<compile_context>
chip_gen: v6e
topology: v6e:2x2x1
jax: 0.10.0
libtpu: 0.0.40
codegen_flags: <defaults>
</compile_context>

<pallas_src>
import functools

import jax
import jax.numpy as jnp
from jax.experimental import pallas as pl
from jax.experimental.pallas import tpu as pltpu

# ------------------------- small synthetic config ---------------------------
IN_DIM = 32
LAYERS = [24, 16]
CODEBOOK_DIM = 8
NUM_LEVELS = 4
CODEBOOK_SIZE = 16
VOCAB = 50                      # items; row 0 of the embedding is the padding row
BETA = 1e-4
QUANT_LOSS_WEIGHT = 1.0
TILE_N = 2048                   # tokens per grid step (lane-dense, multiple of 128)

ENC_DIMS = [IN_DIM] + LAYERS + [CODEBOOK_DIM]   # [32, 24, 16, 8]
DEC_DIMS = ENC_DIMS[::-1]                       # [8, 16, 24, 32]


# ------------------------------- kernel -------------------------------------
def _mlp_T(x, layers):
    """Transposed Linear + ReLU chain (y = W^T @ x + b); no act on last layer.

    Weights arrive in bf16; activations are cast to bf16 at the dot call site,
    accumulation is f32 (preferred_element_type), bias add stays f32.
    """
    n = len(layers)
    for i, (w_t, b) in enumerate(layers):
        x = jnp.dot(w_t, x.astype(w_t.dtype),
                    preferred_element_type=jnp.float32) + b
        if i < n - 1:
            x = jnp.maximum(x, 0.0)
    return x


def rqvae_kernel(*refs, n_enc, n_dec, num_levels, beta):
    # ---- parse refs: inputs then outputs ---------------------------------
    x_in_ref, mask_ref = refs[0], refs[1]
    p = 2
    enc = [(refs[p + 2 * i][...], refs[p + 2 * i + 1][...]) for i in range(n_enc)]
    p += 2 * n_enc
    dec = [(refs[p + 2 * i][...], refs[p + 2 * i + 1][...]) for i in range(n_dec)]
    p += 2 * n_dec
    cb_ref, cbT_ref, c2_ref = refs[p], refs[p + 1], refs[p + 2]
    hard_ref, soft_ref, part_ref = refs[p + 3], refs[p + 4], refs[p + 5]

    x_in = x_in_ref[...]                       # (IN_DIM, T) f32 (wrapper gather)
    mask = mask_ref[...]                       # (1, T)      f32
    T = x_in.shape[1]

    # ------------------------------ encoder -------------------------------
    encoded = _mlp_T(x_in, enc)                                    # (D, T) f32
    D = encoded.shape[0]

    # ---------------------- residual vector quantizer ---------------------
    residual = encoded
    x_q = jnp.zeros_like(encoded)
    qloss_sum = jnp.zeros((1, T), jnp.float32)
    idx_rows = []

    for lvl in range(num_levels):
        cb = cb_ref[lvl]                                           # (K, D) bf16
        cb_t = cbT_ref[lvl]                                        # (D, K) bf16
        c2 = c2_ref[lvl]                                           # (K, 1) f32 (precomputed)
        K = cb.shape[0]

        # squared distance without the per-token ||r||^2 term (cancels in both
        # argmin and softmax).  Distance math stays f32.
        xc = jnp.dot(cb, residual.astype(cb.dtype),
                     preferred_element_type=jnp.float32)           # (K, T)
        dist = c2 - 2.0 * xc                                       # (K, T)

        # argmin over codebook (first minimum, like torch.argmin)
        min_d = jnp.min(dist, axis=0, keepdims=True)               # (1, T)
        kio = jax.lax.broadcasted_iota(jnp.int32, dist.shape, 0)   # (K, T)
        idx = jnp.min(jnp.where(dist <= min_d, kio, K), axis=0,
                      keepdims=True)                               # (1, T) int32

        # hard one-hot lookup through the MXU (one-hot is exact in bf16)
        onehot = (kio == idx).astype(cb_t.dtype)                   # (K, T) bf16
        quantized = jnp.dot(cb_t, onehot,
                            preferred_element_type=jnp.float32)    # (D, T) f32

        # soft probabilities = softmax(-dist); exact reciprocal (probs are a
        # module output, keep them accurate).
        e = jnp.exp(min_d - dist)
        inv = 1.0 / jnp.sum(e, axis=0, keepdims=True)
        prob = e * inv

        # per-level loss computed directly (no x2 + min_d cancellation)
        diff = residual - quantized                                # (D, T)
        qloss_sum = qloss_sum + ((1.0 + beta) / D) * jnp.sum(
            diff * diff, axis=0, keepdims=True)

        idx_rows.append(idx)
        soft_ref[lvl * K:(lvl + 1) * K, :] = prob                  # dense 16-row store

        x_q = x_q + quantized
        residual = diff

    # single batched store of all hard indices (one store instead of 4 masked ones)
    hard_ref[...] = jnp.concatenate(idx_rows, axis=0)              # (L, T) int32

    # ------------------------------ decoder -------------------------------
    decoded = _mlp_T(x_q, dec)                                     # (IN_DIM, T)

    # ----------------------- per-tile loss partials -----------------------
    in_dim = x_in.shape[0]
    recon_per_tok = jnp.sum((decoded - x_in) ** 2, axis=0,
                            keepdims=True) * (1.0 / in_dim)        # (1, T)
    quant_per_tok = qloss_sum * (1.0 / num_levels)                 # (1, T)

    # pack the three per-token rows into one slab, reduce over the lane axis
    # in-kernel (one XLU reduce), emit a tiny (3, 128) partials block.
    slab = jnp.concatenate(
        [recon_per_tok * mask, quant_per_tok * mask, mask], axis=0)  # (3, T)
    sums = jnp.sum(slab, axis=-1, keepdims=True)                     # (3, 1)
    part_ref[0, :, :] = jnp.broadcast_to(sums, (3, 128))


# ------------------------------- wrapper -------------------------------------
def rqvae_forward(x, params, tile_n=TILE_N):
    assert x.dtype in (jnp.int16, jnp.int32, jnp.int64)
    B, L = x.shape
    N = B * L
    n_pad = pl.cdiv(N, tile_n) * tile_n
    num_tiles = n_pad // tile_n

    # tokens on the lane axis; padded ids are 0 -> zero embedding row, masked out
    ids = jnp.pad(x.reshape(N).astype(jnp.int32), (0, n_pad - N))

    # embedding gather in the wrapper (scales to realistic vocabularies);
    # layout: (IN_DIM, n_pad) feature-on-sublane, tokens-on-lane.
    x_in = jnp.take(params["embedding"], ids, axis=0).T.astype(jnp.float32)
    mask = (ids != 0).astype(jnp.float32).reshape(1, n_pad)

    # bf16 matmul operands (f32 accumulation in-kernel); biases / c2 stay f32.
    enc_t = [(w.T.astype(jnp.bfloat16), b.reshape(-1, 1).astype(jnp.float32))
             for w, b in params["enc"]]
    dec_t = [(w.T.astype(jnp.bfloat16), b.reshape(-1, 1).astype(jnp.float32))
             for w, b in params["dec"]]
    cb_f32 = params["codebooks"]                         # (NUM_LEVELS, K, D) f32
    cb = cb_f32.astype(jnp.bfloat16)
    cb_t = jnp.transpose(cb_f32, (0, 2, 1)).astype(jnp.bfloat16)
    c2 = jnp.sum(cb_f32 * cb_f32, axis=-1, keepdims=True)  # (NUM_LEVELS, K, 1) f32

    inputs = [x_in, mask]
    for w, b in enc_t:
        inputs += [w, b]
    for w, b in dec_t:
        inputs += [w, b]
    inputs += [cb, cb_t, c2]

    def resident(shape):
        return pl.BlockSpec(shape, lambda i, s=shape: (0,) * len(s))

    in_specs = [pl.BlockSpec((IN_DIM, tile_n), lambda i: (0, i)),  # x_in: pipelined
                pl.BlockSpec((1, tile_n), lambda i: (0, i))]       # mask: pipelined
    for w, b in enc_t:
        in_specs += [resident(w.shape), resident(b.shape)]
    for w, b in dec_t:
        in_specs += [resident(w.shape), resident(b.shape)]
    in_specs += [resident(cb.shape), resident(cb_t.shape), resident(c2.shape)]

    out_specs = (
        pl.BlockSpec((NUM_LEVELS, tile_n), lambda i: (0, i)),                  # hard_T
        pl.BlockSpec((NUM_LEVELS * CODEBOOK_SIZE, tile_n), lambda i: (0, i)),  # soft_T
        pl.BlockSpec((1, 3, 128), lambda i: (i, 0, 0)),                        # partials
    )

    kernel = functools.partial(
        rqvae_kernel,
        n_enc=len(enc_t),
        n_dec=len(dec_t),
        num_levels=NUM_LEVELS,
        beta=BETA,
    )

    hard_t, soft_t, partials = pl.pallas_call(
        kernel,
        out_shape=(
            jax.ShapeDtypeStruct((NUM_LEVELS, n_pad), jnp.int32),
            jax.ShapeDtypeStruct((NUM_LEVELS * CODEBOOK_SIZE, n_pad), jnp.float32),
            jax.ShapeDtypeStruct((num_tiles, 3, 128), jnp.float32),
        ),
        grid_spec=pltpu.PrefetchScalarGridSpec(
            num_scalar_prefetch=0,
            grid=(num_tiles,),
            in_specs=in_specs,
            out_specs=out_specs,
        ),
        compiler_params=pltpu.CompilerParams(
            dimension_semantics=("parallel",),        # token tiles shard across TCs
            vmem_limit_bytes=32 * 1024 * 1024,        # safe on v5e/v6e/v7x at T=2048
        ),
    )(*inputs)

    # reshape transposed (lane-dense) outputs back to module layout
    hard_indices = hard_t[:, :N].T.reshape(B, L, NUM_LEVELS)
    soft_probs = soft_t[:, :N].T.reshape(B, L, NUM_LEVELS, CODEBOOK_SIZE)

    # finalize masked losses from per-tile partial sums (lane 0 holds the sum)
    recon_num = jnp.sum(partials[:, 0, 0])
    quant_num = jnp.sum(partials[:, 1, 0])
    msum = jnp.sum(partials[:, 2, 0]) + 1e-8
    total_loss = recon_num / msum + QUANT_LOSS_WEIGHT * (quant_num / msum)

    return hard_indices, soft_probs, total_loss


# --------------------------- deterministic params ----------------------------
def init_params(key):
    keys = jax.random.split(key, 32)
    ki = iter(range(32))

    # base embedding: row 0 is the zero padding row (mirrors weights_with_padding)
    emb_body = 0.1 * jax.random.normal(keys[next(ki)], (VOCAB, IN_DIM), jnp.float32)
    embedding = jnp.concatenate([jnp.zeros((1, IN_DIM), jnp.float32), emb_body], axis=0)

    def linear(k, d_in, d_out):
        kw, kb = jax.random.split(k)
        lim = 1.0 / jnp.sqrt(d_in)
        w = jax.random.uniform(kw, (d_in, d_out), jnp.float32, -lim, lim)
        b = jax.random.uniform(kb, (1, d_out), jnp.float32, -lim, lim)
        return w, b

    enc = [linear(keys[next(ki)], ENC_DIMS[i], ENC_DIMS[i + 1])
           for i in range(len(ENC_DIMS) - 1)]
    dec = [linear(keys[next(ki)], DEC_DIMS[i], DEC_DIMS[i + 1])
           for i in range(len(DEC_DIMS) - 1)]

    codebooks = 0.5 * jax.random.normal(
        keys[next(ki)], (NUM_LEVELS, CODEBOOK_SIZE, CODEBOOK_DIM), jnp.float32)

    return {"embedding": embedding, "enc": enc, "dec": dec, "codebooks": codebooks}


# --------------------------------- main ---------------------------------------
if __name__ == "__main__":
    key = jax.random.PRNGKey(0)
    k_param, k_x = jax.random.split(key)

    params = init_params(k_param)
    # token ids in [0, VOCAB]; 0 acts as padding and is masked out of the losses
    x = jax.random.randint(k_x, (2, 8), 0, VOCAB + 1, dtype=jnp.int32)

    hard_indices, soft_probs, total_loss = rqvae_forward(x, params)
    jax.block_until_ready((hard_indices, soft_probs, total_loss))

    assert hard_indices.shape == (2, 8, NUM_LEVELS)
    assert soft_probs.shape == (2, 8, NUM_LEVELS, CODEBOOK_SIZE)
    assert total_loss.shape == ()
    assert bool(jnp.isfinite(total_loss))
    print("KERNEL_OK")
</pallas_src>

<mosaic_0001>
module attributes {stable_mosaic.version = 11 : i64} {
  func.func @rqvae_kernel(%arg0: i32, %arg1: memref<32x2048xf32, #tpu.memory_space<vmem>>, %arg2: memref<1x2048xf32, #tpu.memory_space<vmem>>, %arg3: memref<24x32xbf16, #tpu.memory_space<vmem>>, %arg4: memref<24x1xf32, #tpu.memory_space<vmem>>, %arg5: memref<16x24xbf16, #tpu.memory_space<vmem>>, %arg6: memref<16x1xf32, #tpu.memory_space<vmem>>, %arg7: memref<8x16xbf16, #tpu.memory_space<vmem>>, %arg8: memref<8x1xf32, #tpu.memory_space<vmem>>, %arg9: memref<16x8xbf16, #tpu.memory_space<vmem>>, %arg10: memref<16x1xf32, #tpu.memory_space<vmem>>, %arg11: memref<24x16xbf16, #tpu.memory_space<vmem>>, %arg12: memref<24x1xf32, #tpu.memory_space<vmem>>, %arg13: memref<32x24xbf16, #tpu.memory_space<vmem>>, %arg14: memref<32x1xf32, #tpu.memory_space<vmem>>, %arg15: memref<4x16x8xbf16, #tpu.memory_space<vmem>>, %arg16: memref<4x8x16xbf16, #tpu.memory_space<vmem>>, %arg17: memref<4x16x1xf32, #tpu.memory_space<vmem>>, %arg18: memref<4x2048xi32, #tpu.memory_space<vmem>>, %arg19: memref<64x2048xf32, #tpu.memory_space<vmem>>, %arg20: memref<1x3x128xf32, #tpu.memory_space<vmem>>) attributes {dimension_semantics = [#tpu.dimension_semantics<parallel>], iteration_bounds = array<i64: 1>, scalar_prefetch = 0 : i64, scratch_operands = 0 : i64, tpu.core_type = #tpu.core_type<tc>, window_params = [{transform_indices = @transform_0, window_bounds = array<i64: 32, 2048>}, {transform_indices = @transform_1, window_bounds = array<i64: 1, 2048>}, {pipeline_mode = #tpu.pipeline_mode<synchronous>, transform_indices = @transform_2, window_bounds = array<i64: 24, 32>}, {pipeline_mode = #tpu.pipeline_mode<synchronous>, transform_indices = @transform_3, window_bounds = array<i64: 24, 1>}, {pipeline_mode = #tpu.pipeline_mode<synchronous>, transform_indices = @transform_4, window_bounds = array<i64: 16, 24>}, {pipeline_mode = #tpu.pipeline_mode<synchronous>, transform_indices = @transform_5, window_bounds = array<i64: 16, 1>}, {pipeline_mode = #tpu.pipeline_mode<synchronous>, transform_indices = @transform_6, window_bounds = array<i64: 8, 16>}, {pipeline_mode = #tpu.pipeline_mode<synchronous>, transform_indices = @transform_7, window_bounds = array<i64: 8, 1>}, {pipeline_mode = #tpu.pipeline_mode<synchronous>, transform_indices = @transform_8, window_bounds = array<i64: 16, 8>}, {pipeline_mode = #tpu.pipeline_mode<synchronous>, transform_indices = @transform_9, window_bounds = array<i64: 16, 1>}, {pipeline_mode = #tpu.pipeline_mode<synchronous>, transform_indices = @transform_10, window_bounds = array<i64: 24, 16>}, {pipeline_mode = #tpu.pipeline_mode<synchronous>, transform_indices = @transform_11, window_bounds = array<i64: 24, 1>}, {pipeline_mode = #tpu.pipeline_mode<synchronous>, transform_indices = @transform_12, window_bounds = array<i64: 32, 24>}, {pipeline_mode = #tpu.pipeline_mode<synchronous>, transform_indices = @transform_13, window_bounds = array<i64: 32, 1>}, {pipeline_mode = #tpu.pipeline_mode<synchronous>, transform_indices = @transform_14, window_bounds = array<i64: 4, 16, 8>}, {pipeline_mode = #tpu.pipeline_mode<synchronous>, transform_indices = @transform_15, window_bounds = array<i64: 4, 8, 16>}, {pipeline_mode = #tpu.pipeline_mode<synchronous>, transform_indices = @transform_16, window_bounds = array<i64: 4, 16, 1>}, {transform_indices = @transform_17, window_bounds = array<i64: 4, 2048>}, {transform_indices = @transform_18, window_bounds = array<i64: 64, 2048>}, {transform_indices = @transform_19, window_bounds = array<i64: 1, 3, 128>}]} {
    %c0 = arith.constant 0 : index
    %c0_0 = arith.constant 0 : index
    %0 = vector.load %arg3[%c0, %c0_0] : memref<24x32xbf16, #tpu.memory_space<vmem>>, vector<24x32xbf16>
    %c0_1 = arith.constant 0 : index
    %c0_2 = arith.constant 0 : index
    %1 = vector.load %arg4[%c0_1, %c0_2] : memref<24x1xf32, #tpu.memory_space<vmem>>, vector<24x1xf32>
    %c0_3 = arith.constant 0 : index
    %c0_4 = arith.constant 0 : index
    %2 = vector.load %arg5[%c0_3, %c0_4] : memref<16x24xbf16, #tpu.memory_space<vmem>>, vector<16x24xbf16>
    %c0_5 = arith.constant 0 : index
    %c0_6 = arith.constant 0 : index
    %3 = vector.load %arg6[%c0_5, %c0_6] : memref<16x1xf32, #tpu.memory_space<vmem>>, vector<16x1xf32>
    %c0_7 = arith.constant 0 : index
    %c0_8 = arith.constant 0 : index
    %4 = vector.load %arg7[%c0_7, %c0_8] : memref<8x16xbf16, #tpu.memory_space<vmem>>, vector<8x16xbf16>
    %c0_9 = arith.constant 0 : index
    %c0_10 = arith.constant 0 : index
    %5 = vector.load %arg8[%c0_9, %c0_10] : memref<8x1xf32, #tpu.memory_space<vmem>>, vector<8x1xf32>
    %c0_11 = arith.constant 0 : index
    %c0_12 = arith.constant 0 : index
    %6 = vector.load %arg9[%c0_11, %c0_12] : memref<16x8xbf16, #tpu.memory_space<vmem>>, vector<16x8xbf16>
    %c0_13 = arith.constant 0 : index
    %c0_14 = arith.constant 0 : index
    %7 = vector.load %arg10[%c0_13, %c0_14] : memref<16x1xf32, #tpu.memory_space<vmem>>, vector<16x1xf32>
    %c0_15 = arith.constant 0 : index
    %c0_16 = arith.constant 0 : index
    %8 = vector.load %arg11[%c0_15, %c0_16] : memref<24x16xbf16, #tpu.memory_space<vmem>>, vector<24x16xbf16>
    %c0_17 = arith.constant 0 : index
    %c0_18 = arith.constant 0 : index
    %9 = vector.load %arg12[%c0_17, %c0_18] : memref<24x1xf32, #tpu.memory_space<vmem>>, vector<24x1xf32>
    %c0_19 = arith.constant 0 : index
    %c0_20 = arith.constant 0 : index
    %10 = vector.load %arg13[%c0_19, %c0_20] : memref<32x24xbf16, #tpu.memory_space<vmem>>, vector<32x24xbf16>
    %c0_21 = arith.constant 0 : index
    %c0_22 = arith.constant 0 : index
    %11 = vector.load %arg14[%c0_21, %c0_22] : memref<32x1xf32, #tpu.memory_space<vmem>>, vector<32x1xf32>
    %c0_23 = arith.constant 0 : index
    %c0_24 = arith.constant 0 : index
    %12 = vector.load %arg1[%c0_23, %c0_24] : memref<32x2048xf32, #tpu.memory_space<vmem>>, vector<32x2048xf32>
    %c0_25 = arith.constant 0 : index
    %c0_26 = arith.constant 0 : index
    %13 = vector.load %arg2[%c0_25, %c0_26] : memref<1x2048xf32, #tpu.memory_space<vmem>>, vector<1x2048xf32>
    %14 = arith.truncf %12 : vector<32x2048xf32> to vector<32x2048xbf16>
    %cst = arith.constant dense<0.000000e+00> : vector<24x2048xf32>
    %15 = tpu.matmul %0, %14, %cst {dimension_numbers = #tpu.dot_dimension_numbers<[1], [0], [0], [1], [0, 0, 1, 1], [], []>} : vector<24x32xbf16>, vector<32x2048xbf16>, vector<24x2048xf32> -> vector<24x2048xf32>
    %16 = vector.broadcast %1 : vector<24x1xf32> to vector<24x2048xf32>
    %17 = arith.addf %15, %16 : vector<24x2048xf32>
    %cst_27 = arith.constant 0.000000e+00 : f32
    %18 = vector.broadcast %cst_27 : f32 to vector<24x2048xf32>
    %19 = arith.maximumf %17, %18 : vector<24x2048xf32>
    %20 = arith.truncf %19 : vector<24x2048xf32> to vector<24x2048xbf16>
    %cst_28 = arith.constant dense<0.000000e+00> : vector<16x2048xf32>
    %21 = tpu.matmul %2, %20, %cst_28 {dimension_numbers = #tpu.dot_dimension_numbers<[1], [0], [0], [1], [0, 0, 1, 1], [], []>} : vector<16x24xbf16>, vector<24x2048xbf16>, vector<16x2048xf32> -> vector<16x2048xf32>
    %22 = vector.broadcast %3 : vector<16x1xf32> to vector<16x2048xf32>
    %23 = arith.addf %21, %22 : vector<16x2048xf32>
    %cst_29 = arith.constant 0.000000e+00 : f32
    %24 = vector.broadcast %cst_29 : f32 to vector<16x2048xf32>
    %25 = arith.maximumf %23, %24 : vector<16x2048xf32>
    %26 = arith.truncf %25 : vector<16x2048xf32> to vector<16x2048xbf16>
    %cst_30 = arith.constant dense<0.000000e+00> : vector<8x2048xf32>
    %27 = tpu.matmul %4, %26, %cst_30 {dimension_numbers = #tpu.dot_dimension_numbers<[1], [0], [0], [1], [0, 0, 1, 1], [], []>} : vector<8x16xbf16>, vector<16x2048xbf16>, vector<8x2048xf32> -> vector<8x2048xf32>
    %28 = vector.broadcast %5 : vector<8x1xf32> to vector<8x2048xf32>
    %29 = arith.addf %27, %28 : vector<8x2048xf32>
    %cst_31 = arith.constant 0.000000e+00 : f32
    %30 = vector.broadcast %cst_31 : f32 to vector<8x2048xf32>
    %cst_32 = arith.constant 0.000000e+00 : f32
    %31 = vector.broadcast %cst_32 : f32 to vector<1x2048xf32>
    %c0_33 = arith.constant 0 : index
    %c0_34 = arith.constant 0 : index
    %c0_35 = arith.constant 0 : index
    %32 = vector.load %arg15[%c0_33, %c0_34, %c0_35] : memref<4x16x8xbf16, #tpu.memory_space<vmem>>, vector<1x16x8xbf16>
    %33 = vector.shape_cast %32 : vector<1x16x8xbf16> to vector<16x8xbf16>
    %c0_36 = arith.constant 0 : index
    %c0_37 = arith.constant 0 : index
    %c0_38 = arith.constant 0 : index
    %34 = vector.load %arg16[%c0_36, %c0_37, %c0_38] : memref<4x8x16xbf16, #tpu.memory_space<vmem>>, vector<1x8x16xbf16>
    %35 = vector.shape_cast %34 : vector<1x8x16xbf16> to vector<8x16xbf16>
    %c0_39 = arith.constant 0 : index
    %c0_40 = arith.constant 0 : index
    %c0_41 = arith.constant 0 : index
    %36 = vector.load %arg17[%c0_39, %c0_40, %c0_41] : memref<4x16x1xf32, #tpu.memory_space<vmem>>, vector<1x16x1xf32>
    %37 = vector.shape_cast %36 : vector<1x16x1xf32> to vector<16x1xf32>
    %38 = arith.truncf %29 : vector<8x2048xf32> to vector<8x2048xbf16>
    %cst_42 = arith.constant dense<0.000000e+00> : vector<16x2048xf32>
    %39 = tpu.matmul %33, %38, %cst_42 {dimension_numbers = #tpu.dot_dimension_numbers<[1], [0], [0], [1], [0, 0, 1, 1], [], []>} : vector<16x8xbf16>, vector<8x2048xbf16>, vector<16x2048xf32> -> vector<16x2048xf32>
    %cst_43 = arith.constant 2.000000e+00 : f32
    %40 = vector.broadcast %cst_43 : f32 to vector<16x2048xf32>
    %41 = arith.mulf %40, %39 : vector<16x2048xf32>
    %42 = vector.broadcast %37 : vector<16x1xf32> to vector<16x2048xf32>
    %43 = arith.subf %42, %41 : vector<16x2048xf32>
    %cst_44 = arith.constant dense<0x7F800000> : vector<2048xf32>
    %44 = vector.multi_reduction <minimumf>, %43, %cst_44 [0] : vector<16x2048xf32> to vector<2048xf32>
    %45 = vector.shape_cast %44 : vector<2048xf32> to vector<1x2048xf32>
    %46 = tpu.iota {dimensions = array<i32: 0>} : vector<16x2048xi32>
    %47 = vector.broadcast %45 : vector<1x2048xf32> to vector<16x2048xf32>
    %48 = arith.cmpf ole, %43, %47 : vector<16x2048xf32>
    %c16_i32 = arith.constant 16 : i32
    %49 = vector.broadcast %c16_i32 : i32 to vector<16x2048xi32>
    %50 = arith.select %48, %46, %49 : vector<16x2048xi1>, vector<16x2048xi32>
    %cst_45 = arith.constant dense<2147483647> : vector<2048xi32>
    %51 = vector.multi_reduction <minsi>, %50, %cst_45 [0] : vector<16x2048xi32> to vector<2048xi32>
    %52 = vector.shape_cast %51 : vector<2048xi32> to vector<1x2048xi32>
    %53 = vector.broadcast %52 : vector<1x2048xi32> to vector<16x2048xi32>
    %54 = arith.cmpi eq, %46, %53 : vector<16x2048xi32>
    %55 = arith.extui %54 : vector<16x2048xi1> to vector<16x2048xi32>
    %56 = arith.sitofp %55 : vector<16x2048xi32> to vector<16x2048xf32>
    %57 = arith.truncf %56 : vector<16x2048xf32> to vector<16x2048xbf16>
    %cst_46 = arith.constant dense<0.000000e+00> : vector<8x2048xf32>
    %58 = tpu.matmul %35, %57, %cst_46 {dimension_numbers = #tpu.dot_dimension_numbers<[1], [0], [0], [1], [0, 0, 1, 1], [], []>} : vector<8x16xbf16>, vector<16x2048xbf16>, vector<8x2048xf32> -> vector<8x2048xf32>
    %59 = vector.broadcast %45 : vector<1x2048xf32> to vector<16x2048xf32>
    %60 = arith.subf %59, %43 : vector<16x2048xf32>
    %61 = math.exp %60 : vector<16x2048xf32>
    %cst_47 = arith.constant dense<0.000000e+00> : vector<2048xf32>
    %62 = vector.multi_reduction <add>, %61, %cst_47 [0] : vector<16x2048xf32> to vector<2048xf32>
    %63 = vector.shape_cast %62 : vector<2048xf32> to vector<1x2048xf32>
    %cst_48 = arith.constant 1.000000e+00 : f32
    %64 = vector.broadcast %cst_48 : f32 to vector<1x2048xf32>
    %65 = arith.divf %64, %63 : vector<1x2048xf32>
    %66 = vector.broadcast %65 : vector<1x2048xf32> to vector<16x2048xf32>
    %67 = arith.mulf %61, %66 : vector<16x2048xf32>
    %68 = arith.subf %29, %58 : vector<8x2048xf32>
    %69 = arith.mulf %68, %68 : vector<8x2048xf32>
    %cst_49 = arith.constant dense<0.000000e+00> : vector<2048xf32>
    %70 = vector.multi_reduction <add>, %69, %cst_49 [0] : vector<8x2048xf32> to vector<2048xf32>
    %71 = vector.shape_cast %70 : vector<2048xf32> to vector<1x2048xf32>
    %cst_50 = arith.constant 0.125012502 : f32
    %72 = vector.broadcast %cst_50 : f32 to vector<1x2048xf32>
    %73 = arith.mulf %72, %71 : vector<1x2048xf32>
    %74 = arith.addf %31, %73 : vector<1x2048xf32>
    %c0_51 = arith.constant 0 : index
    %c0_52 = arith.constant 0 : index
    %75 = vector.load %arg19[%c0_51, %c0_52] : memref<64x2048xf32, #tpu.memory_space<vmem>>, vector<16x2048xf32>
    tpu.vector_store %arg19[%c0_51, %c0_52], %67 {strides = array<i32>} : memref<64x2048xf32, #tpu.memory_space<vmem>>, vector<16x2048xf32>,
    %76 = arith.addf %30, %58 : vector<8x2048xf32>
    %c1 = arith.constant 1 : index
    %c0_53 = arith.constant 0 : index
    %c0_54 = arith.constant 0 : index
    %77 = vector.load %arg15[%c1, %c0_53, %c0_54] : memref<4x16x8xbf16, #tpu.memory_space<vmem>>, vector<1x16x8xbf16>
    %78 = vector.shape_cast %77 : vector<1x16x8xbf16> to vector<16x8xbf16>
    %c1_55 = arith.constant 1 : index
    %c0_56 = arith.constant 0 : index
    %c0_57 = arith.constant 0 : index
    %79 = vector.load %arg16[%c1_55, %c0_56, %c0_57] : memref<4x8x16xbf16, #tpu.memory_space<vmem>>, vector<1x8x16xbf16>
    %80 = vector.shape_cast %79 : vector<1x8x16xbf16> to vector<8x16xbf16>
    %c1_58 = arith.constant 1 : index
    %c0_59 = arith.constant 0 : index
    %c0_60 = arith.constant 0 : index
    %81 = vector.load %arg17[%c1_58, %c0_59, %c0_60] : memref<4x16x1xf32, #tpu.memory_space<vmem>>, vector<1x16x1xf32>
    %82 = vector.shape_cast %81 : vector<1x16x1xf32> to vector<16x1xf32>
    %83 = arith.truncf %68 : vector<8x2048xf32> to vector<8x2048xbf16>
    %cst_61 = arith.constant dense<0.000000e+00> : vector<16x2048xf32>
    %84 = tpu.matmul %78, %83, %cst_61 {dimension_numbers = #tpu.dot_dimension_numbers<[1], [0], [0], [1], [0, 0, 1, 1], [], []>} : vector<16x8xbf16>, vector<8x2048xbf16>, vector<16x2048xf32> -> vector<16x2048xf32>
    %cst_62 = arith.constant 2.000000e+00 : f32
    %85 = vector.broadcast %cst_62 : f32 to vector<16x2048xf32>
    %86 = arith.mulf %85, %84 : vector<16x2048xf32>
    %87 = vector.broadcast %82 : vector<16x1xf32> to vector<16x2048xf32>
    %88 = arith.subf %87, %86 : vector<16x2048xf32>
    %cst_63 = arith.constant dense<0x7F800000> : vector<2048xf32>
    %89 = vector.multi_reduction <minimumf>, %88, %cst_63 [0] : vector<16x2048xf32> to vector<2048xf32>
    %90 = vector.shape_cast %89 : vector<2048xf32> to vector<1x2048xf32>
    %91 = tpu.iota {dimensions = array<i32: 0>} : vector<16x2048xi32>
    %92 = vector.broadcast %90 : vector<1x2048xf32> to vector<16x2048xf32>
    %93 = arith.cmpf ole, %88, %92 : vector<16x2048xf32>
    %c16_i32_64 = arith.constant 16 : i32
    %94 = vector.broadcast %c16_i32_64 : i32 to vector<16x2048xi32>
    %95 = arith.select %93, %91, %94 : vector<16x2048xi1>, vector<16x2048xi32>
    %cst_65 = arith.constant dense<2147483647> : vector<2048xi32>
    %96 = vector.multi_reduction <minsi>, %95, %cst_65 [0] : vector<16x2048xi32> to vector<2048xi32>
    %97 = vector.shape_cast %96 : vector<2048xi32> to vector<1x2048xi32>
    %98 = vector.broadcast %97 : vector<1x2048xi32> to vector<16x2048xi32>
    %99 = arith.cmpi eq, %91, %98 : vector<16x2048xi32>
    %100 = arith.extui %99 : vector<16x2048xi1> to vector<16x2048xi32>
    %101 = arith.sitofp %100 : vector<16x2048xi32> to vector<16x2048xf32>
    %102 = arith.truncf %101 : vector<16x2048xf32> to vector<16x2048xbf16>
    %cst_66 = arith.constant dense<0.000000e+00> : vector<8x2048xf32>
    %103 = tpu.matmul %80, %102, %cst_66 {dimension_numbers = #tpu.dot_dimension_numbers<[1], [0], [0], [1], [0, 0, 1, 1], [], []>} : vector<8x16xbf16>, vector<16x2048xbf16>, vector<8x2048xf32> -> vector<8x2048xf32>
    %104 = vector.broadcast %90 : vector<1x2048xf32> to vector<16x2048xf32>
    %105 = arith.subf %104, %88 : vector<16x2048xf32>
    %106 = math.exp %105 : vector<16x2048xf32>
    %cst_67 = arith.constant dense<0.000000e+00> : vector<2048xf32>
    %107 = vector.multi_reduction <add>, %106, %cst_67 [0] : vector<16x2048xf32> to vector<2048xf32>
    %108 = vector.shape_cast %107 : vector<2048xf32> to vector<1x2048xf32>
    %cst_68 = arith.constant 1.000000e+00 : f32
    %109 = vector.broadcast %cst_68 : f32 to vector<1x2048xf32>
    %110 = arith.divf %109, %108 : vector<1x2048xf32>
    %111 = vector.broadcast %110 : vector<1x2048xf32> to vector<16x2048xf32>
    %112 = arith.mulf %106, %111 : vector<16x2048xf32>
    %113 = arith.subf %68, %103 : vector<8x2048xf32>
    %114 = arith.mulf %113, %113 : vector<8x2048xf32>
    %cst_69 = arith.constant dense<0.000000e+00> : vector<2048xf32>
    %115 = vector.multi_reduction <add>, %114, %cst_69 [0] : vector<8x2048xf32> to vector<2048xf32>
    %116 = vector.shape_cast %115 : vector<2048xf32> to vector<1x2048xf32>
    %cst_70 = arith.constant 0.125012502 : f32
    %117 = vector.broadcast %cst_70 : f32 to vector<1x2048xf32>
    %118 = arith.mulf %117, %116 : vector<1x2048xf32>
    %119 = arith.addf %74, %118 : vector<1x2048xf32>
    %c16 = arith.constant 16 : index
    %c0_71 = arith.constant 0 : index
    %120 = vector.load %arg19[%c16, %c0_71] : memref<64x2048xf32, #tpu.memory_space<vmem>>, vector<16x2048xf32>
    tpu.vector_store %arg19[%c16, %c0_71], %112 {strides = array<i32>} : memref<64x2048xf32, #tpu.memory_space<vmem>>, vector<16x2048xf32>,
    %121 = arith.addf %76, %103 : vector<8x2048xf32>
    %c2 = arith.constant 2 : index
    %c0_72 = arith.constant 0 : index
    %c0_73 = arith.constant 0 : index
    %122 = vector.load %arg15[%c2, %c0_72, %c0_73] : memref<4x16x8xbf16, #tpu.memory_space<vmem>>, vector<1x16x8xbf16>
    %123 = vector.shape_cast %122 : vector<1x16x8xbf16> to vector<16x8xbf16>
    %c2_74 = arith.constant 2 : index
    %c0_75 = arith.constant 0 : index
    %c0_76 = arith.constant 0 : index
    %124 = vector.load %arg16[%c2_74, %c0_75, %c0_76] : memref<4x8x16xbf16, #tpu.memory_space<vmem>>, vector<1x8x16xbf16>
    %125 = vector.shape_cast %124 : vector<1x8x16xbf16> to vector<8x16xbf16>
    %c2_77 = arith.constant 2 : index
    %c0_78 = arith.constant 0 : index
    %c0_79 = arith.constant 0 : index
    %126 = vector.load %arg17[%c2_77, %c0_78, %c0_79] : memref<4x16x1xf32, #tpu.memory_space<vmem>>, vector<1x16x1xf32>
    %127 = vector.shape_cast %126 : vector<1x16x1xf32> to vector<16x1xf32>
    %128 = arith.truncf %113 : vector<8x2048xf32> to vector<8x2048xbf16>
    %cst_80 = arith.constant dense<0.000000e+00> : vector<16x2048xf32>
    %129 = tpu.matmul %123, %128, %cst_80 {dimension_numbers = #tpu.dot_dimension_numbers<[1], [0], [0], [1], [0, 0, 1, 1], [], []>} : vector<16x8xbf16>, vector<8x2048xbf16>, vector<16x2048xf32> -> vector<16x2048xf32>
    %cst_81 = arith.constant 2.000000e+00 : f32
    %130 = vector.broadcast %cst_81 : f32 to vector<16x2048xf32>
    %131 = arith.mulf %130, %129 : vector<16x2048xf32>
    %132 = vector.broadcast %127 : vector<16x1xf32> to vector<16x2048xf32>
    %133 = arith.subf %132, %131 : vector<16x2048xf32>
    %cst_82 = arith.constant dense<0x7F800000> : vector<2048xf32>
    %134 = vector.multi_reduction <minimumf>, %133, %cst_82 [0] : vector<16x2048xf32> to vector<2048xf32>
    %135 = vector.shape_cast %134 : vector<2048xf32> to vector<1x2048xf32>
    %136 = tpu.iota {dimensions = array<i32: 0>} : vector<16x2048xi32>
    %137 = vector.broadcast %135 : vector<1x2048xf32> to vector<16x2048xf32>
    %138 = arith.cmpf ole, %133, %137 : vector<16x2048xf32>
    %c16_i32_83 = arith.constant 16 : i32
    %139 = vector.broadcast %c16_i32_83 : i32 to vector<16x2048xi32>
    %140 = arith.select %138, %136, %139 : vector<16x2048xi1>, vector<16x2048xi32>
    %cst_84 = arith.constant dense<2147483647> : vector<2048xi32>
    %141 = vector.multi_reduction <minsi>, %140, %cst_84 [0] : vector<16x2048xi32> to vector<2048xi32>
    %142 = vector.shape_cast %141 : vector<2048xi32> to vector<1x2048xi32>
    %143 = vector.broadcast %142 : vector<1x2048xi32> to vector<16x2048xi32>
    %144 = arith.cmpi eq, %136, %143 : vector<16x2048xi32>
    %145 = arith.extui %144 : vector<16x2048xi1> to vector<16x2048xi32>
    %146 = arith.sitofp %145 : vector<16x2048xi32> to vector<16x2048xf32>
    %147 = arith.truncf %146 : vector<16x2048xf32> to vector<16x2048xbf16>
    %cst_85 = arith.constant dense<0.000000e+00> : vector<8x2048xf32>
    %148 = tpu.matmul %125, %147, %cst_85 {dimension_numbers = #tpu.dot_dimension_numbers<[1], [0], [0], [1], [0, 0, 1, 1], [], []>} : vector<8x16xbf16>, vector<16x2048xbf16>, vector<8x2048xf32> -> vector<8x2048xf32>
    %149 = vector.broadcast %135 : vector<1x2048xf32> to vector<16x2048xf32>
    %150 = arith.subf %149, %133 : vector<16x2048xf32>
    %151 = math.exp %150 : vector<16x2048xf32>
    %cst_86 = arith.constant dense<0.000000e+00> : vector<2048xf32>
    %152 = vector.multi_reduction <add>, %151, %cst_86 [0] : vector<16x2048xf32> to vector<2048xf32>
    %153 = vector.shape_cast %152 : vector<2048xf32> to vector<1x2048xf32>
    %cst_87 = arith.constant 1.000000e+00 : f32
    %154 = vector.broadcast %cst_87 : f32 to vector<1x2048xf32>
    %155 = arith.divf %154, %153 : vector<1x2048xf32>
    %156 = vector.broadcast %155 : vector<1x2048xf32> to vector<16x2048xf32>
    %157 = arith.mulf %151, %156 : vector<16x2048xf32>
    %158 = arith.subf %113, %148 : vector<8x2048xf32>
    %159 = arith.mulf %158, %158 : vector<8x2048xf32>
    %cst_88 = arith.constant dense<0.000000e+00> : vector<2048xf32>
    %160 = vector.multi_reduction <add>, %159, %cst_88 [0] : vector<8x2048xf32> to vector<2048xf32>
    %161 = vector.shape_cast %160 : vector<2048xf32> to vector<1x2048xf32>
    %cst_89 = arith.constant 0.125012502 : f32
    %162 = vector.broadcast %cst_89 : f32 to vector<1x2048xf32>
    %163 = arith.mulf %162, %161 : vector<1x2048xf32>
    %164 = arith.addf %119, %163 : vector<1x2048xf32>
    %c32 = arith.constant 32 : index
    %c0_90 = arith.constant 0 : index
    %165 = vector.load %arg19[%c32, %c0_90] : memref<64x2048xf32, #tpu.memory_space<vmem>>, vector<16x2048xf32>
    tpu.vector_store %arg19[%c32, %c0_90], %157 {strides = array<i32>} : memref<64x2048xf32, #tpu.memory_space<vmem>>, vector<16x2048xf32>,
    %166 = arith.addf %121, %148 : vector<8x2048xf32>
    %c3 = arith.constant 3 : index
    %c0_91 = arith.constant 0 : index
    %c0_92 = arith.constant 0 : index
    %167 = vector.load %arg15[%c3, %c0_91, %c0_92] : memref<4x16x8xbf16, #tpu.memory_space<vmem>>, vector<1x16x8xbf16>
    %168 = vector.shape_cast %167 : vector<1x16x8xbf16> to vector<16x8xbf16>
    %c3_93 = arith.constant 3 : index
    %c0_94 = arith.constant 0 : index
    %c0_95 = arith.constant 0 : index
    %169 = vector.load %arg16[%c3_93, %c0_94, %c0_95] : memref<4x8x16xbf16, #tpu.memory_space<vmem>>, vector<1x8x16xbf16>
    %170 = vector.shape_cast %169 : vector<1x8x16xbf16> to vector<8x16xbf16>
    %c3_96 = arith.constant 3 : index
    %c0_97 = arith.constant 0 : index
    %c0_98 = arith.constant 0 : index
    %171 = vector.load %arg17[%c3_96, %c0_97, %c0_98] : memref<4x16x1xf32, #tpu.memory_space<vmem>>, vector<1x16x1xf32>
    %172 = vector.shape_cast %171 : vector<1x16x1xf32> to vector<16x1xf32>
    %173 = arith.truncf %158 : vector<8x2048xf32> to vector<8x2048xbf16>
    %cst_99 = arith.constant dense<0.000000e+00> : vector<16x2048xf32>
    %174 = tpu.matmul %168, %173, %cst_99 {dimension_numbers = #tpu.dot_dimension_numbers<[1], [0], [0], [1], [0, 0, 1, 1], [], []>} : vector<16x8xbf16>, vector<8x2048xbf16>, vector<16x2048xf32> -> vector<16x2048xf32>
    %cst_100 = arith.constant 2.000000e+00 : f32
    %175 = vector.broadcast %cst_100 : f32 to vector<16x2048xf32>
    %176 = arith.mulf %175, %174 : vector<16x2048xf32>
    %177 = vector.broadcast %172 : vector<16x1xf32> to vector<16x2048xf32>
    %178 = arith.subf %177, %176 : vector<16x2048xf32>
    %cst_101 = arith.constant dense<0x7F800000> : vector<2048xf32>
    %179 = vector.multi_reduction <minimumf>, %178, %cst_101 [0] : vector<16x2048xf32> to vector<2048xf32>
    %180 = vector.shape_cast %179 : vector<2048xf32> to vector<1x2048xf32>
    %181 = tpu.iota {dimensions = array<i32: 0>} : vector<16x2048xi32>
    %182 = vector.broadcast %180 : vector<1x2048xf32> to vector<16x2048xf32>
    %183 = arith.cmpf ole, %178, %182 : vector<16x2048xf32>
    %c16_i32_102 = arith.constant 16 : i32
    %184 = vector.broadcast %c16_i32_102 : i32 to vector<16x2048xi32>
    %185 = arith.select %183, %181, %184 : vector<16x2048xi1>, vector<16x2048xi32>
    %cst_103 = arith.constant dense<2147483647> : vector<2048xi32>
    %186 = vector.multi_reduction <minsi>, %185, %cst_103 [0] : vector<16x2048xi32> to vector<2048xi32>
    %187 = vector.shape_cast %186 : vector<2048xi32> to vector<1x2048xi32>
    %188 = vector.broadcast %187 : vector<1x2048xi32> to vector<16x2048xi32>
    %189 = arith.cmpi eq, %181, %188 : vector<16x2048xi32>
    %190 = arith.extui %189 : vector<16x2048xi1> to vector<16x2048xi32>
    %191 = arith.sitofp %190 : vector<16x2048xi32> to vector<16x2048xf32>
    %192 = arith.truncf %191 : vector<16x2048xf32> to vector<16x2048xbf16>
    %cst_104 = arith.constant dense<0.000000e+00> : vector<8x2048xf32>
    %193 = tpu.matmul %170, %192, %cst_104 {dimension_numbers = #tpu.dot_dimension_numbers<[1], [0], [0], [1], [0, 0, 1, 1], [], []>} : vector<8x16xbf16>, vector<16x2048xbf16>, vector<8x2048xf32> -> vector<8x2048xf32>
    %194 = vector.broadcast %180 : vector<1x2048xf32> to vector<16x2048xf32>
    %195 = arith.subf %194, %178 : vector<16x2048xf32>
    %196 = math.exp %195 : vector<16x2048xf32>
    %cst_105 = arith.constant dense<0.000000e+00> : vector<2048xf32>
    %197 = vector.multi_reduction <add>, %196, %cst_105 [0] : vector<16x2048xf32> to vector<2048xf32>
    %198 = vector.shape_cast %197 : vector<2048xf32> to vector<1x2048xf32>
    %cst_106 = arith.constant 1.000000e+00 : f32
    %199 = vector.broadcast %cst_106 : f32 to vector<1x2048xf32>
    %200 = arith.divf %199, %198 : vector<1x2048xf32>
    %201 = vector.broadcast %200 : vector<1x2048xf32> to vector<16x2048xf32>
    %202 = arith.mulf %196, %201 : vector<16x2048xf32>
    %203 = arith.subf %158, %193 : vector<8x2048xf32>
    %204 = arith.mulf %203, %203 : vector<8x2048xf32>
    %cst_107 = arith.constant dense<0.000000e+00> : vector<2048xf32>
    %205 = vector.multi_reduction <add>, %204, %cst_107 [0] : vector<8x2048xf32> to vector<2048xf32>
    %206 = vector.shape_cast %205 : vector<2048xf32> to vector<1x2048xf32>
    %cst_108 = arith.constant 0.125012502 : f32
    %207 = vector.broadcast %cst_108 : f32 to vector<1x2048xf32>
    %208 = arith.mulf %207, %206 : vector<1x2048xf32>
    %209 = arith.addf %164, %208 : vector<1x2048xf32>
    %c48 = arith.constant 48 : index
    %c0_109 = arith.constant 0 : index
    %210 = vector.load %arg19[%c48, %c0_109] : memref<64x2048xf32, #tpu.memory_space<vmem>>, vector<16x2048xf32>
    tpu.vector_store %arg19[%c48, %c0_109], %202 {strides = array<i32>} : memref<64x2048xf32, #tpu.memory_space<vmem>>, vector<16x2048xf32>,
    %211 = arith.addf %166, %193 : vector<8x2048xf32>
    %212 = tpu.concatenate %52, %97, %142, %187 in 0 : vector<1x2048xi32>, vector<1x2048xi32>, vector<1x2048xi32>, vector<1x2048xi32> -> vector<4x2048xi32>
    %c0_110 = arith.constant 0 : index
    %c0_111 = arith.constant 0 : index
    %213 = vector.load %arg18[%c0_110, %c0_111] : memref<4x2048xi32, #tpu.memory_space<vmem>>, vector<4x2048xi32>
    tpu.vector_store %arg18[%c0_110, %c0_111], %212 {strides = array<i32>} : memref<4x2048xi32, #tpu.memory_space<vmem>>, vector<4x2048xi32>,
    %214 = arith.truncf %211 : vector<8x2048xf32> to vector<8x2048xbf16>
    %cst_112 = arith.constant dense<0.000000e+00> : vector<16x2048xf32>
    %215 = tpu.matmul %6, %214, %cst_112 {dimension_numbers = #tpu.dot_dimension_numbers<[1], [0], [0], [1], [0, 0, 1, 1], [], []>} : vector<16x8xbf16>, vector<8x2048xbf16>, vector<16x2048xf32> -> vector<16x2048xf32>
    %216 = vector.broadcast %7 : vector<16x1xf32> to vector<16x2048xf32>
    %217 = arith.addf %215, %216 : vector<16x2048xf32>
    %cst_113 = arith.constant 0.000000e+00 : f32
    %218 = vector.broadcast %cst_113 : f32 to vector<16x2048xf32>
    %219 = arith.maximumf %217, %218 : vector<16x2048xf32>
    %220 = arith.truncf %219 : vector<16x2048xf32> to vector<16x2048xbf16>
    %cst_114 = arith.constant dense<0.000000e+00> : vector<24x2048xf32>
    %221 = tpu.matmul %8, %220, %cst_114 {dimension_numbers = #tpu.dot_dimension_numbers<[1], [0], [0], [1], [0, 0, 1, 1], [], []>} : vector<24x16xbf16>, vector<16x2048xbf16>, vector<24x2048xf32> -> vector<24x2048xf32>
    %222 = vector.broadcast %9 : vector<24x1xf32> to vector<24x2048xf32>
    %223 = arith.addf %221, %222 : vector<24x2048xf32>
    %cst_115 = arith.constant 0.000000e+00 : f32
    %224 = vector.broadcast %cst_115 : f32 to vector<24x2048xf32>
    %225 = arith.maximumf %223, %224 : vector<24x2048xf32>
    %226 = arith.truncf %225 : vector<24x2048xf32> to vector<24x2048xbf16>
    %cst_116 = arith.constant dense<0.000000e+00> : vector<32x2048xf32>
    %227 = tpu.matmul %10, %226, %cst_116 {dimension_numbers = #tpu.dot_dimension_numbers<[1], [0], [0], [1], [0, 0, 1, 1], [], []>} : vector<32x24xbf16>, vector<24x2048xbf16>, vector<32x2048xf32> -> vector<32x2048xf32>
    %228 = vector.broadcast %11 : vector<32x1xf32> to vector<32x2048xf32>
    %229 = arith.addf %227, %228 : vector<32x2048xf32>
    %230 = arith.subf %229, %12 : vector<32x2048xf32>
    %231 = arith.mulf %230, %230 : vector<32x2048xf32>
    %cst_117 = arith.constant dense<0.000000e+00> : vector<2048xf32>
    %232 = vector.multi_reduction <add>, %231, %cst_117 [0] : vector<32x2048xf32> to vector<2048xf32>
    %233 = vector.shape_cast %232 : vector<2048xf32> to vector<1x2048xf32>
    %cst_118 = arith.constant 3.125000e-02 : f32
    %234 = vector.broadcast %cst_118 : f32 to vector<1x2048xf32>
    %235 = arith.mulf %233, %234 : vector<1x2048xf32>
    %cst_119 = arith.constant 2.500000e-01 : f32
    %236 = vector.broadcast %cst_119 : f32 to vector<1x2048xf32>
    %237 = arith.mulf %209, %236 : vector<1x2048xf32>
    %238 = arith.mulf %235, %13 : vector<1x2048xf32>
    %239 = arith.mulf %237, %13 : vector<1x2048xf32>
    %240 = tpu.concatenate %238, %239, %13 in 0 : vector<1x2048xf32>, vector<1x2048xf32>, vector<1x2048xf32> -> vector<3x2048xf32>
    %cst_120 = arith.constant dense<0.000000e+00> : vector<3xf32>
    %241 = vector.multi_reduction <add>, %240, %cst_120 [1] : vector<3x2048xf32> to vector<3xf32>
    %242 = vector.shape_cast %241 : vector<3xf32> to vector<3x1xf32>
    %243 = vector.shape_cast %242 : vector<3x1xf32> to vector<3x1xf32>
    %244 = vector.broadcast %243 : vector<3x1xf32> to vector<3x128xf32>
    %c0_121 = arith.constant 0 : index
    %c0_122 = arith.constant 0 : index
    %c0_123 = arith.constant 0 : index
    %245 = vector.load %arg20[%c0_121, %c0_122, %c0_123] : memref<1x3x128xf32, #tpu.memory_space<vmem>>, vector<1x3x128xf32>
    %246 = vector.shape_cast %245 : vector<1x3x128xf32> to vector<3x128xf32>
    %247 = vector.shape_cast %244 : vector<3x128xf32> to vector<1x3x128xf32>
    tpu.vector_store %arg20[%c0_121, %c0_122, %c0_123], %247 {strides = array<i32>} : memref<1x3x128xf32, #tpu.memory_space<vmem>>, vector<1x3x128xf32>,
    return
  }
  func.func @transform_0(%arg0: i32) -> (i32, i32) {
    %c0_i32 = arith.constant 0 : i32
    %c0_i32_0 = arith.constant 0 : i32
    return %c0_i32, %arg0 : i32, i32
  }
  func.func @transform_1(%arg0: i32) -> (i32, i32) {
    %c0_i32 = arith.constant 0 : i32
    %c0_i32_0 = arith.constant 0 : i32
    return %c0_i32, %arg0 : i32, i32
  }
  func.func @transform_2(%arg0: i32) -> (i32, i32) {
    %c0_i32 = arith.constant 0 : i32
    %c0_i32_0 = arith.constant 0 : i32
    %c0_i32_1 = arith.constant 0 : i32
    return %c0_i32, %c0_i32_0 : i32, i32
  }
  func.func @transform_3(%arg0: i32) -> (i32, i32) {
    %c0_i32 = arith.constant 0 : i32
    %c0_i32_0 = arith.constant 0 : i32
    %c0_i32_1 = arith.constant 0 : i32
    return %c0_i32, %c0_i32_0 : i32, i32
  }
  func.func @transform_4(%arg0: i32) -> (i32, i32) {
    %c0_i32 = arith.constant 0 : i32
    %c0_i32_0 = arith.constant 0 : i32
    %c0_i32_1 = arith.constant 0 : i32
    return %c0_i32, %c0_i32_0 : i32, i32
  }
  func.func @transform_5(%arg0: i32) -> (i32, i32) {
    %c0_i32 = arith.constant 0 : i32
    %c0_i32_0 = arith.constant 0 : i32
    %c0_i32_1 = arith.constant 0 : i32
    return %c0_i32, %c0_i32_0 : i32, i32
  }
  func.func @transform_6(%arg0: i32) -> (i32, i32) {
    %c0_i32 = arith.constant 0 : i32
    %c0_i32_0 = arith.constant 0 : i32
    %c0_i32_1 = arith.constant 0 : i32
    return %c0_i32, %c0_i32_0 : i32, i32
  }
  func.func @transform_7(%arg0: i32) -> (i32, i32) {
    %c0_i32 = arith.constant 0 : i32
    %c0_i32_0 = arith.constant 0 : i32
    %c0_i32_1 = arith.constant 0 : i32
    return %c0_i32, %c0_i32_0 : i32, i32
  }
  func.func @transform_8(%arg0: i32) -> (i32, i32) {
    %c0_i32 = arith.constant 0 : i32
    %c0_i32_0 = arith.constant 0 : i32
    %c0_i32_1 = arith.constant 0 : i32
    return %c0_i32, %c0_i32_0 : i32, i32
  }
  func.func @transform_9(%arg0: i32) -> (i32, i32) {
    %c0_i32 = arith.constant 0 : i32
    %c0_i32_0 = arith.constant 0 : i32
    %c0_i32_1 = arith.constant 0 : i32
    return %c0_i32, %c0_i32_0 : i32, i32
  }
  func.func @transform_10(%arg0: i32) -> (i32, i32) {
    %c0_i32 = arith.constant 0 : i32
    %c0_i32_0 = arith.constant 0 : i32
    %c0_i32_1 = arith.constant 0 : i32
    return %c0_i32, %c0_i32_0 : i32, i32
  }
  func.func @transform_11(%arg0: i32) -> (i32, i32) {
    %c0_i32 = arith.constant 0 : i32
    %c0_i32_0 = arith.constant 0 : i32
    %c0_i32_1 = arith.constant 0 : i32
    return %c0_i32, %c0_i32_0 : i32, i32
  }
  func.func @transform_12(%arg0: i32) -> (i32, i32) {
    %c0_i32 = arith.constant 0 : i32
    %c0_i32_0 = arith.constant 0 : i32
    %c0_i32_1 = arith.constant 0 : i32
    return %c0_i32, %c0_i32_0 : i32, i32
  }
  func.func @transform_13(%arg0: i32) -> (i32, i32) {
    %c0_i32 = arith.constant 0 : i32
    %c0_i32_0 = arith.constant 0 : i32
    %c0_i32_1 = arith.constant 0 : i32
    return %c0_i32, %c0_i32_0 : i32, i32
  }
  func.func @transform_14(%arg0: i32) -> (i32, i32, i32) {
    %c0_i32 = arith.constant 0 : i32
    %c0_i32_0 = arith.constant 0 : i32
    %c0_i32_1 = arith.constant 0 : i32
    %c0_i32_2 = arith.constant 0 : i32
    return %c0_i32, %c0_i32_0, %c0_i32_1 : i32, i32, i32
  }
  func.func @transform_15(%arg0: i32) -> (i32, i32, i32) {
    %c0_i32 = arith.constant 0 : i32
    %c0_i32_0 = arith.constant 0 : i32
    %c0_i32_1 = arith.constant 0 : i32
    %c0_i32_2 = arith.constant 0 : i32
    return %c0_i32, %c0_i32_0, %c0_i32_1 : i32, i32, i32
  }
  func.func @transform_16(%arg0: i32) -> (i32, i32, i32) {
    %c0_i32 = arith.constant 0 : i32
    %c0_i32_0 = arith.constant 0 : i32
    %c0_i32_1 = arith.constant 0 : i32
    %c0_i32_2 = arith.constant 0 : i32
    return %c0_i32, %c0_i32_0, %c0_i32_1 : i32, i32, i32
  }
  func.func @transform_17(%arg0: i32) -> (i32, i32) {
    %c0_i32 = arith.constant 0 : i32
    %c0_i32_0 = arith.constant 0 : i32
    return %c0_i32, %arg0 : i32, i32
  }
  func.func @transform_18(%arg0: i32) -> (i32, i32) {
    %c0_i32 = arith.constant 0 : i32
    %c0_i32_0 = arith.constant 0 : i32
    return %c0_i32, %arg0 : i32, i32
  }
  func.func @transform_19(%arg0: i32) -> (i32, i32, i32) {
    %c0_i32 = arith.constant 0 : i32
    %c0_i32_0 = arith.constant 0 : i32
    %c0_i32_1 = arith.constant 0 : i32
    return %arg0, %c0_i32, %c0_i32_0 : i32, i32, i32
  }
}

</mosaic_0001>

<llo_original>
// kernel: tpu_custom_call.1
$region0: #{tpu_custom_call.1}
  #allocation0 [shape = 'u32[]', space=smem, size = 0x4, offset = 0x4, fixed_abs, tag = 'smem constant byte address 0x4 - core index']
  #allocation1 [shape = 'u32[144,128]{1,0:T(1,128)}', space=vmem, size = 0x12000, scoped, tag = 'internal scratch']
  %s0 = inlined_call_operand.hbm [shape: f32[32,2048], index: 0, kind: input, shape index: {}]
  %s1 = inlined_call_operand.vmem [shape: f32[1,2048], index: 1, kind: input, shape index: {}]
  %s2 = inlined_call_operand.vmem [shape: bf16[24,32], index: 2, kind: input, shape index: {}]
  %s3 = inlined_call_operand.vmem [shape: f32[24,1], index: 3, kind: input, shape index: {}]
  %s4 = inlined_call_operand.vmem [shape: bf16[16,24], index: 4, kind: input, shape index: {}]
  %s5 = inlined_call_operand.vmem [shape: f32[16,1], index: 5, kind: input, shape index: {}]
  %s6 = inlined_call_operand.vmem [shape: bf16[8,16], index: 6, kind: input, shape index: {}]
  %s7 = inlined_call_operand.vmem [shape: f32[8,1], index: 7, kind: input, shape index: {}]
  %s8 = inlined_call_operand.vmem [shape: bf16[16,8], index: 8, kind: input, shape index: {}]
  %s9 = inlined_call_operand.vmem [shape: f32[16,1], index: 9, kind: input, shape index: {}]
  %s10 = inlined_call_operand.vmem [shape: bf16[24,16], index: 10, kind: input, shape index: {}]
  %s11 = inlined_call_operand.vmem [shape: f32[24,1], index: 11, kind: input, shape index: {}]
  %s12 = inlined_call_operand.vmem [shape: bf16[32,24], index: 12, kind: input, shape index: {}]
  %s13 = inlined_call_operand.vmem [shape: f32[32,1], index: 13, kind: input, shape index: {}]
  %s14 = inlined_call_operand.vmem [shape: bf16[4,16,8], index: 14, kind: input, shape index: {}]
  %s15 = inlined_call_operand.vmem [shape: bf16[4,8,16], index: 15, kind: input, shape index: {}]
  %s16 = inlined_call_operand.vmem [shape: f32[4,16,1], index: 16, kind: input, shape index: {}]
  %s17 = inlined_call_operand.hbm [shape: s32[4,2048], index: 17, kind: output, shape index: {0}]
  %s18 = inlined_call_operand.hbm [shape: f32[64,2048], index: 18, kind: output, shape index: {1}]
  %s19 = inlined_call_operand.vmem [shape: f32[1,3,128], index: 19, kind: output, shape index: {2}]
  %20 = xla_tuple %s17, %s18, %s19
  %s21 = sld [smem:[#allocation0]]
  $region98: #{tpu_custom_call.1} parent=0
    _
  %s23 = ssub.s32 1, %s21
  %s24 = scalar_select 0, %s23, %s21
  $region1: #{tpu_custom_call.1} parent=0
    #allocation2 [shape = 'u8[262144]{0}', space=vmem, size = 0x40000, scoped, tag = 'input window, operand 0, single buffered']
    #allocation3 [shape = 's32[1]{0}', space=sflag, size = 0x4, scoped, tag = 'scoped memory for tpu_custom_call.1']
    #allocation4 [shape = 's32[1]{0}', space=sflag, size = 0x4, scoped, tag = 'scoped memory for tpu_custom_call.1']
    #allocation5 [shape = 'u8[32768]{0}', space=vmem, size = 0x8000, scoped, tag = 'output window, operand 0, single buffered']
    #allocation6 [shape = 'u8[524288]{0}', space=vmem, size = 0x80000, scoped, tag = 'output window, operand 1, single buffered']
    #allocation7 [shape = 's32[1]{0}', space=sflag, size = 0x4, scoped, tag = 'scoped memory for tpu_custom_call.1']
    %25 = vsyncpa [#allocation3], 0
    %26 = vsyncpa [#allocation4], 0
    %27 = vsyncpa [#allocation7], 0
    // Predicated region
    $region2: #{tpu_custom_call.1} parent=1 // pred_check
      _
    $region3: #{tpu_custom_call.1} parent=1 // pred_check_branch
      %29 = sbr.rel (0) target = $region5
    $region4: #{tpu_custom_call.1} parent=1 // pred_region
      %s31 = ssub.s32 8192, 8192
      %32 = vsyncadd [#allocation3], %s31
      %s33 = sshll.u32 [#allocation2], 4
      %s34 = int_to_ptr.vmem [resolvable:$true] %s33
      %39 = dma.hbm_to_vmem [thread:$0]  %s0, 8192, %s34, [#allocation3], 2048, 2048, 128
    $region5: #{tpu_custom_call.1} parent=1 // pred_fallthru
      _
    // Predicated region
    $region6: #{tpu_custom_call.1} parent=1 // pred_check
      _
    $region7: #{tpu_custom_call.1} parent=1 // pred_check_branch
      %41 = sbr.rel (0) target = $region9
    $region8: #{tpu_custom_call.1} parent=1 // pred_region
      _
    $region9: #{tpu_custom_call.1} parent=1 // pred_fallthru
      _
    // Predicated region
    $region10: #{tpu_custom_call.1} parent=1 // pred_check
      _
    $region11: #{tpu_custom_call.1} parent=1 // pred_check_branch
      %43 = sbr.rel (0) target = $region13
    $region12: #{tpu_custom_call.1} parent=1 // pred_region
      _
    $region13: #{tpu_custom_call.1} parent=1 // pred_fallthru
      _
    // Predicated region
    $region14: #{tpu_custom_call.1} parent=1 // pred_check
      _
    $region15: #{tpu_custom_call.1} parent=1 // pred_check_branch
      %45 = sbr.rel (0) target = $region17
    $region16: #{tpu_custom_call.1} parent=1 // pred_region
      _
    $region17: #{tpu_custom_call.1} parent=1 // pred_fallthru
      _
    // Predicated region
    $region18: #{tpu_custom_call.1} parent=1 // pred_check
      _
    $region19: #{tpu_custom_call.1} parent=1 // pred_check_branch
      %47 = sbr.rel (0) target = $region21
    $region20: #{tpu_custom_call.1} parent=1 // pred_region
      _
    $region21: #{tpu_custom_call.1} parent=1 // pred_fallthru
      _
    // Predicated region
    $region22: #{tpu_custom_call.1} parent=1 // pred_check
      _
    $region23: #{tpu_custom_call.1} parent=1 // pred_check_branch
      %49 = sbr.rel (0) target = $region25
    $region24: #{tpu_custom_call.1} parent=1 // pred_region
      _
    $region25: #{tpu_custom_call.1} parent=1 // pred_fallthru
      _
    // Predicated region
    $region26: #{tpu_custom_call.1} parent=1 // pred_check
      _
    $region27: #{tpu_custom_call.1} parent=1 // pred_check_branch
      %51 = sbr.rel (0) target = $region29
    $region28: #{tpu_custom_call.1} parent=1 // pred_region
      _
    $region29: #{tpu_custom_call.1} parent=1 // pred_fallthru
      _
    // Predicated region
    $region30: #{tpu_custom_call.1} parent=1 // pred_check
      _
    $region31: #{tpu_custom_call.1} parent=1 // pred_check_branch
      %53 = sbr.rel (0) target = $region33
    $region32: #{tpu_custom_call.1} parent=1 // pred_region
      _
    $region33: #{tpu_custom_call.1} parent=1 // pred_fallthru
      _
    // Predicated region
    $region34: #{tpu_custom_call.1} parent=1 // pred_check
      _
    $region35: #{tpu_custom_call.1} parent=1 // pred_check_branch
      %55 = sbr.rel (0) target = $region37
    $region36: #{tpu_custom_call.1} parent=1 // pred_region
      _
    $region37: #{tpu_custom_call.1} parent=1 // pred_fallthru
      _
    // Predicated region
    $region38: #{tpu_custom_call.1} parent=1 // pred_check
      _
    $region39: #{tpu_custom_call.1} parent=1 // pred_check_branch
      %57 = sbr.rel (0) target = $region41
    $region40: #{tpu_custom_call.1} parent=1 // pred_region
      _
    $region41: #{tpu_custom_call.1} parent=1 // pred_fallthru
      _
    // Predicated region
    $region42: #{tpu_custom_call.1} parent=1 // pred_check
      _
    $region43: #{tpu_custom_call.1} parent=1 // pred_check_branch
      %59 = sbr.rel (0) target = $region45
    $region44: #{tpu_custom_call.1} parent=1 // pred_region
      _
    $region45: #{tpu_custom_call.1} parent=1 // pred_fallthru
      _
    // Predicated region
    $region46: #{tpu_custom_call.1} parent=1 // pred_check
      _
    $region47: #{tpu_custom_call.1} parent=1 // pred_check_branch
      %61 = sbr.rel (0) target = $region49
    $region48: #{tpu_custom_call.1} parent=1 // pred_region
      _
    $region49: #{tpu_custom_call.1} parent=1 // pred_fallthru
      _
    // Predicated region
    $region50: #{tpu_custom_call.1} parent=1 // pred_check
      _
    $region51: #{tpu_custom_call.1} parent=1 // pred_check_branch
      %63 = sbr.rel (0) target = $region53
    $region52: #{tpu_custom_call.1} parent=1 // pred_region
      _
    $region53: #{tpu_custom_call.1} parent=1 // pred_fallthru
      _
    // Predicated region
    $region54: #{tpu_custom_call.1} parent=1 // pred_check
      _
    $region55: #{tpu_custom_call.1} parent=1 // pred_check_branch
      %65 = sbr.rel (0) target = $region57
    $region56: #{tpu_custom_call.1} parent=1 // pred_region
      _
    $region57: #{tpu_custom_call.1} parent=1 // pred_fallthru
      _
    // Predicated region
    $region58: #{tpu_custom_call.1} parent=1 // pred_check
      _
    $region59: #{tpu_custom_call.1} parent=1 // pred_check_branch
      %67 = sbr.rel (0) target = $region61
    $region60: #{tpu_custom_call.1} parent=1 // pred_region
      _
    $region61: #{tpu_custom_call.1} parent=1 // pred_fallthru
      _
    // Predicated region
    $region62: #{tpu_custom_call.1} parent=1 // pred_check
      _
    $region63: #{tpu_custom_call.1} parent=1 // pred_check_branch
      %69 = sbr.rel (0) target = $region65
    $region64: #{tpu_custom_call.1} parent=1 // pred_region
      _
    $region65: #{tpu_custom_call.1} parent=1 // pred_fallthru
      _
    // Predicated region
    $region66: #{tpu_custom_call.1} parent=1 // pred_check
      _
    $region67: #{tpu_custom_call.1} parent=1 // pred_check_branch
      %71 = sbr.rel (0) target = $region69
    $region68: #{tpu_custom_call.1} parent=1 // pred_region
      _
    $region69: #{tpu_custom_call.1} parent=1 // pred_fallthru
      _
    // Predicated region
    $region70: #{tpu_custom_call.1} parent=1 // pred_check
      _
    $region71: #{tpu_custom_call.1} parent=1 // pred_check_branch
      %73 = sbr.rel (0) target = $region73
    $region72: #{tpu_custom_call.1} parent=1 // pred_region
      %74 = dma.done [#allocation3], 8192
    $region73: #{tpu_custom_call.1} parent=1 // pred_fallthru
      _
    %v76 = vld [vmem:[%s2] sm:$0xf]
    %v77 = vld [vmem:[%s2 + $0x4] sm:$0xf]
    %v78 = vld [vmem:[%s2 + $0x8] sm:$0xf]
    %v79 = vld [vmem:[%s3] sm:$0xff]
    %v80 = vld [vmem:[%s3 + $0x8] sm:$0xff]
    %v81 = vld [vmem:[%s3 + $0x10] sm:$0xff]
    %v82 = vld [vmem:[%s4] sm:$0xf]
    %v83 = vld [vmem:[%s4 + $0x4] sm:$0xf]
    %v84 = vld [vmem:[%s5] sm:$0xff]
    %v85 = vld [vmem:[%s5 + $0x8] sm:$0xff]
    %v86 = vld [vmem:[%s6] sm:$0xf]
    %v87 = vld [vmem:[%s7] sm:$0xff]
    %v88 = vld [vmem:[%s8] sm:$0xf]
    %v89 = vld [vmem:[%s8 + $0x4] sm:$0xf]
    %v90 = vld [vmem:[%s9] sm:$0xff]
    %v91 = vld [vmem:[%s9 + $0x8] sm:$0xff]
    %v92 = vld [vmem:[%s10] sm:$0xf]
    %v93 = vld [vmem:[%s10 + $0x4] sm:$0xf]
    %v94 = vld [vmem:[%s10 + $0x8] sm:$0xf]
    %v95 = vld [vmem:[%s11] sm:$0xff]
    %v96 = vld [vmem:[%s11 + $0x8] sm:$0xff]
    %v97 = vld [vmem:[%s11 + $0x10] sm:$0xff]
    %v98 = vld [vmem:[%s12] sm:$0xf]
    %v99 = vld [vmem:[%s12 + $0x4] sm:$0xf]
    %v100 = vld [vmem:[%s12 + $0x8] sm:$0xf]
    %v101 = vld [vmem:[%s12 + $0xc] sm:$0xf]
    %v102 = vld [vmem:[%s13] sm:$0xff]
    %v103 = vld [vmem:[%s13 + $0x8] sm:$0xff]
    %v104 = vld [vmem:[%s13 + $0x10] sm:$0xff]
    %v105 = vld [vmem:[%s13 + $0x18] sm:$0xff]
    %v106 = vld [vmem:[#allocation2] sm:$0xff]
    %v107 = vld [vmem:[#allocation2 + $0x8] sm:$0xff]
    %v108 = vld [vmem:[#allocation2 + $0x10] sm:$0xff]
    %v109 = vld [vmem:[#allocation2 + $0x18] sm:$0xff]
    %v110 = vld [vmem:[#allocation2 + $0x20] sm:$0xff]
    %v111 = vld [vmem:[#allocation2 + $0x28] sm:$0xff]
    %v112 = vld [vmem:[#allocation2 + $0x30] sm:$0xff]
    %v113 = vld [vmem:[#allocation2 + $0x38] sm:$0xff]
    %v114 = vld [vmem:[#allocation2 + $0x40] sm:$0xff]
    %v115 = vld [vmem:[#allocation2 + $0x48] sm:$0xff]
    %v116 = vld [vmem:[#allocation2 + $0x50] sm:$0xff]
    %v117 = vld [vmem:[#allocation2 + $0x58] sm:$0xff]
    %v118 = vld [vmem:[#allocation2 + $0x60] sm:$0xff]
    %v119 = vld [vmem:[#allocation2 + $0x68] sm:$0xff]
    %v120 = vld [vmem:[#allocation2 + $0x70] sm:$0xff]
    %v121 = vld [vmem:[#allocation2 + $0x78] sm:$0xff]
    %v122 = vld [vmem:[#allocation2 + $0x80] sm:$0xff]
    %v123 = vld [vmem:[#allocation2 + $0x88] sm:$0xff]
    %v124 = vld [vmem:[#allocation2 + $0x90] sm:$0xff]
    %v125 = vld [vmem:[#allocation2 + $0x98] sm:$0xff]
    %v126 = vld [vmem:[#allocation2 + $0xa0] sm:$0xff]
    %v127 = vld [vmem:[#allocation2 + $0xa8] sm:$0xff]
    %v128 = vld [vmem:[#allocation2 + $0xb0] sm:$0xff]
    %v129 = vld [vmem:[#allocation2 + $0xb8] sm:$0xff]
    %v130 = vld [vmem:[#allocation2 + $0xc0] sm:$0xff]
    %v131 = vld [vmem:[#allocation2 + $0xc8] sm:$0xff]
    %v132 = vld [vmem:[#allocation2 + $0xd0] sm:$0xff]
    %v133 = vld [vmem:[#allocation2 + $0xd8] sm:$0xff]
    %v134 = vld [vmem:[#allocation2 + $0xe0] sm:$0xff]
    %v135 = vld [vmem:[#allocation2 + $0xe8] sm:$0xff]
    %v136 = vld [vmem:[#allocation2 + $0xf0] sm:$0xff]
    %v137 = vld [vmem:[#allocation2 + $0xf8] sm:$0xff]
    %v138 = vld [vmem:[#allocation2 + $0x100] sm:$0xff]
    %v139 = vld [vmem:[#allocation2 + $0x108] sm:$0xff]
    %v140 = vld [vmem:[#allocation2 + $0x110] sm:$0xff]
    %v141 = vld [vmem:[#allocation2 + $0x118] sm:$0xff]
    %v142 = vld [vmem:[#allocation2 + $0x120] sm:$0xff]
    %v143 = vld [vmem:[#allocation2 + $0x128] sm:$0xff]
    %v144 = vld [vmem:[#allocation2 + $0x130] sm:$0xff]
    %v145 = vld [vmem:[#allocation2 + $0x138] sm:$0xff]
    %v146 = vld [vmem:[#allocation2 + $0x140] sm:$0xff]
    %v147 = vld [vmem:[#allocation2 + $0x148] sm:$0xff]
    %v148 = vld [vmem:[#allocation2 + $0x150] sm:$0xff]
    %v149 = vld [vmem:[#allocation2 + $0x158] sm:$0xff]
    %v150 = vld [vmem:[#allocation2 + $0x160] sm:$0xff]
    %v151 = vld [vmem:[#allocation2 + $0x168] sm:$0xff]
    %v152 = vld [vmem:[#allocation2 + $0x170] sm:$0xff]
    %v153 = vld [vmem:[#allocation2 + $0x178] sm:$0xff]
    %v154 = vld [vmem:[#allocation2 + $0x180] sm:$0xff]
    %v155 = vld [vmem:[#allocation2 + $0x188] sm:$0xff]
    %v156 = vld [vmem:[#allocation2 + $0x190] sm:$0xff]
    %v157 = vld [vmem:[#allocation2 + $0x198] sm:$0xff]
    %v158 = vld [vmem:[#allocation2 + $0x1a0] sm:$0xff]
    %v159 = vld [vmem:[#allocation2 + $0x1a8] sm:$0xff]
    %v160 = vld [vmem:[#allocation2 + $0x1b0] sm:$0xff]
    %v161 = vld [vmem:[#allocation2 + $0x1b8] sm:$0xff]
    %v162 = vld [vmem:[#allocation2 + $0x1c0] sm:$0xff]
    %v163 = vld [vmem:[#allocation2 + $0x1c8] sm:$0xff]
    %v164 = vld [vmem:[#allocation2 + $0x1d0] sm:$0xff]
    %v165 = vld [vmem:[#allocation2 + $0x1d8] sm:$0xff]
    %v166 = vld [vmem:[#allocation2 + $0x1e0] sm:$0xff]
    %v167 = vld [vmem:[#allocation2 + $0x1e8] sm:$0xff]
    %v168 = vld [vmem:[#allocation2 + $0x1f0] sm:$0xff]
    %v169 = vld [vmem:[#allocation2 + $0x1f8] sm:$0xff]
    %v170 = vld [vmem:[%s1] sm:$0xff]
    %v171 = vld [vmem:[%s1 + $0x8] sm:$0xff]
    %v172 = vpack.c.bf16 %v122, %v106
    %v173 = vpack.c.bf16 %v123, %v107
    %v174 = vpack.c.bf16 %v124, %v108
    %v175 = vpack.c.bf16 %v125, %v109
    %v176 = vpack.c.bf16 %v126, %v110
    %v177 = vpack.c.bf16 %v127, %v111
    %v178 = vpack.c.bf16 %v128, %v112
    %v179 = vpack.c.bf16 %v129, %v113
    %v180 = vpack.c.bf16 %v130, %v114
    %v181 = vpack.c.bf16 %v131, %v115
    %v182 = vpack.c.bf16 %v132, %v116
    %v183 = vpack.c.bf16 %v133, %v117
    %v184 = vpack.c.bf16 %v134, %v118
    %v185 = vpack.c.bf16 %v135, %v119
    %v186 = vpack.c.bf16 %v136, %v120
    %v187 = vpack.c.bf16 %v137, %v121
    %v188 = vpack.c.bf16 %v154, %v138
    %v189 = vpack.c.bf16 %v155, %v139
    %v190 = vpack.c.bf16 %v156, %v140
    %v191 = vpack.c.bf16 %v157, %v141
    %v192 = vpack.c.bf16 %v158, %v142
    %v193 = vpack.c.bf16 %v159, %v143
    %v194 = vpack.c.bf16 %v160, %v144
    %v195 = vpack.c.bf16 %v161, %v145
    %v196 = vpack.c.bf16 %v162, %v146
    %v197 = vpack.c.bf16 %v163, %v147
    %v198 = vpack.c.bf16 %v164, %v148
    %v199 = vpack.c.bf16 %v165, %v149
    %v200 = vpack.c.bf16 %v166, %v150
    %v201 = vpack.c.bf16 %v167, %v151
    %v202 = vpack.c.bf16 %v168, %v152
    %v203 = vpack.c.bf16 %v169, %v153
    %205 = vset.pattern.permute.xlu0 0
    %206 = vperm.xlu0 %205, %v79
    %v207 = vpop.permute.xlu0 %206
    %210 = vset.pattern.permute.xlu0 0
    %211 = vperm.xlu0 %210, %v80
    %v212 = vpop.permute.xlu0 %211
    %215 = vset.pattern.permute.xlu0 0
    %216 = vperm.xlu0 %215, %v81
    %v217 = vpop.permute.xlu0 %216
    %v222 = vunpack.c.l.b16 %v76
    %v223 = vunpack.c.l.b16 %v77
    %v224 = vunpack.c.l.b16 %v78
    %v225 = vpack.c.b16 %v223, %v222
    %v226 = vpack.c.b16 %v224, %v224
    %vm227 = vcmask 261120
    %v229 = vsel %vm227, %v225, 0
    %v232 = vsel %vm227, %v226, 0
    %234 = vmatprep.subr.bf16.mxu0 0
    %235 = vmatpush1.bf16.msra.mxu0 0
    %236 = vmatprep.subr.bf16.mxu0 0
    %237 = vmatpush1.bf16.msra.mxu0 0
    %238 = vmatprep.subr.bf16.mxu0 0
    %239 = vmatpush1.bf16.msra.mxu0 0
    %240 = vmatprep.subr.bf16.mxu0 0
    %241 = vmatpush1.bf16.msra.mxu0 0
    %242 = vmatprep.subr.bf16.mxu0 0
    %243 = vmatpush1.bf16.msra.mxu0 0
    %244 = vmatprep.subr.bf16.mxu0 0
    %245 = vmatpush1.bf16.msra.mxu0 0
    %246 = vmatprep.subr.bf16.mxu0 %v189
    %247 = vmatpush1.bf16.msra.mxu0 %v188
    %248 = vmatprep.subr.bf16.mxu0 %v173
    %249 = vmatpush1.bf16.msra.mxu0 %v172
    %250 = vmatprep.subr.bf16.mxu0 0
    %251 = vmatpush2.bf16.msra.mxu0 0
    %252 = vmatprep.subr.bf16.mxu0 0
    %253 = vmatpush2.bf16.msra.mxu0 0
    %254 = vmatprep.subr.bf16.mxu0 0
    %255 = vmatpush2.bf16.msra.mxu0 0
    %256 = vmatprep.subr.bf16.mxu0 0
    %257 = vmatpush2.bf16.msra.mxu0 0
    %258 = vmatprep.subr.bf16.mxu0 0
    %259 = vmatpush2.bf16.msra.mxu0 0
    %260 = vmatprep.subr.bf16.mxu0 0
    %261 = vmatpush2.bf16.msra.mxu0 0
    %262 = vmatprep.subr.bf16.mxu0 0
    %263 = vmatpush2.bf16.msra.mxu0 0
    %264 = vmatprep.subr.bf16.mxu0 0
    %265 = vmatpush2.bf16.msra.mxu0 0
    %266 = vmatprep.mubr.bf16.mxu0 0
    %267 = vmatmul.mubr.bf16.gmra.mxu0 %v229
    %v268 = vpop.f32.mrf.mxu0
    %v269 = vadd.f32 %v207, %v268
    %v270 = vpop.f32.mrf.mxu0
    %v271 = vadd.f32 %v207, %v270
    %v272 = vpop.f32.mrf.mxu0
    %v273 = vadd.f32 %v212, %v272
    %v274 = vpop.f32.mrf.mxu0
    %v275 = vadd.f32 %v212, %v274
    %276 = vmatprep.mubr.bf16.mxu0 0
    %277 = vmatmul.mubr.bf16.gmra.mxu0 %v232
    %v278 = vpop.f32.mrf.mxu0
    %v279 = vadd.f32 %v217, %v278
    %v280 = vpop.f32.mrf.mxu0
    %v281 = vadd.f32 %v217, %v280
    %v282 = vpop.f32.mrf.mxu0
    %v283 = vpop.f32.mrf.mxu0
    %284 = vdwg.mxu0
    %285 = vmatprep.subr.bf16.mxu0 0
    %286 = vmatpush1.bf16.msra.mxu0 0
    %287 = vmatprep.subr.bf16.mxu0 0
    %288 = vmatpush1.bf16.msra.mxu0 0
    %289 = vmatprep.subr.bf16.mxu0 0
    %290 = vmatpush1.bf16.msra.mxu0 0
    %291 = vmatprep.subr.bf16.mxu0 0
    %292 = vmatpush1.bf16.msra.mxu0 0
    %293 = vmatprep.subr.bf16.mxu0 0
    %294 = vmatpush1.bf16.msra.mxu0 0
    %295 = vmatprep.subr.bf16.mxu0 0
    %296 = vmatpush1.bf16.msra.mxu0 0
    %297 = vmatprep.subr.bf16.mxu0 %v191
    %298 = vmatpush1.bf16.msra.mxu0 %v190
    %299 = vmatprep.subr.bf16.mxu0 %v175
    %300 = vmatpush1.bf16.msra.mxu0 %v174
    %301 = vmatprep.subr.bf16.mxu0 0
    %302 = vmatpush2.bf16.msra.mxu0 0
    %303 = vmatprep.subr.bf16.mxu0 0
    %304 = vmatpush2.bf16.msra.mxu0 0
    %305 = vmatprep.subr.bf16.mxu0 0
    %306 = vmatpush2.bf16.msra.mxu0 0
    %307 = vmatprep.subr.bf16.mxu0 0
    %308 = vmatpush2.bf16.msra.mxu0 0
    %309 = vmatprep.subr.bf16.mxu0 0
    %310 = vmatpush2.bf16.msra.mxu0 0
    %311 = vmatprep.subr.bf16.mxu0 0
    %312 = vmatpush2.bf16.msra.mxu0 0
    %313 = vmatprep.subr.bf16.mxu0 0
    %314 = vmatpush2.bf16.msra.mxu0 0
    %315 = vmatprep.subr.bf16.mxu0 0
    %316 = vmatpush2.bf16.msra.mxu0 0
    %317 = vmatprep.mubr.bf16.mxu0 0
    %318 = vmatmul.mubr.bf16.gmra.mxu0 %v229
    %v319 = vpop.f32.mrf.mxu0
    %v320 = vadd.f32 %v207, %v319
    %v321 = vpop.f32.mrf.mxu0
    %v322 = vadd.f32 %v207, %v321
    %v323 = vpop.f32.mrf.mxu0
    %v324 = vadd.f32 %v212, %v323
    %v325 = vpop.f32.mrf.mxu0
    %v326 = vadd.f32 %v212, %v325
    %327 = vmatprep.mubr.bf16.mxu0 0
    %328 = vmatmul.mubr.bf16.gmra.mxu0 %v232
    %v329 = vpop.f32.mrf.mxu0
    %v330 = vadd.f32 %v217, %v329
    %v331 = vpop.f32.mrf.mxu0
    %v332 = vadd.f32 %v217, %v331
    %v333 = vpop.f32.mrf.mxu0
    %v334 = vpop.f32.mrf.mxu0
    %335 = vdwg.mxu0
    %336 = vmatprep.subr.bf16.mxu0 0
    %337 = vmatpush1.bf16.msra.mxu0 0
    %338 = vmatprep.subr.bf16.mxu0 0
    %339 = vmatpush1.bf16.msra.mxu0 0
    %340 = vmatprep.subr.bf16.mxu0 0
    %341 = vmatpush1.bf16.msra.mxu0 0
    %342 = vmatprep.subr.bf16.mxu0 0
    %343 = vmatpush1.bf16.msra.mxu0 0
    %344 = vmatprep.subr.bf16.mxu0 0
    %345 = vmatpush1.bf16.msra.mxu0 0
    %346 = vmatprep.subr.bf16.mxu0 0
    %347 = vmatpush1.bf16.msra.mxu0 0
    %348 = vmatprep.subr.bf16.mxu0 %v193
    %349 = vmatpush1.bf16.msra.mxu0 %v192
    %350 = vmatprep.subr.bf16.mxu0 %v177
    %351 = vmatpush1.bf16.msra.mxu0 %v176
    %352 = vmatprep.subr.bf16.mxu0 0
    %353 = vmatpush2.bf16.msra.mxu0 0
    %354 = vmatprep.subr.bf16.mxu0 0
    %355 = vmatpush2.bf16.msra.mxu0 0
    %356 = vmatprep.subr.bf16.mxu0 0
    %357 = vmatpush2.bf16.msra.mxu0 0
    %358 = vmatprep.subr.bf16.mxu0 0
    %359 = vmatpush2.bf16.msra.mxu0 0
    %360 = vmatprep.subr.bf16.mxu0 0
    %361 = vmatpush2.bf16.msra.mxu0 0
    %362 = vmatprep.subr.bf16.mxu0 0
    %363 = vmatpush2.bf16.msra.mxu0 0
    %364 = vmatprep.subr.bf16.mxu0 0
    %365 = vmatpush2.bf16.msra.mxu0 0
    %366 = vmatprep.subr.bf16.mxu0 0
    %367 = vmatpush2.bf16.msra.mxu0 0
    %368 = vmatprep.mubr.bf16.mxu0 0
    %369 = vmatmul.mubr.bf16.gmra.mxu0 %v229
    %v370 = vpop.f32.mrf.mxu0
    %v371 = vadd.f32 %v207, %v370
    %v372 = vpop.f32.mrf.mxu0
    %v373 = vadd.f32 %v207, %v372
    %v374 = vpop.f32.mrf.mxu0
    %v375 = vadd.f32 %v212, %v374
    %v376 = vpop.f32.mrf.mxu0
    %v377 = vadd.f32 %v212, %v376
    %378 = vmatprep.mubr.bf16.mxu0 0
    %379 = vmatmul.mubr.bf16.gmra.mxu0 %v232
    %v380 = vpop.f32.mrf.mxu0
    %v381 = vadd.f32 %v217, %v380
    %v382 = vpop.f32.mrf.mxu0
    %v383 = vadd.f32 %v217, %v382
    %v384 = vpop.f32.mrf.mxu0
    %v385 = vpop.f32.mrf.mxu0
    %386 = vdwg.mxu0
    %387 = vmatprep.subr.bf16.mxu0 0
    %388 = vmatpush1.bf16.msra.mxu0 0
    %389 = vmatprep.subr.bf16.mxu0 0
    %390 = vmatpush1.bf16.msra.mxu0 0
    %391 = vmatprep.subr.bf16.mxu0 0
    %392 = vmatpush1.bf16.msra.mxu0 0
    %393 = vmatprep.subr.bf16.mxu0 0
    %394 = vmatpush1.bf16.msra.mxu0 0
    %395 = vmatprep.subr.bf16.mxu0 0
    %396 = vmatpush1.bf16.msra.mxu0 0
    %397 = vmatprep.subr.bf16.mxu0 0
    %398 = vmatpush1.bf16.msra.mxu0 0
    %399 = vmatprep.subr.bf16.mxu0 %v195
    %400 = vmatpush1.bf16.msra.mxu0 %v194
    %401 = vmatprep.subr.bf16.mxu0 %v179
    %402 = vmatpush1.bf16.msra.mxu0 %v178
    %403 = vmatprep.subr.bf16.mxu0 0
    %404 = vmatpush2.bf16.msra.mxu0 0
    %405 = vmatprep.subr.bf16.mxu0 0
    %406 = vmatpush2.bf16.msra.mxu0 0
    %407 = vmatprep.subr.bf16.mxu0 0
    %408 = vmatpush2.bf16.msra.mxu0 0
    %409 = vmatprep.subr.bf16.mxu0 0
    %410 = vmatpush2.bf16.msra.mxu0 0
    %411 = vmatprep.subr.bf16.mxu0 0
    %412 = vmatpush2.bf16.msra.mxu0 0
    %413 = vmatprep.subr.bf16.mxu0 0
    %414 = vmatpush2.bf16.msra.mxu0 0
    %415 = vmatprep.subr.bf16.mxu0 0
    %416 = vmatpush2.bf16.msra.mxu0 0
    %417 = vmatprep.subr.bf16.mxu0 0
    %418 = vmatpush2.bf16.msra.mxu0 0
    %419 = vmatprep.mubr.bf16.mxu0 0
    %420 = vmatmul.mubr.bf16.gmra.mxu0 %v229
    %v421 = vpop.f32.mrf.mxu0
    %v422 = vadd.f32 %v207, %v421
    %v423 = vpop.f32.mrf.mxu0
    %v424 = vadd.f32 %v207, %v423
    %v425 = vpop.f32.mrf.mxu0
    %v426 = vadd.f32 %v212, %v425
    %v427 = vpop.f32.mrf.mxu0
    %v428 = vadd.f32 %v212, %v427
    %429 = vmatprep.mubr.bf16.mxu0 0
    %430 = vmatmul.mubr.bf16.gmra.mxu0 %v232
    %v431 = vpop.f32.mrf.mxu0
    %v432 = vadd.f32 %v217, %v431
    %v433 = vpop.f32.mrf.mxu0
    %v434 = vadd.f32 %v217, %v433
    %v435 = vpop.f32.mrf.mxu0
    %v436 = vpop.f32.mrf.mxu0
    %437 = vdwg.mxu0
    %438 = vmatprep.subr.bf16.mxu0 0
    %439 = vmatpush1.bf16.msra.mxu0 0
    %440 = vmatprep.subr.bf16.mxu0 0
    %441 = vmatpush1.bf16.msra.mxu0 0
    %442 = vmatprep.subr.bf16.mxu0 0
    %443 = vmatpush1.bf16.msra.mxu0 0
    %444 = vmatprep.subr.bf16.mxu0 0
    %445 = vmatpush1.bf16.msra.mxu0 0
    %446 = vmatprep.subr.bf16.mxu0 0
    %447 = vmatpush1.bf16.msra.mxu0 0
    %448 = vmatprep.subr.bf16.mxu0 0
    %449 = vmatpush1.bf16.msra.mxu0 0
    %450 = vmatprep.subr.bf16.mxu0 %v197
    %451 = vmatpush1.bf16.msra.mxu0 %v196
    %452 = vmatprep.subr.bf16.mxu0 %v181
    %453 = vmatpush1.bf16.msra.mxu0 %v180
    %454 = vmatprep.subr.bf16.mxu0 0
    %455 = vmatpush2.bf16.msra.mxu0 0
    %456 = vmatprep.subr.bf16.mxu0 0
    %457 = vmatpush2.bf16.msra.mxu0 0
    %458 = vmatprep.subr.bf16.mxu0 0
    %459 = vmatpush2.bf16.msra.mxu0 0
    %460 = vmatprep.subr.bf16.mxu0 0
    %461 = vmatpush2.bf16.msra.mxu0 0
    %462 = vmatprep.subr.bf16.mxu0 0
    %463 = vmatpush2.bf16.msra.mxu0 0
    %464 = vmatprep.subr.bf16.mxu0 0
    %465 = vmatpush2.bf16.msra.mxu0 0
    %466 = vmatprep.subr.bf16.mxu0 0
    %467 = vmatpush2.bf16.msra.mxu0 0
    %468 = vmatprep.subr.bf16.mxu0 0
    %469 = vmatpush2.bf16.msra.mxu0 0
    %470 = vmatprep.mubr.bf16.mxu0 0
    %471 = vmatmul.mubr.bf16.gmra.mxu0 %v229
    %v472 = vpop.f32.mrf.mxu0
    %v473 = vadd.f32 %v207, %v472
    %v474 = vpop.f32.mrf.mxu0
    %v475 = vadd.f32 %v207, %v474
    %v476 = vpop.f32.mrf.mxu0
    %v477 = vadd.f32 %v212, %v476
    %v478 = vpop.f32.mrf.mxu0
    %v479 = vadd.f32 %v212, %v478
    %480 = vmatprep.mubr.bf16.mxu0 0
    %481 = vmatmul.mubr.bf16.gmra.mxu0 %v232
    %v482 = vpop.f32.mrf.mxu0
    %v483 = vadd.f32 %v217, %v482
    %v484 = vpop.f32.mrf.mxu0
    %v485 = vadd.f32 %v217, %v484
    %v486 = vpop.f32.mrf.mxu0
    %v487 = vpop.f32.mrf.mxu0
    %488 = vdwg.mxu0
    %489 = vmatprep.subr.bf16.mxu0 0
    %490 = vmatpush1.bf16.msra.mxu0 0
    %491 = vmatprep.subr.bf16.mxu0 0
    %492 = vmatpush1.bf16.msra.mxu0 0
    %493 = vmatprep.subr.bf16.mxu0 0
    %494 = vmatpush1.bf16.msra.mxu0 0
    %495 = vmatprep.subr.bf16.mxu0 0
    %496 = vmatpush1.bf16.msra.mxu0 0
    %497 = vmatprep.subr.bf16.mxu0 0
    %498 = vmatpush1.bf16.msra.mxu0 0
    %499 = vmatprep.subr.bf16.mxu0 0
    %500 = vmatpush1.bf16.msra.mxu0 0
    %501 = vmatprep.subr.bf16.mxu0 %v199
    %502 = vmatpush1.bf16.msra.mxu0 %v198
    %503 = vmatprep.subr.bf16.mxu0 %v183
    %504 = vmatpush1.bf16.msra.mxu0 %v182
    %505 = vmatprep.subr.bf16.mxu0 0
    %506 = vmatpush2.bf16.msra.mxu0 0
    %507 = vmatprep.subr.bf16.mxu0 0
    %508 = vmatpush2.bf16.msra.mxu0 0
    %509 = vmatprep.subr.bf16.mxu0 0
    %510 = vmatpush2.bf16.msra.mxu0 0
    %511 = vmatprep.subr.bf16.mxu0 0
    %512 = vmatpush2.bf16.msra.mxu0 0
    %513 = vmatprep.subr.bf16.mxu0 0
    %514 = vmatpush2.bf16.msra.mxu0 0
    %515 = vmatprep.subr.bf16.mxu0 0
    %516 = vmatpush2.bf16.msra.mxu0 0
    %517 = vmatprep.subr.bf16.mxu0 0
    %518 = vmatpush2.bf16.msra.mxu0 0
    %519 = vmatprep.subr.bf16.mxu0 0
    %520 = vmatpush2.bf16.msra.mxu0 0
    %521 = vmatprep.mubr.bf16.mxu0 0
    %522 = vmatmul.mubr.bf16.gmra.mxu0 %v229
    %v523 = vpop.f32.mrf.mxu0
    %v524 = vadd.f32 %v207, %v523
    %v525 = vpop.f32.mrf.mxu0
    %v526 = vadd.f32 %v207, %v525
    %v527 = vpop.f32.mrf.mxu0
    %v528 = vadd.f32 %v212, %v527
    %v529 = vpop.f32.mrf.mxu0
    %v530 = vadd.f32 %v212, %v529
    %531 = vmatprep.mubr.bf16.mxu0 0
    %532 = vmatmul.mubr.bf16.gmra.mxu0 %v232
    %v533 = vpop.f32.mrf.mxu0
    %v534 = vadd.f32 %v217, %v533
    %v535 = vpop.f32.mrf.mxu0
    %v536 = vadd.f32 %v217, %v535
    %v537 = vpop.f32.mrf.mxu0
    %v538 = vpop.f32.mrf.mxu0
    %539 = vdwg.mxu0
    %540 = vmatprep.subr.bf16.mxu0 0
    %541 = vmatpush1.bf16.msra.mxu0 0
    %542 = vmatprep.subr.bf16.mxu0 0
    %543 = vmatpush1.bf16.msra.mxu0 0
    %544 = vmatprep.subr.bf16.mxu0 0
    %545 = vmatpush1.bf16.msra.mxu0 0
    %546 = vmatprep.subr.bf16.mxu0 0
    %547 = vmatpush1.bf16.msra.mxu0 0
    %548 = vmatprep.subr.bf16.mxu0 0
    %549 = vmatpush1.bf16.msra.mxu0 0
    %550 = vmatprep.subr.bf16.mxu0 0
    %551 = vmatpush1.bf16.msra.mxu0 0
    %552 = vmatprep.subr.bf16.mxu0 %v201
    %553 = vmatpush1.bf16.msra.mxu0 %v200
    %554 = vmatprep.subr.bf16.mxu0 %v185
    %555 = vmatpush1.bf16.msra.mxu0 %v184
    %556 = vmatprep.subr.bf16.mxu0 0
    %557 = vmatpush2.bf16.msra.mxu0 0
    %558 = vmatprep.subr.bf16.mxu0 0
    %559 = vmatpush2.bf16.msra.mxu0 0
    %560 = vmatprep.subr.bf16.mxu0 0
    %561 = vmatpush2.bf16.msra.mxu0 0
    %562 = vmatprep.subr.bf16.mxu0 0
    %563 = vmatpush2.bf16.msra.mxu0 0
    %564 = vmatprep.subr.bf16.mxu0 0
    %565 = vmatpush2.bf16.msra.mxu0 0
    %566 = vmatprep.subr.bf16.mxu0 0
    %567 = vmatpush2.bf16.msra.mxu0 0
    %568 = vmatprep.subr.bf16.mxu0 0
    %569 = vmatpush2.bf16.msra.mxu0 0
    %570 = vmatprep.subr.bf16.mxu0 0
    %571 = vmatpush2.bf16.msra.mxu0 0
    %572 = vmatprep.mubr.bf16.mxu0 0
    %573 = vmatmul.mubr.bf16.gmra.mxu0 %v229
    %v574 = vpop.f32.mrf.mxu0
    %v575 = vadd.f32 %v207, %v574
    %v576 = vpop.f32.mrf.mxu0
    %v577 = vadd.f32 %v207, %v576
    %v578 = vpop.f32.mrf.mxu0
    %v579 = vadd.f32 %v212, %v578
    %v580 = vpop.f32.mrf.mxu0
    %v581 = vadd.f32 %v212, %v580
    %582 = vmatprep.mubr.bf16.mxu0 0
    %583 = vmatmul.mubr.bf16.gmra.mxu0 %v232
    %v584 = vpop.f32.mrf.mxu0
    %v585 = vadd.f32 %v217, %v584
    %v586 = vpop.f32.mrf.mxu0
    %v587 = vadd.f32 %v217, %v586
    %v588 = vpop.f32.mrf.mxu0
    %v589 = vpop.f32.mrf.mxu0
    %590 = vdwg.mxu0
    %591 = vmatprep.subr.bf16.mxu0 0
    %592 = vmatpush1.bf16.msra.mxu0 0
    %593 = vmatprep.subr.bf16.mxu0 0
    %594 = vmatpush1.bf16.msra.mxu0 0
    %595 = vmatprep.subr.bf16.mxu0 0
    %596 = vmatpush1.bf16.msra.mxu0 0
    %597 = vmatprep.subr.bf16.mxu0 0
    %598 = vmatpush1.bf16.msra.mxu0 0
    %599 = vmatprep.subr.bf16.mxu0 0
    %600 = vmatpush1.bf16.msra.mxu0 0
    %601 = vmatprep.subr.bf16.mxu0 0
    %602 = vmatpush1.bf16.msra.mxu0 0
    %603 = vmatprep.subr.bf16.mxu0 %v203
    %604 = vmatpush1.bf16.msra.mxu0 %v202
    %605 = vmatprep.subr.bf16.mxu0 %v187
    %606 = vmatpush1.bf16.msra.mxu0 %v186
    %607 = vmatprep.subr.bf16.mxu0 0
    %608 = vmatpush2.bf16.msra.mxu0 0
    %609 = vmatprep.subr.bf16.mxu0 0
    %610 = vmatpush2.bf16.msra.mxu0 0
    %611 = vmatprep.subr.bf16.mxu0 0
    %612 = vmatpush2.bf16.msra.mxu0 0
    %613 = vmatprep.subr.bf16.mxu0 0
    %614 = vmatpush2.bf16.msra.mxu0 0
    %615 = vmatprep.subr.bf16.mxu0 0
    %616 = vmatpush2.bf16.msra.mxu0 0
    %617 = vmatprep.subr.bf16.mxu0 0
    %618 = vmatpush2.bf16.msra.mxu0 0
    %619 = vmatprep.subr.bf16.mxu0 0
    %620 = vmatpush2.bf16.msra.mxu0 0
    %621 = vmatprep.subr.bf16.mxu0 0
    %622 = vmatpush2.bf16.msra.mxu0 0
    %623 = vmatprep.mubr.bf16.mxu0 0
    %624 = vmatmul.mubr.bf16.gmra.mxu0 %v229
    %v625 = vpop.f32.mrf.mxu0
    %v626 = vadd.f32 %v207, %v625
    %v627 = vpop.f32.mrf.mxu0
    %v628 = vadd.f32 %v207, %v627
    %v629 = vpop.f32.mrf.mxu0
    %v630 = vadd.f32 %v212, %v629
    %v631 = vpop.f32.mrf.mxu0
    %v632 = vadd.f32 %v212, %v631
    %633 = vmatprep.mubr.bf16.mxu0 0
    %634 = vmatmul.mubr.bf16.gmra.mxu0 %v232
    %v635 = vpop.f32.mrf.mxu0
    %v636 = vadd.f32 %v217, %v635
    %v637 = vpop.f32.mrf.mxu0
    %v638 = vadd.f32 %v217, %v637
    %v639 = vpop.f32.mrf.mxu0
    %v640 = vpop.f32.mrf.mxu0
    %641 = vdwg.mxu0
    %v642 = vmax.f32 %v269, 0.0
    %v643 = vmax.f32 %v271, 0.0
    %v644 = vmax.f32 %v320, 0.0
    %v645 = vmax.f32 %v322, 0.0
    %v646 = vmax.f32 %v371, 0.0
    %v647 = vmax.f32 %v373, 0.0
    %v648 = vmax.f32 %v422, 0.0
    %v649 = vmax.f32 %v424, 0.0
    %v650 = vmax.f32 %v473, 0.0
    %v651 = vmax.f32 %v475, 0.0
    %v652 = vmax.f32 %v524, 0.0
    %v653 = vmax.f32 %v526, 0.0
    %v654 = vmax.f32 %v575, 0.0
    %v655 = vmax.f32 %v577, 0.0
    %v656 = vmax.f32 %v626, 0.0
    %v657 = vmax.f32 %v628, 0.0
    %v658 = vmax.f32 %v273, 0.0
    %v659 = vmax.f32 %v275, 0.0
    %v660 = vmax.f32 %v324, 0.0
    %v661 = vmax.f32 %v326, 0.0
    %v662 = vmax.f32 %v375, 0.0
    %v663 = vmax.f32 %v377, 0.0
    %v664 = vmax.f32 %v426, 0.0
    %v665 = vmax.f32 %v428, 0.0
    %v666 = vmax.f32 %v477, 0.0
    %v667 = vmax.f32 %v479, 0.0
    %v668 = vmax.f32 %v528, 0.0
    %v669 = vmax.f32 %v530, 0.0
    %v670 = vmax.f32 %v579, 0.0
    %v671 = vmax.f32 %v581, 0.0
    %v672 = vmax.f32 %v630, 0.0
    %v673 = vmax.f32 %v632, 0.0
    %v674 = vmax.f32 %v279, 0.0
    %v675 = vmax.f32 %v281, 0.0
    %v676 = vmax.f32 %v330, 0.0
    %v677 = vmax.f32 %v332, 0.0
    %v678 = vmax.f32 %v381, 0.0
    %v679 = vmax.f32 %v383, 0.0
    %v680 = vmax.f32 %v432, 0.0
    %v681 = vmax.f32 %v434, 0.0
    %v682 = vmax.f32 %v483, 0.0
    %v683 = vmax.f32 %v485, 0.0
    %v684 = vmax.f32 %v534, 0.0
    %v685 = vmax.f32 %v536, 0.0
    %v686 = vmax.f32 %v585, 0.0
    %v687 = vmax.f32 %v587, 0.0
    %v688 = vmax.f32 %v636, 0.0
    %v689 = vmax.f32 %v638, 0.0
    %v690 = vpack.c.bf16 %v658, %v642
    %v691 = vpack.c.bf16 %v659, %v643
    %v692 = vpack.c.bf16 %v660, %v644
    %v693 = vpack.c.bf16 %v661, %v645
    %v694 = vpack.c.bf16 %v662, %v646
    %v695 = vpack.c.bf16 %v663, %v647
    %v696 = vpack.c.bf16 %v664, %v648
    %v697 = vpack.c.bf16 %v665, %v649
    %v698 = vpack.c.bf16 %v666, %v650
    %v699 = vpack.c.bf16 %v667, %v651
    %v700 = vpack.c.bf16 %v668, %v652
    %v701 = vpack.c.bf16 %v669, %v653
    %v702 = vpack.c.bf16 %v670, %v654
    %v703 = vpack.c.bf16 %v671, %v655
    %v704 = vpack.c.bf16 %v672, %v656
    %v705 = vpack.c.bf16 %v673, %v657
    %v706 = vpack.c.bf16 %v674, %v674
    %v707 = vpack.c.bf16 %v675, %v675
    %v708 = vpack.c.bf16 %v676, %v676
    %v709 = vpack.c.bf16 %v677, %v677
    %v710 = vpack.c.bf16 %v678, %v678
    %v711 = vpack.c.bf16 %v679, %v679
    %v712 = vpack.c.bf16 %v680, %v680
    %v713 = vpack.c.bf16 %v681, %v681
    %v714 = vpack.c.bf16 %v682, %v682
    %v715 = vpack.c.bf16 %v683, %v683
    %v716 = vpack.c.bf16 %v684, %v684
    %v717 = vpack.c.bf16 %v685, %v685
    %v718 = vpack.c.bf16 %v686, %v686
    %v719 = vpack.c.bf16 %v687, %v687
    %v720 = vpack.c.bf16 %v688, %v688
    %v721 = vpack.c.bf16 %v689, %v689
    %723 = vset.pattern.permute.xlu0 0
    %724 = vperm.xlu0 %723, %v84
    %v725 = vpop.permute.xlu0 %724
    %728 = vset.pattern.permute.xlu0 0
    %729 = vperm.xlu0 %728, %v85
    %v730 = vpop.permute.xlu0 %729
    %v734 = vunpack.c.l.b16 %v82
    %v735 = vunpack.c.l.b16 %v83
    %v736 = vpack.c.b16 %v735, %v734
    %vm737 = vcmask 195584
    %v739 = vsel %vm737, %v736, 0
    %vm741 = vcmask 1043456
    %v743 = vsel %vm741, %v706, 0
    %v746 = vsel %vm741, %v707, 0
    %v749 = vsel %vm741, %v708, 0
    %v752 = vsel %vm741, %v709, 0
    %v755 = vsel %vm741, %v710, 0
    %v758 = vsel %vm741, %v711, 0
    %v761 = vsel %vm741, %v712, 0
    %v764 = vsel %vm741, %v713, 0
    %v767 = vsel %vm741, %v714, 0
    %v770 = vsel %vm741, %v715, 0
    %v773 = vsel %vm741, %v716, 0
    %v776 = vsel %vm741, %v717, 0
    %v779 = vsel %vm741, %v718, 0
    %v782 = vsel %vm741, %v719, 0
    %v785 = vsel %vm741, %v720, 0
    %v788 = vsel %vm741, %v721, 0
    %790 = vmatprep.subr.bf16.mxu0 0
    %791 = vmatpush1.bf16.msra.mxu0 0
    %792 = vmatprep.subr.bf16.mxu0 0
    %793 = vmatpush1.bf16.msra.mxu0 0
    %794 = vmatprep.subr.bf16.mxu0 0
    %795 = vmatpush1.bf16.msra.mxu0 0
    %796 = vmatprep.subr.bf16.mxu0 0
    %797 = vmatpush1.bf16.msra.mxu0 0
    %798 = vmatprep.subr.bf16.mxu0 0
    %799 = vmatpush1.bf16.msra.mxu0 0
    %800 = vmatprep.subr.bf16.mxu0 0
    %801 = vmatpush1.bf16.msra.mxu0 0
    %802 = vmatprep.subr.bf16.mxu0 %v746
    %803 = vmatpush1.bf16.msra.mxu0 %v743
    %804 = vmatprep.subr.bf16.mxu0 %v691
    %805 = vmatpush1.bf16.msra.mxu0 %v690
    %806 = vmatprep.subr.bf16.mxu0 0
    %807 = vmatpush2.bf16.msra.mxu0 0
    %808 = vmatprep.subr.bf16.mxu0 0
    %809 = vmatpush2.bf16.msra.mxu0 0
    %810 = vmatprep.subr.bf16.mxu0 0
    %811 = vmatpush2.bf16.msra.mxu0 0
    %812 = vmatprep.subr.bf16.mxu0 0
    %813 = vmatpush2.bf16.msra.mxu0 0
    %814 = vmatprep.subr.bf16.mxu0 0
    %815 = vmatpush2.bf16.msra.mxu0 0
    %816 = vmatprep.subr.bf16.mxu0 0
    %817 = vmatpush2.bf16.msra.mxu0 0
    %818 = vmatprep.subr.bf16.mxu0 0
    %819 = vmatpush2.bf16.msra.mxu0 0
    %820 = vmatprep.subr.bf16.mxu0 0
    %821 = vmatpush2.bf16.msra.mxu0 0
    %822 = vmatprep.mubr.bf16.mxu0 0
    %823 = vmatmul.mubr.bf16.gmra.mxu0 %v739
    %v824 = vpop.f32.mrf.mxu0
    %v825 = vadd.f32 %v725, %v824
    %v826 = vpop.f32.mrf.mxu0
    %v827 = vadd.f32 %v725, %v826
    %v828 = vpop.f32.mrf.mxu0
    %v829 = vadd.f32 %v730, %v828
    %v830 = vpop.f32.mrf.mxu0
    %v831 = vadd.f32 %v730, %v830
    %832 = vdwg.mxu0
    %833 = vmatprep.subr.bf16.mxu0 0
    %834 = vmatpush1.bf16.msra.mxu0 0
    %835 = vmatprep.subr.bf16.mxu0 0
    %836 = vmatpush1.bf16.msra.mxu0 0
    %837 = vmatprep.subr.bf16.mxu0 0
    %838 = vmatpush1.bf16.msra.mxu0 0
    %839 = vmatprep.subr.bf16.mxu0 0
    %840 = vmatpush1.bf16.msra.mxu0 0
    %841 = vmatprep.subr.bf16.mxu0 0
    %842 = vmatpush1.bf16.msra.mxu0 0
    %843 = vmatprep.subr.bf16.mxu0 0
    %844 = vmatpush1.bf16.msra.mxu0 0
    %845 = vmatprep.subr.bf16.mxu0 %v752
    %846 = vmatpush1.bf16.msra.mxu0 %v749
    %847 = vmatprep.subr.bf16.mxu0 %v693
    %848 = vmatpush1.bf16.msra.mxu0 %v692
    %849 = vmatprep.subr.bf16.mxu0 0
    %850 = vmatpush2.bf16.msra.mxu0 0
    %851 = vmatprep.subr.bf16.mxu0 0
    %852 = vmatpush2.bf16.msra.mxu0 0
    %853 = vmatprep.subr.bf16.mxu0 0
    %854 = vmatpush2.bf16.msra.mxu0 0
    %855 = vmatprep.subr.bf16.mxu0 0
    %856 = vmatpush2.bf16.msra.mxu0 0
    %857 = vmatprep.subr.bf16.mxu0 0
    %858 = vmatpush2.bf16.msra.mxu0 0
    %859 = vmatprep.subr.bf16.mxu0 0
    %860 = vmatpush2.bf16.msra.mxu0 0
    %861 = vmatprep.subr.bf16.mxu0 0
    %862 = vmatpush2.bf16.msra.mxu0 0
    %863 = vmatprep.subr.bf16.mxu0 0
    %864 = vmatpush2.bf16.msra.mxu0 0
    %865 = vmatprep.mubr.bf16.mxu0 0
    %866 = vmatmul.mubr.bf16.gmra.mxu0 %v739
    %v867 = vpop.f32.mrf.mxu0
    %v868 = vadd.f32 %v725, %v867
    %v869 = vpop.f32.mrf.mxu0
    %v870 = vadd.f32 %v725, %v869
    %v871 = vpop.f32.mrf.mxu0
    %v872 = vadd.f32 %v730, %v871
    %v873 = vpop.f32.mrf.mxu0
    %v874 = vadd.f32 %v730, %v873
    %875 = vdwg.mxu0
    %876 = vmatprep.subr.bf16.mxu0 0
    %877 = vmatpush1.bf16.msra.mxu0 0
    %878 = vmatprep.subr.bf16.mxu0 0
    %879 = vmatpush1.bf16.msra.mxu0 0
    %880 = vmatprep.subr.bf16.mxu0 0
    %881 = vmatpush1.bf16.msra.mxu0 0
    %882 = vmatprep.subr.bf16.mxu0 0
    %883 = vmatpush1.bf16.msra.mxu0 0
    %884 = vmatprep.subr.bf16.mxu0 0
    %885 = vmatpush1.bf16.msra.mxu0 0
    %886 = vmatprep.subr.bf16.mxu0 0
    %887 = vmatpush1.bf16.msra.mxu0 0
    %888 = vmatprep.subr.bf16.mxu0 %v758
    %889 = vmatpush1.bf16.msra.mxu0 %v755
    %890 = vmatprep.subr.bf16.mxu0 %v695
    %891 = vmatpush1.bf16.msra.mxu0 %v694
    %892 = vmatprep.subr.bf16.mxu0 0
    %893 = vmatpush2.bf16.msra.mxu0 0
    %894 = vmatprep.subr.bf16.mxu0 0
    %895 = vmatpush2.bf16.msra.mxu0 0
    %896 = vmatprep.subr.bf16.mxu0 0
    %897 = vmatpush2.bf16.msra.mxu0 0
    %898 = vmatprep.subr.bf16.mxu0 0
    %899 = vmatpush2.bf16.msra.mxu0 0
    %900 = vmatprep.subr.bf16.mxu0 0
    %901 = vmatpush2.bf16.msra.mxu0 0
    %902 = vmatprep.subr.bf16.mxu0 0
    %903 = vmatpush2.bf16.msra.mxu0 0
    %904 = vmatprep.subr.bf16.mxu0 0
    %905 = vmatpush2.bf16.msra.mxu0 0
    %906 = vmatprep.subr.bf16.mxu0 0
    %907 = vmatpush2.bf16.msra.mxu0 0
    %908 = vmatprep.mubr.bf16.mxu0 0
    %909 = vmatmul.mubr.bf16.gmra.mxu0 %v739
    %v910 = vpop.f32.mrf.mxu0
    %v911 = vadd.f32 %v725, %v910
    %v912 = vpop.f32.mrf.mxu0
    %v913 = vadd.f32 %v725, %v912
    %v914 = vpop.f32.mrf.mxu0
    %v915 = vadd.f32 %v730, %v914
    %v916 = vpop.f32.mrf.mxu0
    %v917 = vadd.f32 %v730, %v916
    %918 = vdwg.mxu0
    %919 = vmatprep.subr.bf16.mxu0 0
    %920 = vmatpush1.bf16.msra.mxu0 0
    %921 = vmatprep.subr.bf16.mxu0 0
    %922 = vmatpush1.bf16.msra.mxu0 0
    %923 = vmatprep.subr.bf16.mxu0 0
    %924 = vmatpush1.bf16.msra.mxu0 0
    %925 = vmatprep.subr.bf16.mxu0 0
    %926 = vmatpush1.bf16.msra.mxu0 0
    %927 = vmatprep.subr.bf16.mxu0 0
    %928 = vmatpush1.bf16.msra.mxu0 0
    %929 = vmatprep.subr.bf16.mxu0 0
    %930 = vmatpush1.bf16.msra.mxu0 0
    %931 = vmatprep.subr.bf16.mxu0 %v764
    %932 = vmatpush1.bf16.msra.mxu0 %v761
    %933 = vmatprep.subr.bf16.mxu0 %v697
    %934 = vmatpush1.bf16.msra.mxu0 %v696
    %935 = vmatprep.subr.bf16.mxu0 0
    %936 = vmatpush2.bf16.msra.mxu0 0
    %937 = vmatprep.subr.bf16.mxu0 0
    %938 = vmatpush2.bf16.msra.mxu0 0
    %939 = vmatprep.subr.bf16.mxu0 0
    %940 = vmatpush2.bf16.msra.mxu0 0
    %941 = vmatprep.subr.bf16.mxu0 0
    %942 = vmatpush2.bf16.msra.mxu0 0
    %943 = vmatprep.subr.bf16.mxu0 0
    %944 = vmatpush2.bf16.msra.mxu0 0
    %945 = vmatprep.subr.bf16.mxu0 0
    %946 = vmatpush2.bf16.msra.mxu0 0
    %947 = vmatprep.subr.bf16.mxu0 0
    %948 = vmatpush2.bf16.msra.mxu0 0
    %949 = vmatprep.subr.bf16.mxu0 0
    %950 = vmatpush2.bf16.msra.mxu0 0
    %951 = vmatprep.mubr.bf16.mxu0 0
    %952 = vmatmul.mubr.bf16.gmra.mxu0 %v739
    %v953 = vpop.f32.mrf.mxu0
    %v954 = vadd.f32 %v725, %v953
    %v955 = vpop.f32.mrf.mxu0
    %v956 = vadd.f32 %v725, %v955
    %v957 = vpop.f32.mrf.mxu0
    %v958 = vadd.f32 %v730, %v957
    %v959 = vpop.f32.mrf.mxu0
    %v960 = vadd.f32 %v730, %v959
    %961 = vdwg.mxu0
    %962 = vmatprep.subr.bf16.mxu0 0
    %963 = vmatpush1.bf16.msra.mxu0 0
    %964 = vmatprep.subr.bf16.mxu0 0
    %965 = vmatpush1.bf16.msra.mxu0 0
    %966 = vmatprep.subr.bf16.mxu0 0
    %967 = vmatpush1.bf16.msra.mxu0 0
    %968 = vmatprep.subr.bf16.mxu0 0
    %969 = vmatpush1.bf16.msra.mxu0 0
    %970 = vmatprep.subr.bf16.mxu0 0
    %971 = vmatpush1.bf16.msra.mxu0 0
    %972 = vmatprep.subr.bf16.mxu0 0
    %973 = vmatpush1.bf16.msra.mxu0 0
    %974 = vmatprep.subr.bf16.mxu0 %v770
    %975 = vmatpush1.bf16.msra.mxu0 %v767
    %976 = vmatprep.subr.bf16.mxu0 %v699
    %977 = vmatpush1.bf16.msra.mxu0 %v698
    %978 = vmatprep.subr.bf16.mxu0 0
    %979 = vmatpush2.bf16.msra.mxu0 0
    %980 = vmatprep.subr.bf16.mxu0 0
    %981 = vmatpush2.bf16.msra.mxu0 0
    %982 = vmatprep.subr.bf16.mxu0 0
    %983 = vmatpush2.bf16.msra.mxu0 0
    %984 = vmatprep.subr.bf16.mxu0 0
    %985 = vmatpush2.bf16.msra.mxu0 0
    %986 = vmatprep.subr.bf16.mxu0 0
    %987 = vmatpush2.bf16.msra.mxu0 0
    %988 = vmatprep.subr.bf16.mxu0 0
    %989 = vmatpush2.bf16.msra.mxu0 0
    %990 = vmatprep.subr.bf16.mxu0 0
    %991 = vmatpush2.bf16.msra.mxu0 0
    %992 = vmatprep.subr.bf16.mxu0 0
    %993 = vmatpush2.bf16.msra.mxu0 0
    %994 = vmatprep.mubr.bf16.mxu0 0
    %995 = vmatmul.mubr.bf16.gmra.mxu0 %v739
    %v996 = vpop.f32.mrf.mxu0
    %v997 = vadd.f32 %v725, %v996
    %v998 = vpop.f32.mrf.mxu0
    %v999 = vadd.f32 %v725, %v998
    %v1000 = vpop.f32.mrf.mxu0
    %v1001 = vadd.f32 %v730, %v1000
    %v1002 = vpop.f32.mrf.mxu0
    %v1003 = vadd.f32 %v730, %v1002
    %1004 = vdwg.mxu0
    %1005 = vmatprep.subr.bf16.mxu0 0
    %1006 = vmatpush1.bf16.msra.mxu0 0
    %1007 = vmatprep.subr.bf16.mxu0 0
    %1008 = vmatpush1.bf16.msra.mxu0 0
    %1009 = vmatprep.subr.bf16.mxu0 0
    %1010 = vmatpush1.bf16.msra.mxu0 0
    %1011 = vmatprep.subr.bf16.mxu0 0
    %1012 = vmatpush1.bf16.msra.mxu0 0
    %1013 = vmatprep.subr.bf16.mxu0 0
    %1014 = vmatpush1.bf16.msra.mxu0 0
    %1015 = vmatprep.subr.bf16.mxu0 0
    %1016 = vmatpush1.bf16.msra.mxu0 0
    %1017 = vmatprep.subr.bf16.mxu0 %v776
    %1018 = vmatpush1.bf16.msra.mxu0 %v773
    %1019 = vmatprep.subr.bf16.mxu0 %v701
    %1020 = vmatpush1.bf16.msra.mxu0 %v700
    %1021 = vmatprep.subr.bf16.mxu0 0
    %1022 = vmatpush2.bf16.msra.mxu0 0
    %1023 = vmatprep.subr.bf16.mxu0 0
    %1024 = vmatpush2.bf16.msra.mxu0 0
    %1025 = vmatprep.subr.bf16.mxu0 0
    %1026 = vmatpush2.bf16.msra.mxu0 0
    %1027 = vmatprep.subr.bf16.mxu0 0
    %1028 = vmatpush2.bf16.msra.mxu0 0
    %1029 = vmatprep.subr.bf16.mxu0 0
    %1030 = vmatpush2.bf16.msra.mxu0 0
    %1031 = vmatprep.subr.bf16.mxu0 0
    %1032 = vmatpush2.bf16.msra.mxu0 0
    %1033 = vmatprep.subr.bf16.mxu0 0
    %1034 = vmatpush2.bf16.msra.mxu0 0
    %1035 = vmatprep.subr.bf16.mxu0 0
    %1036 = vmatpush2.bf16.msra.mxu0 0
    %1037 = vmatprep.mubr.bf16.mxu0 0
    %1038 = vmatmul.mubr.bf16.gmra.mxu0 %v739
    %v1039 = vpop.f32.mrf.mxu0
    %v1040 = vadd.f32 %v725, %v1039
    %v1041 = vpop.f32.mrf.mxu0
    %v1042 = vadd.f32 %v725, %v1041
    %v1043 = vpop.f32.mrf.mxu0
    %v1044 = vadd.f32 %v730, %v1043
    %v1045 = vpop.f32.mrf.mxu0
    %v1046 = vadd.f32 %v730, %v1045
    %1047 = vdwg.mxu0
    %1048 = vmatprep.subr.bf16.mxu0 0
    %1049 = vmatpush1.bf16.msra.mxu0 0
    %1050 = vmatprep.subr.bf16.mxu0 0
    %1051 = vmatpush1.bf16.msra.mxu0 0
    %1052 = vmatprep.subr.bf16.mxu0 0
    %1053 = vmatpush1.bf16.msra.mxu0 0
    %1054 = vmatprep.subr.bf16.mxu0 0
    %1055 = vmatpush1.bf16.msra.mxu0 0
    %1056 = vmatprep.subr.bf16.mxu0 0
    %1057 = vmatpush1.bf16.msra.mxu0 0
    %1058 = vmatprep.subr.bf16.mxu0 0
    %1059 = vmatpush1.bf16.msra.mxu0 0
    %1060 = vmatprep.subr.bf16.mxu0 %v782
    %1061 = vmatpush1.bf16.msra.mxu0 %v779
    %1062 = vmatprep.subr.bf16.mxu0 %v703
    %1063 = vmatpush1.bf16.msra.mxu0 %v702
    %1064 = vmatprep.subr.bf16.mxu0 0
    %1065 = vmatpush2.bf16.msra.mxu0 0
    %1066 = vmatprep.subr.bf16.mxu0 0
    %1067 = vmatpush2.bf16.msra.mxu0 0
    %1068 = vmatprep.subr.bf16.mxu0 0
    %1069 = vmatpush2.bf16.msra.mxu0 0
    %1070 = vmatprep.subr.bf16.mxu0 0
    %1071 = vmatpush2.bf16.msra.mxu0 0
    %1072 = vmatprep.subr.bf16.mxu0 0
    %1073 = vmatpush2.bf16.msra.mxu0 0
    %1074 = vmatprep.subr.bf16.mxu0 0
    %1075 = vmatpush2.bf16.msra.mxu0 0
    %1076 = vmatprep.subr.bf16.mxu0 0
    %1077 = vmatpush2.bf16.msra.mxu0 0
    %1078 = vmatprep.subr.bf16.mxu0 0
    %1079 = vmatpush2.bf16.msra.mxu0 0
    %1080 = vmatprep.mubr.bf16.mxu0 0
    %1081 = vmatmul.mubr.bf16.gmra.mxu0 %v739
    %v1082 = vpop.f32.mrf.mxu0
    %v1083 = vadd.f32 %v725, %v1082
    %v1084 = vpop.f32.mrf.mxu0
    %v1085 = vadd.f32 %v725, %v1084
    %v1086 = vpop.f32.mrf.mxu0
    %v1087 = vadd.f32 %v730, %v1086
    %v1088 = vpop.f32.mrf.mxu0
    %v1089 = vadd.f32 %v730, %v1088
    %1090 = vdwg.mxu0
    %1091 = vmatprep.subr.bf16.mxu0 0
    %1092 = vmatpush1.bf16.msra.mxu0 0
    %1093 = vmatprep.subr.bf16.mxu0 0
    %1094 = vmatpush1.bf16.msra.mxu0 0
    %1095 = vmatprep.subr.bf16.mxu0 0
    %1096 = vmatpush1.bf16.msra.mxu0 0
    %1097 = vmatprep.subr.bf16.mxu0 0
    %1098 = vmatpush1.bf16.msra.mxu0 0
    %1099 = vmatprep.subr.bf16.mxu0 0
    %1100 = vmatpush1.bf16.msra.mxu0 0
    %1101 = vmatprep.subr.bf16.mxu0 0
    %1102 = vmatpush1.bf16.msra.mxu0 0
    %1103 = vmatprep.subr.bf16.mxu0 %v788
    %1104 = vmatpush1.bf16.msra.mxu0 %v785
    %1105 = vmatprep.subr.bf16.mxu0 %v705
    %1106 = vmatpush1.bf16.msra.mxu0 %v704
    %1107 = vmatprep.subr.bf16.mxu0 0
    %1108 = vmatpush2.bf16.msra.mxu0 0
    %1109 = vmatprep.subr.bf16.mxu0 0
    %1110 = vmatpush2.bf16.msra.mxu0 0
    %1111 = vmatprep.subr.bf16.mxu0 0
    %1112 = vmatpush2.bf16.msra.mxu0 0
    %1113 = vmatprep.subr.bf16.mxu0 0
    %1114 = vmatpush2.bf16.msra.mxu0 0
    %1115 = vmatprep.subr.bf16.mxu0 0
    %1116 = vmatpush2.bf16.msra.mxu0 0
    %1117 = vmatprep.subr.bf16.mxu0 0
    %1118 = vmatpush2.bf16.msra.mxu0 0
    %1119 = vmatprep.subr.bf16.mxu0 0
    %1120 = vmatpush2.bf16.msra.mxu0 0
    %1121 = vmatprep.subr.bf16.mxu0 0
    %1122 = vmatpush2.bf16.msra.mxu0 0
    %1123 = vmatprep.mubr.bf16.mxu0 0
    %1124 = vmatmul.mubr.bf16.gmra.mxu0 %v739
    %v1125 = vpop.f32.mrf.mxu0
    %v1126 = vadd.f32 %v725, %v1125
    %v1127 = vpop.f32.mrf.mxu0
    %v1128 = vadd.f32 %v725, %v1127
    %v1129 = vpop.f32.mrf.mxu0
    %v1130 = vadd.f32 %v730, %v1129
    %v1131 = vpop.f32.mrf.mxu0
    %v1132 = vadd.f32 %v730, %v1131
    %1133 = vdwg.mxu0
    %v1134 = vmax.f32 %v825, 0.0
    %v1135 = vmax.f32 %v827, 0.0
    %v1136 = vmax.f32 %v868, 0.0
    %v1137 = vmax.f32 %v870, 0.0
    %v1138 = vmax.f32 %v911, 0.0
    %v1139 = vmax.f32 %v913, 0.0
    %v1140 = vmax.f32 %v954, 0.0
    %v1141 = vmax.f32 %v956, 0.0
    %v1142 = vmax.f32 %v997, 0.0
    %v1143 = vmax.f32 %v999, 0.0
    %v1144 = vmax.f32 %v1040, 0.0
    %v1145 = vmax.f32 %v1042, 0.0
    %v1146 = vmax.f32 %v1083, 0.0
    %v1147 = vmax.f32 %v1085, 0.0
    %v1148 = vmax.f32 %v1126, 0.0
    %v1149 = vmax.f32 %v1128, 0.0
    %v1150 = vmax.f32 %v829, 0.0
    %v1151 = vmax.f32 %v831, 0.0
    %v1152 = vmax.f32 %v872, 0.0
    %v1153 = vmax.f32 %v874, 0.0
    %v1154 = vmax.f32 %v915, 0.0
    %v1155 = vmax.f32 %v917, 0.0
    %v1156 = vmax.f32 %v958, 0.0
    %v1157 = vmax.f32 %v960, 0.0
    %v1158 = vmax.f32 %v1001, 0.0
    %v1159 = vmax.f32 %v1003, 0.0
    %v1160 = vmax.f32 %v1044, 0.0
    %v1161 = vmax.f32 %v1046, 0.0
    %v1162 = vmax.f32 %v1087, 0.0
    %v1163 = vmax.f32 %v1089, 0.0
    %v1164 = vmax.f32 %v1130, 0.0
    %v1165 = vmax.f32 %v1132, 0.0
    %v1166 = vpack.c.bf16 %v1150, %v1134
    %v1167 = vpack.c.bf16 %v1151, %v1135
    %v1168 = vpack.c.bf16 %v1152, %v1136
    %v1169 = vpack.c.bf16 %v1153, %v1137
    %v1170 = vpack.c.bf16 %v1154, %v1138
    %v1171 = vpack.c.bf16 %v1155, %v1139
    %v1172 = vpack.c.bf16 %v1156, %v1140
    %v1173 = vpack.c.bf16 %v1157, %v1141
    %v1174 = vpack.c.bf16 %v1158, %v1142
    %v1175 = vpack.c.bf16 %v1159, %v1143
    %v1176 = vpack.c.bf16 %v1160, %v1144
    %v1177 = vpack.c.bf16 %v1161, %v1145
    %v1178 = vpack.c.bf16 %v1162, %v1146
    %v1179 = vpack.c.bf16 %v1163, %v1147
    %v1180 = vpack.c.bf16 %v1164, %v1148
    %v1181 = vpack.c.bf16 %v1165, %v1149
    %1183 = vset.pattern.permute.xlu0 0
    %1184 = vperm.xlu0 %1183, %v87
    %v1185 = vpop.permute.xlu0 %1184
    %vm1187 = vcmask 130048
    %v1189 = vsel %vm1187, %v86, 0
    %1191 = vmatprep.subr.bf16.mxu0 0
    %1192 = vmatpush1.bf16.msra.mxu0 0
    %1193 = vmatprep.subr.bf16.mxu0 0
    %1194 = vmatpush1.bf16.msra.mxu0 0
    %1195 = vmatprep.subr.bf16.mxu0 0
    %1196 = vmatpush1.bf16.msra.mxu0 0
    %1197 = vmatprep.subr.bf16.mxu0 0
    %1198 = vmatpush1.bf16.msra.mxu0 0
    %1199 = vmatprep.subr.bf16.mxu0 0
    %1200 = vmatpush1.bf16.msra.mxu0 0
    %1201 = vmatprep.subr.bf16.mxu0 0
    %1202 = vmatpush1.bf16.msra.mxu0 0
    %1203 = vmatprep.subr.bf16.mxu0 0
    %1204 = vmatpush1.bf16.msra.mxu0 0
    %1205 = vmatprep.subr.bf16.mxu0 %v1167
    %1206 = vmatpush1.bf16.msra.mxu0 %v1166
    %1207 = vmatprep.subr.bf16.mxu0 0
    %1208 = vmatpush2.bf16.msra.mxu0 0
    %1209 = vmatprep.subr.bf16.mxu0 0
    %1210 = vmatpush2.bf16.msra.mxu0 0
    %1211 = vmatprep.subr.bf16.mxu0 0
    %1212 = vmatpush2.bf16.msra.mxu0 0
    %1213 = vmatprep.subr.bf16.mxu0 0
    %1214 = vmatpush2.bf16.msra.mxu0 0
    %1215 = vmatprep.subr.bf16.mxu0 0
    %1216 = vmatpush2.bf16.msra.mxu0 0
    %1217 = vmatprep.subr.bf16.mxu0 0
    %1218 = vmatpush2.bf16.msra.mxu0 0
    %1219 = vmatprep.subr.bf16.mxu0 0
    %1220 = vmatpush2.bf16.msra.mxu0 0
    %1221 = vmatprep.subr.bf16.mxu0 0
    %1222 = vmatpush2.bf16.msra.mxu0 0
    %1223 = vmatprep.mubr.bf16.mxu0 0
    %1224 = vmatmul.mubr.bf16.gmra.mxu0 %v1189
    %v1225 = vpop.f32.mrf.mxu0
    %v1226 = vadd.f32 %v1185, %v1225
    %v1227 = vpop.f32.mrf.mxu0
    %v1228 = vadd.f32 %v1185, %v1227
    %v1229 = vpop.f32.mrf.mxu0
    %v1230 = vpop.f32.mrf.mxu0
    %1231 = vdwg.mxu0
    %1232 = vmatprep.subr.bf16.mxu0 0
    %1233 = vmatpush1.bf16.msra.mxu0 0
    %1234 = vmatprep.subr.bf16.mxu0 0
    %1235 = vmatpush1.bf16.msra.mxu0 0
    %1236 = vmatprep.subr.bf16.mxu0 0
    %1237 = vmatpush1.bf16.msra.mxu0 0
    %1238 = vmatprep.subr.bf16.mxu0 0
    %1239 = vmatpush1.bf16.msra.mxu0 0
    %1240 = vmatprep.subr.bf16.mxu0 0
    %1241 = vmatpush1.bf16.msra.mxu0 0
    %1242 = vmatprep.subr.bf16.mxu0 0
    %1243 = vmatpush1.bf16.msra.mxu0 0
    %1244 = vmatprep.subr.bf16.mxu0 0
    %1245 = vmatpush1.bf16.msra.mxu0 0
    %1246 = vmatprep.subr.bf16.mxu0 %v1169
    %1247 = vmatpush1.bf16.msra.mxu0 %v1168
    %1248 = vmatprep.subr.bf16.mxu0 0
    %1249 = vmatpush2.bf16.msra.mxu0 0
    %1250 = vmatprep.subr.bf16.mxu0 0
    %1251 = vmatpush2.bf16.msra.mxu0 0
    %1252 = vmatprep.subr.bf16.mxu0 0
    %1253 = vmatpush2.bf16.msra.mxu0 0
    %1254 = vmatprep.subr.bf16.mxu0 0
    %1255 = vmatpush2.bf16.msra.mxu0 0
    %1256 = vmatprep.subr.bf16.mxu0 0
    %1257 = vmatpush2.bf16.msra.mxu0 0
    %1258 = vmatprep.subr.bf16.mxu0 0
    %1259 = vmatpush2.bf16.msra.mxu0 0
    %1260 = vmatprep.subr.bf16.mxu0 0
    %1261 = vmatpush2.bf16.msra.mxu0 0
    %1262 = vmatprep.subr.bf16.mxu0 0
    %1263 = vmatpush2.bf16.msra.mxu0 0
    %1264 = vmatprep.mubr.bf16.mxu0 0
    %1265 = vmatmul.mubr.bf16.gmra.mxu0 %v1189
    %v1266 = vpop.f32.mrf.mxu0
    %v1267 = vadd.f32 %v1185, %v1266
    %v1268 = vpop.f32.mrf.mxu0
    %v1269 = vadd.f32 %v1185, %v1268
    %v1270 = vpop.f32.mrf.mxu0
    %v1271 = vpop.f32.mrf.mxu0
    %1272 = vdwg.mxu0
    %1273 = vmatprep.subr.bf16.mxu0 0
    %1274 = vmatpush1.bf16.msra.mxu0 0
    %1275 = vmatprep.subr.bf16.mxu0 0
    %1276 = vmatpush1.bf16.msra.mxu0 0
    %1277 = vmatprep.subr.bf16.mxu0 0
    %1278 = vmatpush1.bf16.msra.mxu0 0
    %1279 = vmatprep.subr.bf16.mxu0 0
    %1280 = vmatpush1.bf16.msra.mxu0 0
    %1281 = vmatprep.subr.bf16.mxu0 0
    %1282 = vmatpush1.bf16.msra.mxu0 0
    %1283 = vmatprep.subr.bf16.mxu0 0
    %1284 = vmatpush1.bf16.msra.mxu0 0
    %1285 = vmatprep.subr.bf16.mxu0 0
    %1286 = vmatpush1.bf16.msra.mxu0 0
    %1287 = vmatprep.subr.bf16.mxu0 %v1171
    %1288 = vmatpush1.bf16.msra.mxu0 %v1170
    %1289 = vmatprep.subr.bf16.mxu0 0
    %1290 = vmatpush2.bf16.msra.mxu0 0
    %1291 = vmatprep.subr.bf16.mxu0 0
    %1292 = vmatpush2.bf16.msra.mxu0 0
    %1293 = vmatprep.subr.bf16.mxu0 0
    %1294 = vmatpush2.bf16.msra.mxu0 0
    %1295 = vmatprep.subr.bf16.mxu0 0
    %1296 = vmatpush2.bf16.msra.mxu0 0
    %1297 = vmatprep.subr.bf16.mxu0 0
    %1298 = vmatpush2.bf16.msra.mxu0 0
    %1299 = vmatprep.subr.bf16.mxu0 0
    %1300 = vmatpush2.bf16.msra.mxu0 0
    %1301 = vmatprep.subr.bf16.mxu0 0
    %1302 = vmatpush2.bf16.msra.mxu0 0
    %1303 = vmatprep.subr.bf16.mxu0 0
    %1304 = vmatpush2.bf16.msra.mxu0 0
    %1305 = vmatprep.mubr.bf16.mxu0 0
    %1306 = vmatmul.mubr.bf16.gmra.mxu0 %v1189
    %v1307 = vpop.f32.mrf.mxu0
    %v1308 = vadd.f32 %v1185, %v1307
    %v1309 = vpop.f32.mrf.mxu0
    %v1310 = vadd.f32 %v1185, %v1309
    %v1311 = vpop.f32.mrf.mxu0
    %v1312 = vpop.f32.mrf.mxu0
    %1313 = vdwg.mxu0
    %1314 = vmatprep.subr.bf16.mxu0 0
    %1315 = vmatpush1.bf16.msra.mxu0 0
    %1316 = vmatprep.subr.bf16.mxu0 0
    %1317 = vmatpush1.bf16.msra.mxu0 0
    %1318 = vmatprep.subr.bf16.mxu0 0
    %1319 = vmatpush1.bf16.msra.mxu0 0
    %1320 = vmatprep.subr.bf16.mxu0 0
    %1321 = vmatpush1.bf16.msra.mxu0 0
    %1322 = vmatprep.subr.bf16.mxu0 0
    %1323 = vmatpush1.bf16.msra.mxu0 0
    %1324 = vmatprep.subr.bf16.mxu0 0
    %1325 = vmatpush1.bf16.msra.mxu0 0
    %1326 = vmatprep.subr.bf16.mxu0 0
    %1327 = vmatpush1.bf16.msra.mxu0 0
    %1328 = vmatprep.subr.bf16.mxu0 %v1173
    %1329 = vmatpush1.bf16.msra.mxu0 %v1172
    %1330 = vmatprep.subr.bf16.mxu0 0
    %1331 = vmatpush2.bf16.msra.mxu0 0
    %1332 = vmatprep.subr.bf16.mxu0 0
    %1333 = vmatpush2.bf16.msra.mxu0 0
    %1334 = vmatprep.subr.bf16.mxu0 0
    %1335 = vmatpush2.bf16.msra.mxu0 0
    %1336 = vmatprep.subr.bf16.mxu0 0
    %1337 = vmatpush2.bf16.msra.mxu0 0
    %1338 = vmatprep.subr.bf16.mxu0 0
    %1339 = vmatpush2.bf16.msra.mxu0 0
    %1340 = vmatprep.subr.bf16.mxu0 0
    %1341 = vmatpush2.bf16.msra.mxu0 0
    %1342 = vmatprep.subr.bf16.mxu0 0
    %1343 = vmatpush2.bf16.msra.mxu0 0
    %1344 = vmatprep.subr.bf16.mxu0 0
    %1345 = vmatpush2.bf16.msra.mxu0 0
    %1346 = vmatprep.mubr.bf16.mxu0 0
    %1347 = vmatmul.mubr.bf16.gmra.mxu0 %v1189
    %v1348 = vpop.f32.mrf.mxu0
    %v1349 = vadd.f32 %v1185, %v1348
    %v1350 = vpop.f32.mrf.mxu0
    %v1351 = vadd.f32 %v1185, %v1350
    %v1352 = vpop.f32.mrf.mxu0
    %v1353 = vpop.f32.mrf.mxu0
    %1354 = vdwg.mxu0
    %1355 = vmatprep.subr.bf16.mxu0 0
    %1356 = vmatpush1.bf16.msra.mxu0 0
    %1357 = vmatprep.subr.bf16.mxu0 0
    %1358 = vmatpush1.bf16.msra.mxu0 0
    %1359 = vmatprep.subr.bf16.mxu0 0
    %1360 = vmatpush1.bf16.msra.mxu0 0
    %1361 = vmatprep.subr.bf16.mxu0 0
    %1362 = vmatpush1.bf16.msra.mxu0 0
    %1363 = vmatprep.subr.bf16.mxu0 0
    %1364 = vmatpush1.bf16.msra.mxu0 0
    %1365 = vmatprep.subr.bf16.mxu0 0
    %1366 = vmatpush1.bf16.msra.mxu0 0
    %1367 = vmatprep.subr.bf16.mxu0 0
    %1368 = vmatpush1.bf16.msra.mxu0 0
    %1369 = vmatprep.subr.bf16.mxu0 %v1175
    %1370 = vmatpush1.bf16.msra.mxu0 %v1174
    %1371 = vmatprep.subr.bf16.mxu0 0
    %1372 = vmatpush2.bf16.msra.mxu0 0
    %1373 = vmatprep.subr.bf16.mxu0 0
    %1374 = vmatpush2.bf16.msra.mxu0 0
    %1375 = vmatprep.subr.bf16.mxu0 0
    %1376 = vmatpush2.bf16.msra.mxu0 0
    %1377 = vmatprep.subr.bf16.mxu0 0
    %1378 = vmatpush2.bf16.msra.mxu0 0
    %1379 = vmatprep.subr.bf16.mxu0 0
    %1380 = vmatpush2.bf16.msra.mxu0 0
    %1381 = vmatprep.subr.bf16.mxu0 0
    %1382 = vmatpush2.bf16.msra.mxu0 0
    %1383 = vmatprep.subr.bf16.mxu0 0
    %1384 = vmatpush2.bf16.msra.mxu0 0
    %1385 = vmatprep.subr.bf16.mxu0 0
    %1386 = vmatpush2.bf16.msra.mxu0 0
    %1387 = vmatprep.mubr.bf16.mxu0 0
    %1388 = vmatmul.mubr.bf16.gmra.mxu0 %v1189
    %v1389 = vpop.f32.mrf.mxu0
    %v1390 = vadd.f32 %v1185, %v1389
    %v1391 = vpop.f32.mrf.mxu0
    %v1392 = vadd.f32 %v1185, %v1391
    %v1393 = vpop.f32.mrf.mxu0
    %v1394 = vpop.f32.mrf.mxu0
    %1395 = vdwg.mxu0
    %1396 = vmatprep.subr.bf16.mxu0 0
    %1397 = vmatpush1.bf16.msra.mxu0 0
    %1398 = vmatprep.subr.bf16.mxu0 0
    %1399 = vmatpush1.bf16.msra.mxu0 0
    %1400 = vmatprep.subr.bf16.mxu0 0
    %1401 = vmatpush1.bf16.msra.mxu0 0
    %1402 = vmatprep.subr.bf16.mxu0 0
    %1403 = vmatpush1.bf16.msra.mxu0 0
    %1404 = vmatprep.subr.bf16.mxu0 0
    %1405 = vmatpush1.bf16.msra.mxu0 0
    %1406 = vmatprep.subr.bf16.mxu0 0
    %1407 = vmatpush1.bf16.msra.mxu0 0
    %1408 = vmatprep.subr.bf16.mxu0 0
    %1409 = vmatpush1.bf16.msra.mxu0 0
    %1410 = vmatprep.subr.bf16.mxu0 %v1177
    %1411 = vmatpush1.bf16.msra.mxu0 %v1176
    %1412 = vmatprep.subr.bf16.mxu0 0
    %1413 = vmatpush2.bf16.msra.mxu0 0
    %1414 = vmatprep.subr.bf16.mxu0 0
    %1415 = vmatpush2.bf16.msra.mxu0 0
    %1416 = vmatprep.subr.bf16.mxu0 0
    %1417 = vmatpush2.bf16.msra.mxu0 0
    %1418 = vmatprep.subr.bf16.mxu0 0
    %1419 = vmatpush2.bf16.msra.mxu0 0
    %1420 = vmatprep.subr.bf16.mxu0 0
    %1421 = vmatpush2.bf16.msra.mxu0 0
    %1422 = vmatprep.subr.bf16.mxu0 0
    %1423 = vmatpush2.bf16.msra.mxu0 0
    %1424 = vmatprep.subr.bf16.mxu0 0
    %1425 = vmatpush2.bf16.msra.mxu0 0
    %1426 = vmatprep.subr.bf16.mxu0 0
    %1427 = vmatpush2.bf16.msra.mxu0 0
    %1428 = vmatprep.mubr.bf16.mxu0 0
    %1429 = vmatmul.mubr.bf16.gmra.mxu0 %v1189
    %v1430 = vpop.f32.mrf.mxu0
    %v1431 = vadd.f32 %v1185, %v1430
    %v1432 = vpop.f32.mrf.mxu0
    %v1433 = vadd.f32 %v1185, %v1432
    %v1434 = vpop.f32.mrf.mxu0
    %v1435 = vpop.f32.mrf.mxu0
    %1436 = vdwg.mxu0
    %1437 = vmatprep.subr.bf16.mxu0 0
    %1438 = vmatpush1.bf16.msra.mxu0 0
    %1439 = vmatprep.subr.bf16.mxu0 0
    %1440 = vmatpush1.bf16.msra.mxu0 0
    %1441 = vmatprep.subr.bf16.mxu0 0
    %1442 = vmatpush1.bf16.msra.mxu0 0
    %1443 = vmatprep.subr.bf16.mxu0 0
    %1444 = vmatpush1.bf16.msra.mxu0 0
    %1445 = vmatprep.subr.bf16.mxu0 0
    %1446 = vmatpush1.bf16.msra.mxu0 0
    %1447 = vmatprep.subr.bf16.mxu0 0
    %1448 = vmatpush1.bf16.msra.mxu0 0
    %1449 = vmatprep.subr.bf16.mxu0 0
    %1450 = vmatpush1.bf16.msra.mxu0 0
    %1451 = vmatprep.subr.bf16.mxu0 %v1179
    %1452 = vmatpush1.bf16.msra.mxu0 %v1178
    %1453 = vmatprep.subr.bf16.mxu0 0
    %1454 = vmatpush2.bf16.msra.mxu0 0
    %1455 = vmatprep.subr.bf16.mxu0 0
    %1456 = vmatpush2.bf16.msra.mxu0 0
    %1457 = vmatprep.subr.bf16.mxu0 0
    %1458 = vmatpush2.bf16.msra.mxu0 0
    %1459 = vmatprep.subr.bf16.mxu0 0
    %1460 = vmatpush2.bf16.msra.mxu0 0
    %1461 = vmatprep.subr.bf16.mxu0 0
    %1462 = vmatpush2.bf16.msra.mxu0 0
    %1463 = vmatprep.subr.bf16.mxu0 0
    %1464 = vmatpush2.bf16.msra.mxu0 0
    %1465 = vmatprep.subr.bf16.mxu0 0
    %1466 = vmatpush2.bf16.msra.mxu0 0
    %1467 = vmatprep.subr.bf16.mxu0 0
    %1468 = vmatpush2.bf16.msra.mxu0 0
    %1469 = vmatprep.mubr.bf16.mxu0 0
    %1470 = vmatmul.mubr.bf16.gmra.mxu0 %v1189
    %v1471 = vpop.f32.mrf.mxu0
    %v1472 = vadd.f32 %v1185, %v1471
    %v1473 = vpop.f32.mrf.mxu0
    %v1474 = vadd.f32 %v1185, %v1473
    %v1475 = vpop.f32.mrf.mxu0
    %v1476 = vpop.f32.mrf.mxu0
    %1477 = vdwg.mxu0
    %1478 = vmatprep.subr.bf16.mxu0 0
    %1479 = vmatpush1.bf16.msra.mxu0 0
    %1480 = vmatprep.subr.bf16.mxu0 0
    %1481 = vmatpush1.bf16.msra.mxu0 0
    %1482 = vmatprep.subr.bf16.mxu0 0
    %1483 = vmatpush1.bf16.msra.mxu0 0
    %1484 = vmatprep.subr.bf16.mxu0 0
    %1485 = vmatpush1.bf16.msra.mxu0 0
    %1486 = vmatprep.subr.bf16.mxu0 0
    %1487 = vmatpush1.bf16.msra.mxu0 0
    %1488 = vmatprep.subr.bf16.mxu0 0
    %1489 = vmatpush1.bf16.msra.mxu0 0
    %1490 = vmatprep.subr.bf16.mxu0 0
    %1491 = vmatpush1.bf16.msra.mxu0 0
    %1492 = vmatprep.subr.bf16.mxu0 %v1181
    %1493 = vmatpush1.bf16.msra.mxu0 %v1180
    %1494 = vmatprep.subr.bf16.mxu0 0
    %1495 = vmatpush2.bf16.msra.mxu0 0
    %1496 = vmatprep.subr.bf16.mxu0 0
    %1497 = vmatpush2.bf16.msra.mxu0 0
    %1498 = vmatprep.subr.bf16.mxu0 0
    %1499 = vmatpush2.bf16.msra.mxu0 0
    %1500 = vmatprep.subr.bf16.mxu0 0
    %1501 = vmatpush2.bf16.msra.mxu0 0
    %1502 = vmatprep.subr.bf16.mxu0 0
    %1503 = vmatpush2.bf16.msra.mxu0 0
    %1504 = vmatprep.subr.bf16.mxu0 0
    %1505 = vmatpush2.bf16.msra.mxu0 0
    %1506 = vmatprep.subr.bf16.mxu0 0
    %1507 = vmatpush2.bf16.msra.mxu0 0
    %1508 = vmatprep.subr.bf16.mxu0 0
    %1509 = vmatpush2.bf16.msra.mxu0 0
    %1510 = vmatprep.mubr.bf16.mxu0 0
    %1511 = vmatmul.mubr.bf16.gmra.mxu0 %v1189
    %v1512 = vpop.f32.mrf.mxu0
    %v1513 = vadd.f32 %v1185, %v1512
    %v1514 = vpop.f32.mrf.mxu0
    %v1515 = vadd.f32 %v1185, %v1514
    %v1516 = vpop.f32.mrf.mxu0
    %v1517 = vpop.f32.mrf.mxu0
    %1518 = vdwg.mxu0
    %v1519 = vld [vmem:[%s14] sm:$0xf]
    %v1520 = vld [vmem:[%s14 + $0x4] sm:$0xf]
    %v1521 = vld [vmem:[%s15] sm:$0xf]
    %v1522 = vld [vmem:[%s16] sm:$0xff]
    %v1523 = vld [vmem:[%s16 + $0x8] sm:$0xff]
    %v1524 = vpack.c.bf16 %v1226, %v1226
    %v1525 = vpack.c.bf16 %v1228, %v1228
    %v1526 = vpack.c.bf16 %v1267, %v1267
    %v1527 = vpack.c.bf16 %v1269, %v1269
    %v1528 = vpack.c.bf16 %v1308, %v1308
    %v1529 = vpack.c.bf16 %v1310, %v1310
    %v1530 = vpack.c.bf16 %v1349, %v1349
    %v1531 = vpack.c.bf16 %v1351, %v1351
    %v1532 = vpack.c.bf16 %v1390, %v1390
    %v1533 = vpack.c.bf16 %v1392, %v1392
    %v1534 = vpack.c.bf16 %v1431, %v1431
    %v1535 = vpack.c.bf16 %v1433, %v1433
    %v1536 = vpack.c.bf16 %v1472, %v1472
    %v1537 = vpack.c.bf16 %v1474, %v1474
    %v1538 = vpack.c.bf16 %v1513, %v1513
    %v1539 = vpack.c.bf16 %v1515, %v1515
    %v1542 = vunpack.c.l.b16 %v1519
    %v1543 = vunpack.c.l.b16 %v1520
    %v1544 = vpack.c.b16 %v1543, %v1542
    %vm1545 = vcmask 64512
    %v1547 = vsel %vm1545, %v1544, 0
    %v1550 = vsel %vm741, %v1524, 0
    %v1553 = vsel %vm741, %v1525, 0
    %v1556 = vsel %vm741, %v1526, 0
    %v1559 = vsel %vm741, %v1527, 0
    %v1562 = vsel %vm741, %v1528, 0
    %v1565 = vsel %vm741, %v1529, 0
    %v1568 = vsel %vm741, %v1530, 0
    %v1571 = vsel %vm741, %v1531, 0
    %v1574 = vsel %vm741, %v1532, 0
    %v1577 = vsel %vm741, %v1533, 0
    %v1580 = vsel %vm741, %v1534, 0
    %v1583 = vsel %vm741, %v1535, 0
    %v1586 = vsel %vm741, %v1536, 0
    %v1589 = vsel %vm741, %v1537, 0
    %v1592 = vsel %vm741, %v1538, 0
    %v1595 = vsel %vm741, %v1539, 0
    %1597 = vmatprep.subr.bf16.mxu0 0
    %1598 = vmatpush1.bf16.msra.mxu0 0
    %1599 = vmatprep.subr.bf16.mxu0 0
    %1600 = vmatpush1.bf16.msra.mxu0 0
    %1601 = vmatprep.subr.bf16.mxu0 0
    %1602 = vmatpush1.bf16.msra.mxu0 0
    %1603 = vmatprep.subr.bf16.mxu0 0
    %1604 = vmatpush1.bf16.msra.mxu0 0
    %1605 = vmatprep.subr.bf16.mxu0 0
    %1606 = vmatpush1.bf16.msra.mxu0 0
    %1607 = vmatprep.subr.bf16.mxu0 0
    %1608 = vmatpush1.bf16.msra.mxu0 0
    %1609 = vmatprep.subr.bf16.mxu0 0
    %1610 = vmatpush1.bf16.msra.mxu0 0
    %1611 = vmatprep.subr.bf16.mxu0 %v1553
    %1612 = vmatpush1.bf16.msra.mxu0 %v1550
    %1613 = vmatprep.subr.bf16.mxu0 0
    %1614 = vmatpush2.bf16.msra.mxu0 0
    %1615 = vmatprep.subr.bf16.mxu0 0
    %1616 = vmatpush2.bf16.msra.mxu0 0
    %1617 = vmatprep.subr.bf16.mxu0 0
    %1618 = vmatpush2.bf16.msra.mxu0 0
    %1619 = vmatprep.subr.bf16.mxu0 0
    %1620 = vmatpush2.bf16.msra.mxu0 0
    %1621 = vmatprep.subr.bf16.mxu0 0
    %1622 = vmatpush2.bf16.msra.mxu0 0
    %1623 = vmatprep.subr.bf16.mxu0 0
    %1624 = vmatpush2.bf16.msra.mxu0 0
    %1625 = vmatprep.subr.bf16.mxu0 0
    %1626 = vmatpush2.bf16.msra.mxu0 0
    %1627 = vmatprep.subr.bf16.mxu0 0
    %1628 = vmatpush2.bf16.msra.mxu0 0
    %1629 = vmatprep.mubr.bf16.mxu0 0
    %1630 = vmatmul.mubr.bf16.gmra.mxu0 %v1547
    %v1631 = vpop.f32.mrf.mxu0
    %v1632 = vadd.f32 0.0, %v1631
    %v1633 = vpop.f32.mrf.mxu0
    %v1634 = vadd.f32 0.0, %v1633
    %v1635 = vpop.f32.mrf.mxu0
    %v1636 = vadd.f32 0.0, %v1635
    %v1637 = vpop.f32.mrf.mxu0
    %v1638 = vadd.f32 0.0, %v1637
    %1639 = vdwg.mxu0
    %1640 = vmatprep.subr.bf16.mxu0 0
    %1641 = vmatpush1.bf16.msra.mxu0 0
    %1642 = vmatprep.subr.bf16.mxu0 0
    %1643 = vmatpush1.bf16.msra.mxu0 0
    %1644 = vmatprep.subr.bf16.mxu0 0
    %1645 = vmatpush1.bf16.msra.mxu0 0
    %1646 = vmatprep.subr.bf16.mxu0 0
    %1647 = vmatpush1.bf16.msra.mxu0 0
    %1648 = vmatprep.subr.bf16.mxu0 0
    %1649 = vmatpush1.bf16.msra.mxu0 0
    %1650 = vmatprep.subr.bf16.mxu0 0
    %1651 = vmatpush1.bf16.msra.mxu0 0
    %1652 = vmatprep.subr.bf16.mxu0 0
    %1653 = vmatpush1.bf16.msra.mxu0 0
    %1654 = vmatprep.subr.bf16.mxu0 %v1559
    %1655 = vmatpush1.bf16.msra.mxu0 %v1556
    %1656 = vmatprep.subr.bf16.mxu0 0
    %1657 = vmatpush2.bf16.msra.mxu0 0
    %1658 = vmatprep.subr.bf16.mxu0 0
    %1659 = vmatpush2.bf16.msra.mxu0 0
    %1660 = vmatprep.subr.bf16.mxu0 0
    %1661 = vmatpush2.bf16.msra.mxu0 0
    %1662 = vmatprep.subr.bf16.mxu0 0
    %1663 = vmatpush2.bf16.msra.mxu0 0
    %1664 = vmatprep.subr.bf16.mxu0 0
    %1665 = vmatpush2.bf16.msra.mxu0 0
    %1666 = vmatprep.subr.bf16.mxu0 0
    %1667 = vmatpush2.bf16.msra.mxu0 0
    %1668 = vmatprep.subr.bf16.mxu0 0
    %1669 = vmatpush2.bf16.msra.mxu0 0
    %1670 = vmatprep.subr.bf16.mxu0 0
    %1671 = vmatpush2.bf16.msra.mxu0 0
    %1672 = vmatprep.mubr.bf16.mxu0 0
    %1673 = vmatmul.mubr.bf16.gmra.mxu0 %v1547
    %v1674 = vpop.f32.mrf.mxu0
    %v1675 = vadd.f32 0.0, %v1674
    %v1676 = vpop.f32.mrf.mxu0
    %v1677 = vadd.f32 0.0, %v1676
    %v1678 = vpop.f32.mrf.mxu0
    %v1679 = vadd.f32 0.0, %v1678
    %v1680 = vpop.f32.mrf.mxu0
    %v1681 = vadd.f32 0.0, %v1680
    %1682 = vdwg.mxu0
    %1683 = vmatprep.subr.bf16.mxu0 0
    %1684 = vmatpush1.bf16.msra.mxu0 0
    %1685 = vmatprep.subr.bf16.mxu0 0
    %1686 = vmatpush1.bf16.msra.mxu0 0
    %1687 = vmatprep.subr.bf16.mxu0 0
    %1688 = vmatpush1.bf16.msra.mxu0 0
    %1689 = vmatprep.subr.bf16.mxu0 0
    %1690 = vmatpush1.bf16.msra.mxu0 0
    %1691 = vmatprep.subr.bf16.mxu0 0
    %1692 = vmatpush1.bf16.msra.mxu0 0
    %1693 = vmatprep.subr.bf16.mxu0 0
    %1694 = vmatpush1.bf16.msra.mxu0 0
    %1695 = vmatprep.subr.bf16.mxu0 0
    %1696 = vmatpush1.bf16.msra.mxu0 0
    %1697 = vmatprep.subr.bf16.mxu0 %v1565
    %1698 = vmatpush1.bf16.msra.mxu0 %v1562
    %1699 = vmatprep.subr.bf16.mxu0 0
    %1700 = vmatpush2.bf16.msra.mxu0 0
    %1701 = vmatprep.subr.bf16.mxu0 0
    %1702 = vmatpush2.bf16.msra.mxu0 0
    %1703 = vmatprep.subr.bf16.mxu0 0
    %1704 = vmatpush2.bf16.msra.mxu0 0
    %1705 = vmatprep.subr.bf16.mxu0 0
    %1706 = vmatpush2.bf16.msra.mxu0 0
    %1707 = vmatprep.subr.bf16.mxu0 0
    %1708 = vmatpush2.bf16.msra.mxu0 0
    %1709 = vmatprep.subr.bf16.mxu0 0
    %1710 = vmatpush2.bf16.msra.mxu0 0
    %1711 = vmatprep.subr.bf16.mxu0 0
    %1712 = vmatpush2.bf16.msra.mxu0 0
    %1713 = vmatprep.subr.bf16.mxu0 0
    %1714 = vmatpush2.bf16.msra.mxu0 0
    %1715 = vmatprep.mubr.bf16.mxu0 0
    %1716 = vmatmul.mubr.bf16.gmra.mxu0 %v1547
    %v1717 = vpop.f32.mrf.mxu0
    %v1718 = vadd.f32 0.0, %v1717
    %v1719 = vpop.f32.mrf.mxu0
    %v1720 = vadd.f32 0.0, %v1719
    %v1721 = vpop.f32.mrf.mxu0
    %v1722 = vadd.f32 0.0, %v1721
    %v1723 = vpop.f32.mrf.mxu0
    %v1724 = vadd.f32 0.0, %v1723
    %1725 = vdwg.mxu0
    %1726 = vmatprep.subr.bf16.mxu0 0
    %1727 = vmatpush1.bf16.msra.mxu0 0
    %1728 = vmatprep.subr.bf16.mxu0 0
    %1729 = vmatpush1.bf16.msra.mxu0 0
    %1730 = vmatprep.subr.bf16.mxu0 0
    %1731 = vmatpush1.bf16.msra.mxu0 0
    %1732 = vmatprep.subr.bf16.mxu0 0
    %1733 = vmatpush1.bf16.msra.mxu0 0
    %1734 = vmatprep.subr.bf16.mxu0 0
    %1735 = vmatpush1.bf16.msra.mxu0 0
    %1736 = vmatprep.subr.bf16.mxu0 0
    %1737 = vmatpush1.bf16.msra.mxu0 0
    %1738 = vmatprep.subr.bf16.mxu0 0
    %1739 = vmatpush1.bf16.msra.mxu0 0
    %1740 = vmatprep.subr.bf16.mxu0 %v1571
    %1741 = vmatpush1.bf16.msra.mxu0 %v1568
    %1742 = vmatprep.subr.bf16.mxu0 0
    %1743 = vmatpush2.bf16.msra.mxu0 0
    %1744 = vmatprep.subr.bf16.mxu0 0
    %1745 = vmatpush2.bf16.msra.mxu0 0
    %1746 = vmatprep.subr.bf16.mxu0 0
    %1747 = vmatpush2.bf16.msra.mxu0 0
    %1748 = vmatprep.subr.bf16.mxu0 0
    %1749 = vmatpush2.bf16.msra.mxu0 0
    %1750 = vmatprep.subr.bf16.mxu0 0
    %1751 = vmatpush2.bf16.msra.mxu0 0
    %1752 = vmatprep.subr.bf16.mxu0 0
    %1753 = vmatpush2.bf16.msra.mxu0 0
    %1754 = vmatprep.subr.bf16.mxu0 0
    %1755 = vmatpush2.bf16.msra.mxu0 0
    %1756 = vmatprep.subr.bf16.mxu0 0
    %1757 = vmatpush2.bf16.msra.mxu0 0
    %1758 = vmatprep.mubr.bf16.mxu0 0
    %1759 = vmatmul.mubr.bf16.gmra.mxu0 %v1547
    %v1760 = vpop.f32.mrf.mxu0
    %v1761 = vadd.f32 0.0, %v1760
    %v1762 = vpop.f32.mrf.mxu0
    %v1763 = vadd.f32 0.0, %v1762
    %v1764 = vpop.f32.mrf.mxu0
    %v1765 = vadd.f32 0.0, %v1764
    %v1766 = vpop.f32.mrf.mxu0
    %v1767 = vadd.f32 0.0, %v1766
    %1768 = vdwg.mxu0
    %1769 = vmatprep.subr.bf16.mxu0 0
    %1770 = vmatpush1.bf16.msra.mxu0 0
    %1771 = vmatprep.subr.bf16.mxu0 0
    %1772 = vmatpush1.bf16.msra.mxu0 0
    %1773 = vmatprep.subr.bf16.mxu0 0
    %1774 = vmatpush1.bf16.msra.mxu0 0
    %1775 = vmatprep.subr.bf16.mxu0 0
    %1776 = vmatpush1.bf16.msra.mxu0 0
    %1777 = vmatprep.subr.bf16.mxu0 0
    %1778 = vmatpush1.bf16.msra.mxu0 0
    %1779 = vmatprep.subr.bf16.mxu0 0
    %1780 = vmatpush1.bf16.msra.mxu0 0
    %1781 = vmatprep.subr.bf16.mxu0 0
    %1782 = vmatpush1.bf16.msra.mxu0 0
    %1783 = vmatprep.subr.bf16.mxu0 %v1577
    %1784 = vmatpush1.bf16.msra.mxu0 %v1574
    %1785 = vmatprep.subr.bf16.mxu0 0
    %1786 = vmatpush2.bf16.msra.mxu0 0
    %1787 = vmatprep.subr.bf16.mxu0 0
    %1788 = vmatpush2.bf16.msra.mxu0 0
    %1789 = vmatprep.subr.bf16.mxu0 0
    %1790 = vmatpush2.bf16.msra.mxu0 0
    %1791 = vmatprep.subr.bf16.mxu0 0
    %1792 = vmatpush2.bf16.msra.mxu0 0
    %1793 = vmatprep.subr.bf16.mxu0 0
    %1794 = vmatpush2.bf16.msra.mxu0 0
    %1795 = vmatprep.subr.bf16.mxu0 0
    %1796 = vmatpush2.bf16.msra.mxu0 0
    %1797 = vmatprep.subr.bf16.mxu0 0
    %1798 = vmatpush2.bf16.msra.mxu0 0
    %1799 = vmatprep.subr.bf16.mxu0 0
    %1800 = vmatpush2.bf16.msra.mxu0 0
    %1801 = vmatprep.mubr.bf16.mxu0 0
    %1802 = vmatmul.mubr.bf16.gmra.mxu0 %v1547
    %v1803 = vpop.f32.mrf.mxu0
    %v1804 = vadd.f32 0.0, %v1803
    %v1805 = vpop.f32.mrf.mxu0
    %v1806 = vadd.f32 0.0, %v1805
    %v1807 = vpop.f32.mrf.mxu0
    %v1808 = vadd.f32 0.0, %v1807
    %v1809 = vpop.f32.mrf.mxu0
    %v1810 = vadd.f32 0.0, %v1809
    %1811 = vdwg.mxu0
    %1812 = vmatprep.subr.bf16.mxu0 0
    %1813 = vmatpush1.bf16.msra.mxu0 0
    %1814 = vmatprep.subr.bf16.mxu0 0
    %1815 = vmatpush1.bf16.msra.mxu0 0
    %1816 = vmatprep.subr.bf16.mxu0 0
    %1817 = vmatpush1.bf16.msra.mxu0 0
    %1818 = vmatprep.subr.bf16.mxu0 0
    %1819 = vmatpush1.bf16.msra.mxu0 0
    %1820 = vmatprep.subr.bf16.mxu0 0
    %1821 = vmatpush1.bf16.msra.mxu0 0
    %1822 = vmatprep.subr.bf16.mxu0 0
    %1823 = vmatpush1.bf16.msra.mxu0 0
    %1824 = vmatprep.subr.bf16.mxu0 0
    %1825 = vmatpush1.bf16.msra.mxu0 0
    %1826 = vmatprep.subr.bf16.mxu0 %v1583
    %1827 = vmatpush1.bf16.msra.mxu0 %v1580
    %1828 = vmatprep.subr.bf16.mxu0 0
    %1829 = vmatpush2.bf16.msra.mxu0 0
    %1830 = vmatprep.subr.bf16.mxu0 0
    %1831 = vmatpush2.bf16.msra.mxu0 0
    %1832 = vmatprep.subr.bf16.mxu0 0
    %1833 = vmatpush2.bf16.msra.mxu0 0
    %1834 = vmatprep.subr.bf16.mxu0 0
    %1835 = vmatpush2.bf16.msra.mxu0 0
    %1836 = vmatprep.subr.bf16.mxu0 0
    %1837 = vmatpush2.bf16.msra.mxu0 0
    %1838 = vmatprep.subr.bf16.mxu0 0
    %1839 = vmatpush2.bf16.msra.mxu0 0
    %1840 = vmatprep.subr.bf16.mxu0 0
    %1841 = vmatpush2.bf16.msra.mxu0 0
    %1842 = vmatprep.subr.bf16.mxu0 0
    %1843 = vmatpush2.bf16.msra.mxu0 0
    %1844 = vmatprep.mubr.bf16.mxu0 0
    %1845 = vmatmul.mubr.bf16.gmra.mxu0 %v1547
    %v1846 = vpop.f32.mrf.mxu0
    %v1847 = vadd.f32 0.0, %v1846
    %v1848 = vpop.f32.mrf.mxu0
    %v1849 = vadd.f32 0.0, %v1848
    %v1850 = vpop.f32.mrf.mxu0
    %v1851 = vadd.f32 0.0, %v1850
    %v1852 = vpop.f32.mrf.mxu0
    %v1853 = vadd.f32 0.0, %v1852
    %1854 = vdwg.mxu0
    %1855 = vmatprep.subr.bf16.mxu0 0
    %1856 = vmatpush1.bf16.msra.mxu0 0
    %1857 = vmatprep.subr.bf16.mxu0 0
    %1858 = vmatpush1.bf16.msra.mxu0 0
    %1859 = vmatprep.subr.bf16.mxu0 0
    %1860 = vmatpush1.bf16.msra.mxu0 0
    %1861 = vmatprep.subr.bf16.mxu0 0
    %1862 = vmatpush1.bf16.msra.mxu0 0
    %1863 = vmatprep.subr.bf16.mxu0 0
    %1864 = vmatpush1.bf16.msra.mxu0 0
    %1865 = vmatprep.subr.bf16.mxu0 0
    %1866 = vmatpush1.bf16.msra.mxu0 0
    %1867 = vmatprep.subr.bf16.mxu0 0
    %1868 = vmatpush1.bf16.msra.mxu0 0
    %1869 = vmatprep.subr.bf16.mxu0 %v1589
    %1870 = vmatpush1.bf16.msra.mxu0 %v1586
    %1871 = vmatprep.subr.bf16.mxu0 0
    %1872 = vmatpush2.bf16.msra.mxu0 0
    %1873 = vmatprep.subr.bf16.mxu0 0
    %1874 = vmatpush2.bf16.msra.mxu0 0
    %1875 = vmatprep.subr.bf16.mxu0 0
    %1876 = vmatpush2.bf16.msra.mxu0 0
    %1877 = vmatprep.subr.bf16.mxu0 0
    %1878 = vmatpush2.bf16.msra.mxu0 0
    %1879 = vmatprep.subr.bf16.mxu0 0
    %1880 = vmatpush2.bf16.msra.mxu0 0
    %1881 = vmatprep.subr.bf16.mxu0 0
    %1882 = vmatpush2.bf16.msra.mxu0 0
    %1883 = vmatprep.subr.bf16.mxu0 0
    %1884 = vmatpush2.bf16.msra.mxu0 0
    %1885 = vmatprep.subr.bf16.mxu0 0
    %1886 = vmatpush2.bf16.msra.mxu0 0
    %1887 = vmatprep.mubr.bf16.mxu0 0
    %1888 = vmatmul.mubr.bf16.gmra.mxu0 %v1547
    %v1889 = vpop.f32.mrf.mxu0
    %v1890 = vadd.f32 0.0, %v1889
    %v1891 = vpop.f32.mrf.mxu0
    %v1892 = vadd.f32 0.0, %v1891
    %v1893 = vpop.f32.mrf.mxu0
    %v1894 = vadd.f32 0.0, %v1893
    %v1895 = vpop.f32.mrf.mxu0
    %v1896 = vadd.f32 0.0, %v1895
    %1897 = vdwg.mxu0
    %1898 = vmatprep.subr.bf16.mxu0 0
    %1899 = vmatpush1.bf16.msra.mxu0 0
    %1900 = vmatprep.subr.bf16.mxu0 0
    %1901 = vmatpush1.bf16.msra.mxu0 0
    %1902 = vmatprep.subr.bf16.mxu0 0
    %1903 = vmatpush1.bf16.msra.mxu0 0
    %1904 = vmatprep.subr.bf16.mxu0 0
    %1905 = vmatpush1.bf16.msra.mxu0 0
    %1906 = vmatprep.subr.bf16.mxu0 0
    %1907 = vmatpush1.bf16.msra.mxu0 0
    %1908 = vmatprep.subr.bf16.mxu0 0
    %1909 = vmatpush1.bf16.msra.mxu0 0
    %1910 = vmatprep.subr.bf16.mxu0 0
    %1911 = vmatpush1.bf16.msra.mxu0 0
    %1912 = vmatprep.subr.bf16.mxu0 %v1595
    %1913 = vmatpush1.bf16.msra.mxu0 %v1592
    %1914 = vmatprep.subr.bf16.mxu0 0
    %1915 = vmatpush2.bf16.msra.mxu0 0
    %1916 = vmatprep.subr.bf16.mxu0 0
    %1917 = vmatpush2.bf16.msra.mxu0 0
    %1918 = vmatprep.subr.bf16.mxu0 0
    %1919 = vmatpush2.bf16.msra.mxu0 0
    %1920 = vmatprep.subr.bf16.mxu0 0
    %1921 = vmatpush2.bf16.msra.mxu0 0
    %1922 = vmatprep.subr.bf16.mxu0 0
    %1923 = vmatpush2.bf16.msra.mxu0 0
    %1924 = vmatprep.subr.bf16.mxu0 0
    %1925 = vmatpush2.bf16.msra.mxu0 0
    %1926 = vmatprep.subr.bf16.mxu0 0
    %1927 = vmatpush2.bf16.msra.mxu0 0
    %1928 = vmatprep.subr.bf16.mxu0 0
    %1929 = vmatpush2.bf16.msra.mxu0 0
    %1930 = vmatprep.mubr.bf16.mxu0 0
    %1931 = vmatmul.mubr.bf16.gmra.mxu0 %v1547
    %v1932 = vpop.f32.mrf.mxu0
    %v1933 = vadd.f32 0.0, %v1932
    %v1934 = vpop.f32.mrf.mxu0
    %v1935 = vadd.f32 0.0, %v1934
    %v1936 = vpop.f32.mrf.mxu0
    %v1937 = vadd.f32 0.0, %v1936
    %v1938 = vpop.f32.mrf.mxu0
    %v1939 = vadd.f32 0.0, %v1938
    %1940 = vdwg.mxu0
    %v1941 = vmul.f32 %v1632, 2.0
    %v1942 = vmul.f32 %v1634, 2.0
    %v1943 = vmul.f32 %v1675, 2.0
    %v1944 = vmul.f32 %v1677, 2.0
    %v1945 = vmul.f32 %v1718, 2.0
    %v1946 = vmul.f32 %v1720, 2.0
    %v1947 = vmul.f32 %v1761, 2.0
    %v1948 = vmul.f32 %v1763, 2.0
    %v1949 = vmul.f32 %v1804, 2.0
    %v1950 = vmul.f32 %v1806, 2.0
    %v1951 = vmul.f32 %v1847, 2.0
    %v1952 = vmul.f32 %v1849, 2.0
    %v1953 = vmul.f32 %v1890, 2.0
    %v1954 = vmul.f32 %v1892, 2.0
    %v1955 = vmul.f32 %v1933, 2.0
    %v1956 = vmul.f32 %v1935, 2.0
    %v1957 = vmul.f32 %v1636, 2.0
    %v1958 = vmul.f32 %v1638, 2.0
    %v1959 = vmul.f32 %v1679, 2.0
    %v1960 = vmul.f32 %v1681, 2.0
    %v1961 = vmul.f32 %v1722, 2.0
    %v1962 = vmul.f32 %v1724, 2.0
    %v1963 = vmul.f32 %v1765, 2.0
    %v1964 = vmul.f32 %v1767, 2.0
    %v1965 = vmul.f32 %v1808, 2.0
    %v1966 = vmul.f32 %v1810, 2.0
    %v1967 = vmul.f32 %v1851, 2.0
    %v1968 = vmul.f32 %v1853, 2.0
    %v1969 = vmul.f32 %v1894, 2.0
    %v1970 = vmul.f32 %v1896, 2.0
    %v1971 = vmul.f32 %v1937, 2.0
    %v1972 = vmul.f32 %v1939, 2.0
    %1974 = vset.pattern.permute.xlu0 0
    %1975 = vperm.xlu0 %1974, %v1522
    %v1976 = vpop.permute.xlu0 %1975
    %1979 = vset.pattern.permute.xlu0 0
    %1980 = vperm.xlu0 %1979, %v1523
    %v1981 = vpop.permute.xlu0 %1980
    %v1983 = vsub.f32 %v1976, %v1941
    %v1984 = vsub.f32 %v1976, %v1942
    %v1985 = vsub.f32 %v1976, %v1943
    %v1986 = vsub.f32 %v1976, %v1944
    %v1987 = vsub.f32 %v1976, %v1945
    %v1988 = vsub.f32 %v1976, %v1946
    %v1989 = vsub.f32 %v1976, %v1947
    %v1990 = vsub.f32 %v1976, %v1948
    %v1991 = vsub.f32 %v1976, %v1949
    %v1992 = vsub.f32 %v1976, %v1950
    %v1993 = vsub.f32 %v1976, %v1951
    %v1994 = vsub.f32 %v1976, %v1952
    %v1995 = vsub.f32 %v1976, %v1953
    %v1996 = vsub.f32 %v1976, %v1954
    %v1997 = vsub.f32 %v1976, %v1955
    %v1998 = vsub.f32 %v1976, %v1956
    %v1999 = vsub.f32 %v1981, %v1957
    %v2000 = vsub.f32 %v1981, %v1958
    %v2001 = vsub.f32 %v1981, %v1959
    %v2002 = vsub.f32 %v1981, %v1960
    %v2003 = vsub.f32 %v1981, %v1961
    %v2004 = vsub.f32 %v1981, %v1962
    %v2005 = vsub.f32 %v1981, %v1963
    %v2006 = vsub.f32 %v1981, %v1964
    %v2007 = vsub.f32 %v1981, %v1965
    %v2008 = vsub.f32 %v1981, %v1966
    %v2009 = vsub.f32 %v1981, %v1967
    %v2010 = vsub.f32 %v1981, %v1968
    %v2011 = vsub.f32 %v1981, %v1969
    %v2012 = vsub.f32 %v1981, %v1970
    %v2013 = vsub.f32 %v1981, %v1971
    %v2014 = vsub.f32 %v1981, %v1972
    %v2015 = vmin.f32 %v1983, %v1999
    %v2016 = vrot.slane %v2015, 4
    %v2017 = vmin.f32 %v2015, %v2016
    %v2018 = vrot.slane %v2017, 2
    %v2019 = vmin.f32 %v2017, %v2018
    %v2020 = vrot.slane %v2019, 1
    %v2021 = vmin.f32 %v2019, %v2020
    %v2022 = vmin.f32 %v1984, %v2000
    %v2023 = vrot.slane %v2022, 4
    %v2024 = vmin.f32 %v2022, %v2023
    %v2025 = vrot.slane %v2024, 2
    %v2026 = vmin.f32 %v2024, %v2025
    %v2027 = vrot.slane %v2026, 1
    %v2028 = vmin.f32 %v2026, %v2027
    %v2029 = vmin.f32 %v1985, %v2001
    %v2030 = vrot.slane %v2029, 4
    %v2031 = vmin.f32 %v2029, %v2030
    %v2032 = vrot.slane %v2031, 2
    %v2033 = vmin.f32 %v2031, %v2032
    %v2034 = vrot.slane %v2033, 1
    %v2035 = vmin.f32 %v2033, %v2034
    %v2036 = vmin.f32 %v1986, %v2002
    %v2037 = vrot.slane %v2036, 4
    %v2038 = vmin.f32 %v2036, %v2037
    %v2039 = vrot.slane %v2038, 2
    %v2040 = vmin.f32 %v2038, %v2039
    %v2041 = vrot.slane %v2040, 1
    %v2042 = vmin.f32 %v2040, %v2041
    %v2043 = vmin.f32 %v1987, %v2003
    %v2044 = vrot.slane %v2043, 4
    %v2045 = vmin.f32 %v2043, %v2044
    %v2046 = vrot.slane %v2045, 2
    %v2047 = vmin.f32 %v2045, %v2046
    %v2048 = vrot.slane %v2047, 1
    %v2049 = vmin.f32 %v2047, %v2048
    %v2050 = vmin.f32 %v1988, %v2004
    %v2051 = vrot.slane %v2050, 4
    %v2052 = vmin.f32 %v2050, %v2051
    %v2053 = vrot.slane %v2052, 2
    %v2054 = vmin.f32 %v2052, %v2053
    %v2055 = vrot.slane %v2054, 1
    %v2056 = vmin.f32 %v2054, %v2055
    %v2057 = vmin.f32 %v1989, %v2005
    %v2058 = vrot.slane %v2057, 4
    %v2059 = vmin.f32 %v2057, %v2058
    %v2060 = vrot.slane %v2059, 2
    %v2061 = vmin.f32 %v2059, %v2060
    %v2062 = vrot.slane %v2061, 1
    %v2063 = vmin.f32 %v2061, %v2062
    %v2064 = vmin.f32 %v1990, %v2006
    %v2065 = vrot.slane %v2064, 4
    %v2066 = vmin.f32 %v2064, %v2065
    %v2067 = vrot.slane %v2066, 2
    %v2068 = vmin.f32 %v2066, %v2067
    %v2069 = vrot.slane %v2068, 1
    %v2070 = vmin.f32 %v2068, %v2069
    %v2071 = vmin.f32 %v1991, %v2007
    %v2072 = vrot.slane %v2071, 4
    %v2073 = vmin.f32 %v2071, %v2072
    %v2074 = vrot.slane %v2073, 2
    %v2075 = vmin.f32 %v2073, %v2074
    %v2076 = vrot.slane %v2075, 1
    %v2077 = vmin.f32 %v2075, %v2076
    %v2078 = vmin.f32 %v1992, %v2008
    %v2079 = vrot.slane %v2078, 4
    %v2080 = vmin.f32 %v2078, %v2079
    %v2081 = vrot.slane %v2080, 2
    %v2082 = vmin.f32 %v2080, %v2081
    %v2083 = vrot.slane %v2082, 1
    %v2084 = vmin.f32 %v2082, %v2083
    %v2085 = vmin.f32 %v1993, %v2009
    %v2086 = vrot.slane %v2085, 4
    %v2087 = vmin.f32 %v2085, %v2086
    %v2088 = vrot.slane %v2087, 2
    %v2089 = vmin.f32 %v2087, %v2088
    %v2090 = vrot.slane %v2089, 1
    %v2091 = vmin.f32 %v2089, %v2090
    %v2092 = vmin.f32 %v1994, %v2010
    %v2093 = vrot.slane %v2092, 4
    %v2094 = vmin.f32 %v2092, %v2093
    %v2095 = vrot.slane %v2094, 2
    %v2096 = vmin.f32 %v2094, %v2095
    %v2097 = vrot.slane %v2096, 1
    %v2098 = vmin.f32 %v2096, %v2097
    %v2099 = vmin.f32 %v1995, %v2011
    %v2100 = vrot.slane %v2099, 4
    %v2101 = vmin.f32 %v2099, %v2100
    %v2102 = vrot.slane %v2101, 2
    %v2103 = vmin.f32 %v2101, %v2102
    %v2104 = vrot.slane %v2103, 1
    %v2105 = vmin.f32 %v2103, %v2104
    %v2106 = vmin.f32 %v1996, %v2012
    %v2107 = vrot.slane %v2106, 4
    %v2108 = vmin.f32 %v2106, %v2107
    %v2109 = vrot.slane %v2108, 2
    %v2110 = vmin.f32 %v2108, %v2109
    %v2111 = vrot.slane %v2110, 1
    %v2112 = vmin.f32 %v2110, %v2111
    %v2113 = vmin.f32 %v1997, %v2013
    %v2114 = vrot.slane %v2113, 4
    %v2115 = vmin.f32 %v2113, %v2114
    %v2116 = vrot.slane %v2115, 2
    %v2117 = vmin.f32 %v2115, %v2116
    %v2118 = vrot.slane %v2117, 1
    %v2119 = vmin.f32 %v2117, %v2118
    %v2120 = vmin.f32 %v1998, %v2014
    %v2121 = vrot.slane %v2120, 4
    %v2122 = vmin.f32 %v2120, %v2121
    %v2123 = vrot.slane %v2122, 2
    %v2124 = vmin.f32 %v2122, %v2123
    %v2125 = vrot.slane %v2124, 1
    %v2126 = vmin.f32 %v2124, %v2125
    %v2127 = vlaneseq
    %v2128 = vshrl.u32 %v2127, 7
    %v2129 = vadd.s32 %v2128, 8
    %vm2130 = vcmp.le.f32.partialorder %v1983, %v2021
    %vm2131 = vcmp.le.f32.partialorder %v1984, %v2028
    %vm2132 = vcmp.le.f32.partialorder %v1985, %v2035
    %vm2133 = vcmp.le.f32.partialorder %v1986, %v2042
    %vm2134 = vcmp.le.f32.partialorder %v1987, %v2049
    %vm2135 = vcmp.le.f32.partialorder %v1988, %v2056
    %vm2136 = vcmp.le.f32.partialorder %v1989, %v2063
    %vm2137 = vcmp.le.f32.partialorder %v1990, %v2070
    %vm2138 = vcmp.le.f32.partialorder %v1991, %v2077
    %vm2139 = vcmp.le.f32.partialorder %v1992, %v2084
    %vm2140 = vcmp.le.f32.partialorder %v1993, %v2091
    %vm2141 = vcmp.le.f32.partialorder %v1994, %v2098
    %vm2142 = vcmp.le.f32.partialorder %v1995, %v2105
    %vm2143 = vcmp.le.f32.partialorder %v1996, %v2112
    %vm2144 = vcmp.le.f32.partialorder %v1997, %v2119
    %vm2145 = vcmp.le.f32.partialorder %v1998, %v2126
    %vm2146 = vcmp.le.f32.partialorder %v1999, %v2021
    %vm2147 = vcmp.le.f32.partialorder %v2000, %v2028
    %vm2148 = vcmp.le.f32.partialorder %v2001, %v2035
    %vm2149 = vcmp.le.f32.partialorder %v2002, %v2042
    %vm2150 = vcmp.le.f32.partialorder %v2003, %v2049
    %vm2151 = vcmp.le.f32.partialorder %v2004, %v2056
    %vm2152 = vcmp.le.f32.partialorder %v2005, %v2063
    %vm2153 = vcmp.le.f32.partialorder %v2006, %v2070
    %vm2154 = vcmp.le.f32.partialorder %v2007, %v2077
    %vm2155 = vcmp.le.f32.partialorder %v2008, %v2084
    %vm2156 = vcmp.le.f32.partialorder %v2009, %v2091
    %vm2157 = vcmp.le.f32.partialorder %v2010, %v2098
    %vm2158 = vcmp.le.f32.partialorder %v2011, %v2105
    %vm2159 = vcmp.le.f32.partialorder %v2012, %v2112
    %vm2160 = vcmp.le.f32.partialorder %v2013, %v2119
    %vm2161 = vcmp.le.f32.partialorder %v2014, %v2126
    %v2162 = vsel %vm2130, %v2128, 16
    %v2163 = vsel %vm2131, %v2128, 16
    %v2164 = vsel %vm2132, %v2128, 16
    %v2165 = vsel %vm2133, %v2128, 16
    %v2166 = vsel %vm2134, %v2128, 16
    %v2167 = vsel %vm2135, %v2128, 16
    %v2168 = vsel %vm2136, %v2128, 16
    %v2169 = vsel %vm2137, %v2128, 16
    %v2170 = vsel %vm2138, %v2128, 16
    %v2171 = vsel %vm2139, %v2128, 16
    %v2172 = vsel %vm2140, %v2128, 16
    %v2173 = vsel %vm2141, %v2128, 16
    %v2174 = vsel %vm2142, %v2128, 16
    %v2175 = vsel %vm2143, %v2128, 16
    %v2176 = vsel %vm2144, %v2128, 16
    %v2177 = vsel %vm2145, %v2128, 16
    %v2178 = vsel %vm2146, %v2129, 16
    %v2179 = vsel %vm2147, %v2129, 16
    %v2180 = vsel %vm2148, %v2129, 16
    %v2181 = vsel %vm2149, %v2129, 16
    %v2182 = vsel %vm2150, %v2129, 16
    %v2183 = vsel %vm2151, %v2129, 16
    %v2184 = vsel %vm2152, %v2129, 16
    %v2185 = vsel %vm2153, %v2129, 16
    %v2186 = vsel %vm2154, %v2129, 16
    %v2187 = vsel %vm2155, %v2129, 16
    %v2188 = vsel %vm2156, %v2129, 16
    %v2189 = vsel %vm2157, %v2129, 16
    %v2190 = vsel %vm2158, %v2129, 16
    %v2191 = vsel %vm2159, %v2129, 16
    %v2192 = vsel %vm2160, %v2129, 16
    %v2193 = vsel %vm2161, %v2129, 16
    %vm2194 = vcmp.lt.s32.totalorder %v2162, %v2178
    %v2195 = vsel %vm2194, %v2162, %v2178
    %v2196 = vrot.slane %v2195, 4
    %vm2197 = vcmp.lt.s32.totalorder %v2195, %v2196
    %v2198 = vsel %vm2197, %v2195, %v2196
    %v2199 = vrot.slane %v2198, 2
    %vm2200 = vcmp.lt.s32.totalorder %v2198, %v2199
    %v2201 = vsel %vm2200, %v2198, %v2199
    %v2202 = vrot.slane %v2201, 1
    %vm2203 = vcmp.lt.s32.totalorder %v2201, %v2202
    %v2204 = vsel %vm2203, %v2201, %v2202
    %vm2205 = vcmp.lt.s32.totalorder %v2163, %v2179
    %v2206 = vsel %vm2205, %v2163, %v2179
    %v2207 = vrot.slane %v2206, 4
    %vm2208 = vcmp.lt.s32.totalorder %v2206, %v2207
    %v2209 = vsel %vm2208, %v2206, %v2207
    %v2210 = vrot.slane %v2209, 2
    %vm2211 = vcmp.lt.s32.totalorder %v2209, %v2210
    %v2212 = vsel %vm2211, %v2209, %v2210
    %v2213 = vrot.slane %v2212, 1
    %vm2214 = vcmp.lt.s32.totalorder %v2212, %v2213
    %v2215 = vsel %vm2214, %v2212, %v2213
    %vm2216 = vcmp.lt.s32.totalorder %v2164, %v2180
    %v2217 = vsel %vm2216, %v2164, %v2180
    %v2218 = vrot.slane %v2217, 4
    %vm2219 = vcmp.lt.s32.totalorder %v2217, %v2218
    %v2220 = vsel %vm2219, %v2217, %v2218
    %v2221 = vrot.slane %v2220, 2
    %vm2222 = vcmp.lt.s32.totalorder %v2220, %v2221
    %v2223 = vsel %vm2222, %v2220, %v2221
    %v2224 = vrot.slane %v2223, 1
    %vm2225 = vcmp.lt.s32.totalorder %v2223, %v2224
    %v2226 = vsel %vm2225, %v2223, %v2224
    %vm2227 = vcmp.lt.s32.totalorder %v2165, %v2181
    %v2228 = vsel %vm2227, %v2165, %v2181
    %v2229 = vrot.slane %v2228, 4
    %vm2230 = vcmp.lt.s32.totalorder %v2228, %v2229
    %v2231 = vsel %vm2230, %v2228, %v2229
    %v2232 = vrot.slane %v2231, 2
    %vm2233 = vcmp.lt.s32.totalorder %v2231, %v2232
    %v2234 = vsel %vm2233, %v2231, %v2232
    %v2235 = vrot.slane %v2234, 1
    %vm2236 = vcmp.lt.s32.totalorder %v2234, %v2235
    %v2237 = vsel %vm2236, %v2234, %v2235
    %vm2238 = vcmp.lt.s32.totalorder %v2166, %v2182
    %v2239 = vsel %vm2238, %v2166, %v2182
    %v2240 = vrot.slane %v2239, 4
    %vm2241 = vcmp.lt.s32.totalorder %v2239, %v2240
    %v2242 = vsel %vm2241, %v2239, %v2240
    %v2243 = vrot.slane %v2242, 2
    %vm2244 = vcmp.lt.s32.totalorder %v2242, %v2243
    %v2245 = vsel %vm2244, %v2242, %v2243
    %v2246 = vrot.slane %v2245, 1
    %vm2247 = vcmp.lt.s32.totalorder %v2245, %v2246
    %v2248 = vsel %vm2247, %v2245, %v2246
    %vm2249 = vcmp.lt.s32.totalorder %v2167, %v2183
    %v2250 = vsel %vm2249, %v2167, %v2183
    %v2251 = vrot.slane %v2250, 4
    %vm2252 = vcmp.lt.s32.totalorder %v2250, %v2251
    %v2253 = vsel %vm2252, %v2250, %v2251
    %v2254 = vrot.slane %v2253, 2
    %vm2255 = vcmp.lt.s32.totalorder %v2253, %v2254
    %v2256 = vsel %vm2255, %v2253, %v2254
    %v2257 = vrot.slane %v2256, 1
    %vm2258 = vcmp.lt.s32.totalorder %v2256, %v2257
    %v2259 = vsel %vm2258, %v2256, %v2257
    %vm2260 = vcmp.lt.s32.totalorder %v2168, %v2184
    %v2261 = vsel %vm2260, %v2168, %v2184
    %v2262 = vrot.slane %v2261, 4
    %vm2263 = vcmp.lt.s32.totalorder %v2261, %v2262
    %v2264 = vsel %vm2263, %v2261, %v2262
    %v2265 = vrot.slane %v2264, 2
    %vm2266 = vcmp.lt.s32.totalorder %v2264, %v2265
    %v2267 = vsel %vm2266, %v2264, %v2265
    %v2268 = vrot.slane %v2267, 1
    %vm2269 = vcmp.lt.s32.totalorder %v2267, %v2268
    %v2270 = vsel %vm2269, %v2267, %v2268
    %vm2271 = vcmp.lt.s32.totalorder %v2169, %v2185
    %v2272 = vsel %vm2271, %v2169, %v2185
    %v2273 = vrot.slane %v2272, 4
    %vm2274 = vcmp.lt.s32.totalorder %v2272, %v2273
    %v2275 = vsel %vm2274, %v2272, %v2273
    %v2276 = vrot.slane %v2275, 2
    %vm2277 = vcmp.lt.s32.totalorder %v2275, %v2276
    %v2278 = vsel %vm2277, %v2275, %v2276
    %v2279 = vrot.slane %v2278, 1
    %vm2280 = vcmp.lt.s32.totalorder %v2278, %v2279
    %v2281 = vsel %vm2280, %v2278, %v2279
    %vm2282 = vcmp.lt.s32.totalorder %v2170, %v2186
    %v2283 = vsel %vm2282, %v2170, %v2186
    %v2284 = vrot.slane %v2283, 4
    %vm2285 = vcmp.lt.s32.totalorder %v2283, %v2284
    %v2286 = vsel %vm2285, %v2283, %v2284
    %v2287 = vrot.slane %v2286, 2
    %vm2288 = vcmp.lt.s32.totalorder %v2286, %v2287
    %v2289 = vsel %vm2288, %v2286, %v2287
    %v2290 = vrot.slane %v2289, 1
    %vm2291 = vcmp.lt.s32.totalorder %v2289, %v2290
    %v2292 = vsel %vm2291, %v2289, %v2290
    %vm2293 = vcmp.lt.s32.totalorder %v2171, %v2187
    %v2294 = vsel %vm2293, %v2171, %v2187
    %v2295 = vrot.slane %v2294, 4
    %vm2296 = vcmp.lt.s32.totalorder %v2294, %v2295
    %v2297 = vsel %vm2296, %v2294, %v2295
    %v2298 = vrot.slane %v2297, 2
    %vm2299 = vcmp.lt.s32.totalorder %v2297, %v2298
    %v2300 = vsel %vm2299, %v2297, %v2298
    %v2301 = vrot.slane %v2300, 1
    %vm2302 = vcmp.lt.s32.totalorder %v2300, %v2301
    %v2303 = vsel %vm2302, %v2300, %v2301
    %vm2304 = vcmp.lt.s32.totalorder %v2172, %v2188
    %v2305 = vsel %vm2304, %v2172, %v2188
    %v2306 = vrot.slane %v2305, 4
    %vm2307 = vcmp.lt.s32.totalorder %v2305, %v2306
    %v2308 = vsel %vm2307, %v2305, %v2306
    %v2309 = vrot.slane %v2308, 2
    %vm2310 = vcmp.lt.s32.totalorder %v2308, %v2309
    %v2311 = vsel %vm2310, %v2308, %v2309
    %v2312 = vrot.slane %v2311, 1
    %vm2313 = vcmp.lt.s32.totalorder %v2311, %v2312
    %v2314 = vsel %vm2313, %v2311, %v2312
    %vm2315 = vcmp.lt.s32.totalorder %v2173, %v2189
    %v2316 = vsel %vm2315, %v2173, %v2189
    %v2317 = vrot.slane %v2316, 4
    %vm2318 = vcmp.lt.s32.totalorder %v2316, %v2317
    %v2319 = vsel %vm2318, %v2316, %v2317
    %v2320 = vrot.slane %v2319, 2
    %vm2321 = vcmp.lt.s32.totalorder %v2319, %v2320
    %v2322 = vsel %vm2321, %v2319, %v2320
    %v2323 = vrot.slane %v2322, 1
    %vm2324 = vcmp.lt.s32.totalorder %v2322, %v2323
    %v2325 = vsel %vm2324, %v2322, %v2323
    %vm2326 = vcmp.lt.s32.totalorder %v2174, %v2190
    %v2327 = vsel %vm2326, %v2174, %v2190
    %v2328 = vrot.slane %v2327, 4
    %vm2329 = vcmp.lt.s32.totalorder %v2327, %v2328
    %v2330 = vsel %vm2329, %v2327, %v2328
    %v2331 = vrot.slane %v2330, 2
    %vm2332 = vcmp.lt.s32.totalorder %v2330, %v2331
    %v2333 = vsel %vm2332, %v2330, %v2331
    %v2334 = vrot.slane %v2333, 1
    %vm2335 = vcmp.lt.s32.totalorder %v2333, %v2334
    %v2336 = vsel %vm2335, %v2333, %v2334
    %vm2337 = vcmp.lt.s32.totalorder %v2175, %v2191
    %v2338 = vsel %vm2337, %v2175, %v2191
    %v2339 = vrot.slane %v2338, 4
    %vm2340 = vcmp.lt.s32.totalorder %v2338, %v2339
    %v2341 = vsel %vm2340, %v2338, %v2339
    %v2342 = vrot.slane %v2341, 2
    %vm2343 = vcmp.lt.s32.totalorder %v2341, %v2342
    %v2344 = vsel %vm2343, %v2341, %v2342
    %v2345 = vrot.slane %v2344, 1
    %vm2346 = vcmp.lt.s32.totalorder %v2344, %v2345
    %v2347 = vsel %vm2346, %v2344, %v2345
    %vm2348 = vcmp.lt.s32.totalorder %v2176, %v2192
    %v2349 = vsel %vm2348, %v2176, %v2192
    %v2350 = vrot.slane %v2349, 4
    %vm2351 = vcmp.lt.s32.totalorder %v2349, %v2350
    %v2352 = vsel %vm2351, %v2349, %v2350
    %v2353 = vrot.slane %v2352, 2
    %vm2354 = vcmp.lt.s32.totalorder %v2352, %v2353
    %v2355 = vsel %vm2354, %v2352, %v2353
    %v2356 = vrot.slane %v2355, 1
    %vm2357 = vcmp.lt.s32.totalorder %v2355, %v2356
    %v2358 = vsel %vm2357, %v2355, %v2356
    %vm2359 = vcmp.lt.s32.totalorder %v2177, %v2193
    %v2360 = vsel %vm2359, %v2177, %v2193
    %v2361 = vrot.slane %v2360, 4
    %vm2362 = vcmp.lt.s32.totalorder %v2360, %v2361
    %v2363 = vsel %vm2362, %v2360, %v2361
    %v2364 = vrot.slane %v2363, 2
    %vm2365 = vcmp.lt.s32.totalorder %v2363, %v2364
    %v2366 = vsel %vm2365, %v2363, %v2364
    %v2367 = vrot.slane %v2366, 1
    %vm2368 = vcmp.lt.s32.totalorder %v2366, %v2367
    %v2369 = vsel %vm2368, %v2366, %v2367
    %vm2370 = vcmp.eq.s32.totalorder %v2128, %v2204
    %vm2371 = vcmp.eq.s32.totalorder %v2128, %v2215
    %vm2372 = vcmp.eq.s32.totalorder %v2128, %v2226
    %vm2373 = vcmp.eq.s32.totalorder %v2128, %v2237
    %vm2374 = vcmp.eq.s32.totalorder %v2128, %v2248
    %vm2375 = vcmp.eq.s32.totalorder %v2128, %v2259
    %vm2376 = vcmp.eq.s32.totalorder %v2128, %v2270
    %vm2377 = vcmp.eq.s32.totalorder %v2128, %v2281
    %vm2378 = vcmp.eq.s32.totalorder %v2128, %v2292
    %vm2379 = vcmp.eq.s32.totalorder %v2128, %v2303
    %vm2380 = vcmp.eq.s32.totalorder %v2128, %v2314
    %vm2381 = vcmp.eq.s32.totalorder %v2128, %v2325
    %vm2382 = vcmp.eq.s32.totalorder %v2128, %v2336
    %vm2383 = vcmp.eq.s32.totalorder %v2128, %v2347
    %vm2384 = vcmp.eq.s32.totalorder %v2128, %v2358
    %vm2385 = vcmp.eq.s32.totalorder %v2128, %v2369
    %vm2386 = vcmp.eq.s32.totalorder %v2129, %v2204
    %vm2387 = vcmp.eq.s32.totalorder %v2129, %v2215
    %vm2388 = vcmp.eq.s32.totalorder %v2129, %v2226
    %vm2389 = vcmp.eq.s32.totalorder %v2129, %v2237
    %vm2390 = vcmp.eq.s32.totalorder %v2129, %v2248
    %vm2391 = vcmp.eq.s32.totalorder %v2129, %v2259
    %vm2392 = vcmp.eq.s32.totalorder %v2129, %v2270
    %vm2393 = vcmp.eq.s32.totalorder %v2129, %v2281
    %vm2394 = vcmp.eq.s32.totalorder %v2129, %v2292
    %vm2395 = vcmp.eq.s32.totalorder %v2129, %v2303
    %vm2396 = vcmp.eq.s32.totalorder %v2129, %v2314
    %vm2397 = vcmp.eq.s32.totalorder %v2129, %v2325
    %vm2398 = vcmp.eq.s32.totalorder %v2129, %v2336
    %vm2399 = vcmp.eq.s32.totalorder %v2129, %v2347
    %vm2400 = vcmp.eq.s32.totalorder %v2129, %v2358
    %vm2401 = vcmp.eq.s32.totalorder %v2129, %v2369
    %v2402 = vsel %vm2370, 1, 0
    %v2403 = vsel %vm2371, 1, 0
    %v2404 = vsel %vm2372, 1, 0
    %v2405 = vsel %vm2373, 1, 0
    %v2406 = vsel %vm2374, 1, 0
    %v2407 = vsel %vm2375, 1, 0
    %v2408 = vsel %vm2376, 1, 0
    %v2409 = vsel %vm2377, 1, 0
    %v2410 = vsel %vm2378, 1, 0
    %v2411 = vsel %vm2379, 1, 0
    %v2412 = vsel %vm2380, 1, 0
    %v2413 = vsel %vm2381, 1, 0
    %v2414 = vsel %vm2382, 1, 0
    %v2415 = vsel %vm2383, 1, 0
    %v2416 = vsel %vm2384, 1, 0
    %v2417 = vsel %vm2385, 1, 0
    %v2418 = vsel %vm2386, 1, 0
    %v2419 = vsel %vm2387, 1, 0
    %v2420 = vsel %vm2388, 1, 0
    %v2421 = vsel %vm2389, 1, 0
    %v2422 = vsel %vm2390, 1, 0
    %v2423 = vsel %vm2391, 1, 0
    %v2424 = vsel %vm2392, 1, 0
    %v2425 = vsel %vm2393, 1, 0
    %v2426 = vsel %vm2394, 1, 0
    %v2427 = vsel %vm2395, 1, 0
    %v2428 = vsel %vm2396, 1, 0
    %v2429 = vsel %vm2397, 1, 0
    %v2430 = vsel %vm2398, 1, 0
    %v2431 = vsel %vm2399, 1, 0
    %v2432 = vsel %vm2400, 1, 0
    %v2433 = vsel %vm2401, 1, 0
    %v2434 = vcvt.s32.f32 %v2402
    %v2435 = vcvt.s32.f32 %v2403
    %v2436 = vcvt.s32.f32 %v2404
    %v2437 = vcvt.s32.f32 %v2405
    %v2438 = vcvt.s32.f32 %v2406
    %v2439 = vcvt.s32.f32 %v2407
    %v2440 = vcvt.s32.f32 %v2408
    %v2441 = vcvt.s32.f32 %v2409
    %v2442 = vcvt.s32.f32 %v2410
    %v2443 = vcvt.s32.f32 %v2411
    %v2444 = vcvt.s32.f32 %v2412
    %v2445 = vcvt.s32.f32 %v2413
    %v2446 = vcvt.s32.f32 %v2414
    %v2447 = vcvt.s32.f32 %v2415
    %v2448 = vcvt.s32.f32 %v2416
    %v2449 = vcvt.s32.f32 %v2417
    %v2450 = vcvt.s32.f32 %v2418
    %v2451 = vcvt.s32.f32 %v2419
    %v2452 = vcvt.s32.f32 %v2420
    %v2453 = vcvt.s32.f32 %v2421
    %v2454 = vcvt.s32.f32 %v2422
    %v2455 = vcvt.s32.f32 %v2423
    %v2456 = vcvt.s32.f32 %v2424
    %v2457 = vcvt.s32.f32 %v2425
    %v2458 = vcvt.s32.f32 %v2426
    %v2459 = vcvt.s32.f32 %v2427
    %v2460 = vcvt.s32.f32 %v2428
    %v2461 = vcvt.s32.f32 %v2429
    %v2462 = vcvt.s32.f32 %v2430
    %v2463 = vcvt.s32.f32 %v2431
    %v2464 = vcvt.s32.f32 %v2432
    %v2465 = vcvt.s32.f32 %v2433
    %v2466 = vpack.c.bf16 %v2450, %v2434
    %v2467 = vpack.c.bf16 %v2451, %v2435
    %v2468 = vpack.c.bf16 %v2452, %v2436
    %v2469 = vpack.c.bf16 %v2453, %v2437
    %v2470 = vpack.c.bf16 %v2454, %v2438
    %v2471 = vpack.c.bf16 %v2455, %v2439
    %v2472 = vpack.c.bf16 %v2456, %v2440
    %v2473 = vpack.c.bf16 %v2457, %v2441
    %v2474 = vpack.c.bf16 %v2458, %v2442
    %v2475 = vpack.c.bf16 %v2459, %v2443
    %v2476 = vpack.c.bf16 %v2460, %v2444
    %v2477 = vpack.c.bf16 %v2461, %v2445
    %v2478 = vpack.c.bf16 %v2462, %v2446
    %v2479 = vpack.c.bf16 %v2463, %v2447
    %v2480 = vpack.c.bf16 %v2464, %v2448
    %v2481 = vpack.c.bf16 %v2465, %v2449
    %v2483 = vsel %vm1187, %v1521, 0
    %2485 = vmatprep.subr.bf16.mxu0 0
    %2486 = vmatpush1.bf16.msra.mxu0 0
    %2487 = vmatprep.subr.bf16.mxu0 0
    %2488 = vmatpush1.bf16.msra.mxu0 0
    %2489 = vmatprep.subr.bf16.mxu0 0
    %2490 = vmatpush1.bf16.msra.mxu0 0
    %2491 = vmatprep.subr.bf16.mxu0 0
    %2492 = vmatpush1.bf16.msra.mxu0 0
    %2493 = vmatprep.subr.bf16.mxu0 0
    %2494 = vmatpush1.bf16.msra.mxu0 0
    %2495 = vmatprep.subr.bf16.mxu0 0
    %2496 = vmatpush1.bf16.msra.mxu0 0
    %2497 = vmatprep.subr.bf16.mxu0 0
    %2498 = vmatpush1.bf16.msra.mxu0 0
    %2499 = vmatprep.subr.bf16.mxu0 %v2467
    %2500 = vmatpush1.bf16.msra.mxu0 %v2466
    %2501 = vmatprep.subr.bf16.mxu0 0
    %2502 = vmatpush2.bf16.msra.mxu0 0
    %2503 = vmatprep.subr.bf16.mxu0 0
    %2504 = vmatpush2.bf16.msra.mxu0 0
    %2505 = vmatprep.subr.bf16.mxu0 0
    %2506 = vmatpush2.bf16.msra.mxu0 0
    %2507 = vmatprep.subr.bf16.mxu0 0
    %2508 = vmatpush2.bf16.msra.mxu0 0
    %2509 = vmatprep.subr.bf16.mxu0 0
    %2510 = vmatpush2.bf16.msra.mxu0 0
    %2511 = vmatprep.subr.bf16.mxu0 0
    %2512 = vmatpush2.bf16.msra.mxu0 0
    %2513 = vmatprep.subr.bf16.mxu0 0
    %2514 = vmatpush2.bf16.msra.mxu0 0
    %2515 = vmatprep.subr.bf16.mxu0 0
    %2516 = vmatpush2.bf16.msra.mxu0 0
    %2517 = vmatprep.mubr.bf16.mxu0 0
    %2518 = vmatmul.mubr.bf16.gmra.mxu0 %v2483
    %v2519 = vpop.f32.mrf.mxu0
    %v2520 = vadd.f32 0.0, %v2519
    %v2521 = vpop.f32.mrf.mxu0
    %v2522 = vadd.f32 0.0, %v2521
    %v2523 = vpop.f32.mrf.mxu0
    %v2524 = vpop.f32.mrf.mxu0
    %2525 = vdwg.mxu0
    %2526 = vmatprep.subr.bf16.mxu0 0
    %2527 = vmatpush1.bf16.msra.mxu0 0
    %2528 = vmatprep.subr.bf16.mxu0 0
    %2529 = vmatpush1.bf16.msra.mxu0 0
    %2530 = vmatprep.subr.bf16.mxu0 0
    %2531 = vmatpush1.bf16.msra.mxu0 0
    %2532 = vmatprep.subr.bf16.mxu0 0
    %2533 = vmatpush1.bf16.msra.mxu0 0
    %2534 = vmatprep.subr.bf16.mxu0 0
    %2535 = vmatpush1.bf16.msra.mxu0 0
    %2536 = vmatprep.subr.bf16.mxu0 0
    %2537 = vmatpush1.bf16.msra.mxu0 0
    %2538 = vmatprep.subr.bf16.mxu0 0
    %2539 = vmatpush1.bf16.msra.mxu0 0
    %2540 = vmatprep.subr.bf16.mxu0 %v2469
    %2541 = vmatpush1.bf16.msra.mxu0 %v2468
    %2542 = vmatprep.subr.bf16.mxu0 0
    %2543 = vmatpush2.bf16.msra.mxu0 0
    %2544 = vmatprep.subr.bf16.mxu0 0
    %2545 = vmatpush2.bf16.msra.mxu0 0
    %2546 = vmatprep.subr.bf16.mxu0 0
    %2547 = vmatpush2.bf16.msra.mxu0 0
    %2548 = vmatprep.subr.bf16.mxu0 0
    %2549 = vmatpush2.bf16.msra.mxu0 0
    %2550 = vmatprep.subr.bf16.mxu0 0
    %2551 = vmatpush2.bf16.msra.mxu0 0
    %2552 = vmatprep.subr.bf16.mxu0 0
    %2553 = vmatpush2.bf16.msra.mxu0 0
    %2554 = vmatprep.subr.bf16.mxu0 0
    %2555 = vmatpush2.bf16.msra.mxu0 0
    %2556 = vmatprep.subr.bf16.mxu0 0
    %2557 = vmatpush2.bf16.msra.mxu0 0
    %2558 = vmatprep.mubr.bf16.mxu0 0
    %2559 = vmatmul.mubr.bf16.gmra.mxu0 %v2483
    %v2560 = vpop.f32.mrf.mxu0
    %v2561 = vadd.f32 0.0, %v2560
    %v2562 = vpop.f32.mrf.mxu0
    %v2563 = vadd.f32 0.0, %v2562
    %v2564 = vpop.f32.mrf.mxu0
    %v2565 = vpop.f32.mrf.mxu0
    %2566 = vdwg.mxu0
    %2567 = vmatprep.subr.bf16.mxu0 0
    %2568 = vmatpush1.bf16.msra.mxu0 0
    %2569 = vmatprep.subr.bf16.mxu0 0
    %2570 = vmatpush1.bf16.msra.mxu0 0
    %2571 = vmatprep.subr.bf16.mxu0 0
    %2572 = vmatpush1.bf16.msra.mxu0 0
    %2573 = vmatprep.subr.bf16.mxu0 0
    %2574 = vmatpush1.bf16.msra.mxu0 0
    %2575 = vmatprep.subr.bf16.mxu0 0
    %2576 = vmatpush1.bf16.msra.mxu0 0
    %2577 = vmatprep.subr.bf16.mxu0 0
    %2578 = vmatpush1.bf16.msra.mxu0 0
    %2579 = vmatprep.subr.bf16.mxu0 0
    %2580 = vmatpush1.bf16.msra.mxu0 0
    %2581 = vmatprep.subr.bf16.mxu0 %v2471
    %2582 = vmatpush1.bf16.msra.mxu0 %v2470
    %2583 = vmatprep.subr.bf16.mxu0 0
    %2584 = vmatpush2.bf16.msra.mxu0 0
    %2585 = vmatprep.subr.bf16.mxu0 0
    %2586 = vmatpush2.bf16.msra.mxu0 0
    %2587 = vmatprep.subr.bf16.mxu0 0
    %2588 = vmatpush2.bf16.msra.mxu0 0
    %2589 = vmatprep.subr.bf16.mxu0 0
    %2590 = vmatpush2.bf16.msra.mxu0 0
    %2591 = vmatprep.subr.bf16.mxu0 0
    %2592 = vmatpush2.bf16.msra.mxu0 0
    %2593 = vmatprep.subr.bf16.mxu0 0
    %2594 = vmatpush2.bf16.msra.mxu0 0
    %2595 = vmatprep.subr.bf16.mxu0 0
    %2596 = vmatpush2.bf16.msra.mxu0 0
    %2597 = vmatprep.subr.bf16.mxu0 0
    %2598 = vmatpush2.bf16.msra.mxu0 0
    %2599 = vmatprep.mubr.bf16.mxu0 0
    %2600 = vmatmul.mubr.bf16.gmra.mxu0 %v2483
    %v2601 = vpop.f32.mrf.mxu0
    %v2602 = vadd.f32 0.0, %v2601
    %v2603 = vpop.f32.mrf.mxu0
    %v2604 = vadd.f32 0.0, %v2603
    %v2605 = vpop.f32.mrf.mxu0
    %v2606 = vpop.f32.mrf.mxu0
    %2607 = vdwg.mxu0
    %2608 = vmatprep.subr.bf16.mxu0 0
    %2609 = vmatpush1.bf16.msra.mxu0 0
    %2610 = vmatprep.subr.bf16.mxu0 0
    %2611 = vmatpush1.bf16.msra.mxu0 0
    %2612 = vmatprep.subr.bf16.mxu0 0
    %2613 = vmatpush1.bf16.msra.mxu0 0
    %2614 = vmatprep.subr.bf16.mxu0 0
    %2615 = vmatpush1.bf16.msra.mxu0 0
    %2616 = vmatprep.subr.bf16.mxu0 0
    %2617 = vmatpush1.bf16.msra.mxu0 0
    %2618 = vmatprep.subr.bf16.mxu0 0
    %2619 = vmatpush1.bf16.msra.mxu0 0
    %2620 = vmatprep.subr.bf16.mxu0 0
    %2621 = vmatpush1.bf16.msra.mxu0 0
    %2622 = vmatprep.subr.bf16.mxu0 %v2473
    %2623 = vmatpush1.bf16.msra.mxu0 %v2472
    %2624 = vmatprep.subr.bf16.mxu0 0
    %2625 = vmatpush2.bf16.msra.mxu0 0
    %2626 = vmatprep.subr.bf16.mxu0 0
    %2627 = vmatpush2.bf16.msra.mxu0 0
    %2628 = vmatprep.subr.bf16.mxu0 0
    %2629 = vmatpush2.bf16.msra.mxu0 0
    %2630 = vmatprep.subr.bf16.mxu0 0
    %2631 = vmatpush2.bf16.msra.mxu0 0
    %2632 = vmatprep.subr.bf16.mxu0 0
    %2633 = vmatpush2.bf16.msra.mxu0 0
    %2634 = vmatprep.subr.bf16.mxu0 0
    %2635 = vmatpush2.bf16.msra.mxu0 0
    %2636 = vmatprep.subr.bf16.mxu0 0
    %2637 = vmatpush2.bf16.msra.mxu0 0
    %2638 = vmatprep.subr.bf16.mxu0 0
    %2639 = vmatpush2.bf16.msra.mxu0 0
    %2640 = vmatprep.mubr.bf16.mxu0 0
    %2641 = vmatmul.mubr.bf16.gmra.mxu0 %v2483
    %v2642 = vpop.f32.mrf.mxu0
    %v2643 = vadd.f32 0.0, %v2642
    %v2644 = vpop.f32.mrf.mxu0
    %v2645 = vadd.f32 0.0, %v2644
    %v2646 = vpop.f32.mrf.mxu0
    %v2647 = vpop.f32.mrf.mxu0
    %2648 = vdwg.mxu0
    %2649 = vmatprep.subr.bf16.mxu0 0
    %2650 = vmatpush1.bf16.msra.mxu0 0
    %2651 = vmatprep.subr.bf16.mxu0 0
    %2652 = vmatpush1.bf16.msra.mxu0 0
    %2653 = vmatprep.subr.bf16.mxu0 0
    %2654 = vmatpush1.bf16.msra.mxu0 0
    %2655 = vmatprep.subr.bf16.mxu0 0
    %2656 = vmatpush1.bf16.msra.mxu0 0
    %2657 = vmatprep.subr.bf16.mxu0 0
    %2658 = vmatpush1.bf16.msra.mxu0 0
    %2659 = vmatprep.subr.bf16.mxu0 0
    %2660 = vmatpush1.bf16.msra.mxu0 0
    %2661 = vmatprep.subr.bf16.mxu0 0
    %2662 = vmatpush1.bf16.msra.mxu0 0
    %2663 = vmatprep.subr.bf16.mxu0 %v2475
    %2664 = vmatpush1.bf16.msra.mxu0 %v2474
    %2665 = vmatprep.subr.bf16.mxu0 0
    %2666 = vmatpush2.bf16.msra.mxu0 0
    %2667 = vmatprep.subr.bf16.mxu0 0
    %2668 = vmatpush2.bf16.msra.mxu0 0
    %2669 = vmatprep.subr.bf16.mxu0 0
    %2670 = vmatpush2.bf16.msra.mxu0 0
    %2671 = vmatprep.subr.bf16.mxu0 0
    %2672 = vmatpush2.bf16.msra.mxu0 0
    %2673 = vmatprep.subr.bf16.mxu0 0
    %2674 = vmatpush2.bf16.msra.mxu0 0
    %2675 = vmatprep.subr.bf16.mxu0 0
    %2676 = vmatpush2.bf16.msra.mxu0 0
    %2677 = vmatprep.subr.bf16.mxu0 0
    %2678 = vmatpush2.bf16.msra.mxu0 0
    %2679 = vmatprep.subr.bf16.mxu0 0
    %2680 = vmatpush2.bf16.msra.mxu0 0
    %2681 = vmatprep.mubr.bf16.mxu0 0
    %2682 = vmatmul.mubr.bf16.gmra.mxu0 %v2483
    %v2683 = vpop.f32.mrf.mxu0
    %v2684 = vadd.f32 0.0, %v2683
    %v2685 = vpop.f32.mrf.mxu0
    %v2686 = vadd.f32 0.0, %v2685
    %v2687 = vpop.f32.mrf.mxu0
    %v2688 = vpop.f32.mrf.mxu0
    %2689 = vdwg.mxu0
    %2690 = vmatprep.subr.bf16.mxu0 0
    %2691 = vmatpush1.bf16.msra.mxu0 0
    %2692 = vmatprep.subr.bf16.mxu0 0
    %2693 = vmatpush1.bf16.msra.mxu0 0
    %2694 = vmatprep.subr.bf16.mxu0 0
    %2695 = vmatpush1.bf16.msra.mxu0 0
    %2696 = vmatprep.subr.bf16.mxu0 0
    %2697 = vmatpush1.bf16.msra.mxu0 0
    %2698 = vmatprep.subr.bf16.mxu0 0
    %2699 = vmatpush1.bf16.msra.mxu0 0
    %2700 = vmatprep.subr.bf16.mxu0 0
    %2701 = vmatpush1.bf16.msra.mxu0 0
    %2702 = vmatprep.subr.bf16.mxu0 0
    %2703 = vmatpush1.bf16.msra.mxu0 0
    %2704 = vmatprep.subr.bf16.mxu0 %v2477
    %2705 = vmatpush1.bf16.msra.mxu0 %v2476
    %2706 = vmatprep.subr.bf16.mxu0 0
    %2707 = vmatpush2.bf16.msra.mxu0 0
    %2708 = vmatprep.subr.bf16.mxu0 0
    %2709 = vmatpush2.bf16.msra.mxu0 0
    %2710 = vmatprep.subr.bf16.mxu0 0
    %2711 = vmatpush2.bf16.msra.mxu0 0
    %2712 = vmatprep.subr.bf16.mxu0 0
    %2713 = vmatpush2.bf16.msra.mxu0 0
    %2714 = vmatprep.subr.bf16.mxu0 0
    %2715 = vmatpush2.bf16.msra.mxu0 0
    %2716 = vmatprep.subr.bf16.mxu0 0
    %2717 = vmatpush2.bf16.msra.mxu0 0
    %2718 = vmatprep.subr.bf16.mxu0 0
    %2719 = vmatpush2.bf16.msra.mxu0 0
    %2720 = vmatprep.subr.bf16.mxu0 0
    %2721 = vmatpush2.bf16.msra.mxu0 0
    %2722 = vmatprep.mubr.bf16.mxu0 0
    %2723 = vmatmul.mubr.bf16.gmra.mxu0 %v2483
    %v2724 = vpop.f32.mrf.mxu0
    %v2725 = vadd.f32 0.0, %v2724
    %v2726 = vpop.f32.mrf.mxu0
    %v2727 = vadd.f32 0.0, %v2726
    %v2728 = vpop.f32.mrf.mxu0
    %v2729 = vpop.f32.mrf.mxu0
    %2730 = vdwg.mxu0
    %2731 = vmatprep.subr.bf16.mxu0 0
    %2732 = vmatpush1.bf16.msra.mxu0 0
    %2733 = vmatprep.subr.bf16.mxu0 0
    %2734 = vmatpush1.bf16.msra.mxu0 0
    %2735 = vmatprep.subr.bf16.mxu0 0
    %2736 = vmatpush1.bf16.msra.mxu0 0
    %2737 = vmatprep.subr.bf16.mxu0 0
    %2738 = vmatpush1.bf16.msra.mxu0 0
    %2739 = vmatprep.subr.bf16.mxu0 0
    %2740 = vmatpush1.bf16.msra.mxu0 0
    %2741 = vmatprep.subr.bf16.mxu0 0
    %2742 = vmatpush1.bf16.msra.mxu0 0
    %2743 = vmatprep.subr.bf16.mxu0 0
    %2744 = vmatpush1.bf16.msra.mxu0 0
    %2745 = vmatprep.subr.bf16.mxu0 %v2479
    %2746 = vmatpush1.bf16.msra.mxu0 %v2478
    %2747 = vmatprep.subr.bf16.mxu0 0
    %2748 = vmatpush2.bf16.msra.mxu0 0
    %2749 = vmatprep.subr.bf16.mxu0 0
    %2750 = vmatpush2.bf16.msra.mxu0 0
    %2751 = vmatprep.subr.bf16.mxu0 0
    %2752 = vmatpush2.bf16.msra.mxu0 0
    %2753 = vmatprep.subr.bf16.mxu0 0
    %2754 = vmatpush2.bf16.msra.mxu0 0
    %2755 = vmatprep.subr.bf16.mxu0 0
    %2756 = vmatpush2.bf16.msra.mxu0 0
    %2757 = vmatprep.subr.bf16.mxu0 0
    %2758 = vmatpush2.bf16.msra.mxu0 0
    %2759 = vmatprep.subr.bf16.mxu0 0
    %2760 = vmatpush2.bf16.msra.mxu0 0
    %2761 = vmatprep.subr.bf16.mxu0 0
    %2762 = vmatpush2.bf16.msra.mxu0 0
    %2763 = vmatprep.mubr.bf16.mxu0 0
    %2764 = vmatmul.mubr.bf16.gmra.mxu0 %v2483
    %v2765 = vpop.f32.mrf.mxu0
    %v2766 = vadd.f32 0.0, %v2765
    %v2767 = vpop.f32.mrf.mxu0
    %v2768 = vadd.f32 0.0, %v2767
    %v2769 = vpop.f32.mrf.mxu0
    %v2770 = vpop.f32.mrf.mxu0
    %2771 = vdwg.mxu0
    %2772 = vmatprep.subr.bf16.mxu0 0
    %2773 = vmatpush1.bf16.msra.mxu0 0
    %2774 = vmatprep.subr.bf16.mxu0 0
    %2775 = vmatpush1.bf16.msra.mxu0 0
    %2776 = vmatprep.subr.bf16.mxu0 0
    %2777 = vmatpush1.bf16.msra.mxu0 0
    %2778 = vmatprep.subr.bf16.mxu0 0
    %2779 = vmatpush1.bf16.msra.mxu0 0
    %2780 = vmatprep.subr.bf16.mxu0 0
    %2781 = vmatpush1.bf16.msra.mxu0 0
    %2782 = vmatprep.subr.bf16.mxu0 0
    %2783 = vmatpush1.bf16.msra.mxu0 0
    %2784 = vmatprep.subr.bf16.mxu0 0
    %2785 = vmatpush1.bf16.msra.mxu0 0
    %2786 = vmatprep.subr.bf16.mxu0 %v2481
    %2787 = vmatpush1.bf16.msra.mxu0 %v2480
    %2788 = vmatprep.subr.bf16.mxu0 0
    %2789 = vmatpush2.bf16.msra.mxu0 0
    %2790 = vmatprep.subr.bf16.mxu0 0
    %2791 = vmatpush2.bf16.msra.mxu0 0
    %2792 = vmatprep.subr.bf16.mxu0 0
    %2793 = vmatpush2.bf16.msra.mxu0 0
    %2794 = vmatprep.subr.bf16.mxu0 0
    %2795 = vmatpush2.bf16.msra.mxu0 0
    %2796 = vmatprep.subr.bf16.mxu0 0
    %2797 = vmatpush2.bf16.msra.mxu0 0
    %2798 = vmatprep.subr.bf16.mxu0 0
    %2799 = vmatpush2.bf16.msra.mxu0 0
    %2800 = vmatprep.subr.bf16.mxu0 0
    %2801 = vmatpush2.bf16.msra.mxu0 0
    %2802 = vmatprep.subr.bf16.mxu0 0
    %2803 = vmatpush2.bf16.msra.mxu0 0
    %2804 = vmatprep.mubr.bf16.mxu0 0
    %2805 = vmatmul.mubr.bf16.gmra.mxu0 %v2483
    %v2806 = vpop.f32.mrf.mxu0
    %v2807 = vadd.f32 0.0, %v2806
    %v2808 = vpop.f32.mrf.mxu0
    %v2809 = vadd.f32 0.0, %v2808
    %v2810 = vpop.f32.mrf.mxu0
    %v2811 = vpop.f32.mrf.mxu0
    %2812 = vdwg.mxu0
    %v2813 = vsub.f32 %v2021, %v1983
    %v2814 = vsub.f32 %v2028, %v1984
    %v2815 = vsub.f32 %v2035, %v1985
    %v2816 = vsub.f32 %v2042, %v1986
    %v2817 = vsub.f32 %v2049, %v1987
    %v2818 = vsub.f32 %v2056, %v1988
    %v2819 = vsub.f32 %v2063, %v1989
    %v2820 = vsub.f32 %v2070, %v1990
    %v2821 = vsub.f32 %v2077, %v1991
    %v2822 = vsub.f32 %v2084, %v1992
    %v2823 = vsub.f32 %v2091, %v1993
    %v2824 = vsub.f32 %v2098, %v1994
    %v2825 = vsub.f32 %v2105, %v1995
    %v2826 = vsub.f32 %v2112, %v1996
    %v2827 = vsub.f32 %v2119, %v1997
    %v2828 = vsub.f32 %v2126, %v1998
    %v2829 = vsub.f32 %v2021, %v1999
    %v2830 = vsub.f32 %v2028, %v2000
    %v2831 = vsub.f32 %v2035, %v2001
    %v2832 = vsub.f32 %v2042, %v2002
    %v2833 = vsub.f32 %v2049, %v2003
    %v2834 = vsub.f32 %v2056, %v2004
    %v2835 = vsub.f32 %v2063, %v2005
    %v2836 = vsub.f32 %v2070, %v2006
    %v2837 = vsub.f32 %v2077, %v2007
    %v2838 = vsub.f32 %v2084, %v2008
    %v2839 = vsub.f32 %v2091, %v2009
    %v2840 = vsub.f32 %v2098, %v2010
    %v2841 = vsub.f32 %v2105, %v2011
    %v2842 = vsub.f32 %v2112, %v2012
    %v2843 = vsub.f32 %v2119, %v2013
    %v2844 = vsub.f32 %v2126, %v2014
    %v2845 = vmul.f32 %v2813, 1.442695
    %v2846 = vpow.pop %v2845
    %v2847 = vmul.f32 %v2814, 1.442695
    %v2848 = vpow.pop %v2847
    %v2849 = vmul.f32 %v2815, 1.442695
    %v2850 = vpow.pop %v2849
    %v2851 = vmul.f32 %v2816, 1.442695
    %v2852 = vpow.pop %v2851
    %v2853 = vmul.f32 %v2817, 1.442695
    %v2854 = vpow.pop %v2853
    %v2855 = vmul.f32 %v2818, 1.442695
    %v2856 = vpow.pop %v2855
    %v2857 = vmul.f32 %v2819, 1.442695
    %v2858 = vpow.pop %v2857
    %v2859 = vmul.f32 %v2820, 1.442695
    %v2860 = vpow.pop %v2859
    %v2861 = vmul.f32 %v2821, 1.442695
    %v2862 = vpow.pop %v2861
    %v2863 = vmul.f32 %v2822, 1.442695
    %v2864 = vpow.pop %v2863
    %v2865 = vmul.f32 %v2823, 1.442695
    %v2866 = vpow.pop %v2865
    %v2867 = vmul.f32 %v2824, 1.442695
    %v2868 = vpow.pop %v2867
    %v2869 = vmul.f32 %v2825, 1.442695
    %v2870 = vpow.pop %v2869
    %v2871 = vmul.f32 %v2826, 1.442695
    %v2872 = vpow.pop %v2871
    %v2873 = vmul.f32 %v2827, 1.442695
    %v2874 = vpow.pop %v2873
    %v2875 = vmul.f32 %v2828, 1.442695
    %v2876 = vpow.pop %v2875
    %v2877 = vmul.f32 %v2829, 1.442695
    %v2878 = vpow.pop %v2877
    %v2879 = vmul.f32 %v2830, 1.442695
    %v2880 = vpow.pop %v2879
    %v2881 = vmul.f32 %v2831, 1.442695
    %v2882 = vpow.pop %v2881
    %v2883 = vmul.f32 %v2832, 1.442695
    %v2884 = vpow.pop %v2883
    %v2885 = vmul.f32 %v2833, 1.442695
    %v2886 = vpow.pop %v2885
    %v2887 = vmul.f32 %v2834, 1.442695
    %v2888 = vpow.pop %v2887
    %v2889 = vmul.f32 %v2835, 1.442695
    %v2890 = vpow.pop %v2889
    %v2891 = vmul.f32 %v2836, 1.442695
    %v2892 = vpow.pop %v2891
    %v2893 = vmul.f32 %v2837, 1.442695
    %v2894 = vpow.pop %v2893
    %v2895 = vmul.f32 %v2838, 1.442695
    %v2896 = vpow.pop %v2895
    %v2897 = vmul.f32 %v2839, 1.442695
    %v2898 = vpow.pop %v2897
    %v2899 = vmul.f32 %v2840, 1.442695
    %v2900 = vpow.pop %v2899
    %v2901 = vmul.f32 %v2841, 1.442695
    %v2902 = vpow.pop %v2901
    %v2903 = vmul.f32 %v2842, 1.442695
    %v2904 = vpow.pop %v2903
    %v2905 = vmul.f32 %v2843, 1.442695
    %v2906 = vpow.pop %v2905
    %v2907 = vmul.f32 %v2844, 1.442695
    %v2908 = vpow.pop %v2907
    %v2909 = vadd.f32 %v2846, %v2878
    %v2910 = vrot.slane %v2909, 4
    %v2911 = vadd.f32 %v2909, %v2910
    %v2912 = vrot.slane %v2911, 2
    %v2913 = vadd.f32 %v2911, %v2912
    %v2914 = vrot.slane %v2913, 1
    %v2915 = vadd.f32 %v2913, %v2914
    %v2916 = vadd.f32 %v2848, %v2880
    %v2917 = vrot.slane %v2916, 4
    %v2918 = vadd.f32 %v2916, %v2917
    %v2919 = vrot.slane %v2918, 2
    %v2920 = vadd.f32 %v2918, %v2919
    %v2921 = vrot.slane %v2920, 1
    %v2922 = vadd.f32 %v2920, %v2921
    %v2923 = vadd.f32 %v2850, %v2882
    %v2924 = vrot.slane %v2923, 4
    %v2925 = vadd.f32 %v2923, %v2924
    %v2926 = vrot.slane %v2925, 2
    %v2927 = vadd.f32 %v2925, %v2926
    %v2928 = vrot.slane %v2927, 1
    %v2929 = vadd.f32 %v2927, %v2928
    %v2930 = vadd.f32 %v2852, %v2884
    %v2931 = vrot.slane %v2930, 4
    %v2932 = vadd.f32 %v2930, %v2931
    %v2933 = vrot.slane %v2932, 2
    %v2934 = vadd.f32 %v2932, %v2933
    %v2935 = vrot.slane %v2934, 1
    %v2936 = vadd.f32 %v2934, %v2935
    %v2937 = vadd.f32 %v2854, %v2886
    %v2938 = vrot.slane %v2937, 4
    %v2939 = vadd.f32 %v2937, %v2938
    %v2940 = vrot.slane %v2939, 2
    %v2941 = vadd.f32 %v2939, %v2940
    %v2942 = vrot.slane %v2941, 1
    %v2943 = vadd.f32 %v2941, %v2942
    %v2944 = vadd.f32 %v2856, %v2888
    %v2945 = vrot.slane %v2944, 4
    %v2946 = vadd.f32 %v2944, %v2945
    %v2947 = vrot.slane %v2946, 2
    %v2948 = vadd.f32 %v2946, %v2947
    %v2949 = vrot.slane %v2948, 1
    %v2950 = vadd.f32 %v2948, %v2949
    %v2951 = vadd.f32 %v2858, %v2890
    %v2952 = vrot.slane %v2951, 4
    %v2953 = vadd.f32 %v2951, %v2952
    %v2954 = vrot.slane %v2953, 2
    %v2955 = vadd.f32 %v2953, %v2954
    %v2956 = vrot.slane %v2955, 1
    %v2957 = vadd.f32 %v2955, %v2956
    %v2958 = vadd.f32 %v2860, %v2892
    %v2959 = vrot.slane %v2958, 4
    %v2960 = vadd.f32 %v2958, %v2959
    %v2961 = vrot.slane %v2960, 2
    %v2962 = vadd.f32 %v2960, %v2961
    %v2963 = vrot.slane %v2962, 1
    %v2964 = vadd.f32 %v2962, %v2963
    %v2965 = vadd.f32 %v2862, %v2894
    %v2966 = vrot.slane %v2965, 4
    %v2967 = vadd.f32 %v2965, %v2966
    %v2968 = vrot.slane %v2967, 2
    %v2969 = vadd.f32 %v2967, %v2968
    %v2970 = vrot.slane %v2969, 1
    %v2971 = vadd.f32 %v2969, %v2970
    %v2972 = vadd.f32 %v2864, %v2896
    %v2973 = vrot.slane %v2972, 4
    %v2974 = vadd.f32 %v2972, %v2973
    %v2975 = vrot.slane %v2974, 2
    %v2976 = vadd.f32 %v2974, %v2975
    %v2977 = vrot.slane %v2976, 1
    %v2978 = vadd.f32 %v2976, %v2977
    %v2979 = vadd.f32 %v2866, %v2898
    %v2980 = vrot.slane %v2979, 4
    %v2981 = vadd.f32 %v2979, %v2980
    %v2982 = vrot.slane %v2981, 2
    %v2983 = vadd.f32 %v2981, %v2982
    %v2984 = vrot.slane %v2983, 1
    %v2985 = vadd.f32 %v2983, %v2984
    %v2986 = vadd.f32 %v2868, %v2900
    %v2987 = vrot.slane %v2986, 4
    %v2988 = vadd.f32 %v2986, %v2987
    %v2989 = vrot.slane %v2988, 2
    %v2990 = vadd.f32 %v2988, %v2989
    %v2991 = vrot.slane %v2990, 1
    %v2992 = vadd.f32 %v2990, %v2991
    %v2993 = vadd.f32 %v2870, %v2902
    %v2994 = vrot.slane %v2993, 4
    %v2995 = vadd.f32 %v2993, %v2994
    %v2996 = vrot.slane %v2995, 2
    %v2997 = vadd.f32 %v2995, %v2996
    %v2998 = vrot.slane %v2997, 1
    %v2999 = vadd.f32 %v2997, %v2998
    %v3000 = vadd.f32 %v2872, %v2904
    %v3001 = vrot.slane %v3000, 4
    %v3002 = vadd.f32 %v3000, %v3001
    %v3003 = vrot.slane %v3002, 2
    %v3004 = vadd.f32 %v3002, %v3003
    %v3005 = vrot.slane %v3004, 1
    %v3006 = vadd.f32 %v3004, %v3005
    %v3007 = vadd.f32 %v2874, %v2906
    %v3008 = vrot.slane %v3007, 4
    %v3009 = vadd.f32 %v3007, %v3008
    %v3010 = vrot.slane %v3009, 2
    %v3011 = vadd.f32 %v3009, %v3010
    %v3012 = vrot.slane %v3011, 1
    %v3013 = vadd.f32 %v3011, %v3012
    %v3014 = vadd.f32 %v2876, %v2908
    %v3015 = vrot.slane %v3014, 4
    %v3016 = vadd.f32 %v3014, %v3015
    %v3017 = vrot.slane %v3016, 2
    %v3018 = vadd.f32 %v3016, %v3017
    %v3019 = vrot.slane %v3018, 1
    %v3020 = vadd.f32 %v3018, %v3019
    %v3021 = vrcp.pop %v2915
    %v3022 = vmul.f32 1.0, %v3021
    %v3023 = vrcp.pop %v2922
    %v3024 = vmul.f32 1.0, %v3023
    %v3025 = vrcp.pop %v2929
    %v3026 = vmul.f32 1.0, %v3025
    %v3027 = vrcp.pop %v2936
    %v3028 = vmul.f32 1.0, %v3027
    %v3029 = vrcp.pop %v2943
    %v3030 = vmul.f32 1.0, %v3029
    %v3031 = vrcp.pop %v2950
    %v3032 = vmul.f32 1.0, %v3031
    %v3033 = vrcp.pop %v2957
    %v3034 = vmul.f32 1.0, %v3033
    %v3035 = vrcp.pop %v2964
    %v3036 = vmul.f32 1.0, %v3035
    %v3037 = vrcp.pop %v2971
    %v3038 = vmul.f32 1.0, %v3037
    %v3039 = vrcp.pop %v2978
    %v3040 = vmul.f32 1.0, %v3039
    %v3041 = vrcp.pop %v2985
    %v3042 = vmul.f32 1.0, %v3041
    %v3043 = vrcp.pop %v2992
    %v3044 = vmul.f32 1.0, %v3043
    %v3045 = vrcp.pop %v2999
    %v3046 = vmul.f32 1.0, %v3045
    %v3047 = vrcp.pop %v3006
    %v3048 = vmul.f32 1.0, %v3047
    %v3049 = vrcp.pop %v3013
    %v3050 = vmul.f32 1.0, %v3049
    %v3051 = vrcp.pop %v3020
    %v3052 = vmul.f32 1.0, %v3051
    %v3053 = vmul.f32 %v2846, %v3022
    %v3054 = vmul.f32 %v2848, %v3024
    %v3055 = vmul.f32 %v2850, %v3026
    %v3056 = vmul.f32 %v2852, %v3028
    %v3057 = vmul.f32 %v2854, %v3030
    %v3058 = vmul.f32 %v2856, %v3032
    %v3059 = vmul.f32 %v2858, %v3034
    %v3060 = vmul.f32 %v2860, %v3036
    %v3061 = vmul.f32 %v2862, %v3038
    %v3062 = vmul.f32 %v2864, %v3040
    %v3063 = vmul.f32 %v2866, %v3042
    %v3064 = vmul.f32 %v2868, %v3044
    %v3065 = vmul.f32 %v2870, %v3046
    %v3066 = vmul.f32 %v2872, %v3048
    %v3067 = vmul.f32 %v2874, %v3050
    %v3068 = vmul.f32 %v2876, %v3052
    %v3069 = vmul.f32 %v2878, %v3022
    %v3070 = vmul.f32 %v2880, %v3024
    %v3071 = vmul.f32 %v2882, %v3026
    %v3072 = vmul.f32 %v2884, %v3028
    %v3073 = vmul.f32 %v2886, %v3030
    %v3074 = vmul.f32 %v2888, %v3032
    %v3075 = vmul.f32 %v2890, %v3034
    %v3076 = vmul.f32 %v2892, %v3036
    %v3077 = vmul.f32 %v2894, %v3038
    %v3078 = vmul.f32 %v2896, %v3040
    %v3079 = vmul.f32 %v2898, %v3042
    %v3080 = vmul.f32 %v2900, %v3044
    %v3081 = vmul.f32 %v2902, %v3046
    %v3082 = vmul.f32 %v2904, %v3048
    %v3083 = vmul.f32 %v2906, %v3050
    %v3084 = vmul.f32 %v2908, %v3052
    %v3085 = vsub.f32 %v1226, %v2520
    %v3086 = vsub.f32 %v1228, %v2522
    %v3087 = vsub.f32 %v1267, %v2561
    %v3088 = vsub.f32 %v1269, %v2563
    %v3089 = vsub.f32 %v1308, %v2602
    %v3090 = vsub.f32 %v1310, %v2604
    %v3091 = vsub.f32 %v1349, %v2643
    %v3092 = vsub.f32 %v1351, %v2645
    %v3093 = vsub.f32 %v1390, %v2684
    %v3094 = vsub.f32 %v1392, %v2686
    %v3095 = vsub.f32 %v1431, %v2725
    %v3096 = vsub.f32 %v1433, %v2727
    %v3097 = vsub.f32 %v1472, %v2766
    %v3098 = vsub.f32 %v1474, %v2768
    %v3099 = vsub.f32 %v1513, %v2807
    %v3100 = vsub.f32 %v1515, %v2809
    %v3101 = vmul.f32 %v3085, %v3085
    %v3102 = vmul.f32 %v3086, %v3086
    %v3103 = vmul.f32 %v3087, %v3087
    %v3104 = vmul.f32 %v3088, %v3088
    %v3105 = vmul.f32 %v3089, %v3089
    %v3106 = vmul.f32 %v3090, %v3090
    %v3107 = vmul.f32 %v3091, %v3091
    %v3108 = vmul.f32 %v3092, %v3092
    %v3109 = vmul.f32 %v3093, %v3093
    %v3110 = vmul.f32 %v3094, %v3094
    %v3111 = vmul.f32 %v3095, %v3095
    %v3112 = vmul.f32 %v3096, %v3096
    %v3113 = vmul.f32 %v3097, %v3097
    %v3114 = vmul.f32 %v3098, %v3098
    %v3115 = vmul.f32 %v3099, %v3099
    %v3116 = vmul.f32 %v3100, %v3100
    %v3117 = vrot.slane %v3101, 4
    %v3118 = vadd.f32 %v3101, %v3117
    %v3119 = vrot.slane %v3118, 2
    %v3120 = vadd.f32 %v3118, %v3119
    %v3121 = vrot.slane %v3120, 1
    %v3122 = vadd.f32 %v3120, %v3121
    %v3123 = vrot.slane %v3102, 4
    %v3124 = vadd.f32 %v3102, %v3123
    %v3125 = vrot.slane %v3124, 2
    %v3126 = vadd.f32 %v3124, %v3125
    %v3127 = vrot.slane %v3126, 1
    %v3128 = vadd.f32 %v3126, %v3127
    %v3129 = vrot.slane %v3103, 4
    %v3130 = vadd.f32 %v3103, %v3129
    %v3131 = vrot.slane %v3130, 2
    %v3132 = vadd.f32 %v3130, %v3131
    %v3133 = vrot.slane %v3132, 1
    %v3134 = vadd.f32 %v3132, %v3133
    %v3135 = vrot.slane %v3104, 4
    %v3136 = vadd.f32 %v3104, %v3135
    %v3137 = vrot.slane %v3136, 2
    %v3138 = vadd.f32 %v3136, %v3137
    %v3139 = vrot.slane %v3138, 1
    %v3140 = vadd.f32 %v3138, %v3139
    %v3141 = vrot.slane %v3105, 4
    %v3142 = vadd.f32 %v3105, %v3141
    %v3143 = vrot.slane %v3142, 2
    %v3144 = vadd.f32 %v3142, %v3143
    %v3145 = vrot.slane %v3144, 1
    %v3146 = vadd.f32 %v3144, %v3145
    %v3147 = vrot.slane %v3106, 4
    %v3148 = vadd.f32 %v3106, %v3147
    %v3149 = vrot.slane %v3148, 2
    %v3150 = vadd.f32 %v3148, %v3149
    %v3151 = vrot.slane %v3150, 1
    %v3152 = vadd.f32 %v3150, %v3151
    %v3153 = vrot.slane %v3107, 4
    %v3154 = vadd.f32 %v3107, %v3153
    %v3155 = vrot.slane %v3154, 2
    %v3156 = vadd.f32 %v3154, %v3155
    %v3157 = vrot.slane %v3156, 1
    %v3158 = vadd.f32 %v3156, %v3157
    %v3159 = vrot.slane %v3108, 4
    %v3160 = vadd.f32 %v3108, %v3159
    %v3161 = vrot.slane %v3160, 2
    %v3162 = vadd.f32 %v3160, %v3161
    %v3163 = vrot.slane %v3162, 1
    %v3164 = vadd.f32 %v3162, %v3163
    %v3165 = vrot.slane %v3109, 4
    %v3166 = vadd.f32 %v3109, %v3165
    %v3167 = vrot.slane %v3166, 2
    %v3168 = vadd.f32 %v3166, %v3167
    %v3169 = vrot.slane %v3168, 1
    %v3170 = vadd.f32 %v3168, %v3169
    %v3171 = vrot.slane %v3110, 4
    %v3172 = vadd.f32 %v3110, %v3171
    %v3173 = vrot.slane %v3172, 2
    %v3174 = vadd.f32 %v3172, %v3173
    %v3175 = vrot.slane %v3174, 1
    %v3176 = vadd.f32 %v3174, %v3175
    %v3177 = vrot.slane %v3111, 4
    %v3178 = vadd.f32 %v3111, %v3177
    %v3179 = vrot.slane %v3178, 2
    %v3180 = vadd.f32 %v3178, %v3179
    %v3181 = vrot.slane %v3180, 1
    %v3182 = vadd.f32 %v3180, %v3181
    %v3183 = vrot.slane %v3112, 4
    %v3184 = vadd.f32 %v3112, %v3183
    %v3185 = vrot.slane %v3184, 2
    %v3186 = vadd.f32 %v3184, %v3185
    %v3187 = vrot.slane %v3186, 1
    %v3188 = vadd.f32 %v3186, %v3187
    %v3189 = vrot.slane %v3113, 4
    %v3190 = vadd.f32 %v3113, %v3189
    %v3191 = vrot.slane %v3190, 2
    %v3192 = vadd.f32 %v3190, %v3191
    %v3193 = vrot.slane %v3192, 1
    %v3194 = vadd.f32 %v3192, %v3193
    %v3195 = vrot.slane %v3114, 4
    %v3196 = vadd.f32 %v3114, %v3195
    %v3197 = vrot.slane %v3196, 2
    %v3198 = vadd.f32 %v3196, %v3197
    %v3199 = vrot.slane %v3198, 1
    %v3200 = vadd.f32 %v3198, %v3199
    %v3201 = vrot.slane %v3115, 4
    %v3202 = vadd.f32 %v3115, %v3201
    %v3203 = vrot.slane %v3202, 2
    %v3204 = vadd.f32 %v3202, %v3203
    %v3205 = vrot.slane %v3204, 1
    %v3206 = vadd.f32 %v3204, %v3205
    %v3207 = vrot.slane %v3116, 4
    %v3208 = vadd.f32 %v3116, %v3207
    %v3209 = vrot.slane %v3208, 2
    %v3210 = vadd.f32 %v3208, %v3209
    %v3211 = vrot.slane %v3210, 1
    %v3212 = vadd.f32 %v3210, %v3211
    %v3213 = vmul.f32 %v3122, 0.1250125
    %v3214 = vmul.f32 %v3128, 0.1250125
    %v3215 = vmul.f32 %v3134, 0.1250125
    %v3216 = vmul.f32 %v3140, 0.1250125
    %v3217 = vmul.f32 %v3146, 0.1250125
    %v3218 = vmul.f32 %v3152, 0.1250125
    %v3219 = vmul.f32 %v3158, 0.1250125
    %v3220 = vmul.f32 %v3164, 0.1250125
    %v3221 = vmul.f32 %v3170, 0.1250125
    %v3222 = vmul.f32 %v3176, 0.1250125
    %v3223 = vmul.f32 %v3182, 0.1250125
    %v3224 = vmul.f32 %v3188, 0.1250125
    %v3225 = vmul.f32 %v3194, 0.1250125
    %v3226 = vmul.f32 %v3200, 0.1250125
    %v3227 = vmul.f32 %v3206, 0.1250125
    %v3228 = vmul.f32 %v3212, 0.1250125
    %v3229 = vadd.f32 %v3213, 0.0
    %v3230 = vadd.f32 %v3214, 0.0
    %v3231 = vadd.f32 %v3215, 0.0
    %v3232 = vadd.f32 %v3216, 0.0
    %v3233 = vadd.f32 %v3217, 0.0
    %v3234 = vadd.f32 %v3218, 0.0
    %v3235 = vadd.f32 %v3219, 0.0
    %v3236 = vadd.f32 %v3220, 0.0
    %v3237 = vadd.f32 %v3221, 0.0
    %v3238 = vadd.f32 %v3222, 0.0
    %v3239 = vadd.f32 %v3223, 0.0
    %v3240 = vadd.f32 %v3224, 0.0
    %v3241 = vadd.f32 %v3225, 0.0
    %v3242 = vadd.f32 %v3226, 0.0
    %v3243 = vadd.f32 %v3227, 0.0
    %v3244 = vadd.f32 %v3228, 0.0
    %3245 = vst [vmem:[#allocation6] sm:$0xff] %v3053
    %3246 = vst [vmem:[#allocation6 + $0x8] sm:$0xff] %v3054
    %3247 = vst [vmem:[#allocation6 + $0x10] sm:$0xff] %v3055
    %3248 = vst [vmem:[#allocation6 + $0x18] sm:$0xff] %v3056
    %3249 = vst [vmem:[#allocation6 + $0x20] sm:$0xff] %v3057
    %3250 = vst [vmem:[#allocation6 + $0x28] sm:$0xff] %v3058
    %3251 = vst [vmem:[#allocation6 + $0x30] sm:$0xff] %v3059
    %3252 = vst [vmem:[#allocation6 + $0x38] sm:$0xff] %v3060
    %3253 = vst [vmem:[#allocation6 + $0x40] sm:$0xff] %v3061
    %3254 = vst [vmem:[#allocation6 + $0x48] sm:$0xff] %v3062
    %3255 = vst [vmem:[#allocation6 + $0x50] sm:$0xff] %v3063
    %3256 = vst [vmem:[#allocation6 + $0x58] sm:$0xff] %v3064
    %3257 = vst [vmem:[#allocation6 + $0x60] sm:$0xff] %v3065
    %3258 = vst [vmem:[#allocation6 + $0x68] sm:$0xff] %v3066
    %3259 = vst [vmem:[#allocation6 + $0x70] sm:$0xff] %v3067
    %3260 = vst [vmem:[#allocation6 + $0x78] sm:$0xff] %v3068
    %3261 = vst [vmem:[#allocation6 + $0x80] sm:$0xff] %v3069
    %3262 = vst [vmem:[#allocation6 + $0x88] sm:$0xff] %v3070
    %3263 = vst [vmem:[#allocation6 + $0x90] sm:$0xff] %v3071
    %3264 = vst [vmem:[#allocation6 + $0x98] sm:$0xff] %v3072
    %3265 = vst [vmem:[#allocation6 + $0xa0] sm:$0xff] %v3073
    %3266 = vst [vmem:[#allocation6 + $0xa8] sm:$0xff] %v3074
    %3267 = vst [vmem:[#allocation6 + $0xb0] sm:$0xff] %v3075
    %3268 = vst [vmem:[#allocation6 + $0xb8] sm:$0xff] %v3076
    %3269 = vst [vmem:[#allocation6 + $0xc0] sm:$0xff] %v3077
    %3270 = vst [vmem:[#allocation6 + $0xc8] sm:$0xff] %v3078
    %3271 = vst [vmem:[#allocation6 + $0xd0] sm:$0xff] %v3079
    %3272 = vst [vmem:[#allocation6 + $0xd8] sm:$0xff] %v3080
    %3273 = vst [vmem:[#allocation6 + $0xe0] sm:$0xff] %v3081
    %3274 = vst [vmem:[#allocation6 + $0xe8] sm:$0xff] %v3082
    %3275 = vst [vmem:[#allocation6 + $0xf0] sm:$0xff] %v3083
    %3276 = vst [vmem:[#allocation6 + $0xf8] sm:$0xff] %v3084
    %v3277 = vadd.f32 %v2520, 0.0
    %v3278 = vadd.f32 %v2522, 0.0
    %v3279 = vadd.f32 %v2561, 0.0
    %v3280 = vadd.f32 %v2563, 0.0
    %v3281 = vadd.f32 %v2602, 0.0
    %v3282 = vadd.f32 %v2604, 0.0
    %v3283 = vadd.f32 %v2643, 0.0
    %v3284 = vadd.f32 %v2645, 0.0
    %v3285 = vadd.f32 %v2684, 0.0
    %v3286 = vadd.f32 %v2686, 0.0
    %v3287 = vadd.f32 %v2725, 0.0
    %v3288 = vadd.f32 %v2727, 0.0
    %v3289 = vadd.f32 %v2766, 0.0
    %v3290 = vadd.f32 %v2768, 0.0
    %v3291 = vadd.f32 %v2807, 0.0
    %v3292 = vadd.f32 %v2809, 0.0
    %s3293 = scalar_lea.vmem %s14, 8
    %v3294 = vld [vmem:[%s3293] sm:$0xf]
    %v3295 = vld [vmem:[%s3293 + $0x4] sm:$0xf]
    %s3296 = scalar_lea.vmem %s15, 4
    %v3297 = vld [vmem:[%s3296] sm:$0xf]
    %s3298 = scalar_lea.vmem %s16, 16
    %v3299 = vld [vmem:[%s3298] sm:$0xff]
    %v3300 = vld [vmem:[%s3298 + $0x8] sm:$0xff]
    %v3301 = vpack.c.bf16 %v3085, %v3085
    %v3302 = vpack.c.bf16 %v3086, %v3086
    %v3303 = vpack.c.bf16 %v3087, %v3087
    %v3304 = vpack.c.bf16 %v3088, %v3088
    %v3305 = vpack.c.bf16 %v3089, %v3089
    %v3306 = vpack.c.bf16 %v3090, %v3090
    %v3307 = vpack.c.bf16 %v3091, %v3091
    %v3308 = vpack.c.bf16 %v3092, %v3092
    %v3309 = vpack.c.bf16 %v3093, %v3093
    %v3310 = vpack.c.bf16 %v3094, %v3094
    %v3311 = vpack.c.bf16 %v3095, %v3095
    %v3312 = vpack.c.bf16 %v3096, %v3096
    %v3313 = vpack.c.bf16 %v3097, %v3097
    %v3314 = vpack.c.bf16 %v3098, %v3098
    %v3315 = vpack.c.bf16 %v3099, %v3099
    %v3316 = vpack.c.bf16 %v3100, %v3100
    %v3319 = vunpack.c.l.b16 %v3294
    %v3320 = vunpack.c.l.b16 %v3295
    %v3321 = vpack.c.b16 %v3320, %v3319
    %v3323 = vsel %vm1545, %v3321, 0
    %v3326 = vsel %vm741, %v3301, 0
    %v3329 = vsel %vm741, %v3302, 0
    %v3332 = vsel %vm741, %v3303, 0
    %v3335 = vsel %vm741, %v3304, 0
    %v3338 = vsel %vm741, %v3305, 0
    %v3341 = vsel %vm741, %v3306, 0
    %v3344 = vsel %vm741, %v3307, 0
    %v3347 = vsel %vm741, %v3308, 0
    %v3350 = vsel %vm741, %v3309, 0
    %v3353 = vsel %vm741, %v3310, 0
    %v3356 = vsel %vm741, %v3311, 0
    %v3359 = vsel %vm741, %v3312, 0
    %v3362 = vsel %vm741, %v3313, 0
    %v3365 = vsel %vm741, %v3314, 0
    %v3368 = vsel %vm741, %v3315, 0
    %v3371 = vsel %vm741, %v3316, 0
    %3373 = vmatprep.subr.bf16.mxu0 0
    %3374 = vmatpush1.bf16.msra.mxu0 0
    %3375 = vmatprep.subr.bf16.mxu0 0
    %3376 = vmatpush1.bf16.msra.mxu0 0
    %3377 = vmatprep.subr.bf16.mxu0 0
    %3378 = vmatpush1.bf16.msra.mxu0 0
    %3379 = vmatprep.subr.bf16.mxu0 0
    %3380 = vmatpush1.bf16.msra.mxu0 0
    %3381 = vmatprep.subr.bf16.mxu0 0
    %3382 = vmatpush1.bf16.msra.mxu0 0
    %3383 = vmatprep.subr.bf16.mxu0 0
    %3384 = vmatpush1.bf16.msra.mxu0 0
    %3385 = vmatprep.subr.bf16.mxu0 0
    %3386 = vmatpush1.bf16.msra.mxu0 0
    %3387 = vmatprep.subr.bf16.mxu0 %v3329
    %3388 = vmatpush1.bf16.msra.mxu0 %v3326
    %3389 = vmatprep.subr.bf16.mxu0 0
    %3390 = vmatpush2.bf16.msra.mxu0 0
    %3391 = vmatprep.subr.bf16.mxu0 0
    %3392 = vmatpush2.bf16.msra.mxu0 0
    %3393 = vmatprep.subr.bf16.mxu0 0
    %3394 = vmatpush2.bf16.msra.mxu0 0
    %3395 = vmatprep.subr.bf16.mxu0 0
    %3396 = vmatpush2.bf16.msra.mxu0 0
    %3397 = vmatprep.subr.bf16.mxu0 0
    %3398 = vmatpush2.bf16.msra.mxu0 0
    %3399 = vmatprep.subr.bf16.mxu0 0
    %3400 = vmatpush2.bf16.msra.mxu0 0
    %3401 = vmatprep.subr.bf16.mxu0 0
    %3402 = vmatpush2.bf16.msra.mxu0 0
    %3403 = vmatprep.subr.bf16.mxu0 0
    %3404 = vmatpush2.bf16.msra.mxu0 0
    %3405 = vmatprep.mubr.bf16.mxu0 0
    %3406 = vmatmul.mubr.bf16.gmra.mxu0 %v3323
    %v3407 = vpop.f32.mrf.mxu0
    %v3408 = vadd.f32 0.0, %v3407
    %v3409 = vpop.f32.mrf.mxu0
    %v3410 = vadd.f32 0.0, %v3409
    %v3411 = vpop.f32.mrf.mxu0
    %v3412 = vadd.f32 0.0, %v3411
    %v3413 = vpop.f32.mrf.mxu0
    %v3414 = vadd.f32 0.0, %v3413
    %3415 = vdwg.mxu0
    %3416 = vmatprep.subr.bf16.mxu0 0
    %3417 = vmatpush1.bf16.msra.mxu0 0
    %3418 = vmatprep.subr.bf16.mxu0 0
    %3419 = vmatpush1.bf16.msra.mxu0 0
    %3420 = vmatprep.subr.bf16.mxu0 0
    %3421 = vmatpush1.bf16.msra.mxu0 0
    %3422 = vmatprep.subr.bf16.mxu0 0
    %3423 = vmatpush1.bf16.msra.mxu0 0
    %3424 = vmatprep.subr.bf16.mxu0 0
    %3425 = vmatpush1.bf16.msra.mxu0 0
    %3426 = vmatprep.subr.bf16.mxu0 0
    %3427 = vmatpush1.bf16.msra.mxu0 0
    %3428 = vmatprep.subr.bf16.mxu0 0
    %3429 = vmatpush1.bf16.msra.mxu0 0
    %3430 = vmatprep.subr.bf16.mxu0 %v3335
    %3431 = vmatpush1.bf16.msra.mxu0 %v3332
    %3432 = vmatprep.subr.bf16.mxu0 0
    %3433 = vmatpush2.bf16.msra.mxu0 0
    %3434 = vmatprep.subr.bf16.mxu0 0
    %3435 = vmatpush2.bf16.msra.mxu0 0
    %3436 = vmatprep.subr.bf16.mxu0 0
    %3437 = vmatpush2.bf16.msra.mxu0 0
    %3438 = vmatprep.subr.bf16.mxu0 0
    %3439 = vmatpush2.bf16.msra.mxu0 0
    %3440 = vmatprep.subr.bf16.mxu0 0
    %3441 = vmatpush2.bf16.msra.mxu0 0
    %3442 = vmatprep.subr.bf16.mxu0 0
    %3443 = vmatpush2.bf16.msra.mxu0 0
    %3444 = vmatprep.subr.bf16.mxu0 0
    %3445 = vmatpush2.bf16.msra.mxu0 0
    %3446 = vmatprep.subr.bf16.mxu0 0
    %3447 = vmatpush2.bf16.msra.mxu0 0
    %3448 = vmatprep.mubr.bf16.mxu0 0
    %3449 = vmatmul.mubr.bf16.gmra.mxu0 %v3323
    %v3450 = vpop.f32.mrf.mxu0
    %v3451 = vadd.f32 0.0, %v3450
    %v3452 = vpop.f32.mrf.mxu0
    %v3453 = vadd.f32 0.0, %v3452
    %v3454 = vpop.f32.mrf.mxu0
    %v3455 = vadd.f32 0.0, %v3454
    %v3456 = vpop.f32.mrf.mxu0
    %v3457 = vadd.f32 0.0, %v3456
    %3458 = vdwg.mxu0
    %3459 = vmatprep.subr.bf16.mxu0 0
    %3460 = vmatpush1.bf16.msra.mxu0 0
    %3461 = vmatprep.subr.bf16.mxu0 0
    %3462 = vmatpush1.bf16.msra.mxu0 0
    %3463 = vmatprep.subr.bf16.mxu0 0
    %3464 = vmatpush1.bf16.msra.mxu0 0
    %3465 = vmatprep.subr.bf16.mxu0 0
    %3466 = vmatpush1.bf16.msra.mxu0 0
    %3467 = vmatprep.subr.bf16.mxu0 0
    %3468 = vmatpush1.bf16.msra.mxu0 0
    %3469 = vmatprep.subr.bf16.mxu0 0
    %3470 = vmatpush1.bf16.msra.mxu0 0
    %3471 = vmatprep.subr.bf16.mxu0 0
    %3472 = vmatpush1.bf16.msra.mxu0 0
    %3473 = vmatprep.subr.bf16.mxu0 %v3341
    %3474 = vmatpush1.bf16.msra.mxu0 %v3338
    %3475 = vmatprep.subr.bf16.mxu0 0
    %3476 = vmatpush2.bf16.msra.mxu0 0
    %3477 = vmatprep.subr.bf16.mxu0 0
    %3478 = vmatpush2.bf16.msra.mxu0 0
    %3479 = vmatprep.subr.bf16.mxu0 0
    %3480 = vmatpush2.bf16.msra.mxu0 0
    %3481 = vmatprep.subr.bf16.mxu0 0
    %3482 = vmatpush2.bf16.msra.mxu0 0
    %3483 = vmatprep.subr.bf16.mxu0 0
    %3484 = vmatpush2.bf16.msra.mxu0 0
    %3485 = vmatprep.subr.bf16.mxu0 0
    %3486 = vmatpush2.bf16.msra.mxu0 0
    %3487 = vmatprep.subr.bf16.mxu0 0
    %3488 = vmatpush2.bf16.msra.mxu0 0
    %3489 = vmatprep.subr.bf16.mxu0 0
    %3490 = vmatpush2.bf16.msra.mxu0 0
    %3491 = vmatprep.mubr.bf16.mxu0 0
    %3492 = vmatmul.mubr.bf16.gmra.mxu0 %v3323
    %v3493 = vpop.f32.mrf.mxu0
    %v3494 = vadd.f32 0.0, %v3493
    %v3495 = vpop.f32.mrf.mxu0
    %v3496 = vadd.f32 0.0, %v3495
    %v3497 = vpop.f32.mrf.mxu0
    %v3498 = vadd.f32 0.0, %v3497
    %v3499 = vpop.f32.mrf.mxu0
    %v3500 = vadd.f32 0.0, %v3499
    %3501 = vdwg.mxu0
    %3502 = vmatprep.subr.bf16.mxu0 0
    %3503 = vmatpush1.bf16.msra.mxu0 0
    %3504 = vmatprep.subr.bf16.mxu0 0
    %3505 = vmatpush1.bf16.msra.mxu0 0
    %3506 = vmatprep.subr.bf16.mxu0 0
    %3507 = vmatpush1.bf16.msra.mxu0 0
    %3508 = vmatprep.subr.bf16.mxu0 0
    %3509 = vmatpush1.bf16.msra.mxu0 0
    %3510 = vmatprep.subr.bf16.mxu0 0
    %3511 = vmatpush1.bf16.msra.mxu0 0
    %3512 = vmatprep.subr.bf16.mxu0 0
    %3513 = vmatpush1.bf16.msra.mxu0 0
    %3514 = vmatprep.subr.bf16.mxu0 0
    %3515 = vmatpush1.bf16.msra.mxu0 0
    %3516 = vmatprep.subr.bf16.mxu0 %v3347
    %3517 = vmatpush1.bf16.msra.mxu0 %v3344
    %3518 = vmatprep.subr.bf16.mxu0 0
    %3519 = vmatpush2.bf16.msra.mxu0 0
    %3520 = vmatprep.subr.bf16.mxu0 0
    %3521 = vmatpush2.bf16.msra.mxu0 0
    %3522 = vmatprep.subr.bf16.mxu0 0
    %3523 = vmatpush2.bf16.msra.mxu0 0
    %3524 = vmatprep.subr.bf16.mxu0 0
    %3525 = vmatpush2.bf16.msra.mxu0 0
    %3526 = vmatprep.subr.bf16.mxu0 0
    %3527 = vmatpush2.bf16.msra.mxu0 0
    %3528 = vmatprep.subr.bf16.mxu0 0
    %3529 = vmatpush2.bf16.msra.mxu0 0
    %3530 = vmatprep.subr.bf16.mxu0 0
    %3531 = vmatpush2.bf16.msra.mxu0 0
    %3532 = vmatprep.subr.bf16.mxu0 0
    %3533 = vmatpush2.bf16.msra.mxu0 0
    %3534 = vmatprep.mubr.bf16.mxu0 0
    %3535 = vmatmul.mubr.bf16.gmra.mxu0 %v3323
    %v3536 = vpop.f32.mrf.mxu0
    %v3537 = vadd.f32 0.0, %v3536
    %v3538 = vpop.f32.mrf.mxu0
    %v3539 = vadd.f32 0.0, %v3538
    %v3540 = vpop.f32.mrf.mxu0
    %v3541 = vadd.f32 0.0, %v3540
    %v3542 = vpop.f32.mrf.mxu0
    %v3543 = vadd.f32 0.0, %v3542
    %3544 = vdwg.mxu0
    %3545 = vmatprep.subr.bf16.mxu0 0
    %3546 = vmatpush1.bf16.msra.mxu0 0
    %3547 = vmatprep.subr.bf16.mxu0 0
    %3548 = vmatpush1.bf16.msra.mxu0 0
    %3549 = vmatprep.subr.bf16.mxu0 0
    %3550 = vmatpush1.bf16.msra.mxu0 0
    %3551 = vmatprep.subr.bf16.mxu0 0
    %3552 = vmatpush1.bf16.msra.mxu0 0
    %3553 = vmatprep.subr.bf16.mxu0 0
    %3554 = vmatpush1.bf16.msra.mxu0 0
    %3555 = vmatprep.subr.bf16.mxu0 0
    %3556 = vmatpush1.bf16.msra.mxu0 0
    %3557 = vmatprep.subr.bf16.mxu0 0
    %3558 = vmatpush1.bf16.msra.mxu0 0
    %3559 = vmatprep.subr.bf16.mxu0 %v3353
    %3560 = vmatpush1.bf16.msra.mxu0 %v3350
    %3561 = vmatprep.subr.bf16.mxu0 0
    %3562 = vmatpush2.bf16.msra.mxu0 0
    %3563 = vmatprep.subr.bf16.mxu0 0
    %3564 = vmatpush2.bf16.msra.mxu0 0
    %3565 = vmatprep.subr.bf16.mxu0 0
    %3566 = vmatpush2.bf16.msra.mxu0 0
    %3567 = vmatprep.subr.bf16.mxu0 0
    %3568 = vmatpush2.bf16.msra.mxu0 0
    %3569 = vmatprep.subr.bf16.mxu0 0
    %3570 = vmatpush2.bf16.msra.mxu0 0
    %3571 = vmatprep.subr.bf16.mxu0 0
    %3572 = vmatpush2.bf16.msra.mxu0 0
    %3573 = vmatprep.subr.bf16.mxu0 0
    %3574 = vmatpush2.bf16.msra.mxu0 0
    %3575 = vmatprep.subr.bf16.mxu0 0
    %3576 = vmatpush2.bf16.msra.mxu0 0
    %3577 = vmatprep.mubr.bf16.mxu0 0
    %3578 = vmatmul.mubr.bf16.gmra.mxu0 %v3323
    %v3579 = vpop.f32.mrf.mxu0
    %v3580 = vadd.f32 0.0, %v3579
    %v3581 = vpop.f32.mrf.mxu0
    %v3582 = vadd.f32 0.0, %v3581
    %v3583 = vpop.f32.mrf.mxu0
    %v3584 = vadd.f32 0.0, %v3583
    %v3585 = vpop.f32.mrf.mxu0
    %v3586 = vadd.f32 0.0, %v3585
    %3587 = vdwg.mxu0
    %3588 = vmatprep.subr.bf16.mxu0 0
    %3589 = vmatpush1.bf16.msra.mxu0 0
    %3590 = vmatprep.subr.bf16.mxu0 0
    %3591 = vmatpush1.bf16.msra.mxu0 0
    %3592 = vmatprep.subr.bf16.mxu0 0
    %3593 = vmatpush1.bf16.msra.mxu0 0
    %3594 = vmatprep.subr.bf16.mxu0 0
    %3595 = vmatpush1.bf16.msra.mxu0 0
    %3596 = vmatprep.subr.bf16.mxu0 0
    %3597 = vmatpush1.bf16.msra.mxu0 0
    %3598 = vmatprep.subr.bf16.mxu0 0
    %3599 = vmatpush1.bf16.msra.mxu0 0
    %3600 = vmatprep.subr.bf16.mxu0 0
    %3601 = vmatpush1.bf16.msra.mxu0 0
    %3602 = vmatprep.subr.bf16.mxu0 %v3359
    %3603 = vmatpush1.bf16.msra.mxu0 %v3356
    %3604 = vmatprep.subr.bf16.mxu0 0
    %3605 = vmatpush2.bf16.msra.mxu0 0
    %3606 = vmatprep.subr.bf16.mxu0 0
    %3607 = vmatpush2.bf16.msra.mxu0 0
    %3608 = vmatprep.subr.bf16.mxu0 0
    %3609 = vmatpush2.bf16.msra.mxu0 0
    %3610 = vmatprep.subr.bf16.mxu0 0
    %3611 = vmatpush2.bf16.msra.mxu0 0
    %3612 = vmatprep.subr.bf16.mxu0 0
    %3613 = vmatpush2.bf16.msra.mxu0 0
    %3614 = vmatprep.subr.bf16.mxu0 0
    %3615 = vmatpush2.bf16.msra.mxu0 0
    %3616 = vmatprep.subr.bf16.mxu0 0
    %3617 = vmatpush2.bf16.msra.mxu0 0
    %3618 = vmatprep.subr.bf16.mxu0 0
    %3619 = vmatpush2.bf16.msra.mxu0 0
    %3620 = vmatprep.mubr.bf16.mxu0 0
    %3621 = vmatmul.mubr.bf16.gmra.mxu0 %v3323
    %v3622 = vpop.f32.mrf.mxu0
    %v3623 = vadd.f32 0.0, %v3622
    %v3624 = vpop.f32.mrf.mxu0
    %v3625 = vadd.f32 0.0, %v3624
    %v3626 = vpop.f32.mrf.mxu0
    %v3627 = vadd.f32 0.0, %v3626
    %v3628 = vpop.f32.mrf.mxu0
    %v3629 = vadd.f32 0.0, %v3628
    %3630 = vdwg.mxu0
    %3631 = vmatprep.subr.bf16.mxu0 0
    %3632 = vmatpush1.bf16.msra.mxu0 0
    %3633 = vmatprep.subr.bf16.mxu0 0
    %3634 = vmatpush1.bf16.msra.mxu0 0
    %3635 = vmatprep.subr.bf16.mxu0 0
    %3636 = vmatpush1.bf16.msra.mxu0 0
    %3637 = vmatprep.subr.bf16.mxu0 0
    %3638 = vmatpush1.bf16.msra.mxu0 0
    %3639 = vmatprep.subr.bf16.mxu0 0
    %3640 = vmatpush1.bf16.msra.mxu0 0
    %3641 = vmatprep.subr.bf16.mxu0 0
    %3642 = vmatpush1.bf16.msra.mxu0 0
    %3643 = vmatprep.subr.bf16.mxu0 0
    %3644 = vmatpush1.bf16.msra.mxu0 0
    %3645 = vmatprep.subr.bf16.mxu0 %v3365
    %3646 = vmatpush1.bf16.msra.mxu0 %v3362
    %3647 = vmatprep.subr.bf16.mxu0 0
    %3648 = vmatpush2.bf16.msra.mxu0 0
    %3649 = vmatprep.subr.bf16.mxu0 0
    %3650 = vmatpush2.bf16.msra.mxu0 0
    %3651 = vmatprep.subr.bf16.mxu0 0
    %3652 = vmatpush2.bf16.msra.mxu0 0
    %3653 = vmatprep.subr.bf16.mxu0 0
    %3654 = vmatpush2.bf16.msra.mxu0 0
    %3655 = vmatprep.subr.bf16.mxu0 0
    %3656 = vmatpush2.bf16.msra.mxu0 0
    %3657 = vmatprep.subr.bf16.mxu0 0
    %3658 = vmatpush2.bf16.msra.mxu0 0
    %3659 = vmatprep.subr.bf16.mxu0 0
    %3660 = vmatpush2.bf16.msra.mxu0 0
    %3661 = vmatprep.subr.bf16.mxu0 0
    %3662 = vmatpush2.bf16.msra.mxu0 0
    %3663 = vmatprep.mubr.bf16.mxu0 0
    %3664 = vmatmul.mubr.bf16.gmra.mxu0 %v3323
    %v3665 = vpop.f32.mrf.mxu0
    %v3666 = vadd.f32 0.0, %v3665
    %v3667 = vpop.f32.mrf.mxu0
    %v3668 = vadd.f32 0.0, %v3667
    %v3669 = vpop.f32.mrf.mxu0
    %v3670 = vadd.f32 0.0, %v3669
    %v3671 = vpop.f32.mrf.mxu0
    %v3672 = vadd.f32 0.0, %v3671
    %3673 = vdwg.mxu0
    %3674 = vmatprep.subr.bf16.mxu0 0
    %3675 = vmatpush1.bf16.msra.mxu0 0
    %3676 = vmatprep.subr.bf16.mxu0 0
    %3677 = vmatpush1.bf16.msra.mxu0 0
    %3678 = vmatprep.subr.bf16.mxu0 0
    %3679 = vmatpush1.bf16.msra.mxu0 0
    %3680 = vmatprep.subr.bf16.mxu0 0
    %3681 = vmatpush1.bf16.msra.mxu0 0
    %3682 = vmatprep.subr.bf16.mxu0 0
    %3683 = vmatpush1.bf16.msra.mxu0 0
    %3684 = vmatprep.subr.bf16.mxu0 0
    %3685 = vmatpush1.bf16.msra.mxu0 0
    %3686 = vmatprep.subr.bf16.mxu0 0
    %3687 = vmatpush1.bf16.msra.mxu0 0
    %3688 = vmatprep.subr.bf16.mxu0 %v3371
    %3689 = vmatpush1.bf16.msra.mxu0 %v3368
    %3690 = vmatprep.subr.bf16.mxu0 0
    %3691 = vmatpush2.bf16.msra.mxu0 0
    %3692 = vmatprep.subr.bf16.mxu0 0
    %3693 = vmatpush2.bf16.msra.mxu0 0
    %3694 = vmatprep.subr.bf16.mxu0 0
    %3695 = vmatpush2.bf16.msra.mxu0 0
    %3696 = vmatprep.subr.bf16.mxu0 0
    %3697 = vmatpush2.bf16.msra.mxu0 0
    %3698 = vmatprep.subr.bf16.mxu0 0
    %3699 = vmatpush2.bf16.msra.mxu0 0
    %3700 = vmatprep.subr.bf16.mxu0 0
    %3701 = vmatpush2.bf16.msra.mxu0 0
    %3702 = vmatprep.subr.bf16.mxu0 0
    %3703 = vmatpush2.bf16.msra.mxu0 0
    %3704 = vmatprep.subr.bf16.mxu0 0
    %3705 = vmatpush2.bf16.msra.mxu0 0
    %3706 = vmatprep.mubr.bf16.mxu0 0
    %3707 = vmatmul.mubr.bf16.gmra.mxu0 %v3323
    %v3708 = vpop.f32.mrf.mxu0
    %v3709 = vadd.f32 0.0, %v3708
    %v3710 = vpop.f32.mrf.mxu0
    %v3711 = vadd.f32 0.0, %v3710
    %v3712 = vpop.f32.mrf.mxu0
    %v3713 = vadd.f32 0.0, %v3712
    %v3714 = vpop.f32.mrf.mxu0
    %v3715 = vadd.f32 0.0, %v3714
    %3716 = vdwg.mxu0
    %v3717 = vmul.f32 %v3408, 2.0
    %v3718 = vmul.f32 %v3410, 2.0
    %v3719 = vmul.f32 %v3451, 2.0
    %v3720 = vmul.f32 %v3453, 2.0
    %v3721 = vmul.f32 %v3494, 2.0
    %v3722 = vmul.f32 %v3496, 2.0
    %v3723 = vmul.f32 %v3537, 2.0
    %v3724 = vmul.f32 %v3539, 2.0
    %v3725 = vmul.f32 %v3580, 2.0
    %v3726 = vmul.f32 %v3582, 2.0
    %v3727 = vmul.f32 %v3623, 2.0
    %v3728 = vmul.f32 %v3625, 2.0
    %v3729 = vmul.f32 %v3666, 2.0
    %v3730 = vmul.f32 %v3668, 2.0
    %v3731 = vmul.f32 %v3709, 2.0
    %v3732 = vmul.f32 %v3711, 2.0
    %v3733 = vmul.f32 %v3412, 2.0
    %v3734 = vmul.f32 %v3414, 2.0
    %v3735 = vmul.f32 %v3455, 2.0
    %v3736 = vmul.f32 %v3457, 2.0
    %v3737 = vmul.f32 %v3498, 2.0
    %v3738 = vmul.f32 %v3500, 2.0
    %v3739 = vmul.f32 %v3541, 2.0
    %v3740 = vmul.f32 %v3543, 2.0
    %v3741 = vmul.f32 %v3584, 2.0
    %v3742 = vmul.f32 %v3586, 2.0
    %v3743 = vmul.f32 %v3627, 2.0
    %v3744 = vmul.f32 %v3629, 2.0
    %v3745 = vmul.f32 %v3670, 2.0
    %v3746 = vmul.f32 %v3672, 2.0
    %v3747 = vmul.f32 %v3713, 2.0
    %v3748 = vmul.f32 %v3715, 2.0
    %3750 = vset.pattern.permute.xlu0 0
    %3751 = vperm.xlu0 %3750, %v3299
    %v3752 = vpop.permute.xlu0 %3751
    %3755 = vset.pattern.permute.xlu0 0
    %3756 = vperm.xlu0 %3755, %v3300
    %v3757 = vpop.permute.xlu0 %3756
    %v3759 = vsub.f32 %v3752, %v3717
    %v3760 = vsub.f32 %v3752, %v3718
    %v3761 = vsub.f32 %v3752, %v3719
    %v3762 = vsub.f32 %v3752, %v3720
    %v3763 = vsub.f32 %v3752, %v3721
    %v3764 = vsub.f32 %v3752, %v3722
    %v3765 = vsub.f32 %v3752, %v3723
    %v3766 = vsub.f32 %v3752, %v3724
    %v3767 = vsub.f32 %v3752, %v3725
    %v3768 = vsub.f32 %v3752, %v3726
    %v3769 = vsub.f32 %v3752, %v3727
    %v3770 = vsub.f32 %v3752, %v3728
    %v3771 = vsub.f32 %v3752, %v3729
    %v3772 = vsub.f32 %v3752, %v3730
    %v3773 = vsub.f32 %v3752, %v3731
    %v3774 = vsub.f32 %v3752, %v3732
    %v3775 = vsub.f32 %v3757, %v3733
    %v3776 = vsub.f32 %v3757, %v3734
    %v3777 = vsub.f32 %v3757, %v3735
    %v3778 = vsub.f32 %v3757, %v3736
    %v3779 = vsub.f32 %v3757, %v3737
    %v3780 = vsub.f32 %v3757, %v3738
    %v3781 = vsub.f32 %v3757, %v3739
    %v3782 = vsub.f32 %v3757, %v3740
    %v3783 = vsub.f32 %v3757, %v3741
    %v3784 = vsub.f32 %v3757, %v3742
    %v3785 = vsub.f32 %v3757, %v3743
    %v3786 = vsub.f32 %v3757, %v3744
    %v3787 = vsub.f32 %v3757, %v3745
    %v3788 = vsub.f32 %v3757, %v3746
    %v3789 = vsub.f32 %v3757, %v3747
    %v3790 = vsub.f32 %v3757, %v3748
    %v3791 = vmin.f32 %v3759, %v3775
    %v3792 = vrot.slane %v3791, 4
    %v3793 = vmin.f32 %v3791, %v3792
    %v3794 = vrot.slane %v3793, 2
    %v3795 = vmin.f32 %v3793, %v3794
    %v3796 = vrot.slane %v3795, 1
    %v3797 = vmin.f32 %v3795, %v3796
    %v3798 = vmin.f32 %v3760, %v3776
    %v3799 = vrot.slane %v3798, 4
    %v3800 = vmin.f32 %v3798, %v3799
    %v3801 = vrot.slane %v3800, 2
    %v3802 = vmin.f32 %v3800, %v3801
    %v3803 = vrot.slane %v3802, 1
    %v3804 = vmin.f32 %v3802, %v3803
    %v3805 = vmin.f32 %v3761, %v3777
    %v3806 = vrot.slane %v3805, 4
    %v3807 = vmin.f32 %v3805, %v3806
    %v3808 = vrot.slane %v3807, 2
    %v3809 = vmin.f32 %v3807, %v3808
    %v3810 = vrot.slane %v3809, 1
    %v3811 = vmin.f32 %v3809, %v3810
    %v3812 = vmin.f32 %v3762, %v3778
    %v3813 = vrot.slane %v3812, 4
    %v3814 = vmin.f32 %v3812, %v3813
    %v3815 = vrot.slane %v3814, 2
    %v3816 = vmin.f32 %v3814, %v3815
    %v3817 = vrot.slane %v3816, 1
    %v3818 = vmin.f32 %v3816, %v3817
    %v3819 = vmin.f32 %v3763, %v3779
    %v3820 = vrot.slane %v3819, 4
    %v3821 = vmin.f32 %v3819, %v3820
    %v3822 = vrot.slane %v3821, 2
    %v3823 = vmin.f32 %v3821, %v3822
    %v3824 = vrot.slane %v3823, 1
    %v3825 = vmin.f32 %v3823, %v3824
    %v3826 = vmin.f32 %v3764, %v3780
    %v3827 = vrot.slane %v3826, 4
    %v3828 = vmin.f32 %v3826, %v3827
    %v3829 = vrot.slane %v3828, 2
    %v3830 = vmin.f32 %v3828, %v3829
    %v3831 = vrot.slane %v3830, 1
    %v3832 = vmin.f32 %v3830, %v3831
    %v3833 = vmin.f32 %v3765, %v3781
    %v3834 = vrot.slane %v3833, 4
    %v3835 = vmin.f32 %v3833, %v3834
    %v3836 = vrot.slane %v3835, 2
    %v3837 = vmin.f32 %v3835, %v3836
    %v3838 = vrot.slane %v3837, 1
    %v3839 = vmin.f32 %v3837, %v3838
    %v3840 = vmin.f32 %v3766, %v3782
    %v3841 = vrot.slane %v3840, 4
    %v3842 = vmin.f32 %v3840, %v3841
    %v3843 = vrot.slane %v3842, 2
    %v3844 = vmin.f32 %v3842, %v3843
    %v3845 = vrot.slane %v3844, 1
    %v3846 = vmin.f32 %v3844, %v3845
    %v3847 = vmin.f32 %v3767, %v3783
    %v3848 = vrot.slane %v3847, 4
    %v3849 = vmin.f32 %v3847, %v3848
    %v3850 = vrot.slane %v3849, 2
    %v3851 = vmin.f32 %v3849, %v3850
    %v3852 = vrot.slane %v3851, 1
    %v3853 = vmin.f32 %v3851, %v3852
    %v3854 = vmin.f32 %v3768, %v3784
    %v3855 = vrot.slane %v3854, 4
    %v3856 = vmin.f32 %v3854, %v3855
    %v3857 = vrot.slane %v3856, 2
    %v3858 = vmin.f32 %v3856, %v3857
    %v3859 = vrot.slane %v3858, 1
    %v3860 = vmin.f32 %v3858, %v3859
    %v3861 = vmin.f32 %v3769, %v3785
    %v3862 = vrot.slane %v3861, 4
    %v3863 = vmin.f32 %v3861, %v3862
    %v3864 = vrot.slane %v3863, 2
    %v3865 = vmin.f32 %v3863, %v3864
    %v3866 = vrot.slane %v3865, 1
    %v3867 = vmin.f32 %v3865, %v3866
    %v3868 = vmin.f32 %v3770, %v3786
    %v3869 = vrot.slane %v3868, 4
    %v3870 = vmin.f32 %v3868, %v3869
    %v3871 = vrot.slane %v3870, 2
    %v3872 = vmin.f32 %v3870, %v3871
    %v3873 = vrot.slane %v3872, 1
    %v3874 = vmin.f32 %v3872, %v3873
    %v3875 = vmin.f32 %v3771, %v3787
    %v3876 = vrot.slane %v3875, 4
    %v3877 = vmin.f32 %v3875, %v3876
    %v3878 = vrot.slane %v3877, 2
    %v3879 = vmin.f32 %v3877, %v3878
    %v3880 = vrot.slane %v3879, 1
    %v3881 = vmin.f32 %v3879, %v3880
    %v3882 = vmin.f32 %v3772, %v3788
    %v3883 = vrot.slane %v3882, 4
    %v3884 = vmin.f32 %v3882, %v3883
    %v3885 = vrot.slane %v3884, 2
    %v3886 = vmin.f32 %v3884, %v3885
    %v3887 = vrot.slane %v3886, 1
    %v3888 = vmin.f32 %v3886, %v3887
    %v3889 = vmin.f32 %v3773, %v3789
    %v3890 = vrot.slane %v3889, 4
    %v3891 = vmin.f32 %v3889, %v3890
    %v3892 = vrot.slane %v3891, 2
    %v3893 = vmin.f32 %v3891, %v3892
    %v3894 = vrot.slane %v3893, 1
    %v3895 = vmin.f32 %v3893, %v3894
    %v3896 = vmin.f32 %v3774, %v3790
    %v3897 = vrot.slane %v3896, 4
    %v3898 = vmin.f32 %v3896, %v3897
    %v3899 = vrot.slane %v3898, 2
    %v3900 = vmin.f32 %v3898, %v3899
    %v3901 = vrot.slane %v3900, 1
    %v3902 = vmin.f32 %v3900, %v3901
    %vm3903 = vcmp.le.f32.partialorder %v3759, %v3797
    %vm3904 = vcmp.le.f32.partialorder %v3760, %v3804
    %vm3905 = vcmp.le.f32.partialorder %v3761, %v3811
    %vm3906 = vcmp.le.f32.partialorder %v3762, %v3818
    %vm3907 = vcmp.le.f32.partialorder %v3763, %v3825
    %vm3908 = vcmp.le.f32.partialorder %v3764, %v3832
    %vm3909 = vcmp.le.f32.partialorder %v3765, %v3839
    %vm3910 = vcmp.le.f32.partialorder %v3766, %v3846
    %vm3911 = vcmp.le.f32.partialorder %v3767, %v3853
    %vm3912 = vcmp.le.f32.partialorder %v3768, %v3860
    %vm3913 = vcmp.le.f32.partialorder %v3769, %v3867
    %vm3914 = vcmp.le.f32.partialorder %v3770, %v3874
    %vm3915 = vcmp.le.f32.partialorder %v3771, %v3881
    %vm3916 = vcmp.le.f32.partialorder %v3772, %v3888
    %vm3917 = vcmp.le.f32.partialorder %v3773, %v3895
    %vm3918 = vcmp.le.f32.partialorder %v3774, %v3902
    %vm3919 = vcmp.le.f32.partialorder %v3775, %v3797
    %vm3920 = vcmp.le.f32.partialorder %v3776, %v3804
    %vm3921 = vcmp.le.f32.partialorder %v3777, %v3811
    %vm3922 = vcmp.le.f32.partialorder %v3778, %v3818
    %vm3923 = vcmp.le.f32.partialorder %v3779, %v3825
    %vm3924 = vcmp.le.f32.partialorder %v3780, %v3832
    %vm3925 = vcmp.le.f32.partialorder %v3781, %v3839
    %vm3926 = vcmp.le.f32.partialorder %v3782, %v3846
    %vm3927 = vcmp.le.f32.partialorder %v3783, %v3853
    %vm3928 = vcmp.le.f32.partialorder %v3784, %v3860
    %vm3929 = vcmp.le.f32.partialorder %v3785, %v3867
    %vm3930 = vcmp.le.f32.partialorder %v3786, %v3874
    %vm3931 = vcmp.le.f32.partialorder %v3787, %v3881
    %vm3932 = vcmp.le.f32.partialorder %v3788, %v3888
    %vm3933 = vcmp.le.f32.partialorder %v3789, %v3895
    %vm3934 = vcmp.le.f32.partialorder %v3790, %v3902
    %v3935 = vsel %vm3903, %v2128, 16
    %v3936 = vsel %vm3904, %v2128, 16
    %v3937 = vsel %vm3905, %v2128, 16
    %v3938 = vsel %vm3906, %v2128, 16
    %v3939 = vsel %vm3907, %v2128, 16
    %v3940 = vsel %vm3908, %v2128, 16
    %v3941 = vsel %vm3909, %v2128, 16
    %v3942 = vsel %vm3910, %v2128, 16
    %v3943 = vsel %vm3911, %v2128, 16
    %v3944 = vsel %vm3912, %v2128, 16
    %v3945 = vsel %vm3913, %v2128, 16
    %v3946 = vsel %vm3914, %v2128, 16
    %v3947 = vsel %vm3915, %v2128, 16
    %v3948 = vsel %vm3916, %v2128, 16
    %v3949 = vsel %vm3917, %v2128, 16
    %v3950 = vsel %vm3918, %v2128, 16
    %v3951 = vsel %vm3919, %v2129, 16
    %v3952 = vsel %vm3920, %v2129, 16
    %v3953 = vsel %vm3921, %v2129, 16
    %v3954 = vsel %vm3922, %v2129, 16
    %v3955 = vsel %vm3923, %v2129, 16
    %v3956 = vsel %vm3924, %v2129, 16
    %v3957 = vsel %vm3925, %v2129, 16
    %v3958 = vsel %vm3926, %v2129, 16
    %v3959 = vsel %vm3927, %v2129, 16
    %v3960 = vsel %vm3928, %v2129, 16
    %v3961 = vsel %vm3929, %v2129, 16
    %v3962 = vsel %vm3930, %v2129, 16
    %v3963 = vsel %vm3931, %v2129, 16
    %v3964 = vsel %vm3932, %v2129, 16
    %v3965 = vsel %vm3933, %v2129, 16
    %v3966 = vsel %vm3934, %v2129, 16
    %vm3967 = vcmp.lt.s32.totalorder %v3935, %v3951
    %v3968 = vsel %vm3967, %v3935, %v3951
    %v3969 = vrot.slane %v3968, 4
    %vm3970 = vcmp.lt.s32.totalorder %v3968, %v3969
    %v3971 = vsel %vm3970, %v3968, %v3969
    %v3972 = vrot.slane %v3971, 2
    %vm3973 = vcmp.lt.s32.totalorder %v3971, %v3972
    %v3974 = vsel %vm3973, %v3971, %v3972
    %v3975 = vrot.slane %v3974, 1
    %vm3976 = vcmp.lt.s32.totalorder %v3974, %v3975
    %v3977 = vsel %vm3976, %v3974, %v3975
    %vm3978 = vcmp.lt.s32.totalorder %v3936, %v3952
    %v3979 = vsel %vm3978, %v3936, %v3952
    %v3980 = vrot.slane %v3979, 4
    %vm3981 = vcmp.lt.s32.totalorder %v3979, %v3980
    %v3982 = vsel %vm3981, %v3979, %v3980
    %v3983 = vrot.slane %v3982, 2
    %vm3984 = vcmp.lt.s32.totalorder %v3982, %v3983
    %v3985 = vsel %vm3984, %v3982, %v3983
    %v3986 = vrot.slane %v3985, 1
    %vm3987 = vcmp.lt.s32.totalorder %v3985, %v3986
    %v3988 = vsel %vm3987, %v3985, %v3986
    %vm3989 = vcmp.lt.s32.totalorder %v3937, %v3953
    %v3990 = vsel %vm3989, %v3937, %v3953
    %v3991 = vrot.slane %v3990, 4
    %vm3992 = vcmp.lt.s32.totalorder %v3990, %v3991
    %v3993 = vsel %vm3992, %v3990, %v3991
    %v3994 = vrot.slane %v3993, 2
    %vm3995 = vcmp.lt.s32.totalorder %v3993, %v3994
    %v3996 = vsel %vm3995, %v3993, %v3994
    %v3997 = vrot.slane %v3996, 1
    %vm3998 = vcmp.lt.s32.totalorder %v3996, %v3997
    %v3999 = vsel %vm3998, %v3996, %v3997
    %vm4000 = vcmp.lt.s32.totalorder %v3938, %v3954
    %v4001 = vsel %vm4000, %v3938, %v3954
    %v4002 = vrot.slane %v4001, 4
    %vm4003 = vcmp.lt.s32.totalorder %v4001, %v4002
    %v4004 = vsel %vm4003, %v4001, %v4002
    %v4005 = vrot.slane %v4004, 2
    %vm4006 = vcmp.lt.s32.totalorder %v4004, %v4005
    %v4007 = vsel %vm4006, %v4004, %v4005
    %v4008 = vrot.slane %v4007, 1
    %vm4009 = vcmp.lt.s32.totalorder %v4007, %v4008
    %v4010 = vsel %vm4009, %v4007, %v4008
    %vm4011 = vcmp.lt.s32.totalorder %v3939, %v3955
    %v4012 = vsel %vm4011, %v3939, %v3955
    %v4013 = vrot.slane %v4012, 4
    %vm4014 = vcmp.lt.s32.totalorder %v4012, %v4013
    %v4015 = vsel %vm4014, %v4012, %v4013
    %v4016 = vrot.slane %v4015, 2
    %vm4017 = vcmp.lt.s32.totalorder %v4015, %v4016
    %v4018 = vsel %vm4017, %v4015, %v4016
    %v4019 = vrot.slane %v4018, 1
    %vm4020 = vcmp.lt.s32.totalorder %v4018, %v4019
    %v4021 = vsel %vm4020, %v4018, %v4019
    %vm4022 = vcmp.lt.s32.totalorder %v3940, %v3956
    %v4023 = vsel %vm4022, %v3940, %v3956
    %v4024 = vrot.slane %v4023, 4
    %vm4025 = vcmp.lt.s32.totalorder %v4023, %v4024
    %v4026 = vsel %vm4025, %v4023, %v4024
    %v4027 = vrot.slane %v4026, 2
    %vm4028 = vcmp.lt.s32.totalorder %v4026, %v4027
    %v4029 = vsel %vm4028, %v4026, %v4027
    %v4030 = vrot.slane %v4029, 1
    %vm4031 = vcmp.lt.s32.totalorder %v4029, %v4030
    %v4032 = vsel %vm4031, %v4029, %v4030
    %vm4033 = vcmp.lt.s32.totalorder %v3941, %v3957
    %v4034 = vsel %vm4033, %v3941, %v3957
    %v4035 = vrot.slane %v4034, 4
    %vm4036 = vcmp.lt.s32.totalorder %v4034, %v4035
    %v4037 = vsel %vm4036, %v4034, %v4035
    %v4038 = vrot.slane %v4037, 2
    %vm4039 = vcmp.lt.s32.totalorder %v4037, %v4038
    %v4040 = vsel %vm4039, %v4037, %v4038
    %v4041 = vrot.slane %v4040, 1
    %vm4042 = vcmp.lt.s32.totalorder %v4040, %v4041
    %v4043 = vsel %vm4042, %v4040, %v4041
    %vm4044 = vcmp.lt.s32.totalorder %v3942, %v3958
    %v4045 = vsel %vm4044, %v3942, %v3958
    %v4046 = vrot.slane %v4045, 4
    %vm4047 = vcmp.lt.s32.totalorder %v4045, %v4046
    %v4048 = vsel %vm4047, %v4045, %v4046
    %v4049 = vrot.slane %v4048, 2
    %vm4050 = vcmp.lt.s32.totalorder %v4048, %v4049
    %v4051 = vsel %vm4050, %v4048, %v4049
    %v4052 = vrot.slane %v4051, 1
    %vm4053 = vcmp.lt.s32.totalorder %v4051, %v4052
    %v4054 = vsel %vm4053, %v4051, %v4052
    %vm4055 = vcmp.lt.s32.totalorder %v3943, %v3959
    %v4056 = vsel %vm4055, %v3943, %v3959
    %v4057 = vrot.slane %v4056, 4
    %vm4058 = vcmp.lt.s32.totalorder %v4056, %v4057
    %v4059 = vsel %vm4058, %v4056, %v4057
    %v4060 = vrot.slane %v4059, 2
    %vm4061 = vcmp.lt.s32.totalorder %v4059, %v4060
    %v4062 = vsel %vm4061, %v4059, %v4060
    %v4063 = vrot.slane %v4062, 1
    %vm4064 = vcmp.lt.s32.totalorder %v4062, %v4063
    %v4065 = vsel %vm4064, %v4062, %v4063
    %vm4066 = vcmp.lt.s32.totalorder %v3944, %v3960
    %v4067 = vsel %vm4066, %v3944, %v3960
    %v4068 = vrot.slane %v4067, 4
    %vm4069 = vcmp.lt.s32.totalorder %v4067, %v4068
    %v4070 = vsel %vm4069, %v4067, %v4068
    %v4071 = vrot.slane %v4070, 2
    %vm4072 = vcmp.lt.s32.totalorder %v4070, %v4071
    %v4073 = vsel %vm4072, %v4070, %v4071
    %v4074 = vrot.slane %v4073, 1
    %vm4075 = vcmp.lt.s32.totalorder %v4073, %v4074
    %v4076 = vsel %vm4075, %v4073, %v4074
    %vm4077 = vcmp.lt.s32.totalorder %v3945, %v3961
    %v4078 = vsel %vm4077, %v3945, %v3961
    %v4079 = vrot.slane %v4078, 4
    %vm4080 = vcmp.lt.s32.totalorder %v4078, %v4079
    %v4081 = vsel %vm4080, %v4078, %v4079
    %v4082 = vrot.slane %v4081, 2
    %vm4083 = vcmp.lt.s32.totalorder %v4081, %v4082
    %v4084 = vsel %vm4083, %v4081, %v4082
    %v4085 = vrot.slane %v4084, 1
    %vm4086 = vcmp.lt.s32.totalorder %v4084, %v4085
    %v4087 = vsel %vm4086, %v4084, %v4085
    %vm4088 = vcmp.lt.s32.totalorder %v3946, %v3962
    %v4089 = vsel %vm4088, %v3946, %v3962
    %v4090 = vrot.slane %v4089, 4
    %vm4091 = vcmp.lt.s32.totalorder %v4089, %v4090
    %v4092 = vsel %vm4091, %v4089, %v4090
    %v4093 = vrot.slane %v4092, 2
    %vm4094 = vcmp.lt.s32.totalorder %v4092, %v4093
    %v4095 = vsel %vm4094, %v4092, %v4093
    %v4096 = vrot.slane %v4095, 1
    %vm4097 = vcmp.lt.s32.totalorder %v4095, %v4096
    %v4098 = vsel %vm4097, %v4095, %v4096
    %vm4099 = vcmp.lt.s32.totalorder %v3947, %v3963
    %v4100 = vsel %vm4099, %v3947, %v3963
    %v4101 = vrot.slane %v4100, 4
    %vm4102 = vcmp.lt.s32.totalorder %v4100, %v4101
    %v4103 = vsel %vm4102, %v4100, %v4101
    %v4104 = vrot.slane %v4103, 2
    %vm4105 = vcmp.lt.s32.totalorder %v4103, %v4104
    %v4106 = vsel %vm4105, %v4103, %v4104
    %v4107 = vrot.slane %v4106, 1
    %vm4108 = vcmp.lt.s32.totalorder %v4106, %v4107
    %v4109 = vsel %vm4108, %v4106, %v4107
    %vm4110 = vcmp.lt.s32.totalorder %v3948, %v3964
    %v4111 = vsel %vm4110, %v3948, %v3964
    %v4112 = vrot.slane %v4111, 4
    %vm4113 = vcmp.lt.s32.totalorder %v4111, %v4112
    %v4114 = vsel %vm4113, %v4111, %v4112
    %v4115 = vrot.slane %v4114, 2
    %vm4116 = vcmp.lt.s32.totalorder %v4114, %v4115
    %v4117 = vsel %vm4116, %v4114, %v4115
    %v4118 = vrot.slane %v4117, 1
    %vm4119 = vcmp.lt.s32.totalorder %v4117, %v4118
    %v4120 = vsel %vm4119, %v4117, %v4118
    %vm4121 = vcmp.lt.s32.totalorder %v3949, %v3965
    %v4122 = vsel %vm4121, %v3949, %v3965
    %v4123 = vrot.slane %v4122, 4
    %vm4124 = vcmp.lt.s32.totalorder %v4122, %v4123
    %v4125 = vsel %vm4124, %v4122, %v4123
    %v4126 = vrot.slane %v4125, 2
    %vm4127 = vcmp.lt.s32.totalorder %v4125, %v4126
    %v4128 = vsel %vm4127, %v4125, %v4126
    %v4129 = vrot.slane %v4128, 1
    %vm4130 = vcmp.lt.s32.totalorder %v4128, %v4129
    %v4131 = vsel %vm4130, %v4128, %v4129
    %vm4132 = vcmp.lt.s32.totalorder %v3950, %v3966
    %v4133 = vsel %vm4132, %v3950, %v3966
    %v4134 = vrot.slane %v4133, 4
    %vm4135 = vcmp.lt.s32.totalorder %v4133, %v4134
    %v4136 = vsel %vm4135, %v4133, %v4134
    %v4137 = vrot.slane %v4136, 2
    %vm4138 = vcmp.lt.s32.totalorder %v4136, %v4137
    %v4139 = vsel %vm4138, %v4136, %v4137
    %v4140 = vrot.slane %v4139, 1
    %vm4141 = vcmp.lt.s32.totalorder %v4139, %v4140
    %v4142 = vsel %vm4141, %v4139, %v4140
    %vm4143 = vcmp.eq.s32.totalorder %v2128, %v3977
    %vm4144 = vcmp.eq.s32.totalorder %v2128, %v3988
    %vm4145 = vcmp.eq.s32.totalorder %v2128, %v3999
    %vm4146 = vcmp.eq.s32.totalorder %v2128, %v4010
    %vm4147 = vcmp.eq.s32.totalorder %v2128, %v4021
    %vm4148 = vcmp.eq.s32.totalorder %v2128, %v4032
    %vm4149 = vcmp.eq.s32.totalorder %v2128, %v4043
    %vm4150 = vcmp.eq.s32.totalorder %v2128, %v4054
    %vm4151 = vcmp.eq.s32.totalorder %v2128, %v4065
    %vm4152 = vcmp.eq.s32.totalorder %v2128, %v4076
    %vm4153 = vcmp.eq.s32.totalorder %v2128, %v4087
    %vm4154 = vcmp.eq.s32.totalorder %v2128, %v4098
    %vm4155 = vcmp.eq.s32.totalorder %v2128, %v4109
    %vm4156 = vcmp.eq.s32.totalorder %v2128, %v4120
    %vm4157 = vcmp.eq.s32.totalorder %v2128, %v4131
    %vm4158 = vcmp.eq.s32.totalorder %v2128, %v4142
    %vm4159 = vcmp.eq.s32.totalorder %v2129, %v3977
    %vm4160 = vcmp.eq.s32.totalorder %v2129, %v3988
    %vm4161 = vcmp.eq.s32.totalorder %v2129, %v3999
    %vm4162 = vcmp.eq.s32.totalorder %v2129, %v4010
    %vm4163 = vcmp.eq.s32.totalorder %v2129, %v4021
    %vm4164 = vcmp.eq.s32.totalorder %v2129, %v4032
    %vm4165 = vcmp.eq.s32.totalorder %v2129, %v4043
    %vm4166 = vcmp.eq.s32.totalorder %v2129, %v4054
    %vm4167 = vcmp.eq.s32.totalorder %v2129, %v4065
    %vm4168 = vcmp.eq.s32.totalorder %v2129, %v4076
    %vm4169 = vcmp.eq.s32.totalorder %v2129, %v4087
    %vm4170 = vcmp.eq.s32.totalorder %v2129, %v4098
    %vm4171 = vcmp.eq.s32.totalorder %v2129, %v4109
    %vm4172 = vcmp.eq.s32.totalorder %v2129, %v4120
    %vm4173 = vcmp.eq.s32.totalorder %v2129, %v4131
    %vm4174 = vcmp.eq.s32.totalorder %v2129, %v4142
    %v4175 = vsel %vm4143, 1, 0
    %v4176 = vsel %vm4144, 1, 0
    %v4177 = vsel %vm4145, 1, 0
    %v4178 = vsel %vm4146, 1, 0
    %v4179 = vsel %vm4147, 1, 0
    %v4180 = vsel %vm4148, 1, 0
    %v4181 = vsel %vm4149, 1, 0
    %v4182 = vsel %vm4150, 1, 0
    %v4183 = vsel %vm4151, 1, 0
    %v4184 = vsel %vm4152, 1, 0
    %v4185 = vsel %vm4153, 1, 0
    %v4186 = vsel %vm4154, 1, 0
    %v4187 = vsel %vm4155, 1, 0
    %v4188 = vsel %vm4156, 1, 0
    %v4189 = vsel %vm4157, 1, 0
    %v4190 = vsel %vm4158, 1, 0
    %v4191 = vsel %vm4159, 1, 0
    %v4192 = vsel %vm4160, 1, 0
    %v4193 = vsel %vm4161, 1, 0
    %v4194 = vsel %vm4162, 1, 0
    %v4195 = vsel %vm4163, 1, 0
    %v4196 = vsel %vm4164, 1, 0
    %v4197 = vsel %vm4165, 1, 0
    %v4198 = vsel %vm4166, 1, 0
    %v4199 = vsel %vm4167, 1, 0
    %v4200 = vsel %vm4168, 1, 0
    %v4201 = vsel %vm4169, 1, 0
    %v4202 = vsel %vm4170, 1, 0
    %v4203 = vsel %vm4171, 1, 0
    %v4204 = vsel %vm4172, 1, 0
    %v4205 = vsel %vm4173, 1, 0
    %v4206 = vsel %vm4174, 1, 0
    %v4207 = vcvt.s32.f32 %v4175
    %v4208 = vcvt.s32.f32 %v4176
    %v4209 = vcvt.s32.f32 %v4177
    %v4210 = vcvt.s32.f32 %v4178
    %v4211 = vcvt.s32.f32 %v4179
    %v4212 = vcvt.s32.f32 %v4180
    %v4213 = vcvt.s32.f32 %v4181
    %v4214 = vcvt.s32.f32 %v4182
    %v4215 = vcvt.s32.f32 %v4183
    %v4216 = vcvt.s32.f32 %v4184
    %v4217 = vcvt.s32.f32 %v4185
    %v4218 = vcvt.s32.f32 %v4186
    %v4219 = vcvt.s32.f32 %v4187
    %v4220 = vcvt.s32.f32 %v4188
    %v4221 = vcvt.s32.f32 %v4189
    %v4222 = vcvt.s32.f32 %v4190
    %v4223 = vcvt.s32.f32 %v4191
    %v4224 = vcvt.s32.f32 %v4192
    %v4225 = vcvt.s32.f32 %v4193
    %v4226 = vcvt.s32.f32 %v4194
    %v4227 = vcvt.s32.f32 %v4195
    %v4228 = vcvt.s32.f32 %v4196
    %v4229 = vcvt.s32.f32 %v4197
    %v4230 = vcvt.s32.f32 %v4198
    %v4231 = vcvt.s32.f32 %v4199
    %v4232 = vcvt.s32.f32 %v4200
    %v4233 = vcvt.s32.f32 %v4201
    %v4234 = vcvt.s32.f32 %v4202
    %v4235 = vcvt.s32.f32 %v4203
    %v4236 = vcvt.s32.f32 %v4204
    %v4237 = vcvt.s32.f32 %v4205
    %v4238 = vcvt.s32.f32 %v4206
    %v4239 = vpack.c.bf16 %v4223, %v4207
    %v4240 = vpack.c.bf16 %v4224, %v4208
    %v4241 = vpack.c.bf16 %v4225, %v4209
    %v4242 = vpack.c.bf16 %v4226, %v4210
    %v4243 = vpack.c.bf16 %v4227, %v4211
    %v4244 = vpack.c.bf16 %v4228, %v4212
    %v4245 = vpack.c.bf16 %v4229, %v4213
    %v4246 = vpack.c.bf16 %v4230, %v4214
    %v4247 = vpack.c.bf16 %v4231, %v4215
    %v4248 = vpack.c.bf16 %v4232, %v4216
    %v4249 = vpack.c.bf16 %v4233, %v4217
    %v4250 = vpack.c.bf16 %v4234, %v4218
    %v4251 = vpack.c.bf16 %v4235, %v4219
    %v4252 = vpack.c.bf16 %v4236, %v4220
    %v4253 = vpack.c.bf16 %v4237, %v4221
    %v4254 = vpack.c.bf16 %v4238, %v4222
    %v4256 = vsel %vm1187, %v3297, 0
    %4258 = vmatprep.subr.bf16.mxu0 0
    %4259 = vmatpush1.bf16.msra.mxu0 0
    %4260 = vmatprep.subr.bf16.mxu0 0
    %4261 = vmatpush1.bf16.msra.mxu0 0
    %4262 = vmatprep.subr.bf16.mxu0 0
    %4263 = vmatpush1.bf16.msra.mxu0 0
    %4264 = vmatprep.subr.bf16.mxu0 0
    %4265 = vmatpush1.bf16.msra.mxu0 0
    %4266 = vmatprep.subr.bf16.mxu0 0
    %4267 = vmatpush1.bf16.msra.mxu0 0
    %4268 = vmatprep.subr.bf16.mxu0 0
    %4269 = vmatpush1.bf16.msra.mxu0 0
    %4270 = vmatprep.subr.bf16.mxu0 0
    %4271 = vmatpush1.bf16.msra.mxu0 0
    %4272 = vmatprep.subr.bf16.mxu0 %v4240
    %4273 = vmatpush1.bf16.msra.mxu0 %v4239
    %4274 = vmatprep.subr.bf16.mxu0 0
    %4275 = vmatpush2.bf16.msra.mxu0 0
    %4276 = vmatprep.subr.bf16.mxu0 0
    %4277 = vmatpush2.bf16.msra.mxu0 0
    %4278 = vmatprep.subr.bf16.mxu0 0
    %4279 = vmatpush2.bf16.msra.mxu0 0
    %4280 = vmatprep.subr.bf16.mxu0 0
    %4281 = vmatpush2.bf16.msra.mxu0 0
    %4282 = vmatprep.subr.bf16.mxu0 0
    %4283 = vmatpush2.bf16.msra.mxu0 0
    %4284 = vmatprep.subr.bf16.mxu0 0
    %4285 = vmatpush2.bf16.msra.mxu0 0
    %4286 = vmatprep.subr.bf16.mxu0 0
    %4287 = vmatpush2.bf16.msra.mxu0 0
    %4288 = vmatprep.subr.bf16.mxu0 0
    %4289 = vmatpush2.bf16.msra.mxu0 0
    %4290 = vmatprep.mubr.bf16.mxu0 0
    %4291 = vmatmul.mubr.bf16.gmra.mxu0 %v4256
    %v4292 = vpop.f32.mrf.mxu0
    %v4293 = vadd.f32 0.0, %v4292
    %v4294 = vpop.f32.mrf.mxu0
    %v4295 = vadd.f32 0.0, %v4294
    %v4296 = vpop.f32.mrf.mxu0
    %v4297 = vpop.f32.mrf.mxu0
    %4298 = vdwg.mxu0
    %4299 = vmatprep.subr.bf16.mxu0 0
    %4300 = vmatpush1.bf16.msra.mxu0 0
    %4301 = vmatprep.subr.bf16.mxu0 0
    %4302 = vmatpush1.bf16.msra.mxu0 0
    %4303 = vmatprep.subr.bf16.mxu0 0
    %4304 = vmatpush1.bf16.msra.mxu0 0
    %4305 = vmatprep.subr.bf16.mxu0 0
    %4306 = vmatpush1.bf16.msra.mxu0 0
    %4307 = vmatprep.subr.bf16.mxu0 0
    %4308 = vmatpush1.bf16.msra.mxu0 0
    %4309 = vmatprep.subr.bf16.mxu0 0
    %4310 = vmatpush1.bf16.msra.mxu0 0
    %4311 = vmatprep.subr.bf16.mxu0 0
    %4312 = vmatpush1.bf16.msra.mxu0 0
    %4313 = vmatprep.subr.bf16.mxu0 %v4242
    %4314 = vmatpush1.bf16.msra.mxu0 %v4241
    %4315 = vmatprep.subr.bf16.mxu0 0
    %4316 = vmatpush2.bf16.msra.mxu0 0
    %4317 = vmatprep.subr.bf16.mxu0 0
    %4318 = vmatpush2.bf16.msra.mxu0 0
    %4319 = vmatprep.subr.bf16.mxu0 0
    %4320 = vmatpush2.bf16.msra.mxu0 0
    %4321 = vmatprep.subr.bf16.mxu0 0
    %4322 = vmatpush2.bf16.msra.mxu0 0
    %4323 = vmatprep.subr.bf16.mxu0 0
    %4324 = vmatpush2.bf16.msra.mxu0 0
    %4325 = vmatprep.subr.bf16.mxu0 0
    %4326 = vmatpush2.bf16.msra.mxu0 0
    %4327 = vmatprep.subr.bf16.mxu0 0
    %4328 = vmatpush2.bf16.msra.mxu0 0
    %4329 = vmatprep.subr.bf16.mxu0 0
    %4330 = vmatpush2.bf16.msra.mxu0 0
    %4331 = vmatprep.mubr.bf16.mxu0 0
    %4332 = vmatmul.mubr.bf16.gmra.mxu0 %v4256
    %v4333 = vpop.f32.mrf.mxu0
    %v4334 = vadd.f32 0.0, %v4333
    %v4335 = vpop.f32.mrf.mxu0
    %v4336 = vadd.f32 0.0, %v4335
    %v4337 = vpop.f32.mrf.mxu0
    %v4338 = vpop.f32.mrf.mxu0
    %4339 = vdwg.mxu0
    %4340 = vmatprep.subr.bf16.mxu0 0
    %4341 = vmatpush1.bf16.msra.mxu0 0
    %4342 = vmatprep.subr.bf16.mxu0 0
    %4343 = vmatpush1.bf16.msra.mxu0 0
    %4344 = vmatprep.subr.bf16.mxu0 0
    %4345 = vmatpush1.bf16.msra.mxu0 0
    %4346 = vmatprep.subr.bf16.mxu0 0
    %4347 = vmatpush1.bf16.msra.mxu0 0
    %4348 = vmatprep.subr.bf16.mxu0 0
    %4349 = vmatpush1.bf16.msra.mxu0 0
    %4350 = vmatprep.subr.bf16.mxu0 0
    %4351 = vmatpush1.bf16.msra.mxu0 0
    %4352 = vmatprep.subr.bf16.mxu0 0
    %4353 = vmatpush1.bf16.msra.mxu0 0
    %4354 = vmatprep.subr.bf16.mxu0 %v4244
    %4355 = vmatpush1.bf16.msra.mxu0 %v4243
    %4356 = vmatprep.subr.bf16.mxu0 0
    %4357 = vmatpush2.bf16.msra.mxu0 0
    %4358 = vmatprep.subr.bf16.mxu0 0
    %4359 = vmatpush2.bf16.msra.mxu0 0
    %4360 = vmatprep.subr.bf16.mxu0 0
    %4361 = vmatpush2.bf16.msra.mxu0 0
    %4362 = vmatprep.subr.bf16.mxu0 0
    %4363 = vmatpush2.bf16.msra.mxu0 0
    %4364 = vmatprep.subr.bf16.mxu0 0
    %4365 = vmatpush2.bf16.msra.mxu0 0
    %4366 = vmatprep.subr.bf16.mxu0 0
    %4367 = vmatpush2.bf16.msra.mxu0 0
    %4368 = vmatprep.subr.bf16.mxu0 0
    %4369 = vmatpush2.bf16.msra.mxu0 0
    %4370 = vmatprep.subr.bf16.mxu0 0
    %4371 = vmatpush2.bf16.msra.mxu0 0
    %4372 = vmatprep.mubr.bf16.mxu0 0
    %4373 = vmatmul.mubr.bf16.gmra.mxu0 %v4256
    %v4374 = vpop.f32.mrf.mxu0
    %v4375 = vadd.f32 0.0, %v4374
    %v4376 = vpop.f32.mrf.mxu0
    %v4377 = vadd.f32 0.0, %v4376
    %v4378 = vpop.f32.mrf.mxu0
    %v4379 = vpop.f32.mrf.mxu0
    %4380 = vdwg.mxu0
    %4381 = vmatprep.subr.bf16.mxu0 0
    %4382 = vmatpush1.bf16.msra.mxu0 0
    %4383 = vmatprep.subr.bf16.mxu0 0
    %4384 = vmatpush1.bf16.msra.mxu0 0
    %4385 = vmatprep.subr.bf16.mxu0 0
    %4386 = vmatpush1.bf16.msra.mxu0 0
    %4387 = vmatprep.subr.bf16.mxu0 0
    %4388 = vmatpush1.bf16.msra.mxu0 0
    %4389 = vmatprep.subr.bf16.mxu0 0
    %4390 = vmatpush1.bf16.msra.mxu0 0
    %4391 = vmatprep.subr.bf16.mxu0 0
    %4392 = vmatpush1.bf16.msra.mxu0 0
    %4393 = vmatprep.subr.bf16.mxu0 0
    %4394 = vmatpush1.bf16.msra.mxu0 0
    %4395 = vmatprep.subr.bf16.mxu0 %v4246
    %4396 = vmatpush1.bf16.msra.mxu0 %v4245
    %4397 = vmatprep.subr.bf16.mxu0 0
    %4398 = vmatpush2.bf16.msra.mxu0 0
    %4399 = vmatprep.subr.bf16.mxu0 0
    %4400 = vmatpush2.bf16.msra.mxu0 0
    %4401 = vmatprep.subr.bf16.mxu0 0
    %4402 = vmatpush2.bf16.msra.mxu0 0
    %4403 = vmatprep.subr.bf16.mxu0 0
    %4404 = vmatpush2.bf16.msra.mxu0 0
    %4405 = vmatprep.subr.bf16.mxu0 0
    %4406 = vmatpush2.bf16.msra.mxu0 0
    %4407 = vmatprep.subr.bf16.mxu0 0
    %4408 = vmatpush2.bf16.msra.mxu0 0
    %4409 = vmatprep.subr.bf16.mxu0 0
    %4410 = vmatpush2.bf16.msra.mxu0 0
    %4411 = vmatprep.subr.bf16.mxu0 0
    %4412 = vmatpush2.bf16.msra.mxu0 0
    %4413 = vmatprep.mubr.bf16.mxu0 0
    %4414 = vmatmul.mubr.bf16.gmra.mxu0 %v4256
    %v4415 = vpop.f32.mrf.mxu0
    %v4416 = vadd.f32 0.0, %v4415
    %v4417 = vpop.f32.mrf.mxu0
    %v4418 = vadd.f32 0.0, %v4417
    %v4419 = vpop.f32.mrf.mxu0
    %v4420 = vpop.f32.mrf.mxu0
    %4421 = vdwg.mxu0
    %4422 = vmatprep.subr.bf16.mxu0 0
    %4423 = vmatpush1.bf16.msra.mxu0 0
    %4424 = vmatprep.subr.bf16.mxu0 0
    %4425 = vmatpush1.bf16.msra.mxu0 0
    %4426 = vmatprep.subr.bf16.mxu0 0
    %4427 = vmatpush1.bf16.msra.mxu0 0
    %4428 = vmatprep.subr.bf16.mxu0 0
    %4429 = vmatpush1.bf16.msra.mxu0 0
    %4430 = vmatprep.subr.bf16.mxu0 0
    %4431 = vmatpush1.bf16.msra.mxu0 0
    %4432 = vmatprep.subr.bf16.mxu0 0
    %4433 = vmatpush1.bf16.msra.mxu0 0
    %4434 = vmatprep.subr.bf16.mxu0 0
    %4435 = vmatpush1.bf16.msra.mxu0 0
    %4436 = vmatprep.subr.bf16.mxu0 %v4248
    %4437 = vmatpush1.bf16.msra.mxu0 %v4247
    %4438 = vmatprep.subr.bf16.mxu0 0
    %4439 = vmatpush2.bf16.msra.mxu0 0
    %4440 = vmatprep.subr.bf16.mxu0 0
    %4441 = vmatpush2.bf16.msra.mxu0 0
    %4442 = vmatprep.subr.bf16.mxu0 0
    %4443 = vmatpush2.bf16.msra.mxu0 0
    %4444 = vmatprep.subr.bf16.mxu0 0
    %4445 = vmatpush2.bf16.msra.mxu0 0
    %4446 = vmatprep.subr.bf16.mxu0 0
    %4447 = vmatpush2.bf16.msra.mxu0 0
    %4448 = vmatprep.subr.bf16.mxu0 0
    %4449 = vmatpush2.bf16.msra.mxu0 0
    %4450 = vmatprep.subr.bf16.mxu0 0
    %4451 = vmatpush2.bf16.msra.mxu0 0
    %4452 = vmatprep.subr.bf16.mxu0 0
    %4453 = vmatpush2.bf16.msra.mxu0 0
    %4454 = vmatprep.mubr.bf16.mxu0 0
    %4455 = vmatmul.mubr.bf16.gmra.mxu0 %v4256
    %v4456 = vpop.f32.mrf.mxu0
    %v4457 = vadd.f32 0.0, %v4456
    %v4458 = vpop.f32.mrf.mxu0
    %v4459 = vadd.f32 0.0, %v4458
    %v4460 = vpop.f32.mrf.mxu0
    %v4461 = vpop.f32.mrf.mxu0
    %4462 = vdwg.mxu0
    %4463 = vmatprep.subr.bf16.mxu0 0
    %4464 = vmatpush1.bf16.msra.mxu0 0
    %4465 = vmatprep.subr.bf16.mxu0 0
    %4466 = vmatpush1.bf16.msra.mxu0 0
    %4467 = vmatprep.subr.bf16.mxu0 0
    %4468 = vmatpush1.bf16.msra.mxu0 0
    %4469 = vmatprep.subr.bf16.mxu0 0
    %4470 = vmatpush1.bf16.msra.mxu0 0
    %4471 = vmatprep.subr.bf16.mxu0 0
    %4472 = vmatpush1.bf16.msra.mxu0 0
    %4473 = vmatprep.subr.bf16.mxu0 0
    %4474 = vmatpush1.bf16.msra.mxu0 0
    %4475 = vmatprep.subr.bf16.mxu0 0
    %4476 = vmatpush1.bf16.msra.mxu0 0
    %4477 = vmatprep.subr.bf16.mxu0 %v4250
    %4478 = vmatpush1.bf16.msra.mxu0 %v4249
    %4479 = vmatprep.subr.bf16.mxu0 0
    %4480 = vmatpush2.bf16.msra.mxu0 0
    %4481 = vmatprep.subr.bf16.mxu0 0
    %4482 = vmatpush2.bf16.msra.mxu0 0
    %4483 = vmatprep.subr.bf16.mxu0 0
    %4484 = vmatpush2.bf16.msra.mxu0 0
    %4485 = vmatprep.subr.bf16.mxu0 0
    %4486 = vmatpush2.bf16.msra.mxu0 0
    %4487 = vmatprep.subr.bf16.mxu0 0
    %4488 = vmatpush2.bf16.msra.mxu0 0
    %4489 = vmatprep.subr.bf16.mxu0 0
    %4490 = vmatpush2.bf16.msra.mxu0 0
    %4491 = vmatprep.subr.bf16.mxu0 0
    %4492 = vmatpush2.bf16.msra.mxu0 0
    %4493 = vmatprep.subr.bf16.mxu0 0
    %4494 = vmatpush2.bf16.msra.mxu0 0
    %4495 = vmatprep.mubr.bf16.mxu0 0
    %4496 = vmatmul.mubr.bf16.gmra.mxu0 %v4256
    %v4497 = vpop.f32.mrf.mxu0
    %v4498 = vadd.f32 0.0, %v4497
    %v4499 = vpop.f32.mrf.mxu0
    %v4500 = vadd.f32 0.0, %v4499
    %v4501 = vpop.f32.mrf.mxu0
    %v4502 = vpop.f32.mrf.mxu0
    %4503 = vdwg.mxu0
    %4504 = vmatprep.subr.bf16.mxu0 0
    %4505 = vmatpush1.bf16.msra.mxu0 0
    %4506 = vmatprep.subr.bf16.mxu0 0
    %4507 = vmatpush1.bf16.msra.mxu0 0
    %4508 = vmatprep.subr.bf16.mxu0 0
    %4509 = vmatpush1.bf16.msra.mxu0 0
    %4510 = vmatprep.subr.bf16.mxu0 0
    %4511 = vmatpush1.bf16.msra.mxu0 0
    %4512 = vmatprep.subr.bf16.mxu0 0
    %4513 = vmatpush1.bf16.msra.mxu0 0
    %4514 = vmatprep.subr.bf16.mxu0 0
    %4515 = vmatpush1.bf16.msra.mxu0 0
    %4516 = vmatprep.subr.bf16.mxu0 0
    %4517 = vmatpush1.bf16.msra.mxu0 0
    %4518 = vmatprep.subr.bf16.mxu0 %v4252
    %4519 = vmatpush1.bf16.msra.mxu0 %v4251
    %4520 = vmatprep.subr.bf16.mxu0 0
    %4521 = vmatpush2.bf16.msra.mxu0 0
    %4522 = vmatprep.subr.bf16.mxu0 0
    %4523 = vmatpush2.bf16.msra.mxu0 0
    %4524 = vmatprep.subr.bf16.mxu0 0
    %4525 = vmatpush2.bf16.msra.mxu0 0
    %4526 = vmatprep.subr.bf16.mxu0 0
    %4527 = vmatpush2.bf16.msra.mxu0 0
    %4528 = vmatprep.subr.bf16.mxu0 0
    %4529 = vmatpush2.bf16.msra.mxu0 0
    %4530 = vmatprep.subr.bf16.mxu0 0
    %4531 = vmatpush2.bf16.msra.mxu0 0
    %4532 = vmatprep.subr.bf16.mxu0 0
    %4533 = vmatpush2.bf16.msra.mxu0 0
    %4534 = vmatprep.subr.bf16.mxu0 0
    %4535 = vmatpush2.bf16.msra.mxu0 0
    %4536 = vmatprep.mubr.bf16.mxu0 0
    %4537 = vmatmul.mubr.bf16.gmra.mxu0 %v4256
    %v4538 = vpop.f32.mrf.mxu0
    %v4539 = vadd.f32 0.0, %v4538
    %v4540 = vpop.f32.mrf.mxu0
    %v4541 = vadd.f32 0.0, %v4540
    %v4542 = vpop.f32.mrf.mxu0
    %v4543 = vpop.f32.mrf.mxu0
    %4544 = vdwg.mxu0
    %4545 = vmatprep.subr.bf16.mxu0 0
    %4546 = vmatpush1.bf16.msra.mxu0 0
    %4547 = vmatprep.subr.bf16.mxu0 0
    %4548 = vmatpush1.bf16.msra.mxu0 0
    %4549 = vmatprep.subr.bf16.mxu0 0
    %4550 = vmatpush1.bf16.msra.mxu0 0
    %4551 = vmatprep.subr.bf16.mxu0 0
    %4552 = vmatpush1.bf16.msra.mxu0 0
    %4553 = vmatprep.subr.bf16.mxu0 0
    %4554 = vmatpush1.bf16.msra.mxu0 0
    %4555 = vmatprep.subr.bf16.mxu0 0
    %4556 = vmatpush1.bf16.msra.mxu0 0
    %4557 = vmatprep.subr.bf16.mxu0 0
    %4558 = vmatpush1.bf16.msra.mxu0 0
    %4559 = vmatprep.subr.bf16.mxu0 %v4254
    %4560 = vmatpush1.bf16.msra.mxu0 %v4253
    %4561 = vmatprep.subr.bf16.mxu0 0
    %4562 = vmatpush2.bf16.msra.mxu0 0
    %4563 = vmatprep.subr.bf16.mxu0 0
    %4564 = vmatpush2.bf16.msra.mxu0 0
    %4565 = vmatprep.subr.bf16.mxu0 0
    %4566 = vmatpush2.bf16.msra.mxu0 0
    %4567 = vmatprep.subr.bf16.mxu0 0
    %4568 = vmatpush2.bf16.msra.mxu0 0
    %4569 = vmatprep.subr.bf16.mxu0 0
    %4570 = vmatpush2.bf16.msra.mxu0 0
    %4571 = vmatprep.subr.bf16.mxu0 0
    %4572 = vmatpush2.bf16.msra.mxu0 0
    %4573 = vmatprep.subr.bf16.mxu0 0
    %4574 = vmatpush2.bf16.msra.mxu0 0
    %4575 = vmatprep.subr.bf16.mxu0 0
    %4576 = vmatpush2.bf16.msra.mxu0 0
    %4577 = vmatprep.mubr.bf16.mxu0 0
    %4578 = vmatmul.mubr.bf16.gmra.mxu0 %v4256
    %v4579 = vpop.f32.mrf.mxu0
    %v4580 = vadd.f32 0.0, %v4579
    %v4581 = vpop.f32.mrf.mxu0
    %v4582 = vadd.f32 0.0, %v4581
    %v4583 = vpop.f32.mrf.mxu0
    %v4584 = vpop.f32.mrf.mxu0
    %4585 = vdwg.mxu0
    %v4586 = vsub.f32 %v3797, %v3759
    %v4587 = vsub.f32 %v3804, %v3760
    %v4588 = vsub.f32 %v3811, %v3761
    %v4589 = vsub.f32 %v3818, %v3762
    %v4590 = vsub.f32 %v3825, %v3763
    %v4591 = vsub.f32 %v3832, %v3764
    %v4592 = vsub.f32 %v3839, %v3765
    %v4593 = vsub.f32 %v3846, %v3766
    %v4594 = vsub.f32 %v3853, %v3767
    %v4595 = vsub.f32 %v3860, %v3768
    %v4596 = vsub.f32 %v3867, %v3769
    %v4597 = vsub.f32 %v3874, %v3770
    %v4598 = vsub.f32 %v3881, %v3771
    %v4599 = vsub.f32 %v3888, %v3772
    %v4600 = vsub.f32 %v3895, %v3773
    %v4601 = vsub.f32 %v3902, %v3774
    %v4602 = vsub.f32 %v3797, %v3775
    %v4603 = vsub.f32 %v3804, %v3776
    %v4604 = vsub.f32 %v3811, %v3777
    %v4605 = vsub.f32 %v3818, %v3778
    %v4606 = vsub.f32 %v3825, %v3779
    %v4607 = vsub.f32 %v3832, %v3780
    %v4608 = vsub.f32 %v3839, %v3781
    %v4609 = vsub.f32 %v3846, %v3782
    %v4610 = vsub.f32 %v3853, %v3783
    %v4611 = vsub.f32 %v3860, %v3784
    %v4612 = vsub.f32 %v3867, %v3785
    %v4613 = vsub.f32 %v3874, %v3786
    %v4614 = vsub.f32 %v3881, %v3787
    %v4615 = vsub.f32 %v3888, %v3788
    %v4616 = vsub.f32 %v3895, %v3789
    %v4617 = vsub.f32 %v3902, %v3790
    %v4618 = vmul.f32 %v4586, 1.442695
    %v4619 = vpow.pop %v4618
    %v4620 = vmul.f32 %v4587, 1.442695
    %v4621 = vpow.pop %v4620
    %v4622 = vmul.f32 %v4588, 1.442695
    %v4623 = vpow.pop %v4622
    %v4624 = vmul.f32 %v4589, 1.442695
    %v4625 = vpow.pop %v4624
    %v4626 = vmul.f32 %v4590, 1.442695
    %v4627 = vpow.pop %v4626
    %v4628 = vmul.f32 %v4591, 1.442695
    %v4629 = vpow.pop %v4628
    %v4630 = vmul.f32 %v4592, 1.442695
    %v4631 = vpow.pop %v4630
    %v4632 = vmul.f32 %v4593, 1.442695
    %v4633 = vpow.pop %v4632
    %v4634 = vmul.f32 %v4594, 1.442695
    %v4635 = vpow.pop %v4634
    %v4636 = vmul.f32 %v4595, 1.442695
    %v4637 = vpow.pop %v4636
    %v4638 = vmul.f32 %v4596, 1.442695
    %v4639 = vpow.pop %v4638
    %v4640 = vmul.f32 %v4597, 1.442695
    %v4641 = vpow.pop %v4640
    %v4642 = vmul.f32 %v4598, 1.442695
    %v4643 = vpow.pop %v4642
    %v4644 = vmul.f32 %v4599, 1.442695
    %v4645 = vpow.pop %v4644
    %v4646 = vmul.f32 %v4600, 1.442695
    %v4647 = vpow.pop %v4646
    %v4648 = vmul.f32 %v4601, 1.442695
    %v4649 = vpow.pop %v4648
    %v4650 = vmul.f32 %v4602, 1.442695
    %v4651 = vpow.pop %v4650
    %v4652 = vmul.f32 %v4603, 1.442695
    %v4653 = vpow.pop %v4652
    %v4654 = vmul.f32 %v4604, 1.442695
    %v4655 = vpow.pop %v4654
    %v4656 = vmul.f32 %v4605, 1.442695
    %v4657 = vpow.pop %v4656
    %v4658 = vmul.f32 %v4606, 1.442695
    %v4659 = vpow.pop %v4658
    %v4660 = vmul.f32 %v4607, 1.442695
    %v4661 = vpow.pop %v4660
    %v4662 = vmul.f32 %v4608, 1.442695
    %v4663 = vpow.pop %v4662
    %v4664 = vmul.f32 %v4609, 1.442695
    %v4665 = vpow.pop %v4664
    %v4666 = vmul.f32 %v4610, 1.442695
    %v4667 = vpow.pop %v4666
    %v4668 = vmul.f32 %v4611, 1.442695
    %v4669 = vpow.pop %v4668
    %v4670 = vmul.f32 %v4612, 1.442695
    %v4671 = vpow.pop %v4670
    %v4672 = vmul.f32 %v4613, 1.442695
    %v4673 = vpow.pop %v4672
    %v4674 = vmul.f32 %v4614, 1.442695
    %v4675 = vpow.pop %v4674
    %v4676 = vmul.f32 %v4615, 1.442695
    %v4677 = vpow.pop %v4676
    %v4678 = vmul.f32 %v4616, 1.442695
    %v4679 = vpow.pop %v4678
    %v4680 = vmul.f32 %v4617, 1.442695
    %v4681 = vpow.pop %v4680
    %v4682 = vadd.f32 %v4619, %v4651
    %v4683 = vrot.slane %v4682, 4
    %v4684 = vadd.f32 %v4682, %v4683
    %v4685 = vrot.slane %v4684, 2
    %v4686 = vadd.f32 %v4684, %v4685
    %v4687 = vrot.slane %v4686, 1
    %v4688 = vadd.f32 %v4686, %v4687
    %v4689 = vadd.f32 %v4621, %v4653
    %v4690 = vrot.slane %v4689, 4
    %v4691 = vadd.f32 %v4689, %v4690
    %v4692 = vrot.slane %v4691, 2
    %v4693 = vadd.f32 %v4691, %v4692
    %v4694 = vrot.slane %v4693, 1
    %v4695 = vadd.f32 %v4693, %v4694
    %v4696 = vadd.f32 %v4623, %v4655
    %v4697 = vrot.slane %v4696, 4
    %v4698 = vadd.f32 %v4696, %v4697
    %v4699 = vrot.slane %v4698, 2
    %v4700 = vadd.f32 %v4698, %v4699
    %v4701 = vrot.slane %v4700, 1
    %v4702 = vadd.f32 %v4700, %v4701
    %v4703 = vadd.f32 %v4625, %v4657
    %v4704 = vrot.slane %v4703, 4
    %v4705 = vadd.f32 %v4703, %v4704
    %v4706 = vrot.slane %v4705, 2
    %v4707 = vadd.f32 %v4705, %v4706
    %v4708 = vrot.slane %v4707, 1
    %v4709 = vadd.f32 %v4707, %v4708
    %v4710 = vadd.f32 %v4627, %v4659
    %v4711 = vrot.slane %v4710, 4
    %v4712 = vadd.f32 %v4710, %v4711
    %v4713 = vrot.slane %v4712, 2
    %v4714 = vadd.f32 %v4712, %v4713
    %v4715 = vrot.slane %v4714, 1
    %v4716 = vadd.f32 %v4714, %v4715
    %v4717 = vadd.f32 %v4629, %v4661
    %v4718 = vrot.slane %v4717, 4
    %v4719 = vadd.f32 %v4717, %v4718
    %v4720 = vrot.slane %v4719, 2
    %v4721 = vadd.f32 %v4719, %v4720
    %v4722 = vrot.slane %v4721, 1
    %v4723 = vadd.f32 %v4721, %v4722
    %v4724 = vadd.f32 %v4631, %v4663
    %v4725 = vrot.slane %v4724, 4
    %v4726 = vadd.f32 %v4724, %v4725
    %v4727 = vrot.slane %v4726, 2
    %v4728 = vadd.f32 %v4726, %v4727
    %v4729 = vrot.slane %v4728, 1
    %v4730 = vadd.f32 %v4728, %v4729
    %v4731 = vadd.f32 %v4633, %v4665
    %v4732 = vrot.slane %v4731, 4
    %v4733 = vadd.f32 %v4731, %v4732
    %v4734 = vrot.slane %v4733, 2
    %v4735 = vadd.f32 %v4733, %v4734
    %v4736 = vrot.slane %v4735, 1
    %v4737 = vadd.f32 %v4735, %v4736
    %v4738 = vadd.f32 %v4635, %v4667
    %v4739 = vrot.slane %v4738, 4
    %v4740 = vadd.f32 %v4738, %v4739
    %v4741 = vrot.slane %v4740, 2
    %v4742 = vadd.f32 %v4740, %v4741
    %v4743 = vrot.slane %v4742, 1
    %v4744 = vadd.f32 %v4742, %v4743
    %v4745 = vadd.f32 %v4637, %v4669
    %v4746 = vrot.slane %v4745, 4
    %v4747 = vadd.f32 %v4745, %v4746
    %v4748 = vrot.slane %v4747, 2
    %v4749 = vadd.f32 %v4747, %v4748
    %v4750 = vrot.slane %v4749, 1
    %v4751 = vadd.f32 %v4749, %v4750
    %v4752 = vadd.f32 %v4639, %v4671
    %v4753 = vrot.slane %v4752, 4
    %v4754 = vadd.f32 %v4752, %v4753
    %v4755 = vrot.slane %v4754, 2
    %v4756 = vadd.f32 %v4754, %v4755
    %v4757 = vrot.slane %v4756, 1
    %v4758 = vadd.f32 %v4756, %v4757
    %v4759 = vadd.f32 %v4641, %v4673
    %v4760 = vrot.slane %v4759, 4
    %v4761 = vadd.f32 %v4759, %v4760
    %v4762 = vrot.slane %v4761, 2
    %v4763 = vadd.f32 %v4761, %v4762
    %v4764 = vrot.slane %v4763, 1
    %v4765 = vadd.f32 %v4763, %v4764
    %v4766 = vadd.f32 %v4643, %v4675
    %v4767 = vrot.slane %v4766, 4
    %v4768 = vadd.f32 %v4766, %v4767
    %v4769 = vrot.slane %v4768, 2
    %v4770 = vadd.f32 %v4768, %v4769
    %v4771 = vrot.slane %v4770, 1
    %v4772 = vadd.f32 %v4770, %v4771
    %v4773 = vadd.f32 %v4645, %v4677
    %v4774 = vrot.slane %v4773, 4
    %v4775 = vadd.f32 %v4773, %v4774
    %v4776 = vrot.slane %v4775, 2
    %v4777 = vadd.f32 %v4775, %v4776
    %v4778 = vrot.slane %v4777, 1
    %v4779 = vadd.f32 %v4777, %v4778
    %v4780 = vadd.f32 %v4647, %v4679
    %v4781 = vrot.slane %v4780, 4
    %v4782 = vadd.f32 %v4780, %v4781
    %v4783 = vrot.slane %v4782, 2
    %v4784 = vadd.f32 %v4782, %v4783
    %v4785 = vrot.slane %v4784, 1
    %v4786 = vadd.f32 %v4784, %v4785
    %v4787 = vadd.f32 %v4649, %v4681
    %v4788 = vrot.slane %v4787, 4
    %v4789 = vadd.f32 %v4787, %v4788
    %v4790 = vrot.slane %v4789, 2
    %v4791 = vadd.f32 %v4789, %v4790
    %v4792 = vrot.slane %v4791, 1
    %v4793 = vadd.f32 %v4791, %v4792
    %v4794 = vrcp.pop %v4688
    %v4795 = vmul.f32 1.0, %v4794
    %v4796 = vrcp.pop %v4695
    %v4797 = vmul.f32 1.0, %v4796
    %v4798 = vrcp.pop %v4702
    %v4799 = vmul.f32 1.0, %v4798
    %v4800 = vrcp.pop %v4709
    %v4801 = vmul.f32 1.0, %v4800
    %v4802 = vrcp.pop %v4716
    %v4803 = vmul.f32 1.0, %v4802
    %v4804 = vrcp.pop %v4723
    %v4805 = vmul.f32 1.0, %v4804
    %v4806 = vrcp.pop %v4730
    %v4807 = vmul.f32 1.0, %v4806
    %v4808 = vrcp.pop %v4737
    %v4809 = vmul.f32 1.0, %v4808
    %v4810 = vrcp.pop %v4744
    %v4811 = vmul.f32 1.0, %v4810
    %v4812 = vrcp.pop %v4751
    %v4813 = vmul.f32 1.0, %v4812
    %v4814 = vrcp.pop %v4758
    %v4815 = vmul.f32 1.0, %v4814
    %v4816 = vrcp.pop %v4765
    %v4817 = vmul.f32 1.0, %v4816
    %v4818 = vrcp.pop %v4772
    %v4819 = vmul.f32 1.0, %v4818
    %v4820 = vrcp.pop %v4779
    %v4821 = vmul.f32 1.0, %v4820
    %v4822 = vrcp.pop %v4786
    %v4823 = vmul.f32 1.0, %v4822
    %v4824 = vrcp.pop %v4793
    %v4825 = vmul.f32 1.0, %v4824
    %v4826 = vmul.f32 %v4619, %v4795
    %v4827 = vmul.f32 %v4621, %v4797
    %v4828 = vmul.f32 %v4623, %v4799
    %v4829 = vmul.f32 %v4625, %v4801
    %v4830 = vmul.f32 %v4627, %v4803
    %v4831 = vmul.f32 %v4629, %v4805
    %v4832 = vmul.f32 %v4631, %v4807
    %v4833 = vmul.f32 %v4633, %v4809
    %v4834 = vmul.f32 %v4635, %v4811
    %v4835 = vmul.f32 %v4637, %v4813
    %v4836 = vmul.f32 %v4639, %v4815
    %v4837 = vmul.f32 %v4641, %v4817
    %v4838 = vmul.f32 %v4643, %v4819
    %v4839 = vmul.f32 %v4645, %v4821
    %v4840 = vmul.f32 %v4647, %v4823
    %v4841 = vmul.f32 %v4649, %v4825
    %v4842 = vmul.f32 %v4651, %v4795
    %v4843 = vmul.f32 %v4653, %v4797
    %v4844 = vmul.f32 %v4655, %v4799
    %v4845 = vmul.f32 %v4657, %v4801
    %v4846 = vmul.f32 %v4659, %v4803
    %v4847 = vmul.f32 %v4661, %v4805
    %v4848 = vmul.f32 %v4663, %v4807
    %v4849 = vmul.f32 %v4665, %v4809
    %v4850 = vmul.f32 %v4667, %v4811
    %v4851 = vmul.f32 %v4669, %v4813
    %v4852 = vmul.f32 %v4671, %v4815
    %v4853 = vmul.f32 %v4673, %v4817
    %v4854 = vmul.f32 %v4675, %v4819
    %v4855 = vmul.f32 %v4677, %v4821
    %v4856 = vmul.f32 %v4679, %v4823
    %v4857 = vmul.f32 %v4681, %v4825
    %v4858 = vsub.f32 %v3085, %v4293
    %v4859 = vsub.f32 %v3086, %v4295
    %v4860 = vsub.f32 %v3087, %v4334
    %v4861 = vsub.f32 %v3088, %v4336
    %v4862 = vsub.f32 %v3089, %v4375
    %v4863 = vsub.f32 %v3090, %v4377
    %v4864 = vsub.f32 %v3091, %v4416
    %v4865 = vsub.f32 %v3092, %v4418
    %v4866 = vsub.f32 %v3093, %v4457
    %v4867 = vsub.f32 %v3094, %v4459
    %v4868 = vsub.f32 %v3095, %v4498
    %v4869 = vsub.f32 %v3096, %v4500
    %v4870 = vsub.f32 %v3097, %v4539
    %v4871 = vsub.f32 %v3098, %v4541
    %v4872 = vsub.f32 %v3099, %v4580
    %v4873 = vsub.f32 %v3100, %v4582
    %v4874 = vmul.f32 %v4858, %v4858
    %v4875 = vmul.f32 %v4859, %v4859
    %v4876 = vmul.f32 %v4860, %v4860
    %v4877 = vmul.f32 %v4861, %v4861
    %v4878 = vmul.f32 %v4862, %v4862
    %v4879 = vmul.f32 %v4863, %v4863
    %v4880 = vmul.f32 %v4864, %v4864
    %v4881 = vmul.f32 %v4865, %v4865
    %v4882 = vmul.f32 %v4866, %v4866
    %v4883 = vmul.f32 %v4867, %v4867
    %v4884 = vmul.f32 %v4868, %v4868
    %v4885 = vmul.f32 %v4869, %v4869
    %v4886 = vmul.f32 %v4870, %v4870
    %v4887 = vmul.f32 %v4871, %v4871
    %v4888 = vmul.f32 %v4872, %v4872
    %v4889 = vmul.f32 %v4873, %v4873
    %v4890 = vrot.slane %v4874, 4
    %v4891 = vadd.f32 %v4874, %v4890
    %v4892 = vrot.slane %v4891, 2
    %v4893 = vadd.f32 %v4891, %v4892
    %v4894 = vrot.slane %v4893, 1
    %v4895 = vadd.f32 %v4893, %v4894
    %v4896 = vrot.slane %v4875, 4
    %v4897 = vadd.f32 %v4875, %v4896
    %v4898 = vrot.slane %v4897, 2
    %v4899 = vadd.f32 %v4897, %v4898
    %v4900 = vrot.slane %v4899, 1
    %v4901 = vadd.f32 %v4899, %v4900
    %v4902 = vrot.slane %v4876, 4
    %v4903 = vadd.f32 %v4876, %v4902
    %v4904 = vrot.slane %v4903, 2
    %v4905 = vadd.f32 %v4903, %v4904
    %v4906 = vrot.slane %v4905, 1
    %v4907 = vadd.f32 %v4905, %v4906
    %v4908 = vrot.slane %v4877, 4
    %v4909 = vadd.f32 %v4877, %v4908
    %v4910 = vrot.slane %v4909, 2
    %v4911 = vadd.f32 %v4909, %v4910
    %v4912 = vrot.slane %v4911, 1
    %v4913 = vadd.f32 %v4911, %v4912
    %v4914 = vrot.slane %v4878, 4
    %v4915 = vadd.f32 %v4878, %v4914
    %v4916 = vrot.slane %v4915, 2
    %v4917 = vadd.f32 %v4915, %v4916
    %v4918 = vrot.slane %v4917, 1
    %v4919 = vadd.f32 %v4917, %v4918
    %v4920 = vrot.slane %v4879, 4
    %v4921 = vadd.f32 %v4879, %v4920
    %v4922 = vrot.slane %v4921, 2
    %v4923 = vadd.f32 %v4921, %v4922
    %v4924 = vrot.slane %v4923, 1
    %v4925 = vadd.f32 %v4923, %v4924
    %v4926 = vrot.slane %v4880, 4
    %v4927 = vadd.f32 %v4880, %v4926
    %v4928 = vrot.slane %v4927, 2
    %v4929 = vadd.f32 %v4927, %v4928
    %v4930 = vrot.slane %v4929, 1
    %v4931 = vadd.f32 %v4929, %v4930
    %v4932 = vrot.slane %v4881, 4
    %v4933 = vadd.f32 %v4881, %v4932
    %v4934 = vrot.slane %v4933, 2
    %v4935 = vadd.f32 %v4933, %v4934
    %v4936 = vrot.slane %v4935, 1
    %v4937 = vadd.f32 %v4935, %v4936
    %v4938 = vrot.slane %v4882, 4
    %v4939 = vadd.f32 %v4882, %v4938
    %v4940 = vrot.slane %v4939, 2
    %v4941 = vadd.f32 %v4939, %v4940
    %v4942 = vrot.slane %v4941, 1
    %v4943 = vadd.f32 %v4941, %v4942
    %v4944 = vrot.slane %v4883, 4
    %v4945 = vadd.f32 %v4883, %v4944
    %v4946 = vrot.slane %v4945, 2
    %v4947 = vadd.f32 %v4945, %v4946
    %v4948 = vrot.slane %v4947, 1
    %v4949 = vadd.f32 %v4947, %v4948
    %v4950 = vrot.slane %v4884, 4
    %v4951 = vadd.f32 %v4884, %v4950
    %v4952 = vrot.slane %v4951, 2
    %v4953 = vadd.f32 %v4951, %v4952
    %v4954 = vrot.slane %v4953, 1
    %v4955 = vadd.f32 %v4953, %v4954
    %v4956 = vrot.slane %v4885, 4
    %v4957 = vadd.f32 %v4885, %v4956
    %v4958 = vrot.slane %v4957, 2
    %v4959 = vadd.f32 %v4957, %v4958
    %v4960 = vrot.slane %v4959, 1
    %v4961 = vadd.f32 %v4959, %v4960
    %v4962 = vrot.slane %v4886, 4
    %v4963 = vadd.f32 %v4886, %v4962
    %v4964 = vrot.slane %v4963, 2
    %v4965 = vadd.f32 %v4963, %v4964
    %v4966 = vrot.slane %v4965, 1
    %v4967 = vadd.f32 %v4965, %v4966
    %v4968 = vrot.slane %v4887, 4
    %v4969 = vadd.f32 %v4887, %v4968
    %v4970 = vrot.slane %v4969, 2
    %v4971 = vadd.f32 %v4969, %v4970
    %v4972 = vrot.slane %v4971, 1
    %v4973 = vadd.f32 %v4971, %v4972
    %v4974 = vrot.slane %v4888, 4
    %v4975 = vadd.f32 %v4888, %v4974
    %v4976 = vrot.slane %v4975, 2
    %v4977 = vadd.f32 %v4975, %v4976
    %v4978 = vrot.slane %v4977, 1
    %v4979 = vadd.f32 %v4977, %v4978
    %v4980 = vrot.slane %v4889, 4
    %v4981 = vadd.f32 %v4889, %v4980
    %v4982 = vrot.slane %v4981, 2
    %v4983 = vadd.f32 %v4981, %v4982
    %v4984 = vrot.slane %v4983, 1
    %v4985 = vadd.f32 %v4983, %v4984
    %v4986 = vmul.f32 %v4895, 0.1250125
    %v4987 = vmul.f32 %v4901, 0.1250125
    %v4988 = vmul.f32 %v4907, 0.1250125
    %v4989 = vmul.f32 %v4913, 0.1250125
    %v4990 = vmul.f32 %v4919, 0.1250125
    %v4991 = vmul.f32 %v4925, 0.1250125
    %v4992 = vmul.f32 %v4931, 0.1250125
    %v4993 = vmul.f32 %v4937, 0.1250125
    %v4994 = vmul.f32 %v4943, 0.1250125
    %v4995 = vmul.f32 %v4949, 0.1250125
    %v4996 = vmul.f32 %v4955, 0.1250125
    %v4997 = vmul.f32 %v4961, 0.1250125
    %v4998 = vmul.f32 %v4967, 0.1250125
    %v4999 = vmul.f32 %v4973, 0.1250125
    %v5000 = vmul.f32 %v4979, 0.1250125
    %v5001 = vmul.f32 %v4985, 0.1250125
    %v5002 = vadd.f32 %v3229, %v4986
    %v5003 = vadd.f32 %v3230, %v4987
    %v5004 = vadd.f32 %v3231, %v4988
    %v5005 = vadd.f32 %v3232, %v4989
    %v5006 = vadd.f32 %v3233, %v4990
    %v5007 = vadd.f32 %v3234, %v4991
    %v5008 = vadd.f32 %v3235, %v4992
    %v5009 = vadd.f32 %v3236, %v4993
    %v5010 = vadd.f32 %v3237, %v4994
    %v5011 = vadd.f32 %v3238, %v4995
    %v5012 = vadd.f32 %v3239, %v4996
    %v5013 = vadd.f32 %v3240, %v4997
    %v5014 = vadd.f32 %v3241, %v4998
    %v5015 = vadd.f32 %v3242, %v4999
    %v5016 = vadd.f32 %v3243, %v5000
    %v5017 = vadd.f32 %v3244, %v5001
    %5018 = vst [vmem:[#allocation6 + $0x100] sm:$0xff] %v4826
    %5019 = vst [vmem:[#allocation6 + $0x108] sm:$0xff] %v4827
    %5020 = vst [vmem:[#allocation6 + $0x110] sm:$0xff] %v4828
    %5021 = vst [vmem:[#allocation6 + $0x118] sm:$0xff] %v4829
    %5022 = vst [vmem:[#allocation6 + $0x120] sm:$0xff] %v4830
    %5023 = vst [vmem:[#allocation6 + $0x128] sm:$0xff] %v4831
    %5024 = vst [vmem:[#allocation6 + $0x130] sm:$0xff] %v4832
    %5025 = vst [vmem:[#allocation6 + $0x138] sm:$0xff] %v4833
    %5026 = vst [vmem:[#allocation6 + $0x140] sm:$0xff] %v4834
    %5027 = vst [vmem:[#allocation6 + $0x148] sm:$0xff] %v4835
    %5028 = vst [vmem:[#allocation6 + $0x150] sm:$0xff] %v4836
    %5029 = vst [vmem:[#allocation6 + $0x158] sm:$0xff] %v4837
    %5030 = vst [vmem:[#allocation6 + $0x160] sm:$0xff] %v4838
    %5031 = vst [vmem:[#allocation6 + $0x168] sm:$0xff] %v4839
    %5032 = vst [vmem:[#allocation6 + $0x170] sm:$0xff] %v4840
    %5033 = vst [vmem:[#allocation6 + $0x178] sm:$0xff] %v4841
    %5034 = vst [vmem:[#allocation6 + $0x180] sm:$0xff] %v4842
    %5035 = vst [vmem:[#allocation6 + $0x188] sm:$0xff] %v4843
    %5036 = vst [vmem:[#allocation6 + $0x190] sm:$0xff] %v4844
    %5037 = vst [vmem:[#allocation6 + $0x198] sm:$0xff] %v4845
    %5038 = vst [vmem:[#allocation6 + $0x1a0] sm:$0xff] %v4846
    %5039 = vst [vmem:[#allocation6 + $0x1a8] sm:$0xff] %v4847
    %5040 = vst [vmem:[#allocation6 + $0x1b0] sm:$0xff] %v4848
    %5041 = vst [vmem:[#allocation6 + $0x1b8] sm:$0xff] %v4849
    %5042 = vst [vmem:[#allocation6 + $0x1c0] sm:$0xff] %v4850
    %5043 = vst [vmem:[#allocation6 + $0x1c8] sm:$0xff] %v4851
    %5044 = vst [vmem:[#allocation6 + $0x1d0] sm:$0xff] %v4852
    %5045 = vst [vmem:[#allocation6 + $0x1d8] sm:$0xff] %v4853
    %5046 = vst [vmem:[#allocation6 + $0x1e0] sm:$0xff] %v4854
    %5047 = vst [vmem:[#allocation6 + $0x1e8] sm:$0xff] %v4855
    %5048 = vst [vmem:[#allocation6 + $0x1f0] sm:$0xff] %v4856
    %5049 = vst [vmem:[#allocation6 + $0x1f8] sm:$0xff] %v4857
    %v5050 = vadd.f32 %v3277, %v4293
    %v5051 = vadd.f32 %v3278, %v4295
    %v5052 = vadd.f32 %v3279, %v4334
    %v5053 = vadd.f32 %v3280, %v4336
    %v5054 = vadd.f32 %v3281, %v4375
    %v5055 = vadd.f32 %v3282, %v4377
    %v5056 = vadd.f32 %v3283, %v4416
    %v5057 = vadd.f32 %v3284, %v4418
    %v5058 = vadd.f32 %v3285, %v4457
    %v5059 = vadd.f32 %v3286, %v4459
    %v5060 = vadd.f32 %v3287, %v4498
    %v5061 = vadd.f32 %v3288, %v4500
    %v5062 = vadd.f32 %v3289, %v4539
    %v5063 = vadd.f32 %v3290, %v4541
    %v5064 = vadd.f32 %v3291, %v4580
    %v5065 = vadd.f32 %v3292, %v4582
    %s5066 = scalar_lea.vmem %s14, 16
    %v5067 = vld [vmem:[%s5066] sm:$0xf]
    %v5068 = vld [vmem:[%s5066 + $0x4] sm:$0xf]
    %s5069 = scalar_lea.vmem %s15, 8
    %v5070 = vld [vmem:[%s5069] sm:$0xf]
    %s5071 = scalar_lea.vmem %s16, 32
    %v5072 = vld [vmem:[%s5071] sm:$0xff]
    %v5073 = vld [vmem:[%s5071 + $0x8] sm:$0xff]
    %v5074 = vpack.c.bf16 %v4858, %v4858
    %v5075 = vpack.c.bf16 %v4859, %v4859
    %v5076 = vpack.c.bf16 %v4860, %v4860
    %v5077 = vpack.c.bf16 %v4861, %v4861
    %v5078 = vpack.c.bf16 %v4862, %v4862
    %v5079 = vpack.c.bf16 %v4863, %v4863
    %v5080 = vpack.c.bf16 %v4864, %v4864
    %v5081 = vpack.c.bf16 %v4865, %v4865
    %v5082 = vpack.c.bf16 %v4866, %v4866
    %v5083 = vpack.c.bf16 %v4867, %v4867
    %v5084 = vpack.c.bf16 %v4868, %v4868
    %v5085 = vpack.c.bf16 %v4869, %v4869
    %v5086 = vpack.c.bf16 %v4870, %v4870
    %v5087 = vpack.c.bf16 %v4871, %v4871
    %v5088 = vpack.c.bf16 %v4872, %v4872
    %v5089 = vpack.c.bf16 %v4873, %v4873
    %v5092 = vunpack.c.l.b16 %v5067
    %v5093 = vunpack.c.l.b16 %v5068
    %v5094 = vpack.c.b16 %v5093, %v5092
    %v5096 = vsel %vm1545, %v5094, 0
    %v5099 = vsel %vm741, %v5074, 0
    %v5102 = vsel %vm741, %v5075, 0
    %v5105 = vsel %vm741, %v5076, 0
    %v5108 = vsel %vm741, %v5077, 0
    %v5111 = vsel %vm741, %v5078, 0
    %v5114 = vsel %vm741, %v5079, 0
    %v5117 = vsel %vm741, %v5080, 0
    %v5120 = vsel %vm741, %v5081, 0
    %v5123 = vsel %vm741, %v5082, 0
    %v5126 = vsel %vm741, %v5083, 0
    %v5129 = vsel %vm741, %v5084, 0
    %v5132 = vsel %vm741, %v5085, 0
    %v5135 = vsel %vm741, %v5086, 0
    %v5138 = vsel %vm741, %v5087, 0
    %v5141 = vsel %vm741, %v5088, 0
    %v5144 = vsel %vm741, %v5089, 0
    %5146 = vmatprep.subr.bf16.mxu0 0
    %5147 = vmatpush1.bf16.msra.mxu0 0
    %5148 = vmatprep.subr.bf16.mxu0 0
    %5149 = vmatpush1.bf16.msra.mxu0 0
    %5150 = vmatprep.subr.bf16.mxu0 0
    %5151 = vmatpush1.bf16.msra.mxu0 0
    %5152 = vmatprep.subr.bf16.mxu0 0
    %5153 = vmatpush1.bf16.msra.mxu0 0
    %5154 = vmatprep.subr.bf16.mxu0 0
    %5155 = vmatpush1.bf16.msra.mxu0 0
    %5156 = vmatprep.subr.bf16.mxu0 0
    %5157 = vmatpush1.bf16.msra.mxu0 0
    %5158 = vmatprep.subr.bf16.mxu0 0
    %5159 = vmatpush1.bf16.msra.mxu0 0
    %5160 = vmatprep.subr.bf16.mxu0 %v5102
    %5161 = vmatpush1.bf16.msra.mxu0 %v5099
    %5162 = vmatprep.subr.bf16.mxu0 0
    %5163 = vmatpush2.bf16.msra.mxu0 0
    %5164 = vmatprep.subr.bf16.mxu0 0
    %5165 = vmatpush2.bf16.msra.mxu0 0
    %5166 = vmatprep.subr.bf16.mxu0 0
    %5167 = vmatpush2.bf16.msra.mxu0 0
    %5168 = vmatprep.subr.bf16.mxu0 0
    %5169 = vmatpush2.bf16.msra.mxu0 0
    %5170 = vmatprep.subr.bf16.mxu0 0
    %5171 = vmatpush2.bf16.msra.mxu0 0
    %5172 = vmatprep.subr.bf16.mxu0 0
    %5173 = vmatpush2.bf16.msra.mxu0 0
    %5174 = vmatprep.subr.bf16.mxu0 0
    %5175 = vmatpush2.bf16.msra.mxu0 0
    %5176 = vmatprep.subr.bf16.mxu0 0
    %5177 = vmatpush2.bf16.msra.mxu0 0
    %5178 = vmatprep.mubr.bf16.mxu0 0
    %5179 = vmatmul.mubr.bf16.gmra.mxu0 %v5096
    %v5180 = vpop.f32.mrf.mxu0
    %v5181 = vadd.f32 0.0, %v5180
    %v5182 = vpop.f32.mrf.mxu0
    %v5183 = vadd.f32 0.0, %v5182
    %v5184 = vpop.f32.mrf.mxu0
    %v5185 = vadd.f32 0.0, %v5184
    %v5186 = vpop.f32.mrf.mxu0
    %v5187 = vadd.f32 0.0, %v5186
    %5188 = vdwg.mxu0
    %5189 = vmatprep.subr.bf16.mxu0 0
    %5190 = vmatpush1.bf16.msra.mxu0 0
    %5191 = vmatprep.subr.bf16.mxu0 0
    %5192 = vmatpush1.bf16.msra.mxu0 0
    %5193 = vmatprep.subr.bf16.mxu0 0
    %5194 = vmatpush1.bf16.msra.mxu0 0
    %5195 = vmatprep.subr.bf16.mxu0 0
    %5196 = vmatpush1.bf16.msra.mxu0 0
    %5197 = vmatprep.subr.bf16.mxu0 0
    %5198 = vmatpush1.bf16.msra.mxu0 0
    %5199 = vmatprep.subr.bf16.mxu0 0
    %5200 = vmatpush1.bf16.msra.mxu0 0
    %5201 = vmatprep.subr.bf16.mxu0 0
    %5202 = vmatpush1.bf16.msra.mxu0 0
    %5203 = vmatprep.subr.bf16.mxu0 %v5108
    %5204 = vmatpush1.bf16.msra.mxu0 %v5105
    %5205 = vmatprep.subr.bf16.mxu0 0
    %5206 = vmatpush2.bf16.msra.mxu0 0
    %5207 = vmatprep.subr.bf16.mxu0 0
    %5208 = vmatpush2.bf16.msra.mxu0 0
    %5209 = vmatprep.subr.bf16.mxu0 0
    %5210 = vmatpush2.bf16.msra.mxu0 0
    %5211 = vmatprep.subr.bf16.mxu0 0
    %5212 = vmatpush2.bf16.msra.mxu0 0
    %5213 = vmatprep.subr.bf16.mxu0 0
    %5214 = vmatpush2.bf16.msra.mxu0 0
    %5215 = vmatprep.subr.bf16.mxu0 0
    %5216 = vmatpush2.bf16.msra.mxu0 0
    %5217 = vmatprep.subr.bf16.mxu0 0
    %5218 = vmatpush2.bf16.msra.mxu0 0
    %5219 = vmatprep.subr.bf16.mxu0 0
    %5220 = vmatpush2.bf16.msra.mxu0 0
    %5221 = vmatprep.mubr.bf16.mxu0 0
    %5222 = vmatmul.mubr.bf16.gmra.mxu0 %v5096
    %v5223 = vpop.f32.mrf.mxu0
    %v5224 = vadd.f32 0.0, %v5223
    %v5225 = vpop.f32.mrf.mxu0
    %v5226 = vadd.f32 0.0, %v5225
    %v5227 = vpop.f32.mrf.mxu0
    %v5228 = vadd.f32 0.0, %v5227
    %v5229 = vpop.f32.mrf.mxu0
    %v5230 = vadd.f32 0.0, %v5229
    %5231 = vdwg.mxu0
    %5232 = vmatprep.subr.bf16.mxu0 0
    %5233 = vmatpush1.bf16.msra.mxu0 0
    %5234 = vmatprep.subr.bf16.mxu0 0
    %5235 = vmatpush1.bf16.msra.mxu0 0
    %5236 = vmatprep.subr.bf16.mxu0 0
    %5237 = vmatpush1.bf16.msra.mxu0 0
    %5238 = vmatprep.subr.bf16.mxu0 0
    %5239 = vmatpush1.bf16.msra.mxu0 0
    %5240 = vmatprep.subr.bf16.mxu0 0
    %5241 = vmatpush1.bf16.msra.mxu0 0
    %5242 = vmatprep.subr.bf16.mxu0 0
    %5243 = vmatpush1.bf16.msra.mxu0 0
    %5244 = vmatprep.subr.bf16.mxu0 0
    %5245 = vmatpush1.bf16.msra.mxu0 0
    %5246 = vmatprep.subr.bf16.mxu0 %v5114
    %5247 = vmatpush1.bf16.msra.mxu0 %v5111
    %5248 = vmatprep.subr.bf16.mxu0 0
    %5249 = vmatpush2.bf16.msra.mxu0 0
    %5250 = vmatprep.subr.bf16.mxu0 0
    %5251 = vmatpush2.bf16.msra.mxu0 0
    %5252 = vmatprep.subr.bf16.mxu0 0
    %5253 = vmatpush2.bf16.msra.mxu0 0
    %5254 = vmatprep.subr.bf16.mxu0 0
    %5255 = vmatpush2.bf16.msra.mxu0 0
    %5256 = vmatprep.subr.bf16.mxu0 0
    %5257 = vmatpush2.bf16.msra.mxu0 0
    %5258 = vmatprep.subr.bf16.mxu0 0
    %5259 = vmatpush2.bf16.msra.mxu0 0
    %5260 = vmatprep.subr.bf16.mxu0 0
    %5261 = vmatpush2.bf16.msra.mxu0 0
    %5262 = vmatprep.subr.bf16.mxu0 0
    %5263 = vmatpush2.bf16.msra.mxu0 0
    %5264 = vmatprep.mubr.bf16.mxu0 0
    %5265 = vmatmul.mubr.bf16.gmra.mxu0 %v5096
    %v5266 = vpop.f32.mrf.mxu0
    %v5267 = vadd.f32 0.0, %v5266
    %v5268 = vpop.f32.mrf.mxu0
    %v5269 = vadd.f32 0.0, %v5268
    %v5270 = vpop.f32.mrf.mxu0
    %v5271 = vadd.f32 0.0, %v5270
    %v5272 = vpop.f32.mrf.mxu0
    %v5273 = vadd.f32 0.0, %v5272
    %5274 = vdwg.mxu0
    %5275 = vmatprep.subr.bf16.mxu0 0
    %5276 = vmatpush1.bf16.msra.mxu0 0
    %5277 = vmatprep.subr.bf16.mxu0 0
    %5278 = vmatpush1.bf16.msra.mxu0 0
    %5279 = vmatprep.subr.bf16.mxu0 0
    %5280 = vmatpush1.bf16.msra.mxu0 0
    %5281 = vmatprep.subr.bf16.mxu0 0
    %5282 = vmatpush1.bf16.msra.mxu0 0
    %5283 = vmatprep.subr.bf16.mxu0 0
    %5284 = vmatpush1.bf16.msra.mxu0 0
    %5285 = vmatprep.subr.bf16.mxu0 0
    %5286 = vmatpush1.bf16.msra.mxu0 0
    %5287 = vmatprep.subr.bf16.mxu0 0
    %5288 = vmatpush1.bf16.msra.mxu0 0
    %5289 = vmatprep.subr.bf16.mxu0 %v5120
    %5290 = vmatpush1.bf16.msra.mxu0 %v5117
    %5291 = vmatprep.subr.bf16.mxu0 0
    %5292 = vmatpush2.bf16.msra.mxu0 0
    %5293 = vmatprep.subr.bf16.mxu0 0
    %5294 = vmatpush2.bf16.msra.mxu0 0
    %5295 = vmatprep.subr.bf16.mxu0 0
    %5296 = vmatpush2.bf16.msra.mxu0 0
    %5297 = vmatprep.subr.bf16.mxu0 0
    %5298 = vmatpush2.bf16.msra.mxu0 0
    %5299 = vmatprep.subr.bf16.mxu0 0
    %5300 = vmatpush2.bf16.msra.mxu0 0
    %5301 = vmatprep.subr.bf16.mxu0 0
    %5302 = vmatpush2.bf16.msra.mxu0 0
    %5303 = vmatprep.subr.bf16.mxu0 0
    %5304 = vmatpush2.bf16.msra.mxu0 0
    %5305 = vmatprep.subr.bf16.mxu0 0
    %5306 = vmatpush2.bf16.msra.mxu0 0
    %5307 = vmatprep.mubr.bf16.mxu0 0
    %5308 = vmatmul.mubr.bf16.gmra.mxu0 %v5096
    %v5309 = vpop.f32.mrf.mxu0
    %v5310 = vadd.f32 0.0, %v5309
    %v5311 = vpop.f32.mrf.mxu0
    %v5312 = vadd.f32 0.0, %v5311
    %v5313 = vpop.f32.mrf.mxu0
    %v5314 = vadd.f32 0.0, %v5313
    %v5315 = vpop.f32.mrf.mxu0
    %v5316 = vadd.f32 0.0, %v5315
    %5317 = vdwg.mxu0
    %5318 = vmatprep.subr.bf16.mxu0 0
    %5319 = vmatpush1.bf16.msra.mxu0 0
    %5320 = vmatprep.subr.bf16.mxu0 0
    %5321 = vmatpush1.bf16.msra.mxu0 0
    %5322 = vmatprep.subr.bf16.mxu0 0
    %5323 = vmatpush1.bf16.msra.mxu0 0
    %5324 = vmatprep.subr.bf16.mxu0 0
    %5325 = vmatpush1.bf16.msra.mxu0 0
    %5326 = vmatprep.subr.bf16.mxu0 0
    %5327 = vmatpush1.bf16.msra.mxu0 0
    %5328 = vmatprep.subr.bf16.mxu0 0
    %5329 = vmatpush1.bf16.msra.mxu0 0
    %5330 = vmatprep.subr.bf16.mxu0 0
    %5331 = vmatpush1.bf16.msra.mxu0 0
    %5332 = vmatprep.subr.bf16.mxu0 %v5126
    %5333 = vmatpush1.bf16.msra.mxu0 %v5123
    %5334 = vmatprep.subr.bf16.mxu0 0
    %5335 = vmatpush2.bf16.msra.mxu0 0
    %5336 = vmatprep.subr.bf16.mxu0 0
    %5337 = vmatpush2.bf16.msra.mxu0 0
    %5338 = vmatprep.subr.bf16.mxu0 0
    %5339 = vmatpush2.bf16.msra.mxu0 0
    %5340 = vmatprep.subr.bf16.mxu0 0
    %5341 = vmatpush2.bf16.msra.mxu0 0
    %5342 = vmatprep.subr.bf16.mxu0 0
    %5343 = vmatpush2.bf16.msra.mxu0 0
    %5344 = vmatprep.subr.bf16.mxu0 0
    %5345 = vmatpush2.bf16.msra.mxu0 0
    %5346 = vmatprep.subr.bf16.mxu0 0
    %5347 = vmatpush2.bf16.msra.mxu0 0
    %5348 = vmatprep.subr.bf16.mxu0 0
    %5349 = vmatpush2.bf16.msra.mxu0 0
    %5350 = vmatprep.mubr.bf16.mxu0 0
    %5351 = vmatmul.mubr.bf16.gmra.mxu0 %v5096
    %v5352 = vpop.f32.mrf.mxu0
    %v5353 = vadd.f32 0.0, %v5352
    %v5354 = vpop.f32.mrf.mxu0
    %v5355 = vadd.f32 0.0, %v5354
    %v5356 = vpop.f32.mrf.mxu0
    %v5357 = vadd.f32 0.0, %v5356
    %v5358 = vpop.f32.mrf.mxu0
    %v5359 = vadd.f32 0.0, %v5358
    %5360 = vdwg.mxu0
    %5361 = vmatprep.subr.bf16.mxu0 0
    %5362 = vmatpush1.bf16.msra.mxu0 0
    %5363 = vmatprep.subr.bf16.mxu0 0
    %5364 = vmatpush1.bf16.msra.mxu0 0
    %5365 = vmatprep.subr.bf16.mxu0 0
    %5366 = vmatpush1.bf16.msra.mxu0 0
    %5367 = vmatprep.subr.bf16.mxu0 0
    %5368 = vmatpush1.bf16.msra.mxu0 0
    %5369 = vmatprep.subr.bf16.mxu0 0
    %5370 = vmatpush1.bf16.msra.mxu0 0
    %5371 = vmatprep.subr.bf16.mxu0 0
    %5372 = vmatpush1.bf16.msra.mxu0 0
    %5373 = vmatprep.subr.bf16.mxu0 0
    %5374 = vmatpush1.bf16.msra.mxu0 0
    %5375 = vmatprep.subr.bf16.mxu0 %v5132
    %5376 = vmatpush1.bf16.msra.mxu0 %v5129
    %5377 = vmatprep.subr.bf16.mxu0 0
    %5378 = vmatpush2.bf16.msra.mxu0 0
    %5379 = vmatprep.subr.bf16.mxu0 0
    %5380 = vmatpush2.bf16.msra.mxu0 0
    %5381 = vmatprep.subr.bf16.mxu0 0
    %5382 = vmatpush2.bf16.msra.mxu0 0
    %5383 = vmatprep.subr.bf16.mxu0 0
    %5384 = vmatpush2.bf16.msra.mxu0 0
    %5385 = vmatprep.subr.bf16.mxu0 0
    %5386 = vmatpush2.bf16.msra.mxu0 0
    %5387 = vmatprep.subr.bf16.mxu0 0
    %5388 = vmatpush2.bf16.msra.mxu0 0
    %5389 = vmatprep.subr.bf16.mxu0 0
    %5390 = vmatpush2.bf16.msra.mxu0 0
    %5391 = vmatprep.subr.bf16.mxu0 0
    %5392 = vmatpush2.bf16.msra.mxu0 0
    %5393 = vmatprep.mubr.bf16.mxu0 0
    %5394 = vmatmul.mubr.bf16.gmra.mxu0 %v5096
    %v5395 = vpop.f32.mrf.mxu0
    %v5396 = vadd.f32 0.0, %v5395
    %v5397 = vpop.f32.mrf.mxu0
    %v5398 = vadd.f32 0.0, %v5397
    %v5399 = vpop.f32.mrf.mxu0
    %v5400 = vadd.f32 0.0, %v5399
    %v5401 = vpop.f32.mrf.mxu0
    %v5402 = vadd.f32 0.0, %v5401
    %5403 = vdwg.mxu0
    %5404 = vmatprep.subr.bf16.mxu0 0
    %5405 = vmatpush1.bf16.msra.mxu0 0
    %5406 = vmatprep.subr.bf16.mxu0 0
    %5407 = vmatpush1.bf16.msra.mxu0 0
    %5408 = vmatprep.subr.bf16.mxu0 0
    %5409 = vmatpush1.bf16.msra.mxu0 0
    %5410 = vmatprep.subr.bf16.mxu0 0
    %5411 = vmatpush1.bf16.msra.mxu0 0
    %5412 = vmatprep.subr.bf16.mxu0 0
    %5413 = vmatpush1.bf16.msra.mxu0 0
    %5414 = vmatprep.subr.bf16.mxu0 0
    %5415 = vmatpush1.bf16.msra.mxu0 0
    %5416 = vmatprep.subr.bf16.mxu0 0
    %5417 = vmatpush1.bf16.msra.mxu0 0
    %5418 = vmatprep.subr.bf16.mxu0 %v5138
    %5419 = vmatpush1.bf16.msra.mxu0 %v5135
    %5420 = vmatprep.subr.bf16.mxu0 0
    %5421 = vmatpush2.bf16.msra.mxu0 0
    %5422 = vmatprep.subr.bf16.mxu0 0
    %5423 = vmatpush2.bf16.msra.mxu0 0
    %5424 = vmatprep.subr.bf16.mxu0 0
    %5425 = vmatpush2.bf16.msra.mxu0 0
    %5426 = vmatprep.subr.bf16.mxu0 0
    %5427 = vmatpush2.bf16.msra.mxu0 0
    %5428 = vmatprep.subr.bf16.mxu0 0
    %5429 = vmatpush2.bf16.msra.mxu0 0
    %5430 = vmatprep.subr.bf16.mxu0 0
    %5431 = vmatpush2.bf16.msra.mxu0 0
    %5432 = vmatprep.subr.bf16.mxu0 0
    %5433 = vmatpush2.bf16.msra.mxu0 0
    %5434 = vmatprep.subr.bf16.mxu0 0
    %5435 = vmatpush2.bf16.msra.mxu0 0
    %5436 = vmatprep.mubr.bf16.mxu0 0
    %5437 = vmatmul.mubr.bf16.gmra.mxu0 %v5096
    %v5438 = vpop.f32.mrf.mxu0
    %v5439 = vadd.f32 0.0, %v5438
    %v5440 = vpop.f32.mrf.mxu0
    %v5441 = vadd.f32 0.0, %v5440
    %v5442 = vpop.f32.mrf.mxu0
    %v5443 = vadd.f32 0.0, %v5442
    %v5444 = vpop.f32.mrf.mxu0
    %v5445 = vadd.f32 0.0, %v5444
    %5446 = vdwg.mxu0
    %5447 = vmatprep.subr.bf16.mxu0 0
    %5448 = vmatpush1.bf16.msra.mxu0 0
    %5449 = vmatprep.subr.bf16.mxu0 0
    %5450 = vmatpush1.bf16.msra.mxu0 0
    %5451 = vmatprep.subr.bf16.mxu0 0
    %5452 = vmatpush1.bf16.msra.mxu0 0
    %5453 = vmatprep.subr.bf16.mxu0 0
    %5454 = vmatpush1.bf16.msra.mxu0 0
    %5455 = vmatprep.subr.bf16.mxu0 0
    %5456 = vmatpush1.bf16.msra.mxu0 0
    %5457 = vmatprep.subr.bf16.mxu0 0
    %5458 = vmatpush1.bf16.msra.mxu0 0
    %5459 = vmatprep.subr.bf16.mxu0 0
    %5460 = vmatpush1.bf16.msra.mxu0 0
    %5461 = vmatprep.subr.bf16.mxu0 %v5144
    %5462 = vmatpush1.bf16.msra.mxu0 %v5141
    %5463 = vmatprep.subr.bf16.mxu0 0
    %5464 = vmatpush2.bf16.msra.mxu0 0
    %5465 = vmatprep.subr.bf16.mxu0 0
    %5466 = vmatpush2.bf16.msra.mxu0 0
    %5467 = vmatprep.subr.bf16.mxu0 0
    %5468 = vmatpush2.bf16.msra.mxu0 0
    %5469 = vmatprep.subr.bf16.mxu0 0
    %5470 = vmatpush2.bf16.msra.mxu0 0
    %5471 = vmatprep.subr.bf16.mxu0 0
    %5472 = vmatpush2.bf16.msra.mxu0 0
    %5473 = vmatprep.subr.bf16.mxu0 0
    %5474 = vmatpush2.bf16.msra.mxu0 0
    %5475 = vmatprep.subr.bf16.mxu0 0
    %5476 = vmatpush2.bf16.msra.mxu0 0
    %5477 = vmatprep.subr.bf16.mxu0 0
    %5478 = vmatpush2.bf16.msra.mxu0 0
    %5479 = vmatprep.mubr.bf16.mxu0 0
    %5480 = vmatmul.mubr.bf16.gmra.mxu0 %v5096
    %v5481 = vpop.f32.mrf.mxu0
    %v5482 = vadd.f32 0.0, %v5481
    %v5483 = vpop.f32.mrf.mxu0
    %v5484 = vadd.f32 0.0, %v5483
    %v5485 = vpop.f32.mrf.mxu0
    %v5486 = vadd.f32 0.0, %v5485
    %v5487 = vpop.f32.mrf.mxu0
    %v5488 = vadd.f32 0.0, %v5487
    %5489 = vdwg.mxu0
    %v5490 = vmul.f32 %v5181, 2.0
    %v5491 = vmul.f32 %v5183, 2.0
    %v5492 = vmul.f32 %v5224, 2.0
    %v5493 = vmul.f32 %v5226, 2.0
    %v5494 = vmul.f32 %v5267, 2.0
    %v5495 = vmul.f32 %v5269, 2.0
    %v5496 = vmul.f32 %v5310, 2.0
    %v5497 = vmul.f32 %v5312, 2.0
    %v5498 = vmul.f32 %v5353, 2.0
    %v5499 = vmul.f32 %v5355, 2.0
    %v5500 = vmul.f32 %v5396, 2.0
    %v5501 = vmul.f32 %v5398, 2.0
    %v5502 = vmul.f32 %v5439, 2.0
    %v5503 = vmul.f32 %v5441, 2.0
    %v5504 = vmul.f32 %v5482, 2.0
    %v5505 = vmul.f32 %v5484, 2.0
    %v5506 = vmul.f32 %v5185, 2.0
    %v5507 = vmul.f32 %v5187, 2.0
    %v5508 = vmul.f32 %v5228, 2.0
    %v5509 = vmul.f32 %v5230, 2.0
    %v5510 = vmul.f32 %v5271, 2.0
    %v5511 = vmul.f32 %v5273, 2.0
    %v5512 = vmul.f32 %v5314, 2.0
    %v5513 = vmul.f32 %v5316, 2.0
    %v5514 = vmul.f32 %v5357, 2.0
    %v5515 = vmul.f32 %v5359, 2.0
    %v5516 = vmul.f32 %v5400, 2.0
    %v5517 = vmul.f32 %v5402, 2.0
    %v5518 = vmul.f32 %v5443, 2.0
    %v5519 = vmul.f32 %v5445, 2.0
    %v5520 = vmul.f32 %v5486, 2.0
    %v5521 = vmul.f32 %v5488, 2.0
    %5523 = vset.pattern.permute.xlu0 0
    %5524 = vperm.xlu0 %5523, %v5072
    %v5525 = vpop.permute.xlu0 %5524
    %5528 = vset.pattern.permute.xlu0 0
    %5529 = vperm.xlu0 %5528, %v5073
    %v5530 = vpop.permute.xlu0 %5529
    %v5532 = vsub.f32 %v5525, %v5490
    %v5533 = vsub.f32 %v5525, %v5491
    %v5534 = vsub.f32 %v5525, %v5492
    %v5535 = vsub.f32 %v5525, %v5493
    %v5536 = vsub.f32 %v5525, %v5494
    %v5537 = vsub.f32 %v5525, %v5495
    %v5538 = vsub.f32 %v5525, %v5496
    %v5539 = vsub.f32 %v5525, %v5497
    %v5540 = vsub.f32 %v5525, %v5498
    %v5541 = vsub.f32 %v5525, %v5499
    %v5542 = vsub.f32 %v5525, %v5500
    %v5543 = vsub.f32 %v5525, %v5501
    %v5544 = vsub.f32 %v5525, %v5502
    %v5545 = vsub.f32 %v5525, %v5503
    %v5546 = vsub.f32 %v5525, %v5504
    %v5547 = vsub.f32 %v5525, %v5505
    %v5548 = vsub.f32 %v5530, %v5506
    %v5549 = vsub.f32 %v5530, %v5507
    %v5550 = vsub.f32 %v5530, %v5508
    %v5551 = vsub.f32 %v5530, %v5509
    %v5552 = vsub.f32 %v5530, %v5510
    %v5553 = vsub.f32 %v5530, %v5511
    %v5554 = vsub.f32 %v5530, %v5512
    %v5555 = vsub.f32 %v5530, %v5513
    %v5556 = vsub.f32 %v5530, %v5514
    %v5557 = vsub.f32 %v5530, %v5515
    %v5558 = vsub.f32 %v5530, %v5516
    %v5559 = vsub.f32 %v5530, %v5517
    %v5560 = vsub.f32 %v5530, %v5518
    %v5561 = vsub.f32 %v5530, %v5519
    %v5562 = vsub.f32 %v5530, %v5520
    %v5563 = vsub.f32 %v5530, %v5521
    %v5564 = vmin.f32 %v5532, %v5548
    %v5565 = vrot.slane %v5564, 4
    %v5566 = vmin.f32 %v5564, %v5565
    %v5567 = vrot.slane %v5566, 2
    %v5568 = vmin.f32 %v5566, %v5567
    %v5569 = vrot.slane %v5568, 1
    %v5570 = vmin.f32 %v5568, %v5569
    %v5571 = vmin.f32 %v5533, %v5549
    %v5572 = vrot.slane %v5571, 4
    %v5573 = vmin.f32 %v5571, %v5572
    %v5574 = vrot.slane %v5573, 2
    %v5575 = vmin.f32 %v5573, %v5574
    %v5576 = vrot.slane %v5575, 1
    %v5577 = vmin.f32 %v5575, %v5576
    %v5578 = vmin.f32 %v5534, %v5550
    %v5579 = vrot.slane %v5578, 4
    %v5580 = vmin.f32 %v5578, %v5579
    %v5581 = vrot.slane %v5580, 2
    %v5582 = vmin.f32 %v5580, %v5581
    %v5583 = vrot.slane %v5582, 1
    %v5584 = vmin.f32 %v5582, %v5583
    %v5585 = vmin.f32 %v5535, %v5551
    %v5586 = vrot.slane %v5585, 4
    %v5587 = vmin.f32 %v5585, %v5586
    %v5588 = vrot.slane %v5587, 2
    %v5589 = vmin.f32 %v5587, %v5588
    %v5590 = vrot.slane %v5589, 1
    %v5591 = vmin.f32 %v5589, %v5590
    %v5592 = vmin.f32 %v5536, %v5552
    %v5593 = vrot.slane %v5592, 4
    %v5594 = vmin.f32 %v5592, %v5593
    %v5595 = vrot.slane %v5594, 2
    %v5596 = vmin.f32 %v5594, %v5595
    %v5597 = vrot.slane %v5596, 1
    %v5598 = vmin.f32 %v5596, %v5597
    %v5599 = vmin.f32 %v5537, %v5553
    %v5600 = vrot.slane %v5599, 4
    %v5601 = vmin.f32 %v5599, %v5600
    %v5602 = vrot.slane %v5601, 2
    %v5603 = vmin.f32 %v5601, %v5602
    %v5604 = vrot.slane %v5603, 1
    %v5605 = vmin.f32 %v5603, %v5604
    %v5606 = vmin.f32 %v5538, %v5554
    %v5607 = vrot.slane %v5606, 4
    %v5608 = vmin.f32 %v5606, %v5607
    %v5609 = vrot.slane %v5608, 2
    %v5610 = vmin.f32 %v5608, %v5609
    %v5611 = vrot.slane %v5610, 1
    %v5612 = vmin.f32 %v5610, %v5611
    %v5613 = vmin.f32 %v5539, %v5555
    %v5614 = vrot.slane %v5613, 4
    %v5615 = vmin.f32 %v5613, %v5614
    %v5616 = vrot.slane %v5615, 2
    %v5617 = vmin.f32 %v5615, %v5616
    %v5618 = vrot.slane %v5617, 1
    %v5619 = vmin.f32 %v5617, %v5618
    %v5620 = vmin.f32 %v5540, %v5556
    %v5621 = vrot.slane %v5620, 4
    %v5622 = vmin.f32 %v5620, %v5621
    %v5623 = vrot.slane %v5622, 2
    %v5624 = vmin.f32 %v5622, %v5623
    %v5625 = vrot.slane %v5624, 1
    %v5626 = vmin.f32 %v5624, %v5625
    %v5627 = vmin.f32 %v5541, %v5557
    %v5628 = vrot.slane %v5627, 4
    %v5629 = vmin.f32 %v5627, %v5628
    %v5630 = vrot.slane %v5629, 2
    %v5631 = vmin.f32 %v5629, %v5630
    %v5632 = vrot.slane %v5631, 1
    %v5633 = vmin.f32 %v5631, %v5632
    %v5634 = vmin.f32 %v5542, %v5558
    %v5635 = vrot.slane %v5634, 4
    %v5636 = vmin.f32 %v5634, %v5635
    %v5637 = vrot.slane %v5636, 2
    %v5638 = vmin.f32 %v5636, %v5637
    %v5639 = vrot.slane %v5638, 1
    %v5640 = vmin.f32 %v5638, %v5639
    %v5641 = vmin.f32 %v5543, %v5559
    %v5642 = vrot.slane %v5641, 4
    %v5643 = vmin.f32 %v5641, %v5642
    %v5644 = vrot.slane %v5643, 2
    %v5645 = vmin.f32 %v5643, %v5644
    %v5646 = vrot.slane %v5645, 1
    %v5647 = vmin.f32 %v5645, %v5646
    %v5648 = vmin.f32 %v5544, %v5560
    %v5649 = vrot.slane %v5648, 4
    %v5650 = vmin.f32 %v5648, %v5649
    %v5651 = vrot.slane %v5650, 2
    %v5652 = vmin.f32 %v5650, %v5651
    %v5653 = vrot.slane %v5652, 1
    %v5654 = vmin.f32 %v5652, %v5653
    %v5655 = vmin.f32 %v5545, %v5561
    %v5656 = vrot.slane %v5655, 4
    %v5657 = vmin.f32 %v5655, %v5656
    %v5658 = vrot.slane %v5657, 2
    %v5659 = vmin.f32 %v5657, %v5658
    %v5660 = vrot.slane %v5659, 1
    %v5661 = vmin.f32 %v5659, %v5660
    %v5662 = vmin.f32 %v5546, %v5562
    %v5663 = vrot.slane %v5662, 4
    %v5664 = vmin.f32 %v5662, %v5663
    %v5665 = vrot.slane %v5664, 2
    %v5666 = vmin.f32 %v5664, %v5665
    %v5667 = vrot.slane %v5666, 1
    %v5668 = vmin.f32 %v5666, %v5667
    %v5669 = vmin.f32 %v5547, %v5563
    %v5670 = vrot.slane %v5669, 4
    %v5671 = vmin.f32 %v5669, %v5670
    %v5672 = vrot.slane %v5671, 2
    %v5673 = vmin.f32 %v5671, %v5672
    %v5674 = vrot.slane %v5673, 1
    %v5675 = vmin.f32 %v5673, %v5674
    %vm5676 = vcmp.le.f32.partialorder %v5532, %v5570
    %vm5677 = vcmp.le.f32.partialorder %v5533, %v5577
    %vm5678 = vcmp.le.f32.partialorder %v5534, %v5584
    %vm5679 = vcmp.le.f32.partialorder %v5535, %v5591
    %vm5680 = vcmp.le.f32.partialorder %v5536, %v5598
    %vm5681 = vcmp.le.f32.partialorder %v5537, %v5605
    %vm5682 = vcmp.le.f32.partialorder %v5538, %v5612
    %vm5683 = vcmp.le.f32.partialorder %v5539, %v5619
    %vm5684 = vcmp.le.f32.partialorder %v5540, %v5626
    %vm5685 = vcmp.le.f32.partialorder %v5541, %v5633
    %vm5686 = vcmp.le.f32.partialorder %v5542, %v5640
    %vm5687 = vcmp.le.f32.partialorder %v5543, %v5647
    %vm5688 = vcmp.le.f32.partialorder %v5544, %v5654
    %vm5689 = vcmp.le.f32.partialorder %v5545, %v5661
    %vm5690 = vcmp.le.f32.partialorder %v5546, %v5668
    %vm5691 = vcmp.le.f32.partialorder %v5547, %v5675
    %vm5692 = vcmp.le.f32.partialorder %v5548, %v5570
    %vm5693 = vcmp.le.f32.partialorder %v5549, %v5577
    %vm5694 = vcmp.le.f32.partialorder %v5550, %v5584
    %vm5695 = vcmp.le.f32.partialorder %v5551, %v5591
    %vm5696 = vcmp.le.f32.partialorder %v5552, %v5598
    %vm5697 = vcmp.le.f32.partialorder %v5553, %v5605
    %vm5698 = vcmp.le.f32.partialorder %v5554, %v5612
    %vm5699 = vcmp.le.f32.partialorder %v5555, %v5619
    %vm5700 = vcmp.le.f32.partialorder %v5556, %v5626
    %vm5701 = vcmp.le.f32.partialorder %v5557, %v5633
    %vm5702 = vcmp.le.f32.partialorder %v5558, %v5640
    %vm5703 = vcmp.le.f32.partialorder %v5559, %v5647
    %vm5704 = vcmp.le.f32.partialorder %v5560, %v5654
    %vm5705 = vcmp.le.f32.partialorder %v5561, %v5661
    %vm5706 = vcmp.le.f32.partialorder %v5562, %v5668
    %vm5707 = vcmp.le.f32.partialorder %v5563, %v5675
    %v5708 = vsel %vm5676, %v2128, 16
    %v5709 = vsel %vm5677, %v2128, 16
    %v5710 = vsel %vm5678, %v2128, 16
    %v5711 = vsel %vm5679, %v2128, 16
    %v5712 = vsel %vm5680, %v2128, 16
    %v5713 = vsel %vm5681, %v2128, 16
    %v5714 = vsel %vm5682, %v2128, 16
    %v5715 = vsel %vm5683, %v2128, 16
    %v5716 = vsel %vm5684, %v2128, 16
    %v5717 = vsel %vm5685, %v2128, 16
    %v5718 = vsel %vm5686, %v2128, 16
    %v5719 = vsel %vm5687, %v2128, 16
    %v5720 = vsel %vm5688, %v2128, 16
    %v5721 = vsel %vm5689, %v2128, 16
    %v5722 = vsel %vm5690, %v2128, 16
    %v5723 = vsel %vm5691, %v2128, 16
    %v5724 = vsel %vm5692, %v2129, 16
    %v5725 = vsel %vm5693, %v2129, 16
    %v5726 = vsel %vm5694, %v2129, 16
    %v5727 = vsel %vm5695, %v2129, 16
    %v5728 = vsel %vm5696, %v2129, 16
    %v5729 = vsel %vm5697, %v2129, 16
    %v5730 = vsel %vm5698, %v2129, 16
    %v5731 = vsel %vm5699, %v2129, 16
    %v5732 = vsel %vm5700, %v2129, 16
    %v5733 = vsel %vm5701, %v2129, 16
    %v5734 = vsel %vm5702, %v2129, 16
    %v5735 = vsel %vm5703, %v2129, 16
    %v5736 = vsel %vm5704, %v2129, 16
    %v5737 = vsel %vm5705, %v2129, 16
    %v5738 = vsel %vm5706, %v2129, 16
    %v5739 = vsel %vm5707, %v2129, 16
    %vm5740 = vcmp.lt.s32.totalorder %v5708, %v5724
    %v5741 = vsel %vm5740, %v5708, %v5724
    %v5742 = vrot.slane %v5741, 4
    %vm5743 = vcmp.lt.s32.totalorder %v5741, %v5742
    %v5744 = vsel %vm5743, %v5741, %v5742
    %v5745 = vrot.slane %v5744, 2
    %vm5746 = vcmp.lt.s32.totalorder %v5744, %v5745
    %v5747 = vsel %vm5746, %v5744, %v5745
    %v5748 = vrot.slane %v5747, 1
    %vm5749 = vcmp.lt.s32.totalorder %v5747, %v5748
    %v5750 = vsel %vm5749, %v5747, %v5748
    %vm5751 = vcmp.lt.s32.totalorder %v5709, %v5725
    %v5752 = vsel %vm5751, %v5709, %v5725
    %v5753 = vrot.slane %v5752, 4
    %vm5754 = vcmp.lt.s32.totalorder %v5752, %v5753
    %v5755 = vsel %vm5754, %v5752, %v5753
    %v5756 = vrot.slane %v5755, 2
    %vm5757 = vcmp.lt.s32.totalorder %v5755, %v5756
    %v5758 = vsel %vm5757, %v5755, %v5756
    %v5759 = vrot.slane %v5758, 1
    %vm5760 = vcmp.lt.s32.totalorder %v5758, %v5759
    %v5761 = vsel %vm5760, %v5758, %v5759
    %vm5762 = vcmp.lt.s32.totalorder %v5710, %v5726
    %v5763 = vsel %vm5762, %v5710, %v5726
    %v5764 = vrot.slane %v5763, 4
    %vm5765 = vcmp.lt.s32.totalorder %v5763, %v5764
    %v5766 = vsel %vm5765, %v5763, %v5764
    %v5767 = vrot.slane %v5766, 2
    %vm5768 = vcmp.lt.s32.totalorder %v5766, %v5767
    %v5769 = vsel %vm5768, %v5766, %v5767
    %v5770 = vrot.slane %v5769, 1
    %vm5771 = vcmp.lt.s32.totalorder %v5769, %v5770
    %v5772 = vsel %vm5771, %v5769, %v5770
    %vm5773 = vcmp.lt.s32.totalorder %v5711, %v5727
    %v5774 = vsel %vm5773, %v5711, %v5727
    %v5775 = vrot.slane %v5774, 4
    %vm5776 = vcmp.lt.s32.totalorder %v5774, %v5775
    %v5777 = vsel %vm5776, %v5774, %v5775
    %v5778 = vrot.slane %v5777, 2
    %vm5779 = vcmp.lt.s32.totalorder %v5777, %v5778
    %v5780 = vsel %vm5779, %v5777, %v5778
    %v5781 = vrot.slane %v5780, 1
    %vm5782 = vcmp.lt.s32.totalorder %v5780, %v5781
    %v5783 = vsel %vm5782, %v5780, %v5781
    %vm5784 = vcmp.lt.s32.totalorder %v5712, %v5728
    %v5785 = vsel %vm5784, %v5712, %v5728
    %v5786 = vrot.slane %v5785, 4
    %vm5787 = vcmp.lt.s32.totalorder %v5785, %v5786
    %v5788 = vsel %vm5787, %v5785, %v5786
    %v5789 = vrot.slane %v5788, 2
    %vm5790 = vcmp.lt.s32.totalorder %v5788, %v5789
    %v5791 = vsel %vm5790, %v5788, %v5789
    %v5792 = vrot.slane %v5791, 1
    %vm5793 = vcmp.lt.s32.totalorder %v5791, %v5792
    %v5794 = vsel %vm5793, %v5791, %v5792
    %vm5795 = vcmp.lt.s32.totalorder %v5713, %v5729
    %v5796 = vsel %vm5795, %v5713, %v5729
    %v5797 = vrot.slane %v5796, 4
    %vm5798 = vcmp.lt.s32.totalorder %v5796, %v5797
    %v5799 = vsel %vm5798, %v5796, %v5797
    %v5800 = vrot.slane %v5799, 2
    %vm5801 = vcmp.lt.s32.totalorder %v5799, %v5800
    %v5802 = vsel %vm5801, %v5799, %v5800
    %v5803 = vrot.slane %v5802, 1
    %vm5804 = vcmp.lt.s32.totalorder %v5802, %v5803
    %v5805 = vsel %vm5804, %v5802, %v5803
    %vm5806 = vcmp.lt.s32.totalorder %v5714, %v5730
    %v5807 = vsel %vm5806, %v5714, %v5730
    %v5808 = vrot.slane %v5807, 4
    %vm5809 = vcmp.lt.s32.totalorder %v5807, %v5808
    %v5810 = vsel %vm5809, %v5807, %v5808
    %v5811 = vrot.slane %v5810, 2
    %vm5812 = vcmp.lt.s32.totalorder %v5810, %v5811
    %v5813 = vsel %vm5812, %v5810, %v5811
    %v5814 = vrot.slane %v5813, 1
    %vm5815 = vcmp.lt.s32.totalorder %v5813, %v5814
    %v5816 = vsel %vm5815, %v5813, %v5814
    %vm5817 = vcmp.lt.s32.totalorder %v5715, %v5731
    %v5818 = vsel %vm5817, %v5715, %v5731
    %v5819 = vrot.slane %v5818, 4
    %vm5820 = vcmp.lt.s32.totalorder %v5818, %v5819
    %v5821 = vsel %vm5820, %v5818, %v5819
    %v5822 = vrot.slane %v5821, 2
    %vm5823 = vcmp.lt.s32.totalorder %v5821, %v5822
    %v5824 = vsel %vm5823, %v5821, %v5822
    %v5825 = vrot.slane %v5824, 1
    %vm5826 = vcmp.lt.s32.totalorder %v5824, %v5825
    %v5827 = vsel %vm5826, %v5824, %v5825
    %vm5828 = vcmp.lt.s32.totalorder %v5716, %v5732
    %v5829 = vsel %vm5828, %v5716, %v5732
    %v5830 = vrot.slane %v5829, 4
    %vm5831 = vcmp.lt.s32.totalorder %v5829, %v5830
    %v5832 = vsel %vm5831, %v5829, %v5830
    %v5833 = vrot.slane %v5832, 2
    %vm5834 = vcmp.lt.s32.totalorder %v5832, %v5833
    %v5835 = vsel %vm5834, %v5832, %v5833
    %v5836 = vrot.slane %v5835, 1
    %vm5837 = vcmp.lt.s32.totalorder %v5835, %v5836
    %v5838 = vsel %vm5837, %v5835, %v5836
    %vm5839 = vcmp.lt.s32.totalorder %v5717, %v5733
    %v5840 = vsel %vm5839, %v5717, %v5733
    %v5841 = vrot.slane %v5840, 4
    %vm5842 = vcmp.lt.s32.totalorder %v5840, %v5841
    %v5843 = vsel %vm5842, %v5840, %v5841
    %v5844 = vrot.slane %v5843, 2
    %vm5845 = vcmp.lt.s32.totalorder %v5843, %v5844
    %v5846 = vsel %vm5845, %v5843, %v5844
    %v5847 = vrot.slane %v5846, 1
    %vm5848 = vcmp.lt.s32.totalorder %v5846, %v5847
    %v5849 = vsel %vm5848, %v5846, %v5847
    %vm5850 = vcmp.lt.s32.totalorder %v5718, %v5734
    %v5851 = vsel %vm5850, %v5718, %v5734
    %v5852 = vrot.slane %v5851, 4
    %vm5853 = vcmp.lt.s32.totalorder %v5851, %v5852
    %v5854 = vsel %vm5853, %v5851, %v5852
    %v5855 = vrot.slane %v5854, 2
    %vm5856 = vcmp.lt.s32.totalorder %v5854, %v5855
    %v5857 = vsel %vm5856, %v5854, %v5855
    %v5858 = vrot.slane %v5857, 1
    %vm5859 = vcmp.lt.s32.totalorder %v5857, %v5858
    %v5860 = vsel %vm5859, %v5857, %v5858
    %vm5861 = vcmp.lt.s32.totalorder %v5719, %v5735
    %v5862 = vsel %vm5861, %v5719, %v5735
    %v5863 = vrot.slane %v5862, 4
    %vm5864 = vcmp.lt.s32.totalorder %v5862, %v5863
    %v5865 = vsel %vm5864, %v5862, %v5863
    %v5866 = vrot.slane %v5865, 2
    %vm5867 = vcmp.lt.s32.totalorder %v5865, %v5866
    %v5868 = vsel %vm5867, %v5865, %v5866
    %v5869 = vrot.slane %v5868, 1
    %vm5870 = vcmp.lt.s32.totalorder %v5868, %v5869
    %v5871 = vsel %vm5870, %v5868, %v5869
    %vm5872 = vcmp.lt.s32.totalorder %v5720, %v5736
    %v5873 = vsel %vm5872, %v5720, %v5736
    %v5874 = vrot.slane %v5873, 4
    %vm5875 = vcmp.lt.s32.totalorder %v5873, %v5874
    %v5876 = vsel %vm5875, %v5873, %v5874
    %v5877 = vrot.slane %v5876, 2
    %vm5878 = vcmp.lt.s32.totalorder %v5876, %v5877
    %v5879 = vsel %vm5878, %v5876, %v5877
    %v5880 = vrot.slane %v5879, 1
    %vm5881 = vcmp.lt.s32.totalorder %v5879, %v5880
    %v5882 = vsel %vm5881, %v5879, %v5880
    %vm5883 = vcmp.lt.s32.totalorder %v5721, %v5737
    %v5884 = vsel %vm5883, %v5721, %v5737
    %v5885 = vrot.slane %v5884, 4
    %vm5886 = vcmp.lt.s32.totalorder %v5884, %v5885
    %v5887 = vsel %vm5886, %v5884, %v5885
    %v5888 = vrot.slane %v5887, 2
    %vm5889 = vcmp.lt.s32.totalorder %v5887, %v5888
    %v5890 = vsel %vm5889, %v5887, %v5888
    %v5891 = vrot.slane %v5890, 1
    %vm5892 = vcmp.lt.s32.totalorder %v5890, %v5891
    %v5893 = vsel %vm5892, %v5890, %v5891
    %vm5894 = vcmp.lt.s32.totalorder %v5722, %v5738
    %v5895 = vsel %vm5894, %v5722, %v5738
    %v5896 = vrot.slane %v5895, 4
    %vm5897 = vcmp.lt.s32.totalorder %v5895, %v5896
    %v5898 = vsel %vm5897, %v5895, %v5896
    %v5899 = vrot.slane %v5898, 2
    %vm5900 = vcmp.lt.s32.totalorder %v5898, %v5899
    %v5901 = vsel %vm5900, %v5898, %v5899
    %v5902 = vrot.slane %v5901, 1
    %vm5903 = vcmp.lt.s32.totalorder %v5901, %v5902
    %v5904 = vsel %vm5903, %v5901, %v5902
    %vm5905 = vcmp.lt.s32.totalorder %v5723, %v5739
    %v5906 = vsel %vm5905, %v5723, %v5739
    %v5907 = vrot.slane %v5906, 4
    %vm5908 = vcmp.lt.s32.totalorder %v5906, %v5907
    %v5909 = vsel %vm5908, %v5906, %v5907
    %v5910 = vrot.slane %v5909, 2
    %vm5911 = vcmp.lt.s32.totalorder %v5909, %v5910
    %v5912 = vsel %vm5911, %v5909, %v5910
    %v5913 = vrot.slane %v5912, 1
    %vm5914 = vcmp.lt.s32.totalorder %v5912, %v5913
    %v5915 = vsel %vm5914, %v5912, %v5913
    %vm5916 = vcmp.eq.s32.totalorder %v2128, %v5750
    %vm5917 = vcmp.eq.s32.totalorder %v2128, %v5761
    %vm5918 = vcmp.eq.s32.totalorder %v2128, %v5772
    %vm5919 = vcmp.eq.s32.totalorder %v2128, %v5783
    %vm5920 = vcmp.eq.s32.totalorder %v2128, %v5794
    %vm5921 = vcmp.eq.s32.totalorder %v2128, %v5805
    %vm5922 = vcmp.eq.s32.totalorder %v2128, %v5816
    %vm5923 = vcmp.eq.s32.totalorder %v2128, %v5827
    %vm5924 = vcmp.eq.s32.totalorder %v2128, %v5838
    %vm5925 = vcmp.eq.s32.totalorder %v2128, %v5849
    %vm5926 = vcmp.eq.s32.totalorder %v2128, %v5860
    %vm5927 = vcmp.eq.s32.totalorder %v2128, %v5871
    %vm5928 = vcmp.eq.s32.totalorder %v2128, %v5882
    %vm5929 = vcmp.eq.s32.totalorder %v2128, %v5893
    %vm5930 = vcmp.eq.s32.totalorder %v2128, %v5904
    %vm5931 = vcmp.eq.s32.totalorder %v2128, %v5915
    %vm5932 = vcmp.eq.s32.totalorder %v2129, %v5750
    %vm5933 = vcmp.eq.s32.totalorder %v2129, %v5761
    %vm5934 = vcmp.eq.s32.totalorder %v2129, %v5772
    %vm5935 = vcmp.eq.s32.totalorder %v2129, %v5783
    %vm5936 = vcmp.eq.s32.totalorder %v2129, %v5794
    %vm5937 = vcmp.eq.s32.totalorder %v2129, %v5805
    %vm5938 = vcmp.eq.s32.totalorder %v2129, %v5816
    %vm5939 = vcmp.eq.s32.totalorder %v2129, %v5827
    %vm5940 = vcmp.eq.s32.totalorder %v2129, %v5838
    %vm5941 = vcmp.eq.s32.totalorder %v2129, %v5849
    %vm5942 = vcmp.eq.s32.totalorder %v2129, %v5860
    %vm5943 = vcmp.eq.s32.totalorder %v2129, %v5871
    %vm5944 = vcmp.eq.s32.totalorder %v2129, %v5882
    %vm5945 = vcmp.eq.s32.totalorder %v2129, %v5893
    %vm5946 = vcmp.eq.s32.totalorder %v2129, %v5904
    %vm5947 = vcmp.eq.s32.totalorder %v2129, %v5915
    %v5948 = vsel %vm5916, 1, 0
    %v5949 = vsel %vm5917, 1, 0
    %v5950 = vsel %vm5918, 1, 0
    %v5951 = vsel %vm5919, 1, 0
    %v5952 = vsel %vm5920, 1, 0
    %v5953 = vsel %vm5921, 1, 0
    %v5954 = vsel %vm5922, 1, 0
    %v5955 = vsel %vm5923, 1, 0
    %v5956 = vsel %vm5924, 1, 0
    %v5957 = vsel %vm5925, 1, 0
    %v5958 = vsel %vm5926, 1, 0
    %v5959 = vsel %vm5927, 1, 0
    %v5960 = vsel %vm5928, 1, 0
    %v5961 = vsel %vm5929, 1, 0
    %v5962 = vsel %vm5930, 1, 0
    %v5963 = vsel %vm5931, 1, 0
    %v5964 = vsel %vm5932, 1, 0
    %v5965 = vsel %vm5933, 1, 0
    %v5966 = vsel %vm5934, 1, 0
    %v5967 = vsel %vm5935, 1, 0
    %v5968 = vsel %vm5936, 1, 0
    %v5969 = vsel %vm5937, 1, 0
    %v5970 = vsel %vm5938, 1, 0
    %v5971 = vsel %vm5939, 1, 0
    %v5972 = vsel %vm5940, 1, 0
    %v5973 = vsel %vm5941, 1, 0
    %v5974 = vsel %vm5942, 1, 0
    %v5975 = vsel %vm5943, 1, 0
    %v5976 = vsel %vm5944, 1, 0
    %v5977 = vsel %vm5945, 1, 0
    %v5978 = vsel %vm5946, 1, 0
    %v5979 = vsel %vm5947, 1, 0
    %v5980 = vcvt.s32.f32 %v5948
    %v5981 = vcvt.s32.f32 %v5949
    %v5982 = vcvt.s32.f32 %v5950
    %v5983 = vcvt.s32.f32 %v5951
    %v5984 = vcvt.s32.f32 %v5952
    %v5985 = vcvt.s32.f32 %v5953
    %v5986 = vcvt.s32.f32 %v5954
    %v5987 = vcvt.s32.f32 %v5955
    %v5988 = vcvt.s32.f32 %v5956
    %v5989 = vcvt.s32.f32 %v5957
    %v5990 = vcvt.s32.f32 %v5958
    %v5991 = vcvt.s32.f32 %v5959
    %v5992 = vcvt.s32.f32 %v5960
    %v5993 = vcvt.s32.f32 %v5961
    %v5994 = vcvt.s32.f32 %v5962
    %v5995 = vcvt.s32.f32 %v5963
    %v5996 = vcvt.s32.f32 %v5964
    %v5997 = vcvt.s32.f32 %v5965
    %v5998 = vcvt.s32.f32 %v5966
    %v5999 = vcvt.s32.f32 %v5967
    %v6000 = vcvt.s32.f32 %v5968
    %v6001 = vcvt.s32.f32 %v5969
    %v6002 = vcvt.s32.f32 %v5970
    %v6003 = vcvt.s32.f32 %v5971
    %v6004 = vcvt.s32.f32 %v5972
    %v6005 = vcvt.s32.f32 %v5973
    %v6006 = vcvt.s32.f32 %v5974
    %v6007 = vcvt.s32.f32 %v5975
    %v6008 = vcvt.s32.f32 %v5976
    %v6009 = vcvt.s32.f32 %v5977
    %v6010 = vcvt.s32.f32 %v5978
    %v6011 = vcvt.s32.f32 %v5979
    %v6012 = vpack.c.bf16 %v5996, %v5980
    %v6013 = vpack.c.bf16 %v5997, %v5981
    %v6014 = vpack.c.bf16 %v5998, %v5982
    %v6015 = vpack.c.bf16 %v5999, %v5983
    %v6016 = vpack.c.bf16 %v6000, %v5984
    %v6017 = vpack.c.bf16 %v6001, %v5985
    %v6018 = vpack.c.bf16 %v6002, %v5986
    %v6019 = vpack.c.bf16 %v6003, %v5987
    %v6020 = vpack.c.bf16 %v6004, %v5988
    %v6021 = vpack.c.bf16 %v6005, %v5989
    %v6022 = vpack.c.bf16 %v6006, %v5990
    %v6023 = vpack.c.bf16 %v6007, %v5991
    %v6024 = vpack.c.bf16 %v6008, %v5992
    %v6025 = vpack.c.bf16 %v6009, %v5993
    %v6026 = vpack.c.bf16 %v6010, %v5994
    %v6027 = vpack.c.bf16 %v6011, %v5995
    %v6029 = vsel %vm1187, %v5070, 0
    %6031 = vmatprep.subr.bf16.mxu0 0
    %6032 = vmatpush1.bf16.msra.mxu0 0
    %6033 = vmatprep.subr.bf16.mxu0 0
    %6034 = vmatpush1.bf16.msra.mxu0 0
    %6035 = vmatprep.subr.bf16.mxu0 0
    %6036 = vmatpush1.bf16.msra.mxu0 0
    %6037 = vmatprep.subr.bf16.mxu0 0
    %6038 = vmatpush1.bf16.msra.mxu0 0
    %6039 = vmatprep.subr.bf16.mxu0 0
    %6040 = vmatpush1.bf16.msra.mxu0 0
    %6041 = vmatprep.subr.bf16.mxu0 0
    %6042 = vmatpush1.bf16.msra.mxu0 0
    %6043 = vmatprep.subr.bf16.mxu0 0
    %6044 = vmatpush1.bf16.msra.mxu0 0
    %6045 = vmatprep.subr.bf16.mxu0 %v6013
    %6046 = vmatpush1.bf16.msra.mxu0 %v6012
    %6047 = vmatprep.subr.bf16.mxu0 0
    %6048 = vmatpush2.bf16.msra.mxu0 0
    %6049 = vmatprep.subr.bf16.mxu0 0
    %6050 = vmatpush2.bf16.msra.mxu0 0
    %6051 = vmatprep.subr.bf16.mxu0 0
    %6052 = vmatpush2.bf16.msra.mxu0 0
    %6053 = vmatprep.subr.bf16.mxu0 0
    %6054 = vmatpush2.bf16.msra.mxu0 0
    %6055 = vmatprep.subr.bf16.mxu0 0
    %6056 = vmatpush2.bf16.msra.mxu0 0
    %6057 = vmatprep.subr.bf16.mxu0 0
    %6058 = vmatpush2.bf16.msra.mxu0 0
    %6059 = vmatprep.subr.bf16.mxu0 0
    %6060 = vmatpush2.bf16.msra.mxu0 0
    %6061 = vmatprep.subr.bf16.mxu0 0
    %6062 = vmatpush2.bf16.msra.mxu0 0
    %6063 = vmatprep.mubr.bf16.mxu0 0
    %6064 = vmatmul.mubr.bf16.gmra.mxu0 %v6029
    %v6065 = vpop.f32.mrf.mxu0
    %v6066 = vadd.f32 0.0, %v6065
    %v6067 = vpop.f32.mrf.mxu0
    %v6068 = vadd.f32 0.0, %v6067
    %v6069 = vpop.f32.mrf.mxu0
    %v6070 = vpop.f32.mrf.mxu0
    %6071 = vdwg.mxu0
    %6072 = vmatprep.subr.bf16.mxu0 0
    %6073 = vmatpush1.bf16.msra.mxu0 0
    %6074 = vmatprep.subr.bf16.mxu0 0
    %6075 = vmatpush1.bf16.msra.mxu0 0
    %6076 = vmatprep.subr.bf16.mxu0 0
    %6077 = vmatpush1.bf16.msra.mxu0 0
    %6078 = vmatprep.subr.bf16.mxu0 0
    %6079 = vmatpush1.bf16.msra.mxu0 0
    %6080 = vmatprep.subr.bf16.mxu0 0
    %6081 = vmatpush1.bf16.msra.mxu0 0
    %6082 = vmatprep.subr.bf16.mxu0 0
    %6083 = vmatpush1.bf16.msra.mxu0 0
    %6084 = vmatprep.subr.bf16.mxu0 0
    %6085 = vmatpush1.bf16.msra.mxu0 0
    %6086 = vmatprep.subr.bf16.mxu0 %v6015
    %6087 = vmatpush1.bf16.msra.mxu0 %v6014
    %6088 = vmatprep.subr.bf16.mxu0 0
    %6089 = vmatpush2.bf16.msra.mxu0 0
    %6090 = vmatprep.subr.bf16.mxu0 0
    %6091 = vmatpush2.bf16.msra.mxu0 0
    %6092 = vmatprep.subr.bf16.mxu0 0
    %6093 = vmatpush2.bf16.msra.mxu0 0
    %6094 = vmatprep.subr.bf16.mxu0 0
    %6095 = vmatpush2.bf16.msra.mxu0 0
    %6096 = vmatprep.subr.bf16.mxu0 0
    %6097 = vmatpush2.bf16.msra.mxu0 0
    %6098 = vmatprep.subr.bf16.mxu0 0
    %6099 = vmatpush2.bf16.msra.mxu0 0
    %6100 = vmatprep.subr.bf16.mxu0 0
    %6101 = vmatpush2.bf16.msra.mxu0 0
    %6102 = vmatprep.subr.bf16.mxu0 0
    %6103 = vmatpush2.bf16.msra.mxu0 0
    %6104 = vmatprep.mubr.bf16.mxu0 0
    %6105 = vmatmul.mubr.bf16.gmra.mxu0 %v6029
    %v6106 = vpop.f32.mrf.mxu0
    %v6107 = vadd.f32 0.0, %v6106
    %v6108 = vpop.f32.mrf.mxu0
    %v6109 = vadd.f32 0.0, %v6108
    %v6110 = vpop.f32.mrf.mxu0
    %v6111 = vpop.f32.mrf.mxu0
    %6112 = vdwg.mxu0
    %6113 = vmatprep.subr.bf16.mxu0 0
    %6114 = vmatpush1.bf16.msra.mxu0 0
    %6115 = vmatprep.subr.bf16.mxu0 0
    %6116 = vmatpush1.bf16.msra.mxu0 0
    %6117 = vmatprep.subr.bf16.mxu0 0
    %6118 = vmatpush1.bf16.msra.mxu0 0
    %6119 = vmatprep.subr.bf16.mxu0 0
    %6120 = vmatpush1.bf16.msra.mxu0 0
    %6121 = vmatprep.subr.bf16.mxu0 0
    %6122 = vmatpush1.bf16.msra.mxu0 0
    %6123 = vmatprep.subr.bf16.mxu0 0
    %6124 = vmatpush1.bf16.msra.mxu0 0
    %6125 = vmatprep.subr.bf16.mxu0 0
    %6126 = vmatpush1.bf16.msra.mxu0 0
    %6127 = vmatprep.subr.bf16.mxu0 %v6017
    %6128 = vmatpush1.bf16.msra.mxu0 %v6016
    %6129 = vmatprep.subr.bf16.mxu0 0
    %6130 = vmatpush2.bf16.msra.mxu0 0
    %6131 = vmatprep.subr.bf16.mxu0 0
    %6132 = vmatpush2.bf16.msra.mxu0 0
    %6133 = vmatprep.subr.bf16.mxu0 0
    %6134 = vmatpush2.bf16.msra.mxu0 0
    %6135 = vmatprep.subr.bf16.mxu0 0
    %6136 = vmatpush2.bf16.msra.mxu0 0
    %6137 = vmatprep.subr.bf16.mxu0 0
    %6138 = vmatpush2.bf16.msra.mxu0 0
    %6139 = vmatprep.subr.bf16.mxu0 0
    %6140 = vmatpush2.bf16.msra.mxu0 0
    %6141 = vmatprep.subr.bf16.mxu0 0
    %6142 = vmatpush2.bf16.msra.mxu0 0
    %6143 = vmatprep.subr.bf16.mxu0 0
    %6144 = vmatpush2.bf16.msra.mxu0 0
    %6145 = vmatprep.mubr.bf16.mxu0 0
    %6146 = vmatmul.mubr.bf16.gmra.mxu0 %v6029
    %v6147 = vpop.f32.mrf.mxu0
    %v6148 = vadd.f32 0.0, %v6147
    %v6149 = vpop.f32.mrf.mxu0
    %v6150 = vadd.f32 0.0, %v6149
    %v6151 = vpop.f32.mrf.mxu0
    %v6152 = vpop.f32.mrf.mxu0
    %6153 = vdwg.mxu0
    %6154 = vmatprep.subr.bf16.mxu0 0
    %6155 = vmatpush1.bf16.msra.mxu0 0
    %6156 = vmatprep.subr.bf16.mxu0 0
    %6157 = vmatpush1.bf16.msra.mxu0 0
    %6158 = vmatprep.subr.bf16.mxu0 0
    %6159 = vmatpush1.bf16.msra.mxu0 0
    %6160 = vmatprep.subr.bf16.mxu0 0
    %6161 = vmatpush1.bf16.msra.mxu0 0
    %6162 = vmatprep.subr.bf16.mxu0 0
    %6163 = vmatpush1.bf16.msra.mxu0 0
    %6164 = vmatprep.subr.bf16.mxu0 0
    %6165 = vmatpush1.bf16.msra.mxu0 0
    %6166 = vmatprep.subr.bf16.mxu0 0
    %6167 = vmatpush1.bf16.msra.mxu0 0
    %6168 = vmatprep.subr.bf16.mxu0 %v6019
    %6169 = vmatpush1.bf16.msra.mxu0 %v6018
    %6170 = vmatprep.subr.bf16.mxu0 0
    %6171 = vmatpush2.bf16.msra.mxu0 0
    %6172 = vmatprep.subr.bf16.mxu0 0
    %6173 = vmatpush2.bf16.msra.mxu0 0
    %6174 = vmatprep.subr.bf16.mxu0 0
    %6175 = vmatpush2.bf16.msra.mxu0 0
    %6176 = vmatprep.subr.bf16.mxu0 0
    %6177 = vmatpush2.bf16.msra.mxu0 0
    %6178 = vmatprep.subr.bf16.mxu0 0
    %6179 = vmatpush2.bf16.msra.mxu0 0
    %6180 = vmatprep.subr.bf16.mxu0 0
    %6181 = vmatpush2.bf16.msra.mxu0 0
    %6182 = vmatprep.subr.bf16.mxu0 0
    %6183 = vmatpush2.bf16.msra.mxu0 0
    %6184 = vmatprep.subr.bf16.mxu0 0
    %6185 = vmatpush2.bf16.msra.mxu0 0
    %6186 = vmatprep.mubr.bf16.mxu0 0
    %6187 = vmatmul.mubr.bf16.gmra.mxu0 %v6029
    %v6188 = vpop.f32.mrf.mxu0
    %v6189 = vadd.f32 0.0, %v6188
    %v6190 = vpop.f32.mrf.mxu0
    %v6191 = vadd.f32 0.0, %v6190
    %v6192 = vpop.f32.mrf.mxu0
    %v6193 = vpop.f32.mrf.mxu0
    %6194 = vdwg.mxu0
    %6195 = vmatprep.subr.bf16.mxu0 0
    %6196 = vmatpush1.bf16.msra.mxu0 0
    %6197 = vmatprep.subr.bf16.mxu0 0
    %6198 = vmatpush1.bf16.msra.mxu0 0
    %6199 = vmatprep.subr.bf16.mxu0 0
    %6200 = vmatpush1.bf16.msra.mxu0 0
    %6201 = vmatprep.subr.bf16.mxu0 0
    %6202 = vmatpush1.bf16.msra.mxu0 0
    %6203 = vmatprep.subr.bf16.mxu0 0
    %6204 = vmatpush1.bf16.msra.mxu0 0
    %6205 = vmatprep.subr.bf16.mxu0 0
    %6206 = vmatpush1.bf16.msra.mxu0 0
    %6207 = vmatprep.subr.bf16.mxu0 0
    %6208 = vmatpush1.bf16.msra.mxu0 0
    %6209 = vmatprep.subr.bf16.mxu0 %v6021
    %6210 = vmatpush1.bf16.msra.mxu0 %v6020
    %6211 = vmatprep.subr.bf16.mxu0 0
    %6212 = vmatpush2.bf16.msra.mxu0 0
    %6213 = vmatprep.subr.bf16.mxu0 0
    %6214 = vmatpush2.bf16.msra.mxu0 0
    %6215 = vmatprep.subr.bf16.mxu0 0
    %6216 = vmatpush2.bf16.msra.mxu0 0
    %6217 = vmatprep.subr.bf16.mxu0 0
    %6218 = vmatpush2.bf16.msra.mxu0 0
    %6219 = vmatprep.subr.bf16.mxu0 0
    %6220 = vmatpush2.bf16.msra.mxu0 0
    %6221 = vmatprep.subr.bf16.mxu0 0
    %6222 = vmatpush2.bf16.msra.mxu0 0
    %6223 = vmatprep.subr.bf16.mxu0 0
    %6224 = vmatpush2.bf16.msra.mxu0 0
    %6225 = vmatprep.subr.bf16.mxu0 0
    %6226 = vmatpush2.bf16.msra.mxu0 0
    %6227 = vmatprep.mubr.bf16.mxu0 0
    %6228 = vmatmul.mubr.bf16.gmra.mxu0 %v6029
    %v6229 = vpop.f32.mrf.mxu0
    %v6230 = vadd.f32 0.0, %v6229
    %v6231 = vpop.f32.mrf.mxu0
    %v6232 = vadd.f32 0.0, %v6231
    %v6233 = vpop.f32.mrf.mxu0
    %v6234 = vpop.f32.mrf.mxu0
    %6235 = vdwg.mxu0
    %6236 = vmatprep.subr.bf16.mxu0 0
    %6237 = vmatpush1.bf16.msra.mxu0 0
    %6238 = vmatprep.subr.bf16.mxu0 0
    %6239 = vmatpush1.bf16.msra.mxu0 0
    %6240 = vmatprep.subr.bf16.mxu0 0
    %6241 = vmatpush1.bf16.msra.mxu0 0
    %6242 = vmatprep.subr.bf16.mxu0 0
    %6243 = vmatpush1.bf16.msra.mxu0 0
    %6244 = vmatprep.subr.bf16.mxu0 0
    %6245 = vmatpush1.bf16.msra.mxu0 0
    %6246 = vmatprep.subr.bf16.mxu0 0
    %6247 = vmatpush1.bf16.msra.mxu0 0
    %6248 = vmatprep.subr.bf16.mxu0 0
    %6249 = vmatpush1.bf16.msra.mxu0 0
    %6250 = vmatprep.subr.bf16.mxu0 %v6023
    %6251 = vmatpush1.bf16.msra.mxu0 %v6022
    %6252 = vmatprep.subr.bf16.mxu0 0
    %6253 = vmatpush2.bf16.msra.mxu0 0
    %6254 = vmatprep.subr.bf16.mxu0 0
    %6255 = vmatpush2.bf16.msra.mxu0 0
    %6256 = vmatprep.subr.bf16.mxu0 0
    %6257 = vmatpush2.bf16.msra.mxu0 0
    %6258 = vmatprep.subr.bf16.mxu0 0
    %6259 = vmatpush2.bf16.msra.mxu0 0
    %6260 = vmatprep.subr.bf16.mxu0 0
    %6261 = vmatpush2.bf16.msra.mxu0 0
    %6262 = vmatprep.subr.bf16.mxu0 0
    %6263 = vmatpush2.bf16.msra.mxu0 0
    %6264 = vmatprep.subr.bf16.mxu0 0
    %6265 = vmatpush2.bf16.msra.mxu0 0
    %6266 = vmatprep.subr.bf16.mxu0 0
    %6267 = vmatpush2.bf16.msra.mxu0 0
    %6268 = vmatprep.mubr.bf16.mxu0 0
    %6269 = vmatmul.mubr.bf16.gmra.mxu0 %v6029
    %v6270 = vpop.f32.mrf.mxu0
    %v6271 = vadd.f32 0.0, %v6270
    %v6272 = vpop.f32.mrf.mxu0
    %v6273 = vadd.f32 0.0, %v6272
    %v6274 = vpop.f32.mrf.mxu0
    %v6275 = vpop.f32.mrf.mxu0
    %6276 = vdwg.mxu0
    %6277 = vmatprep.subr.bf16.mxu0 0
    %6278 = vmatpush1.bf16.msra.mxu0 0
    %6279 = vmatprep.subr.bf16.mxu0 0
    %6280 = vmatpush1.bf16.msra.mxu0 0
    %6281 = vmatprep.subr.bf16.mxu0 0
    %6282 = vmatpush1.bf16.msra.mxu0 0
    %6283 = vmatprep.subr.bf16.mxu0 0
    %6284 = vmatpush1.bf16.msra.mxu0 0
    %6285 = vmatprep.subr.bf16.mxu0 0
    %6286 = vmatpush1.bf16.msra.mxu0 0
    %6287 = vmatprep.subr.bf16.mxu0 0
    %6288 = vmatpush1.bf16.msra.mxu0 0
    %6289 = vmatprep.subr.bf16.mxu0 0
    %6290 = vmatpush1.bf16.msra.mxu0 0
    %6291 = vmatprep.subr.bf16.mxu0 %v6025
    %6292 = vmatpush1.bf16.msra.mxu0 %v6024
    %6293 = vmatprep.subr.bf16.mxu0 0
    %6294 = vmatpush2.bf16.msra.mxu0 0
    %6295 = vmatprep.subr.bf16.mxu0 0
    %6296 = vmatpush2.bf16.msra.mxu0 0
    %6297 = vmatprep.subr.bf16.mxu0 0
    %6298 = vmatpush2.bf16.msra.mxu0 0
    %6299 = vmatprep.subr.bf16.mxu0 0
    %6300 = vmatpush2.bf16.msra.mxu0 0
    %6301 = vmatprep.subr.bf16.mxu0 0
    %6302 = vmatpush2.bf16.msra.mxu0 0
    %6303 = vmatprep.subr.bf16.mxu0 0
    %6304 = vmatpush2.bf16.msra.mxu0 0
    %6305 = vmatprep.subr.bf16.mxu0 0
    %6306 = vmatpush2.bf16.msra.mxu0 0
    %6307 = vmatprep.subr.bf16.mxu0 0
    %6308 = vmatpush2.bf16.msra.mxu0 0
    %6309 = vmatprep.mubr.bf16.mxu0 0
    %6310 = vmatmul.mubr.bf16.gmra.mxu0 %v6029
    %v6311 = vpop.f32.mrf.mxu0
    %v6312 = vadd.f32 0.0, %v6311
    %v6313 = vpop.f32.mrf.mxu0
    %v6314 = vadd.f32 0.0, %v6313
    %v6315 = vpop.f32.mrf.mxu0
    %v6316 = vpop.f32.mrf.mxu0
    %6317 = vdwg.mxu0
    %6318 = vmatprep.subr.bf16.mxu0 0
    %6319 = vmatpush1.bf16.msra.mxu0 0
    %6320 = vmatprep.subr.bf16.mxu0 0
    %6321 = vmatpush1.bf16.msra.mxu0 0
    %6322 = vmatprep.subr.bf16.mxu0 0
    %6323 = vmatpush1.bf16.msra.mxu0 0
    %6324 = vmatprep.subr.bf16.mxu0 0
    %6325 = vmatpush1.bf16.msra.mxu0 0
    %6326 = vmatprep.subr.bf16.mxu0 0
    %6327 = vmatpush1.bf16.msra.mxu0 0
    %6328 = vmatprep.subr.bf16.mxu0 0
    %6329 = vmatpush1.bf16.msra.mxu0 0
    %6330 = vmatprep.subr.bf16.mxu0 0
    %6331 = vmatpush1.bf16.msra.mxu0 0
    %6332 = vmatprep.subr.bf16.mxu0 %v6027
    %6333 = vmatpush1.bf16.msra.mxu0 %v6026
    %6334 = vmatprep.subr.bf16.mxu0 0
    %6335 = vmatpush2.bf16.msra.mxu0 0
    %6336 = vmatprep.subr.bf16.mxu0 0
    %6337 = vmatpush2.bf16.msra.mxu0 0
    %6338 = vmatprep.subr.bf16.mxu0 0
    %6339 = vmatpush2.bf16.msra.mxu0 0
    %6340 = vmatprep.subr.bf16.mxu0 0
    %6341 = vmatpush2.bf16.msra.mxu0 0
    %6342 = vmatprep.subr.bf16.mxu0 0
    %6343 = vmatpush2.bf16.msra.mxu0 0
    %6344 = vmatprep.subr.bf16.mxu0 0
    %6345 = vmatpush2.bf16.msra.mxu0 0
    %6346 = vmatprep.subr.bf16.mxu0 0
    %6347 = vmatpush2.bf16.msra.mxu0 0
    %6348 = vmatprep.subr.bf16.mxu0 0
    %6349 = vmatpush2.bf16.msra.mxu0 0
    %6350 = vmatprep.mubr.bf16.mxu0 0
    %6351 = vmatmul.mubr.bf16.gmra.mxu0 %v6029
    %v6352 = vpop.f32.mrf.mxu0
    %v6353 = vadd.f32 0.0, %v6352
    %v6354 = vpop.f32.mrf.mxu0
    %v6355 = vadd.f32 0.0, %v6354
    %v6356 = vpop.f32.mrf.mxu0
    %v6357 = vpop.f32.mrf.mxu0
    %6358 = vdwg.mxu0
    %v6359 = vsub.f32 %v5570, %v5532
    %v6360 = vsub.f32 %v5577, %v5533
    %v6361 = vsub.f32 %v5584, %v5534
    %v6362 = vsub.f32 %v5591, %v5535
    %v6363 = vsub.f32 %v5598, %v5536
    %v6364 = vsub.f32 %v5605, %v5537
    %v6365 = vsub.f32 %v5612, %v5538
    %v6366 = vsub.f32 %v5619, %v5539
    %v6367 = vsub.f32 %v5626, %v5540
    %v6368 = vsub.f32 %v5633, %v5541
    %v6369 = vsub.f32 %v5640, %v5542
    %v6370 = vsub.f32 %v5647, %v5543
    %v6371 = vsub.f32 %v5654, %v5544
    %v6372 = vsub.f32 %v5661, %v5545
    %v6373 = vsub.f32 %v5668, %v5546
    %v6374 = vsub.f32 %v5675, %v5547
    %v6375 = vsub.f32 %v5570, %v5548
    %v6376 = vsub.f32 %v5577, %v5549
    %v6377 = vsub.f32 %v5584, %v5550
    %v6378 = vsub.f32 %v5591, %v5551
    %v6379 = vsub.f32 %v5598, %v5552
    %v6380 = vsub.f32 %v5605, %v5553
    %v6381 = vsub.f32 %v5612, %v5554
    %v6382 = vsub.f32 %v5619, %v5555
    %v6383 = vsub.f32 %v5626, %v5556
    %v6384 = vsub.f32 %v5633, %v5557
    %v6385 = vsub.f32 %v5640, %v5558
    %v6386 = vsub.f32 %v5647, %v5559
    %v6387 = vsub.f32 %v5654, %v5560
    %v6388 = vsub.f32 %v5661, %v5561
    %v6389 = vsub.f32 %v5668, %v5562
    %v6390 = vsub.f32 %v5675, %v5563
    %v6391 = vmul.f32 %v6359, 1.442695
    %v6392 = vpow.pop %v6391
    %v6393 = vmul.f32 %v6360, 1.442695
    %v6394 = vpow.pop %v6393
    %v6395 = vmul.f32 %v6361, 1.442695
    %v6396 = vpow.pop %v6395
    %v6397 = vmul.f32 %v6362, 1.442695
    %v6398 = vpow.pop %v6397
    %v6399 = vmul.f32 %v6363, 1.442695
    %v6400 = vpow.pop %v6399
    %v6401 = vmul.f32 %v6364, 1.442695
    %v6402 = vpow.pop %v6401
    %v6403 = vmul.f32 %v6365, 1.442695
    %v6404 = vpow.pop %v6403
    %v6405 = vmul.f32 %v6366, 1.442695
    %v6406 = vpow.pop %v6405
    %v6407 = vmul.f32 %v6367, 1.442695
    %v6408 = vpow.pop %v6407
    %v6409 = vmul.f32 %v6368, 1.442695
    %v6410 = vpow.pop %v6409
    %v6411 = vmul.f32 %v6369, 1.442695
    %v6412 = vpow.pop %v6411
    %v6413 = vmul.f32 %v6370, 1.442695
    %v6414 = vpow.pop %v6413
    %v6415 = vmul.f32 %v6371, 1.442695
    %v6416 = vpow.pop %v6415
    %v6417 = vmul.f32 %v6372, 1.442695
    %v6418 = vpow.pop %v6417
    %v6419 = vmul.f32 %v6373, 1.442695
    %v6420 = vpow.pop %v6419
    %v6421 = vmul.f32 %v6374, 1.442695
    %v6422 = vpow.pop %v6421
    %v6423 = vmul.f32 %v6375, 1.442695
    %v6424 = vpow.pop %v6423
    %v6425 = vmul.f32 %v6376, 1.442695
    %v6426 = vpow.pop %v6425
    %v6427 = vmul.f32 %v6377, 1.442695
    %v6428 = vpow.pop %v6427
    %v6429 = vmul.f32 %v6378, 1.442695
    %v6430 = vpow.pop %v6429
    %v6431 = vmul.f32 %v6379, 1.442695
    %v6432 = vpow.pop %v6431
    %v6433 = vmul.f32 %v6380, 1.442695
    %v6434 = vpow.pop %v6433
    %v6435 = vmul.f32 %v6381, 1.442695
    %v6436 = vpow.pop %v6435
    %v6437 = vmul.f32 %v6382, 1.442695
    %v6438 = vpow.pop %v6437
    %v6439 = vmul.f32 %v6383, 1.442695
    %v6440 = vpow.pop %v6439
    %v6441 = vmul.f32 %v6384, 1.442695
    %v6442 = vpow.pop %v6441
    %v6443 = vmul.f32 %v6385, 1.442695
    %v6444 = vpow.pop %v6443
    %v6445 = vmul.f32 %v6386, 1.442695
    %v6446 = vpow.pop %v6445
    %v6447 = vmul.f32 %v6387, 1.442695
    %v6448 = vpow.pop %v6447
    %v6449 = vmul.f32 %v6388, 1.442695
    %v6450 = vpow.pop %v6449
    %v6451 = vmul.f32 %v6389, 1.442695
    %v6452 = vpow.pop %v6451
    %v6453 = vmul.f32 %v6390, 1.442695
    %v6454 = vpow.pop %v6453
    %v6455 = vadd.f32 %v6392, %v6424
    %v6456 = vrot.slane %v6455, 4
    %v6457 = vadd.f32 %v6455, %v6456
    %v6458 = vrot.slane %v6457, 2
    %v6459 = vadd.f32 %v6457, %v6458
    %v6460 = vrot.slane %v6459, 1
    %v6461 = vadd.f32 %v6459, %v6460
    %v6462 = vadd.f32 %v6394, %v6426
    %v6463 = vrot.slane %v6462, 4
    %v6464 = vadd.f32 %v6462, %v6463
    %v6465 = vrot.slane %v6464, 2
    %v6466 = vadd.f32 %v6464, %v6465
    %v6467 = vrot.slane %v6466, 1
    %v6468 = vadd.f32 %v6466, %v6467
    %v6469 = vadd.f32 %v6396, %v6428
    %v6470 = vrot.slane %v6469, 4
    %v6471 = vadd.f32 %v6469, %v6470
    %v6472 = vrot.slane %v6471, 2
    %v6473 = vadd.f32 %v6471, %v6472
    %v6474 = vrot.slane %v6473, 1
    %v6475 = vadd.f32 %v6473, %v6474
    %v6476 = vadd.f32 %v6398, %v6430
    %v6477 = vrot.slane %v6476, 4
    %v6478 = vadd.f32 %v6476, %v6477
    %v6479 = vrot.slane %v6478, 2
    %v6480 = vadd.f32 %v6478, %v6479
    %v6481 = vrot.slane %v6480, 1
    %v6482 = vadd.f32 %v6480, %v6481
    %v6483 = vadd.f32 %v6400, %v6432
    %v6484 = vrot.slane %v6483, 4
    %v6485 = vadd.f32 %v6483, %v6484
    %v6486 = vrot.slane %v6485, 2
    %v6487 = vadd.f32 %v6485, %v6486
    %v6488 = vrot.slane %v6487, 1
    %v6489 = vadd.f32 %v6487, %v6488
    %v6490 = vadd.f32 %v6402, %v6434
    %v6491 = vrot.slane %v6490, 4
    %v6492 = vadd.f32 %v6490, %v6491
    %v6493 = vrot.slane %v6492, 2
    %v6494 = vadd.f32 %v6492, %v6493
    %v6495 = vrot.slane %v6494, 1
    %v6496 = vadd.f32 %v6494, %v6495
    %v6497 = vadd.f32 %v6404, %v6436
    %v6498 = vrot.slane %v6497, 4
    %v6499 = vadd.f32 %v6497, %v6498
    %v6500 = vrot.slane %v6499, 2
    %v6501 = vadd.f32 %v6499, %v6500
    %v6502 = vrot.slane %v6501, 1
    %v6503 = vadd.f32 %v6501, %v6502
    %v6504 = vadd.f32 %v6406, %v6438
    %v6505 = vrot.slane %v6504, 4
    %v6506 = vadd.f32 %v6504, %v6505
    %v6507 = vrot.slane %v6506, 2
    %v6508 = vadd.f32 %v6506, %v6507
    %v6509 = vrot.slane %v6508, 1
    %v6510 = vadd.f32 %v6508, %v6509
    %v6511 = vadd.f32 %v6408, %v6440
    %v6512 = vrot.slane %v6511, 4
    %v6513 = vadd.f32 %v6511, %v6512
    %v6514 = vrot.slane %v6513, 2
    %v6515 = vadd.f32 %v6513, %v6514
    %v6516 = vrot.slane %v6515, 1
    %v6517 = vadd.f32 %v6515, %v6516
    %v6518 = vadd.f32 %v6410, %v6442
    %v6519 = vrot.slane %v6518, 4
    %v6520 = vadd.f32 %v6518, %v6519
    %v6521 = vrot.slane %v6520, 2
    %v6522 = vadd.f32 %v6520, %v6521
    %v6523 = vrot.slane %v6522, 1
    %v6524 = vadd.f32 %v6522, %v6523
    %v6525 = vadd.f32 %v6412, %v6444
    %v6526 = vrot.slane %v6525, 4
    %v6527 = vadd.f32 %v6525, %v6526
    %v6528 = vrot.slane %v6527, 2
    %v6529 = vadd.f32 %v6527, %v6528
    %v6530 = vrot.slane %v6529, 1
    %v6531 = vadd.f32 %v6529, %v6530
    %v6532 = vadd.f32 %v6414, %v6446
    %v6533 = vrot.slane %v6532, 4
    %v6534 = vadd.f32 %v6532, %v6533
    %v6535 = vrot.slane %v6534, 2
    %v6536 = vadd.f32 %v6534, %v6535
    %v6537 = vrot.slane %v6536, 1
    %v6538 = vadd.f32 %v6536, %v6537
    %v6539 = vadd.f32 %v6416, %v6448
    %v6540 = vrot.slane %v6539, 4
    %v6541 = vadd.f32 %v6539, %v6540
    %v6542 = vrot.slane %v6541, 2
    %v6543 = vadd.f32 %v6541, %v6542
    %v6544 = vrot.slane %v6543, 1
    %v6545 = vadd.f32 %v6543, %v6544
    %v6546 = vadd.f32 %v6418, %v6450
    %v6547 = vrot.slane %v6546, 4
    %v6548 = vadd.f32 %v6546, %v6547
    %v6549 = vrot.slane %v6548, 2
    %v6550 = vadd.f32 %v6548, %v6549
    %v6551 = vrot.slane %v6550, 1
    %v6552 = vadd.f32 %v6550, %v6551
    %v6553 = vadd.f32 %v6420, %v6452
    %v6554 = vrot.slane %v6553, 4
    %v6555 = vadd.f32 %v6553, %v6554
    %v6556 = vrot.slane %v6555, 2
    %v6557 = vadd.f32 %v6555, %v6556
    %v6558 = vrot.slane %v6557, 1
    %v6559 = vadd.f32 %v6557, %v6558
    %v6560 = vadd.f32 %v6422, %v6454
    %v6561 = vrot.slane %v6560, 4
    %v6562 = vadd.f32 %v6560, %v6561
    %v6563 = vrot.slane %v6562, 2
    %v6564 = vadd.f32 %v6562, %v6563
    %v6565 = vrot.slane %v6564, 1
    %v6566 = vadd.f32 %v6564, %v6565
    %v6567 = vrcp.pop %v6461
    %v6568 = vmul.f32 1.0, %v6567
    %v6569 = vrcp.pop %v6468
    %v6570 = vmul.f32 1.0, %v6569
    %v6571 = vrcp.pop %v6475
    %v6572 = vmul.f32 1.0, %v6571
    %v6573 = vrcp.pop %v6482
    %v6574 = vmul.f32 1.0, %v6573
    %v6575 = vrcp.pop %v6489
    %v6576 = vmul.f32 1.0, %v6575
    %v6577 = vrcp.pop %v6496
    %v6578 = vmul.f32 1.0, %v6577
    %v6579 = vrcp.pop %v6503
    %v6580 = vmul.f32 1.0, %v6579
    %v6581 = vrcp.pop %v6510
    %v6582 = vmul.f32 1.0, %v6581
    %v6583 = vrcp.pop %v6517
    %v6584 = vmul.f32 1.0, %v6583
    %v6585 = vrcp.pop %v6524
    %v6586 = vmul.f32 1.0, %v6585
    %v6587 = vrcp.pop %v6531
    %v6588 = vmul.f32 1.0, %v6587
    %v6589 = vrcp.pop %v6538
    %v6590 = vmul.f32 1.0, %v6589
    %v6591 = vrcp.pop %v6545
    %v6592 = vmul.f32 1.0, %v6591
    %v6593 = vrcp.pop %v6552
    %v6594 = vmul.f32 1.0, %v6593
    %v6595 = vrcp.pop %v6559
    %v6596 = vmul.f32 1.0, %v6595
    %v6597 = vrcp.pop %v6566
    %v6598 = vmul.f32 1.0, %v6597
    %v6599 = vmul.f32 %v6392, %v6568
    %v6600 = vmul.f32 %v6394, %v6570
    %v6601 = vmul.f32 %v6396, %v6572
    %v6602 = vmul.f32 %v6398, %v6574
    %v6603 = vmul.f32 %v6400, %v6576
    %v6604 = vmul.f32 %v6402, %v6578
    %v6605 = vmul.f32 %v6404, %v6580
    %v6606 = vmul.f32 %v6406, %v6582
    %v6607 = vmul.f32 %v6408, %v6584
    %v6608 = vmul.f32 %v6410, %v6586
    %v6609 = vmul.f32 %v6412, %v6588
    %v6610 = vmul.f32 %v6414, %v6590
    %v6611 = vmul.f32 %v6416, %v6592
    %v6612 = vmul.f32 %v6418, %v6594
    %v6613 = vmul.f32 %v6420, %v6596
    %v6614 = vmul.f32 %v6422, %v6598
    %v6615 = vmul.f32 %v6424, %v6568
    %v6616 = vmul.f32 %v6426, %v6570
    %v6617 = vmul.f32 %v6428, %v6572
    %v6618 = vmul.f32 %v6430, %v6574
    %v6619 = vmul.f32 %v6432, %v6576
    %v6620 = vmul.f32 %v6434, %v6578
    %v6621 = vmul.f32 %v6436, %v6580
    %v6622 = vmul.f32 %v6438, %v6582
    %v6623 = vmul.f32 %v6440, %v6584
    %v6624 = vmul.f32 %v6442, %v6586
    %v6625 = vmul.f32 %v6444, %v6588
    %v6626 = vmul.f32 %v6446, %v6590
    %v6627 = vmul.f32 %v6448, %v6592
    %v6628 = vmul.f32 %v6450, %v6594
    %v6629 = vmul.f32 %v6452, %v6596
    %v6630 = vmul.f32 %v6454, %v6598
    %v6631 = vsub.f32 %v4858, %v6066
    %v6632 = vsub.f32 %v4859, %v6068
    %v6633 = vsub.f32 %v4860, %v6107
    %v6634 = vsub.f32 %v4861, %v6109
    %v6635 = vsub.f32 %v4862, %v6148
    %v6636 = vsub.f32 %v4863, %v6150
    %v6637 = vsub.f32 %v4864, %v6189
    %v6638 = vsub.f32 %v4865, %v6191
    %v6639 = vsub.f32 %v4866, %v6230
    %v6640 = vsub.f32 %v4867, %v6232
    %v6641 = vsub.f32 %v4868, %v6271
    %v6642 = vsub.f32 %v4869, %v6273
    %v6643 = vsub.f32 %v4870, %v6312
    %v6644 = vsub.f32 %v4871, %v6314
    %v6645 = vsub.f32 %v4872, %v6353
    %v6646 = vsub.f32 %v4873, %v6355
    %v6647 = vmul.f32 %v6631, %v6631
    %v6648 = vmul.f32 %v6632, %v6632
    %v6649 = vmul.f32 %v6633, %v6633
    %v6650 = vmul.f32 %v6634, %v6634
    %v6651 = vmul.f32 %v6635, %v6635
    %v6652 = vmul.f32 %v6636, %v6636
    %v6653 = vmul.f32 %v6637, %v6637
    %v6654 = vmul.f32 %v6638, %v6638
    %v6655 = vmul.f32 %v6639, %v6639
    %v6656 = vmul.f32 %v6640, %v6640
    %v6657 = vmul.f32 %v6641, %v6641
    %v6658 = vmul.f32 %v6642, %v6642
    %v6659 = vmul.f32 %v6643, %v6643
    %v6660 = vmul.f32 %v6644, %v6644
    %v6661 = vmul.f32 %v6645, %v6645
    %v6662 = vmul.f32 %v6646, %v6646
    %v6663 = vrot.slane %v6647, 4
    %v6664 = vadd.f32 %v6647, %v6663
    %v6665 = vrot.slane %v6664, 2
    %v6666 = vadd.f32 %v6664, %v6665
    %v6667 = vrot.slane %v6666, 1
    %v6668 = vadd.f32 %v6666, %v6667
    %v6669 = vrot.slane %v6648, 4
    %v6670 = vadd.f32 %v6648, %v6669
    %v6671 = vrot.slane %v6670, 2
    %v6672 = vadd.f32 %v6670, %v6671
    %v6673 = vrot.slane %v6672, 1
    %v6674 = vadd.f32 %v6672, %v6673
    %v6675 = vrot.slane %v6649, 4
    %v6676 = vadd.f32 %v6649, %v6675
    %v6677 = vrot.slane %v6676, 2
    %v6678 = vadd.f32 %v6676, %v6677
    %v6679 = vrot.slane %v6678, 1
    %v6680 = vadd.f32 %v6678, %v6679
    %v6681 = vrot.slane %v6650, 4
    %v6682 = vadd.f32 %v6650, %v6681
    %v6683 = vrot.slane %v6682, 2
    %v6684 = vadd.f32 %v6682, %v6683
    %v6685 = vrot.slane %v6684, 1
    %v6686 = vadd.f32 %v6684, %v6685
    %v6687 = vrot.slane %v6651, 4
    %v6688 = vadd.f32 %v6651, %v6687
    %v6689 = vrot.slane %v6688, 2
    %v6690 = vadd.f32 %v6688, %v6689
    %v6691 = vrot.slane %v6690, 1
    %v6692 = vadd.f32 %v6690, %v6691
    %v6693 = vrot.slane %v6652, 4
    %v6694 = vadd.f32 %v6652, %v6693
    %v6695 = vrot.slane %v6694, 2
    %v6696 = vadd.f32 %v6694, %v6695
    %v6697 = vrot.slane %v6696, 1
    %v6698 = vadd.f32 %v6696, %v6697
    %v6699 = vrot.slane %v6653, 4
    %v6700 = vadd.f32 %v6653, %v6699
    %v6701 = vrot.slane %v6700, 2
    %v6702 = vadd.f32 %v6700, %v6701
    %v6703 = vrot.slane %v6702, 1
    %v6704 = vadd.f32 %v6702, %v6703
    %v6705 = vrot.slane %v6654, 4
    %v6706 = vadd.f32 %v6654, %v6705
    %v6707 = vrot.slane %v6706, 2
    %v6708 = vadd.f32 %v6706, %v6707
    %v6709 = vrot.slane %v6708, 1
    %v6710 = vadd.f32 %v6708, %v6709
    %v6711 = vrot.slane %v6655, 4
    %v6712 = vadd.f32 %v6655, %v6711
    %v6713 = vrot.slane %v6712, 2
    %v6714 = vadd.f32 %v6712, %v6713
    %v6715 = vrot.slane %v6714, 1
    %v6716 = vadd.f32 %v6714, %v6715
    %v6717 = vrot.slane %v6656, 4
    %v6718 = vadd.f32 %v6656, %v6717
    %v6719 = vrot.slane %v6718, 2
    %v6720 = vadd.f32 %v6718, %v6719
    %v6721 = vrot.slane %v6720, 1
    %v6722 = vadd.f32 %v6720, %v6721
    %v6723 = vrot.slane %v6657, 4
    %v6724 = vadd.f32 %v6657, %v6723
    %v6725 = vrot.slane %v6724, 2
    %v6726 = vadd.f32 %v6724, %v6725
    %v6727 = vrot.slane %v6726, 1
    %v6728 = vadd.f32 %v6726, %v6727
    %v6729 = vrot.slane %v6658, 4
    %v6730 = vadd.f32 %v6658, %v6729
    %v6731 = vrot.slane %v6730, 2
    %v6732 = vadd.f32 %v6730, %v6731
    %v6733 = vrot.slane %v6732, 1
    %v6734 = vadd.f32 %v6732, %v6733
    %v6735 = vrot.slane %v6659, 4
    %v6736 = vadd.f32 %v6659, %v6735
    %v6737 = vrot.slane %v6736, 2
    %v6738 = vadd.f32 %v6736, %v6737
    %v6739 = vrot.slane %v6738, 1
    %v6740 = vadd.f32 %v6738, %v6739
    %v6741 = vrot.slane %v6660, 4
    %v6742 = vadd.f32 %v6660, %v6741
    %v6743 = vrot.slane %v6742, 2
    %v6744 = vadd.f32 %v6742, %v6743
    %v6745 = vrot.slane %v6744, 1
    %v6746 = vadd.f32 %v6744, %v6745
    %v6747 = vrot.slane %v6661, 4
    %v6748 = vadd.f32 %v6661, %v6747
    %v6749 = vrot.slane %v6748, 2
    %v6750 = vadd.f32 %v6748, %v6749
    %v6751 = vrot.slane %v6750, 1
    %v6752 = vadd.f32 %v6750, %v6751
    %v6753 = vrot.slane %v6662, 4
    %v6754 = vadd.f32 %v6662, %v6753
    %v6755 = vrot.slane %v6754, 2
    %v6756 = vadd.f32 %v6754, %v6755
    %v6757 = vrot.slane %v6756, 1
    %v6758 = vadd.f32 %v6756, %v6757
    %v6759 = vmul.f32 %v6668, 0.1250125
    %v6760 = vmul.f32 %v6674, 0.1250125
    %v6761 = vmul.f32 %v6680, 0.1250125
    %v6762 = vmul.f32 %v6686, 0.1250125
    %v6763 = vmul.f32 %v6692, 0.1250125
    %v6764 = vmul.f32 %v6698, 0.1250125
    %v6765 = vmul.f32 %v6704, 0.1250125
    %v6766 = vmul.f32 %v6710, 0.1250125
    %v6767 = vmul.f32 %v6716, 0.1250125
    %v6768 = vmul.f32 %v6722, 0.1250125
    %v6769 = vmul.f32 %v6728, 0.1250125
    %v6770 = vmul.f32 %v6734, 0.1250125
    %v6771 = vmul.f32 %v6740, 0.1250125
    %v6772 = vmul.f32 %v6746, 0.1250125
    %v6773 = vmul.f32 %v6752, 0.1250125
    %v6774 = vmul.f32 %v6758, 0.1250125
    %v6775 = vadd.f32 %v5002, %v6759
    %v6776 = vadd.f32 %v5003, %v6760
    %v6777 = vadd.f32 %v5004, %v6761
    %v6778 = vadd.f32 %v5005, %v6762
    %v6779 = vadd.f32 %v5006, %v6763
    %v6780 = vadd.f32 %v5007, %v6764
    %v6781 = vadd.f32 %v5008, %v6765
    %v6782 = vadd.f32 %v5009, %v6766
    %v6783 = vadd.f32 %v5010, %v6767
    %v6784 = vadd.f32 %v5011, %v6768
    %v6785 = vadd.f32 %v5012, %v6769
    %v6786 = vadd.f32 %v5013, %v6770
    %v6787 = vadd.f32 %v5014, %v6771
    %v6788 = vadd.f32 %v5015, %v6772
    %v6789 = vadd.f32 %v5016, %v6773
    %v6790 = vadd.f32 %v5017, %v6774
    %6791 = vst [vmem:[#allocation6 + $0x200] sm:$0xff] %v6599
    %6792 = vst [vmem:[#allocation6 + $0x208] sm:$0xff] %v6600
    %6793 = vst [vmem:[#allocation6 + $0x210] sm:$0xff] %v6601
    %6794 = vst [vmem:[#allocation6 + $0x218] sm:$0xff] %v6602
    %6795 = vst [vmem:[#allocation6 + $0x220] sm:$0xff] %v6603
    %6796 = vst [vmem:[#allocation6 + $0x228] sm:$0xff] %v6604
    %6797 = vst [vmem:[#allocation6 + $0x230] sm:$0xff] %v6605
    %6798 = vst [vmem:[#allocation6 + $0x238] sm:$0xff] %v6606
    %6799 = vst [vmem:[#allocation6 + $0x240] sm:$0xff] %v6607
    %6800 = vst [vmem:[#allocation6 + $0x248] sm:$0xff] %v6608
    %6801 = vst [vmem:[#allocation6 + $0x250] sm:$0xff] %v6609
    %6802 = vst [vmem:[#allocation6 + $0x258] sm:$0xff] %v6610
    %6803 = vst [vmem:[#allocation6 + $0x260] sm:$0xff] %v6611
    %6804 = vst [vmem:[#allocation6 + $0x268] sm:$0xff] %v6612
    %6805 = vst [vmem:[#allocation6 + $0x270] sm:$0xff] %v6613
    %6806 = vst [vmem:[#allocation6 + $0x278] sm:$0xff] %v6614
    %6807 = vst [vmem:[#allocation6 + $0x280] sm:$0xff] %v6615
    %6808 = vst [vmem:[#allocation6 + $0x288] sm:$0xff] %v6616
    %6809 = vst [vmem:[#allocation6 + $0x290] sm:$0xff] %v6617
    %6810 = vst [vmem:[#allocation6 + $0x298] sm:$0xff] %v6618
    %6811 = vst [vmem:[#allocation6 + $0x2a0] sm:$0xff] %v6619
    %6812 = vst [vmem:[#allocation6 + $0x2a8] sm:$0xff] %v6620
    %6813 = vst [vmem:[#allocation6 + $0x2b0] sm:$0xff] %v6621
    %6814 = vst [vmem:[#allocation6 + $0x2b8] sm:$0xff] %v6622
    %6815 = vst [vmem:[#allocation6 + $0x2c0] sm:$0xff] %v6623
    %6816 = vst [vmem:[#allocation6 + $0x2c8] sm:$0xff] %v6624
    %6817 = vst [vmem:[#allocation6 + $0x2d0] sm:$0xff] %v6625
    %6818 = vst [vmem:[#allocation6 + $0x2d8] sm:$0xff] %v6626
    %6819 = vst [vmem:[#allocation6 + $0x2e0] sm:$0xff] %v6627
    %6820 = vst [vmem:[#allocation6 + $0x2e8] sm:$0xff] %v6628
    %6821 = vst [vmem:[#allocation6 + $0x2f0] sm:$0xff] %v6629
    %6822 = vst [vmem:[#allocation6 + $0x2f8] sm:$0xff] %v6630
    %v6823 = vadd.f32 %v5050, %v6066
    %v6824 = vadd.f32 %v5051, %v6068
    %v6825 = vadd.f32 %v5052, %v6107
    %v6826 = vadd.f32 %v5053, %v6109
    %v6827 = vadd.f32 %v5054, %v6148
    %v6828 = vadd.f32 %v5055, %v6150
    %v6829 = vadd.f32 %v5056, %v6189
    %v6830 = vadd.f32 %v5057, %v6191
    %v6831 = vadd.f32 %v5058, %v6230
    %v6832 = vadd.f32 %v5059, %v6232
    %v6833 = vadd.f32 %v5060, %v6271
    %v6834 = vadd.f32 %v5061, %v6273
    %v6835 = vadd.f32 %v5062, %v6312
    %v6836 = vadd.f32 %v5063, %v6314
    %v6837 = vadd.f32 %v5064, %v6353
    %v6838 = vadd.f32 %v5065, %v6355
    %s6839 = scalar_lea.vmem %s14, 24
    %v6840 = vld [vmem:[%s6839] sm:$0xf]
    %v6841 = vld [vmem:[%s6839 + $0x4] sm:$0xf]
    %s6842 = scalar_lea.vmem %s15, 12
    %v6843 = vld [vmem:[%s6842] sm:$0xf]
    %s6844 = scalar_lea.vmem %s16, 48
    %v6845 = vld [vmem:[%s6844] sm:$0xff]
    %v6846 = vld [vmem:[%s6844 + $0x8] sm:$0xff]
    %v6847 = vpack.c.bf16 %v6631, %v6631
    %v6848 = vpack.c.bf16 %v6632, %v6632
    %v6849 = vpack.c.bf16 %v6633, %v6633
    %v6850 = vpack.c.bf16 %v6634, %v6634
    %v6851 = vpack.c.bf16 %v6635, %v6635
    %v6852 = vpack.c.bf16 %v6636, %v6636
    %v6853 = vpack.c.bf16 %v6637, %v6637
    %v6854 = vpack.c.bf16 %v6638, %v6638
    %v6855 = vpack.c.bf16 %v6639, %v6639
    %v6856 = vpack.c.bf16 %v6640, %v6640
    %v6857 = vpack.c.bf16 %v6641, %v6641
    %v6858 = vpack.c.bf16 %v6642, %v6642
    %v6859 = vpack.c.bf16 %v6643, %v6643
    %v6860 = vpack.c.bf16 %v6644, %v6644
    %v6861 = vpack.c.bf16 %v6645, %v6645
    %v6862 = vpack.c.bf16 %v6646, %v6646
    %v6865 = vunpack.c.l.b16 %v6840
    %v6866 = vunpack.c.l.b16 %v6841
    %v6867 = vpack.c.b16 %v6866, %v6865
    %v6869 = vsel %vm1545, %v6867, 0
    %v6872 = vsel %vm741, %v6847, 0
    %v6875 = vsel %vm741, %v6848, 0
    %v6878 = vsel %vm741, %v6849, 0
    %v6881 = vsel %vm741, %v6850, 0
    %v6884 = vsel %vm741, %v6851, 0
    %v6887 = vsel %vm741, %v6852, 0
    %v6890 = vsel %vm741, %v6853, 0
    %v6893 = vsel %vm741, %v6854, 0
    %v6896 = vsel %vm741, %v6855, 0
    %v6899 = vsel %vm741, %v6856, 0
    %v6902 = vsel %vm741, %v6857, 0
    %v6905 = vsel %vm741, %v6858, 0
    %v6908 = vsel %vm741, %v6859, 0
    %v6911 = vsel %vm741, %v6860, 0
    %v6914 = vsel %vm741, %v6861, 0
    %v6917 = vsel %vm741, %v6862, 0
    %6919 = vmatprep.subr.bf16.mxu0 0
    %6920 = vmatpush1.bf16.msra.mxu0 0
    %6921 = vmatprep.subr.bf16.mxu0 0
    %6922 = vmatpush1.bf16.msra.mxu0 0
    %6923 = vmatprep.subr.bf16.mxu0 0
    %6924 = vmatpush1.bf16.msra.mxu0 0
    %6925 = vmatprep.subr.bf16.mxu0 0
    %6926 = vmatpush1.bf16.msra.mxu0 0
    %6927 = vmatprep.subr.bf16.mxu0 0
    %6928 = vmatpush1.bf16.msra.mxu0 0
    %6929 = vmatprep.subr.bf16.mxu0 0
    %6930 = vmatpush1.bf16.msra.mxu0 0
    %6931 = vmatprep.subr.bf16.mxu0 0
    %6932 = vmatpush1.bf16.msra.mxu0 0
    %6933 = vmatprep.subr.bf16.mxu0 %v6875
    %6934 = vmatpush1.bf16.msra.mxu0 %v6872
    %6935 = vmatprep.subr.bf16.mxu0 0
    %6936 = vmatpush2.bf16.msra.mxu0 0
    %6937 = vmatprep.subr.bf16.mxu0 0
    %6938 = vmatpush2.bf16.msra.mxu0 0
    %6939 = vmatprep.subr.bf16.mxu0 0
    %6940 = vmatpush2.bf16.msra.mxu0 0
    %6941 = vmatprep.subr.bf16.mxu0 0
    %6942 = vmatpush2.bf16.msra.mxu0 0
    %6943 = vmatprep.subr.bf16.mxu0 0
    %6944 = vmatpush2.bf16.msra.mxu0 0
    %6945 = vmatprep.subr.bf16.mxu0 0
    %6946 = vmatpush2.bf16.msra.mxu0 0
    %6947 = vmatprep.subr.bf16.mxu0 0
    %6948 = vmatpush2.bf16.msra.mxu0 0
    %6949 = vmatprep.subr.bf16.mxu0 0
    %6950 = vmatpush2.bf16.msra.mxu0 0
    %6951 = vmatprep.mubr.bf16.mxu0 0
    %6952 = vmatmul.mubr.bf16.gmra.mxu0 %v6869
    %v6953 = vpop.f32.mrf.mxu0
    %v6954 = vadd.f32 0.0, %v6953
    %v6955 = vpop.f32.mrf.mxu0
    %v6956 = vadd.f32 0.0, %v6955
    %v6957 = vpop.f32.mrf.mxu0
    %v6958 = vadd.f32 0.0, %v6957
    %v6959 = vpop.f32.mrf.mxu0
    %v6960 = vadd.f32 0.0, %v6959
    %6961 = vdwg.mxu0
    %6962 = vmatprep.subr.bf16.mxu0 0
    %6963 = vmatpush1.bf16.msra.mxu0 0
    %6964 = vmatprep.subr.bf16.mxu0 0
    %6965 = vmatpush1.bf16.msra.mxu0 0
    %6966 = vmatprep.subr.bf16.mxu0 0
    %6967 = vmatpush1.bf16.msra.mxu0 0
    %6968 = vmatprep.subr.bf16.mxu0 0
    %6969 = vmatpush1.bf16.msra.mxu0 0
    %6970 = vmatprep.subr.bf16.mxu0 0
    %6971 = vmatpush1.bf16.msra.mxu0 0
    %6972 = vmatprep.subr.bf16.mxu0 0
    %6973 = vmatpush1.bf16.msra.mxu0 0
    %6974 = vmatprep.subr.bf16.mxu0 0
    %6975 = vmatpush1.bf16.msra.mxu0 0
    %6976 = vmatprep.subr.bf16.mxu0 %v6881
    %6977 = vmatpush1.bf16.msra.mxu0 %v6878
    %6978 = vmatprep.subr.bf16.mxu0 0
    %6979 = vmatpush2.bf16.msra.mxu0 0
    %6980 = vmatprep.subr.bf16.mxu0 0
    %6981 = vmatpush2.bf16.msra.mxu0 0
    %6982 = vmatprep.subr.bf16.mxu0 0
    %6983 = vmatpush2.bf16.msra.mxu0 0
    %6984 = vmatprep.subr.bf16.mxu0 0
    %6985 = vmatpush2.bf16.msra.mxu0 0
    %6986 = vmatprep.subr.bf16.mxu0 0
    %6987 = vmatpush2.bf16.msra.mxu0 0
    %6988 = vmatprep.subr.bf16.mxu0 0
    %6989 = vmatpush2.bf16.msra.mxu0 0
    %6990 = vmatprep.subr.bf16.mxu0 0
    %6991 = vmatpush2.bf16.msra.mxu0 0
    %6992 = vmatprep.subr.bf16.mxu0 0
    %6993 = vmatpush2.bf16.msra.mxu0 0
    %6994 = vmatprep.mubr.bf16.mxu0 0
    %6995 = vmatmul.mubr.bf16.gmra.mxu0 %v6869
    %v6996 = vpop.f32.mrf.mxu0
    %v6997 = vadd.f32 0.0, %v6996
    %v6998 = vpop.f32.mrf.mxu0
    %v6999 = vadd.f32 0.0, %v6998
    %v7000 = vpop.f32.mrf.mxu0
    %v7001 = vadd.f32 0.0, %v7000
    %v7002 = vpop.f32.mrf.mxu0
    %v7003 = vadd.f32 0.0, %v7002
    %7004 = vdwg.mxu0
    %7005 = vmatprep.subr.bf16.mxu0 0
    %7006 = vmatpush1.bf16.msra.mxu0 0
    %7007 = vmatprep.subr.bf16.mxu0 0
    %7008 = vmatpush1.bf16.msra.mxu0 0
    %7009 = vmatprep.subr.bf16.mxu0 0
    %7010 = vmatpush1.bf16.msra.mxu0 0
    %7011 = vmatprep.subr.bf16.mxu0 0
    %7012 = vmatpush1.bf16.msra.mxu0 0
    %7013 = vmatprep.subr.bf16.mxu0 0
    %7014 = vmatpush1.bf16.msra.mxu0 0
    %7015 = vmatprep.subr.bf16.mxu0 0
    %7016 = vmatpush1.bf16.msra.mxu0 0
    %7017 = vmatprep.subr.bf16.mxu0 0
    %7018 = vmatpush1.bf16.msra.mxu0 0
    %7019 = vmatprep.subr.bf16.mxu0 %v6887
    %7020 = vmatpush1.bf16.msra.mxu0 %v6884
    %7021 = vmatprep.subr.bf16.mxu0 0
    %7022 = vmatpush2.bf16.msra.mxu0 0
    %7023 = vmatprep.subr.bf16.mxu0 0
    %7024 = vmatpush2.bf16.msra.mxu0 0
    %7025 = vmatprep.subr.bf16.mxu0 0
    %7026 = vmatpush2.bf16.msra.mxu0 0
    %7027 = vmatprep.subr.bf16.mxu0 0
    %7028 = vmatpush2.bf16.msra.mxu0 0
    %7029 = vmatprep.subr.bf16.mxu0 0
    %7030 = vmatpush2.bf16.msra.mxu0 0
    %7031 = vmatprep.subr.bf16.mxu0 0
    %7032 = vmatpush2.bf16.msra.mxu0 0
    %7033 = vmatprep.subr.bf16.mxu0 0
    %7034 = vmatpush2.bf16.msra.mxu0 0
    %7035 = vmatprep.subr.bf16.mxu0 0
    %7036 = vmatpush2.bf16.msra.mxu0 0
    %7037 = vmatprep.mubr.bf16.mxu0 0
    %7038 = vmatmul.mubr.bf16.gmra.mxu0 %v6869
    %v7039 = vpop.f32.mrf.mxu0
    %v7040 = vadd.f32 0.0, %v7039
    %v7041 = vpop.f32.mrf.mxu0
    %v7042 = vadd.f32 0.0, %v7041
    %v7043 = vpop.f32.mrf.mxu0
    %v7044 = vadd.f32 0.0, %v7043
    %v7045 = vpop.f32.mrf.mxu0
    %v7046 = vadd.f32 0.0, %v7045
    %7047 = vdwg.mxu0
    %7048 = vmatprep.subr.bf16.mxu0 0
    %7049 = vmatpush1.bf16.msra.mxu0 0
    %7050 = vmatprep.subr.bf16.mxu0 0
    %7051 = vmatpush1.bf16.msra.mxu0 0
    %7052 = vmatprep.subr.bf16.mxu0 0
    %7053 = vmatpush1.bf16.msra.mxu0 0
    %7054 = vmatprep.subr.bf16.mxu0 0
    %7055 = vmatpush1.bf16.msra.mxu0 0
    %7056 = vmatprep.subr.bf16.mxu0 0
    %7057 = vmatpush1.bf16.msra.mxu0 0
    %7058 = vmatprep.subr.bf16.mxu0 0
    %7059 = vmatpush1.bf16.msra.mxu0 0
    %7060 = vmatprep.subr.bf16.mxu0 0
    %7061 = vmatpush1.bf16.msra.mxu0 0
    %7062 = vmatprep.subr.bf16.mxu0 %v6893
    %7063 = vmatpush1.bf16.msra.mxu0 %v6890
    %7064 = vmatprep.subr.bf16.mxu0 0
    %7065 = vmatpush2.bf16.msra.mxu0 0
    %7066 = vmatprep.subr.bf16.mxu0 0
    %7067 = vmatpush2.bf16.msra.mxu0 0
    %7068 = vmatprep.subr.bf16.mxu0 0
    %7069 = vmatpush2.bf16.msra.mxu0 0
    %7070 = vmatprep.subr.bf16.mxu0 0
    %7071 = vmatpush2.bf16.msra.mxu0 0
    %7072 = vmatprep.subr.bf16.mxu0 0
    %7073 = vmatpush2.bf16.msra.mxu0 0
    %7074 = vmatprep.subr.bf16.mxu0 0
    %7075 = vmatpush2.bf16.msra.mxu0 0
    %7076 = vmatprep.subr.bf16.mxu0 0
    %7077 = vmatpush2.bf16.msra.mxu0 0
    %7078 = vmatprep.subr.bf16.mxu0 0
    %7079 = vmatpush2.bf16.msra.mxu0 0
    %7080 = vmatprep.mubr.bf16.mxu0 0
    %7081 = vmatmul.mubr.bf16.gmra.mxu0 %v6869
    %v7082 = vpop.f32.mrf.mxu0
    %v7083 = vadd.f32 0.0, %v7082
    %v7084 = vpop.f32.mrf.mxu0
    %v7085 = vadd.f32 0.0, %v7084
    %v7086 = vpop.f32.mrf.mxu0
    %v7087 = vadd.f32 0.0, %v7086
    %v7088 = vpop.f32.mrf.mxu0
    %v7089 = vadd.f32 0.0, %v7088
    %7090 = vdwg.mxu0
    %7091 = vmatprep.subr.bf16.mxu0 0
    %7092 = vmatpush1.bf16.msra.mxu0 0
    %7093 = vmatprep.subr.bf16.mxu0 0
    %7094 = vmatpush1.bf16.msra.mxu0 0
    %7095 = vmatprep.subr.bf16.mxu0 0
    %7096 = vmatpush1.bf16.msra.mxu0 0
    %7097 = vmatprep.subr.bf16.mxu0 0
    %7098 = vmatpush1.bf16.msra.mxu0 0
    %7099 = vmatprep.subr.bf16.mxu0 0
    %7100 = vmatpush1.bf16.msra.mxu0 0
    %7101 = vmatprep.subr.bf16.mxu0 0
    %7102 = vmatpush1.bf16.msra.mxu0 0
    %7103 = vmatprep.subr.bf16.mxu0 0
    %7104 = vmatpush1.bf16.msra.mxu0 0
    %7105 = vmatprep.subr.bf16.mxu0 %v6899
    %7106 = vmatpush1.bf16.msra.mxu0 %v6896
    %7107 = vmatprep.subr.bf16.mxu0 0
    %7108 = vmatpush2.bf16.msra.mxu0 0
    %7109 = vmatprep.subr.bf16.mxu0 0
    %7110 = vmatpush2.bf16.msra.mxu0 0
    %7111 = vmatprep.subr.bf16.mxu0 0
    %7112 = vmatpush2.bf16.msra.mxu0 0
    %7113 = vmatprep.subr.bf16.mxu0 0
    %7114 = vmatpush2.bf16.msra.mxu0 0
    %7115 = vmatprep.subr.bf16.mxu0 0
    %7116 = vmatpush2.bf16.msra.mxu0 0
    %7117 = vmatprep.subr.bf16.mxu0 0
    %7118 = vmatpush2.bf16.msra.mxu0 0
    %7119 = vmatprep.subr.bf16.mxu0 0
    %7120 = vmatpush2.bf16.msra.mxu0 0
    %7121 = vmatprep.subr.bf16.mxu0 0
    %7122 = vmatpush2.bf16.msra.mxu0 0
    %7123 = vmatprep.mubr.bf16.mxu0 0
    %7124 = vmatmul.mubr.bf16.gmra.mxu0 %v6869
    %v7125 = vpop.f32.mrf.mxu0
    %v7126 = vadd.f32 0.0, %v7125
    %v7127 = vpop.f32.mrf.mxu0
    %v7128 = vadd.f32 0.0, %v7127
    %v7129 = vpop.f32.mrf.mxu0
    %v7130 = vadd.f32 0.0, %v7129
    %v7131 = vpop.f32.mrf.mxu0
    %v7132 = vadd.f32 0.0, %v7131
    %7133 = vdwg.mxu0
    %7134 = vmatprep.subr.bf16.mxu0 0
    %7135 = vmatpush1.bf16.msra.mxu0 0
    %7136 = vmatprep.subr.bf16.mxu0 0
    %7137 = vmatpush1.bf16.msra.mxu0 0
    %7138 = vmatprep.subr.bf16.mxu0 0
    %7139 = vmatpush1.bf16.msra.mxu0 0
    %7140 = vmatprep.subr.bf16.mxu0 0
    %7141 = vmatpush1.bf16.msra.mxu0 0
    %7142 = vmatprep.subr.bf16.mxu0 0
    %7143 = vmatpush1.bf16.msra.mxu0 0
    %7144 = vmatprep.subr.bf16.mxu0 0
    %7145 = vmatpush1.bf16.msra.mxu0 0
    %7146 = vmatprep.subr.bf16.mxu0 0
    %7147 = vmatpush1.bf16.msra.mxu0 0
    %7148 = vmatprep.subr.bf16.mxu0 %v6905
    %7149 = vmatpush1.bf16.msra.mxu0 %v6902
    %7150 = vmatprep.subr.bf16.mxu0 0
    %7151 = vmatpush2.bf16.msra.mxu0 0
    %7152 = vmatprep.subr.bf16.mxu0 0
    %7153 = vmatpush2.bf16.msra.mxu0 0
    %7154 = vmatprep.subr.bf16.mxu0 0
    %7155 = vmatpush2.bf16.msra.mxu0 0
    %7156 = vmatprep.subr.bf16.mxu0 0
    %7157 = vmatpush2.bf16.msra.mxu0 0
    %7158 = vmatprep.subr.bf16.mxu0 0
    %7159 = vmatpush2.bf16.msra.mxu0 0
    %7160 = vmatprep.subr.bf16.mxu0 0
    %7161 = vmatpush2.bf16.msra.mxu0 0
    %7162 = vmatprep.subr.bf16.mxu0 0
    %7163 = vmatpush2.bf16.msra.mxu0 0
    %7164 = vmatprep.subr.bf16.mxu0 0
    %7165 = vmatpush2.bf16.msra.mxu0 0
    %7166 = vmatprep.mubr.bf16.mxu0 0
    %7167 = vmatmul.mubr.bf16.gmra.mxu0 %v6869
    %v7168 = vpop.f32.mrf.mxu0
    %v7169 = vadd.f32 0.0, %v7168
    %v7170 = vpop.f32.mrf.mxu0
    %v7171 = vadd.f32 0.0, %v7170
    %v7172 = vpop.f32.mrf.mxu0
    %v7173 = vadd.f32 0.0, %v7172
    %v7174 = vpop.f32.mrf.mxu0
    %v7175 = vadd.f32 0.0, %v7174
    %7176 = vdwg.mxu0
    %7177 = vmatprep.subr.bf16.mxu0 0
    %7178 = vmatpush1.bf16.msra.mxu0 0
    %7179 = vmatprep.subr.bf16.mxu0 0
    %7180 = vmatpush1.bf16.msra.mxu0 0
    %7181 = vmatprep.subr.bf16.mxu0 0
    %7182 = vmatpush1.bf16.msra.mxu0 0
    %7183 = vmatprep.subr.bf16.mxu0 0
    %7184 = vmatpush1.bf16.msra.mxu0 0
    %7185 = vmatprep.subr.bf16.mxu0 0
    %7186 = vmatpush1.bf16.msra.mxu0 0
    %7187 = vmatprep.subr.bf16.mxu0 0
    %7188 = vmatpush1.bf16.msra.mxu0 0
    %7189 = vmatprep.subr.bf16.mxu0 0
    %7190 = vmatpush1.bf16.msra.mxu0 0
    %7191 = vmatprep.subr.bf16.mxu0 %v6911
    %7192 = vmatpush1.bf16.msra.mxu0 %v6908
    %7193 = vmatprep.subr.bf16.mxu0 0
    %7194 = vmatpush2.bf16.msra.mxu0 0
    %7195 = vmatprep.subr.bf16.mxu0 0
    %7196 = vmatpush2.bf16.msra.mxu0 0
    %7197 = vmatprep.subr.bf16.mxu0 0
    %7198 = vmatpush2.bf16.msra.mxu0 0
    %7199 = vmatprep.subr.bf16.mxu0 0
    %7200 = vmatpush2.bf16.msra.mxu0 0
    %7201 = vmatprep.subr.bf16.mxu0 0
    %7202 = vmatpush2.bf16.msra.mxu0 0
    %7203 = vmatprep.subr.bf16.mxu0 0
    %7204 = vmatpush2.bf16.msra.mxu0 0
    %7205 = vmatprep.subr.bf16.mxu0 0
    %7206 = vmatpush2.bf16.msra.mxu0 0
    %7207 = vmatprep.subr.bf16.mxu0 0
    %7208 = vmatpush2.bf16.msra.mxu0 0
    %7209 = vmatprep.mubr.bf16.mxu0 0
    %7210 = vmatmul.mubr.bf16.gmra.mxu0 %v6869
    %v7211 = vpop.f32.mrf.mxu0
    %v7212 = vadd.f32 0.0, %v7211
    %v7213 = vpop.f32.mrf.mxu0
    %v7214 = vadd.f32 0.0, %v7213
    %v7215 = vpop.f32.mrf.mxu0
    %v7216 = vadd.f32 0.0, %v7215
    %v7217 = vpop.f32.mrf.mxu0
    %v7218 = vadd.f32 0.0, %v7217
    %7219 = vdwg.mxu0
    %7220 = vmatprep.subr.bf16.mxu0 0
    %7221 = vmatpush1.bf16.msra.mxu0 0
    %7222 = vmatprep.subr.bf16.mxu0 0
    %7223 = vmatpush1.bf16.msra.mxu0 0
    %7224 = vmatprep.subr.bf16.mxu0 0
    %7225 = vmatpush1.bf16.msra.mxu0 0
    %7226 = vmatprep.subr.bf16.mxu0 0
    %7227 = vmatpush1.bf16.msra.mxu0 0
    %7228 = vmatprep.subr.bf16.mxu0 0
    %7229 = vmatpush1.bf16.msra.mxu0 0
    %7230 = vmatprep.subr.bf16.mxu0 0
    %7231 = vmatpush1.bf16.msra.mxu0 0
    %7232 = vmatprep.subr.bf16.mxu0 0
    %7233 = vmatpush1.bf16.msra.mxu0 0
    %7234 = vmatprep.subr.bf16.mxu0 %v6917
    %7235 = vmatpush1.bf16.msra.mxu0 %v6914
    %7236 = vmatprep.subr.bf16.mxu0 0
    %7237 = vmatpush2.bf16.msra.mxu0 0
    %7238 = vmatprep.subr.bf16.mxu0 0
    %7239 = vmatpush2.bf16.msra.mxu0 0
    %7240 = vmatprep.subr.bf16.mxu0 0
    %7241 = vmatpush2.bf16.msra.mxu0 0
    %7242 = vmatprep.subr.bf16.mxu0 0
    %7243 = vmatpush2.bf16.msra.mxu0 0
    %7244 = vmatprep.subr.bf16.mxu0 0
    %7245 = vmatpush2.bf16.msra.mxu0 0
    %7246 = vmatprep.subr.bf16.mxu0 0
    %7247 = vmatpush2.bf16.msra.mxu0 0
    %7248 = vmatprep.subr.bf16.mxu0 0
    %7249 = vmatpush2.bf16.msra.mxu0 0
    %7250 = vmatprep.subr.bf16.mxu0 0
    %7251 = vmatpush2.bf16.msra.mxu0 0
    %7252 = vmatprep.mubr.bf16.mxu0 0
    %7253 = vmatmul.mubr.bf16.gmra.mxu0 %v6869
    %v7254 = vpop.f32.mrf.mxu0
    %v7255 = vadd.f32 0.0, %v7254
    %v7256 = vpop.f32.mrf.mxu0
    %v7257 = vadd.f32 0.0, %v7256
    %v7258 = vpop.f32.mrf.mxu0
    %v7259 = vadd.f32 0.0, %v7258
    %v7260 = vpop.f32.mrf.mxu0
    %v7261 = vadd.f32 0.0, %v7260
    %7262 = vdwg.mxu0
    %v7263 = vmul.f32 %v6954, 2.0
    %v7264 = vmul.f32 %v6956, 2.0
    %v7265 = vmul.f32 %v6997, 2.0
    %v7266 = vmul.f32 %v6999, 2.0
    %v7267 = vmul.f32 %v7040, 2.0
    %v7268 = vmul.f32 %v7042, 2.0
    %v7269 = vmul.f32 %v7083, 2.0
    %v7270 = vmul.f32 %v7085, 2.0
    %v7271 = vmul.f32 %v7126, 2.0
    %v7272 = vmul.f32 %v7128, 2.0
    %v7273 = vmul.f32 %v7169, 2.0
    %v7274 = vmul.f32 %v7171, 2.0
    %v7275 = vmul.f32 %v7212, 2.0
    %v7276 = vmul.f32 %v7214, 2.0
    %v7277 = vmul.f32 %v7255, 2.0
    %v7278 = vmul.f32 %v7257, 2.0
    %v7279 = vmul.f32 %v6958, 2.0
    %v7280 = vmul.f32 %v6960, 2.0
    %v7281 = vmul.f32 %v7001, 2.0
    %v7282 = vmul.f32 %v7003, 2.0
    %v7283 = vmul.f32 %v7044, 2.0
    %v7284 = vmul.f32 %v7046, 2.0
    %v7285 = vmul.f32 %v7087, 2.0
    %v7286 = vmul.f32 %v7089, 2.0
    %v7287 = vmul.f32 %v7130, 2.0
    %v7288 = vmul.f32 %v7132, 2.0
    %v7289 = vmul.f32 %v7173, 2.0
    %v7290 = vmul.f32 %v7175, 2.0
    %v7291 = vmul.f32 %v7216, 2.0
    %v7292 = vmul.f32 %v7218, 2.0
    %v7293 = vmul.f32 %v7259, 2.0
    %v7294 = vmul.f32 %v7261, 2.0
    %7296 = vset.pattern.permute.xlu0 0
    %7297 = vperm.xlu0 %7296, %v6845
    %v7298 = vpop.permute.xlu0 %7297
    %7301 = vset.pattern.permute.xlu0 0
    %7302 = vperm.xlu0 %7301, %v6846
    %v7303 = vpop.permute.xlu0 %7302
    %v7305 = vsub.f32 %v7298, %v7263
    %v7306 = vsub.f32 %v7298, %v7264
    %v7307 = vsub.f32 %v7298, %v7265
    %v7308 = vsub.f32 %v7298, %v7266
    %v7309 = vsub.f32 %v7298, %v7267
    %v7310 = vsub.f32 %v7298, %v7268
    %v7311 = vsub.f32 %v7298, %v7269
    %v7312 = vsub.f32 %v7298, %v7270
    %v7313 = vsub.f32 %v7298, %v7271
    %v7314 = vsub.f32 %v7298, %v7272
    %v7315 = vsub.f32 %v7298, %v7273
    %v7316 = vsub.f32 %v7298, %v7274
    %v7317 = vsub.f32 %v7298, %v7275
    %v7318 = vsub.f32 %v7298, %v7276
    %v7319 = vsub.f32 %v7298, %v7277
    %v7320 = vsub.f32 %v7298, %v7278
    %v7321 = vsub.f32 %v7303, %v7279
    %v7322 = vsub.f32 %v7303, %v7280
    %v7323 = vsub.f32 %v7303, %v7281
    %v7324 = vsub.f32 %v7303, %v7282
    %v7325 = vsub.f32 %v7303, %v7283
    %v7326 = vsub.f32 %v7303, %v7284
    %v7327 = vsub.f32 %v7303, %v7285
    %v7328 = vsub.f32 %v7303, %v7286
    %v7329 = vsub.f32 %v7303, %v7287
    %v7330 = vsub.f32 %v7303, %v7288
    %v7331 = vsub.f32 %v7303, %v7289
    %v7332 = vsub.f32 %v7303, %v7290
    %v7333 = vsub.f32 %v7303, %v7291
    %v7334 = vsub.f32 %v7303, %v7292
    %v7335 = vsub.f32 %v7303, %v7293
    %v7336 = vsub.f32 %v7303, %v7294
    %v7337 = vmin.f32 %v7305, %v7321
    %v7338 = vrot.slane %v7337, 4
    %v7339 = vmin.f32 %v7337, %v7338
    %v7340 = vrot.slane %v7339, 2
    %v7341 = vmin.f32 %v7339, %v7340
    %v7342 = vrot.slane %v7341, 1
    %v7343 = vmin.f32 %v7341, %v7342
    %v7344 = vmin.f32 %v7306, %v7322
    %v7345 = vrot.slane %v7344, 4
    %v7346 = vmin.f32 %v7344, %v7345
    %v7347 = vrot.slane %v7346, 2
    %v7348 = vmin.f32 %v7346, %v7347
    %v7349 = vrot.slane %v7348, 1
    %v7350 = vmin.f32 %v7348, %v7349
    %v7351 = vmin.f32 %v7307, %v7323
    %v7352 = vrot.slane %v7351, 4
    %v7353 = vmin.f32 %v7351, %v7352
    %v7354 = vrot.slane %v7353, 2
    %v7355 = vmin.f32 %v7353, %v7354
    %v7356 = vrot.slane %v7355, 1
    %v7357 = vmin.f32 %v7355, %v7356
    %v7358 = vmin.f32 %v7308, %v7324
    %v7359 = vrot.slane %v7358, 4
    %v7360 = vmin.f32 %v7358, %v7359
    %v7361 = vrot.slane %v7360, 2
    %v7362 = vmin.f32 %v7360, %v7361
    %v7363 = vrot.slane %v7362, 1
    %v7364 = vmin.f32 %v7362, %v7363
    %v7365 = vmin.f32 %v7309, %v7325
    %v7366 = vrot.slane %v7365, 4
    %v7367 = vmin.f32 %v7365, %v7366
    %v7368 = vrot.slane %v7367, 2
    %v7369 = vmin.f32 %v7367, %v7368
    %v7370 = vrot.slane %v7369, 1
    %v7371 = vmin.f32 %v7369, %v7370
    %v7372 = vmin.f32 %v7310, %v7326
    %v7373 = vrot.slane %v7372, 4
    %v7374 = vmin.f32 %v7372, %v7373
    %v7375 = vrot.slane %v7374, 2
    %v7376 = vmin.f32 %v7374, %v7375
    %v7377 = vrot.slane %v7376, 1
    %v7378 = vmin.f32 %v7376, %v7377
    %v7379 = vmin.f32 %v7311, %v7327
    %v7380 = vrot.slane %v7379, 4
    %v7381 = vmin.f32 %v7379, %v7380
    %v7382 = vrot.slane %v7381, 2
    %v7383 = vmin.f32 %v7381, %v7382
    %v7384 = vrot.slane %v7383, 1
    %v7385 = vmin.f32 %v7383, %v7384
    %v7386 = vmin.f32 %v7312, %v7328
    %v7387 = vrot.slane %v7386, 4
    %v7388 = vmin.f32 %v7386, %v7387
    %v7389 = vrot.slane %v7388, 2
    %v7390 = vmin.f32 %v7388, %v7389
    %v7391 = vrot.slane %v7390, 1
    %v7392 = vmin.f32 %v7390, %v7391
    %v7393 = vmin.f32 %v7313, %v7329
    %v7394 = vrot.slane %v7393, 4
    %v7395 = vmin.f32 %v7393, %v7394
    %v7396 = vrot.slane %v7395, 2
    %v7397 = vmin.f32 %v7395, %v7396
    %v7398 = vrot.slane %v7397, 1
    %v7399 = vmin.f32 %v7397, %v7398
    %v7400 = vmin.f32 %v7314, %v7330
    %v7401 = vrot.slane %v7400, 4
    %v7402 = vmin.f32 %v7400, %v7401
    %v7403 = vrot.slane %v7402, 2
    %v7404 = vmin.f32 %v7402, %v7403
    %v7405 = vrot.slane %v7404, 1
    %v7406 = vmin.f32 %v7404, %v7405
    %v7407 = vmin.f32 %v7315, %v7331
    %v7408 = vrot.slane %v7407, 4
    %v7409 = vmin.f32 %v7407, %v7408
    %v7410 = vrot.slane %v7409, 2
    %v7411 = vmin.f32 %v7409, %v7410
    %v7412 = vrot.slane %v7411, 1
    %v7413 = vmin.f32 %v7411, %v7412
    %v7414 = vmin.f32 %v7316, %v7332
    %v7415 = vrot.slane %v7414, 4
    %v7416 = vmin.f32 %v7414, %v7415
    %v7417 = vrot.slane %v7416, 2
    %v7418 = vmin.f32 %v7416, %v7417
    %v7419 = vrot.slane %v7418, 1
    %v7420 = vmin.f32 %v7418, %v7419
    %v7421 = vmin.f32 %v7317, %v7333
    %v7422 = vrot.slane %v7421, 4
    %v7423 = vmin.f32 %v7421, %v7422
    %v7424 = vrot.slane %v7423, 2
    %v7425 = vmin.f32 %v7423, %v7424
    %v7426 = vrot.slane %v7425, 1
    %v7427 = vmin.f32 %v7425, %v7426
    %v7428 = vmin.f32 %v7318, %v7334
    %v7429 = vrot.slane %v7428, 4
    %v7430 = vmin.f32 %v7428, %v7429
    %v7431 = vrot.slane %v7430, 2
    %v7432 = vmin.f32 %v7430, %v7431
    %v7433 = vrot.slane %v7432, 1
    %v7434 = vmin.f32 %v7432, %v7433
    %v7435 = vmin.f32 %v7319, %v7335
    %v7436 = vrot.slane %v7435, 4
    %v7437 = vmin.f32 %v7435, %v7436
    %v7438 = vrot.slane %v7437, 2
    %v7439 = vmin.f32 %v7437, %v7438
    %v7440 = vrot.slane %v7439, 1
    %v7441 = vmin.f32 %v7439, %v7440
    %v7442 = vmin.f32 %v7320, %v7336
    %v7443 = vrot.slane %v7442, 4
    %v7444 = vmin.f32 %v7442, %v7443
    %v7445 = vrot.slane %v7444, 2
    %v7446 = vmin.f32 %v7444, %v7445
    %v7447 = vrot.slane %v7446, 1
    %v7448 = vmin.f32 %v7446, %v7447
    %vm7449 = vcmp.le.f32.partialorder %v7305, %v7343
    %vm7450 = vcmp.le.f32.partialorder %v7306, %v7350
    %vm7451 = vcmp.le.f32.partialorder %v7307, %v7357
    %vm7452 = vcmp.le.f32.partialorder %v7308, %v7364
    %vm7453 = vcmp.le.f32.partialorder %v7309, %v7371
    %vm7454 = vcmp.le.f32.partialorder %v7310, %v7378
    %vm7455 = vcmp.le.f32.partialorder %v7311, %v7385
    %vm7456 = vcmp.le.f32.partialorder %v7312, %v7392
    %vm7457 = vcmp.le.f32.partialorder %v7313, %v7399
    %vm7458 = vcmp.le.f32.partialorder %v7314, %v7406
    %vm7459 = vcmp.le.f32.partialorder %v7315, %v7413
    %vm7460 = vcmp.le.f32.partialorder %v7316, %v7420
    %vm7461 = vcmp.le.f32.partialorder %v7317, %v7427
    %vm7462 = vcmp.le.f32.partialorder %v7318, %v7434
    %vm7463 = vcmp.le.f32.partialorder %v7319, %v7441
    %vm7464 = vcmp.le.f32.partialorder %v7320, %v7448
    %vm7465 = vcmp.le.f32.partialorder %v7321, %v7343
    %vm7466 = vcmp.le.f32.partialorder %v7322, %v7350
    %vm7467 = vcmp.le.f32.partialorder %v7323, %v7357
    %vm7468 = vcmp.le.f32.partialorder %v7324, %v7364
    %vm7469 = vcmp.le.f32.partialorder %v7325, %v7371
    %vm7470 = vcmp.le.f32.partialorder %v7326, %v7378
    %vm7471 = vcmp.le.f32.partialorder %v7327, %v7385
    %vm7472 = vcmp.le.f32.partialorder %v7328, %v7392
    %vm7473 = vcmp.le.f32.partialorder %v7329, %v7399
    %vm7474 = vcmp.le.f32.partialorder %v7330, %v7406
    %vm7475 = vcmp.le.f32.partialorder %v7331, %v7413
    %vm7476 = vcmp.le.f32.partialorder %v7332, %v7420
    %vm7477 = vcmp.le.f32.partialorder %v7333, %v7427
    %vm7478 = vcmp.le.f32.partialorder %v7334, %v7434
    %vm7479 = vcmp.le.f32.partialorder %v7335, %v7441
    %vm7480 = vcmp.le.f32.partialorder %v7336, %v7448
    %v7481 = vsel %vm7449, %v2128, 16
    %v7482 = vsel %vm7450, %v2128, 16
    %v7483 = vsel %vm7451, %v2128, 16
    %v7484 = vsel %vm7452, %v2128, 16
    %v7485 = vsel %vm7453, %v2128, 16
    %v7486 = vsel %vm7454, %v2128, 16
    %v7487 = vsel %vm7455, %v2128, 16
    %v7488 = vsel %vm7456, %v2128, 16
    %v7489 = vsel %vm7457, %v2128, 16
    %v7490 = vsel %vm7458, %v2128, 16
    %v7491 = vsel %vm7459, %v2128, 16
    %v7492 = vsel %vm7460, %v2128, 16
    %v7493 = vsel %vm7461, %v2128, 16
    %v7494 = vsel %vm7462, %v2128, 16
    %v7495 = vsel %vm7463, %v2128, 16
    %v7496 = vsel %vm7464, %v2128, 16
    %v7497 = vsel %vm7465, %v2129, 16
    %v7498 = vsel %vm7466, %v2129, 16
    %v7499 = vsel %vm7467, %v2129, 16
    %v7500 = vsel %vm7468, %v2129, 16
    %v7501 = vsel %vm7469, %v2129, 16
    %v7502 = vsel %vm7470, %v2129, 16
    %v7503 = vsel %vm7471, %v2129, 16
    %v7504 = vsel %vm7472, %v2129, 16
    %v7505 = vsel %vm7473, %v2129, 16
    %v7506 = vsel %vm7474, %v2129, 16
    %v7507 = vsel %vm7475, %v2129, 16
    %v7508 = vsel %vm7476, %v2129, 16
    %v7509 = vsel %vm7477, %v2129, 16
    %v7510 = vsel %vm7478, %v2129, 16
    %v7511 = vsel %vm7479, %v2129, 16
    %v7512 = vsel %vm7480, %v2129, 16
    %vm7513 = vcmp.lt.s32.totalorder %v7481, %v7497
    %v7514 = vsel %vm7513, %v7481, %v7497
    %v7515 = vrot.slane %v7514, 4
    %vm7516 = vcmp.lt.s32.totalorder %v7514, %v7515
    %v7517 = vsel %vm7516, %v7514, %v7515
    %v7518 = vrot.slane %v7517, 2
    %vm7519 = vcmp.lt.s32.totalorder %v7517, %v7518
    %v7520 = vsel %vm7519, %v7517, %v7518
    %v7521 = vrot.slane %v7520, 1
    %vm7522 = vcmp.lt.s32.totalorder %v7520, %v7521
    %v7523 = vsel %vm7522, %v7520, %v7521
    %vm7524 = vcmp.lt.s32.totalorder %v7482, %v7498
    %v7525 = vsel %vm7524, %v7482, %v7498
    %v7526 = vrot.slane %v7525, 4
    %vm7527 = vcmp.lt.s32.totalorder %v7525, %v7526
    %v7528 = vsel %vm7527, %v7525, %v7526
    %v7529 = vrot.slane %v7528, 2
    %vm7530 = vcmp.lt.s32.totalorder %v7528, %v7529
    %v7531 = vsel %vm7530, %v7528, %v7529
    %v7532 = vrot.slane %v7531, 1
    %vm7533 = vcmp.lt.s32.totalorder %v7531, %v7532
    %v7534 = vsel %vm7533, %v7531, %v7532
    %vm7535 = vcmp.lt.s32.totalorder %v7483, %v7499
    %v7536 = vsel %vm7535, %v7483, %v7499
    %v7537 = vrot.slane %v7536, 4
    %vm7538 = vcmp.lt.s32.totalorder %v7536, %v7537
    %v7539 = vsel %vm7538, %v7536, %v7537
    %v7540 = vrot.slane %v7539, 2
    %vm7541 = vcmp.lt.s32.totalorder %v7539, %v7540
    %v7542 = vsel %vm7541, %v7539, %v7540
    %v7543 = vrot.slane %v7542, 1
    %vm7544 = vcmp.lt.s32.totalorder %v7542, %v7543
    %v7545 = vsel %vm7544, %v7542, %v7543
    %vm7546 = vcmp.lt.s32.totalorder %v7484, %v7500
    %v7547 = vsel %vm7546, %v7484, %v7500
    %v7548 = vrot.slane %v7547, 4
    %vm7549 = vcmp.lt.s32.totalorder %v7547, %v7548
    %v7550 = vsel %vm7549, %v7547, %v7548
    %v7551 = vrot.slane %v7550, 2
    %vm7552 = vcmp.lt.s32.totalorder %v7550, %v7551
    %v7553 = vsel %vm7552, %v7550, %v7551
    %v7554 = vrot.slane %v7553, 1
    %vm7555 = vcmp.lt.s32.totalorder %v7553, %v7554
    %v7556 = vsel %vm7555, %v7553, %v7554
    %vm7557 = vcmp.lt.s32.totalorder %v7485, %v7501
    %v7558 = vsel %vm7557, %v7485, %v7501
    %v7559 = vrot.slane %v7558, 4
    %vm7560 = vcmp.lt.s32.totalorder %v7558, %v7559
    %v7561 = vsel %vm7560, %v7558, %v7559
    %v7562 = vrot.slane %v7561, 2
    %vm7563 = vcmp.lt.s32.totalorder %v7561, %v7562
    %v7564 = vsel %vm7563, %v7561, %v7562
    %v7565 = vrot.slane %v7564, 1
    %vm7566 = vcmp.lt.s32.totalorder %v7564, %v7565
    %v7567 = vsel %vm7566, %v7564, %v7565
    %vm7568 = vcmp.lt.s32.totalorder %v7486, %v7502
    %v7569 = vsel %vm7568, %v7486, %v7502
    %v7570 = vrot.slane %v7569, 4
    %vm7571 = vcmp.lt.s32.totalorder %v7569, %v7570
    %v7572 = vsel %vm7571, %v7569, %v7570
    %v7573 = vrot.slane %v7572, 2
    %vm7574 = vcmp.lt.s32.totalorder %v7572, %v7573
    %v7575 = vsel %vm7574, %v7572, %v7573
    %v7576 = vrot.slane %v7575, 1
    %vm7577 = vcmp.lt.s32.totalorder %v7575, %v7576
    %v7578 = vsel %vm7577, %v7575, %v7576
    %vm7579 = vcmp.lt.s32.totalorder %v7487, %v7503
    %v7580 = vsel %vm7579, %v7487, %v7503
    %v7581 = vrot.slane %v7580, 4
    %vm7582 = vcmp.lt.s32.totalorder %v7580, %v7581
    %v7583 = vsel %vm7582, %v7580, %v7581
    %v7584 = vrot.slane %v7583, 2
    %vm7585 = vcmp.lt.s32.totalorder %v7583, %v7584
    %v7586 = vsel %vm7585, %v7583, %v7584
    %v7587 = vrot.slane %v7586, 1
    %vm7588 = vcmp.lt.s32.totalorder %v7586, %v7587
    %v7589 = vsel %vm7588, %v7586, %v7587
    %vm7590 = vcmp.lt.s32.totalorder %v7488, %v7504
    %v7591 = vsel %vm7590, %v7488, %v7504
    %v7592 = vrot.slane %v7591, 4
    %vm7593 = vcmp.lt.s32.totalorder %v7591, %v7592
    %v7594 = vsel %vm7593, %v7591, %v7592
    %v7595 = vrot.slane %v7594, 2
    %vm7596 = vcmp.lt.s32.totalorder %v7594, %v7595
    %v7597 = vsel %vm7596, %v7594, %v7595
    %v7598 = vrot.slane %v7597, 1
    %vm7599 = vcmp.lt.s32.totalorder %v7597, %v7598
    %v7600 = vsel %vm7599, %v7597, %v7598
    %vm7601 = vcmp.lt.s32.totalorder %v7489, %v7505
    %v7602 = vsel %vm7601, %v7489, %v7505
    %v7603 = vrot.slane %v7602, 4
    %vm7604 = vcmp.lt.s32.totalorder %v7602, %v7603
    %v7605 = vsel %vm7604, %v7602, %v7603
    %v7606 = vrot.slane %v7605, 2
    %vm7607 = vcmp.lt.s32.totalorder %v7605, %v7606
    %v7608 = vsel %vm7607, %v7605, %v7606
    %v7609 = vrot.slane %v7608, 1
    %vm7610 = vcmp.lt.s32.totalorder %v7608, %v7609
    %v7611 = vsel %vm7610, %v7608, %v7609
    %vm7612 = vcmp.lt.s32.totalorder %v7490, %v7506
    %v7613 = vsel %vm7612, %v7490, %v7506
    %v7614 = vrot.slane %v7613, 4
    %vm7615 = vcmp.lt.s32.totalorder %v7613, %v7614
    %v7616 = vsel %vm7615, %v7613, %v7614
    %v7617 = vrot.slane %v7616, 2
    %vm7618 = vcmp.lt.s32.totalorder %v7616, %v7617
    %v7619 = vsel %vm7618, %v7616, %v7617
    %v7620 = vrot.slane %v7619, 1
    %vm7621 = vcmp.lt.s32.totalorder %v7619, %v7620
    %v7622 = vsel %vm7621, %v7619, %v7620
    %vm7623 = vcmp.lt.s32.totalorder %v7491, %v7507
    %v7624 = vsel %vm7623, %v7491, %v7507
    %v7625 = vrot.slane %v7624, 4
    %vm7626 = vcmp.lt.s32.totalorder %v7624, %v7625
    %v7627 = vsel %vm7626, %v7624, %v7625
    %v7628 = vrot.slane %v7627, 2
    %vm7629 = vcmp.lt.s32.totalorder %v7627, %v7628
    %v7630 = vsel %vm7629, %v7627, %v7628
    %v7631 = vrot.slane %v7630, 1
    %vm7632 = vcmp.lt.s32.totalorder %v7630, %v7631
    %v7633 = vsel %vm7632, %v7630, %v7631
    %vm7634 = vcmp.lt.s32.totalorder %v7492, %v7508
    %v7635 = vsel %vm7634, %v7492, %v7508
    %v7636 = vrot.slane %v7635, 4
    %vm7637 = vcmp.lt.s32.totalorder %v7635, %v7636
    %v7638 = vsel %vm7637, %v7635, %v7636
    %v7639 = vrot.slane %v7638, 2
    %vm7640 = vcmp.lt.s32.totalorder %v7638, %v7639
    %v7641 = vsel %vm7640, %v7638, %v7639
    %v7642 = vrot.slane %v7641, 1
    %vm7643 = vcmp.lt.s32.totalorder %v7641, %v7642
    %v7644 = vsel %vm7643, %v7641, %v7642
    %vm7645 = vcmp.lt.s32.totalorder %v7493, %v7509
    %v7646 = vsel %vm7645, %v7493, %v7509
    %v7647 = vrot.slane %v7646, 4
    %vm7648 = vcmp.lt.s32.totalorder %v7646, %v7647
    %v7649 = vsel %vm7648, %v7646, %v7647
    %v7650 = vrot.slane %v7649, 2
    %vm7651 = vcmp.lt.s32.totalorder %v7649, %v7650
    %v7652 = vsel %vm7651, %v7649, %v7650
    %v7653 = vrot.slane %v7652, 1
    %vm7654 = vcmp.lt.s32.totalorder %v7652, %v7653
    %v7655 = vsel %vm7654, %v7652, %v7653
    %vm7656 = vcmp.lt.s32.totalorder %v7494, %v7510
    %v7657 = vsel %vm7656, %v7494, %v7510
    %v7658 = vrot.slane %v7657, 4
    %vm7659 = vcmp.lt.s32.totalorder %v7657, %v7658
    %v7660 = vsel %vm7659, %v7657, %v7658
    %v7661 = vrot.slane %v7660, 2
    %vm7662 = vcmp.lt.s32.totalorder %v7660, %v7661
    %v7663 = vsel %vm7662, %v7660, %v7661
    %v7664 = vrot.slane %v7663, 1
    %vm7665 = vcmp.lt.s32.totalorder %v7663, %v7664
    %v7666 = vsel %vm7665, %v7663, %v7664
    %vm7667 = vcmp.lt.s32.totalorder %v7495, %v7511
    %v7668 = vsel %vm7667, %v7495, %v7511
    %v7669 = vrot.slane %v7668, 4
    %vm7670 = vcmp.lt.s32.totalorder %v7668, %v7669
    %v7671 = vsel %vm7670, %v7668, %v7669
    %v7672 = vrot.slane %v7671, 2
    %vm7673 = vcmp.lt.s32.totalorder %v7671, %v7672
    %v7674 = vsel %vm7673, %v7671, %v7672
    %v7675 = vrot.slane %v7674, 1
    %vm7676 = vcmp.lt.s32.totalorder %v7674, %v7675
    %v7677 = vsel %vm7676, %v7674, %v7675
    %vm7678 = vcmp.lt.s32.totalorder %v7496, %v7512
    %v7679 = vsel %vm7678, %v7496, %v7512
    %v7680 = vrot.slane %v7679, 4
    %vm7681 = vcmp.lt.s32.totalorder %v7679, %v7680
    %v7682 = vsel %vm7681, %v7679, %v7680
    %v7683 = vrot.slane %v7682, 2
    %vm7684 = vcmp.lt.s32.totalorder %v7682, %v7683
    %v7685 = vsel %vm7684, %v7682, %v7683
    %v7686 = vrot.slane %v7685, 1
    %vm7687 = vcmp.lt.s32.totalorder %v7685, %v7686
    %v7688 = vsel %vm7687, %v7685, %v7686
    %vm7689 = vcmp.eq.s32.totalorder %v2128, %v7523
    %vm7690 = vcmp.eq.s32.totalorder %v2128, %v7534
    %vm7691 = vcmp.eq.s32.totalorder %v2128, %v7545
    %vm7692 = vcmp.eq.s32.totalorder %v2128, %v7556
    %vm7693 = vcmp.eq.s32.totalorder %v2128, %v7567
    %vm7694 = vcmp.eq.s32.totalorder %v2128, %v7578
    %vm7695 = vcmp.eq.s32.totalorder %v2128, %v7589
    %vm7696 = vcmp.eq.s32.totalorder %v2128, %v7600
    %vm7697 = vcmp.eq.s32.totalorder %v2128, %v7611
    %vm7698 = vcmp.eq.s32.totalorder %v2128, %v7622
    %vm7699 = vcmp.eq.s32.totalorder %v2128, %v7633
    %vm7700 = vcmp.eq.s32.totalorder %v2128, %v7644
    %vm7701 = vcmp.eq.s32.totalorder %v2128, %v7655
    %vm7702 = vcmp.eq.s32.totalorder %v2128, %v7666
    %vm7703 = vcmp.eq.s32.totalorder %v2128, %v7677
    %vm7704 = vcmp.eq.s32.totalorder %v2128, %v7688
    %vm7705 = vcmp.eq.s32.totalorder %v2129, %v7523
    %vm7706 = vcmp.eq.s32.totalorder %v2129, %v7534
    %vm7707 = vcmp.eq.s32.totalorder %v2129, %v7545
    %vm7708 = vcmp.eq.s32.totalorder %v2129, %v7556
    %vm7709 = vcmp.eq.s32.totalorder %v2129, %v7567
    %vm7710 = vcmp.eq.s32.totalorder %v2129, %v7578
    %vm7711 = vcmp.eq.s32.totalorder %v2129, %v7589
    %vm7712 = vcmp.eq.s32.totalorder %v2129, %v7600
    %vm7713 = vcmp.eq.s32.totalorder %v2129, %v7611
    %vm7714 = vcmp.eq.s32.totalorder %v2129, %v7622
    %vm7715 = vcmp.eq.s32.totalorder %v2129, %v7633
    %vm7716 = vcmp.eq.s32.totalorder %v2129, %v7644
    %vm7717 = vcmp.eq.s32.totalorder %v2129, %v7655
    %vm7718 = vcmp.eq.s32.totalorder %v2129, %v7666
    %vm7719 = vcmp.eq.s32.totalorder %v2129, %v7677
    %vm7720 = vcmp.eq.s32.totalorder %v2129, %v7688
    %v7721 = vsel %vm7689, 1, 0
    %v7722 = vsel %vm7690, 1, 0
    %v7723 = vsel %vm7691, 1, 0
    %v7724 = vsel %vm7692, 1, 0
    %v7725 = vsel %vm7693, 1, 0
    %v7726 = vsel %vm7694, 1, 0
    %v7727 = vsel %vm7695, 1, 0
    %v7728 = vsel %vm7696, 1, 0
    %v7729 = vsel %vm7697, 1, 0
    %v7730 = vsel %vm7698, 1, 0
    %v7731 = vsel %vm7699, 1, 0
    %v7732 = vsel %vm7700, 1, 0
    %v7733 = vsel %vm7701, 1, 0
    %v7734 = vsel %vm7702, 1, 0
    %v7735 = vsel %vm7703, 1, 0
    %v7736 = vsel %vm7704, 1, 0
    %v7737 = vsel %vm7705, 1, 0
    %v7738 = vsel %vm7706, 1, 0
    %v7739 = vsel %vm7707, 1, 0
    %v7740 = vsel %vm7708, 1, 0
    %v7741 = vsel %vm7709, 1, 0
    %v7742 = vsel %vm7710, 1, 0
    %v7743 = vsel %vm7711, 1, 0
    %v7744 = vsel %vm7712, 1, 0
    %v7745 = vsel %vm7713, 1, 0
    %v7746 = vsel %vm7714, 1, 0
    %v7747 = vsel %vm7715, 1, 0
    %v7748 = vsel %vm7716, 1, 0
    %v7749 = vsel %vm7717, 1, 0
    %v7750 = vsel %vm7718, 1, 0
    %v7751 = vsel %vm7719, 1, 0
    %v7752 = vsel %vm7720, 1, 0
    %v7753 = vcvt.s32.f32 %v7721
    %v7754 = vcvt.s32.f32 %v7722
    %v7755 = vcvt.s32.f32 %v7723
    %v7756 = vcvt.s32.f32 %v7724
    %v7757 = vcvt.s32.f32 %v7725
    %v7758 = vcvt.s32.f32 %v7726
    %v7759 = vcvt.s32.f32 %v7727
    %v7760 = vcvt.s32.f32 %v7728
    %v7761 = vcvt.s32.f32 %v7729
    %v7762 = vcvt.s32.f32 %v7730
    %v7763 = vcvt.s32.f32 %v7731
    %v7764 = vcvt.s32.f32 %v7732
    %v7765 = vcvt.s32.f32 %v7733
    %v7766 = vcvt.s32.f32 %v7734
    %v7767 = vcvt.s32.f32 %v7735
    %v7768 = vcvt.s32.f32 %v7736
    %v7769 = vcvt.s32.f32 %v7737
    %v7770 = vcvt.s32.f32 %v7738
    %v7771 = vcvt.s32.f32 %v7739
    %v7772 = vcvt.s32.f32 %v7740
    %v7773 = vcvt.s32.f32 %v7741
    %v7774 = vcvt.s32.f32 %v7742
    %v7775 = vcvt.s32.f32 %v7743
    %v7776 = vcvt.s32.f32 %v7744
    %v7777 = vcvt.s32.f32 %v7745
    %v7778 = vcvt.s32.f32 %v7746
    %v7779 = vcvt.s32.f32 %v7747
    %v7780 = vcvt.s32.f32 %v7748
    %v7781 = vcvt.s32.f32 %v7749
    %v7782 = vcvt.s32.f32 %v7750
    %v7783 = vcvt.s32.f32 %v7751
    %v7784 = vcvt.s32.f32 %v7752
    %v7785 = vpack.c.bf16 %v7769, %v7753
    %v7786 = vpack.c.bf16 %v7770, %v7754
    %v7787 = vpack.c.bf16 %v7771, %v7755
    %v7788 = vpack.c.bf16 %v7772, %v7756
    %v7789 = vpack.c.bf16 %v7773, %v7757
    %v7790 = vpack.c.bf16 %v7774, %v7758
    %v7791 = vpack.c.bf16 %v7775, %v7759
    %v7792 = vpack.c.bf16 %v7776, %v7760
    %v7793 = vpack.c.bf16 %v7777, %v7761
    %v7794 = vpack.c.bf16 %v7778, %v7762
    %v7795 = vpack.c.bf16 %v7779, %v7763
    %v7796 = vpack.c.bf16 %v7780, %v7764
    %v7797 = vpack.c.bf16 %v7781, %v7765
    %v7798 = vpack.c.bf16 %v7782, %v7766
    %v7799 = vpack.c.bf16 %v7783, %v7767
    %v7800 = vpack.c.bf16 %v7784, %v7768
    %v7802 = vsel %vm1187, %v6843, 0
    %7804 = vmatprep.subr.bf16.mxu0 0
    %7805 = vmatpush1.bf16.msra.mxu0 0
    %7806 = vmatprep.subr.bf16.mxu0 0
    %7807 = vmatpush1.bf16.msra.mxu0 0
    %7808 = vmatprep.subr.bf16.mxu0 0
    %7809 = vmatpush1.bf16.msra.mxu0 0
    %7810 = vmatprep.subr.bf16.mxu0 0
    %7811 = vmatpush1.bf16.msra.mxu0 0
    %7812 = vmatprep.subr.bf16.mxu0 0
    %7813 = vmatpush1.bf16.msra.mxu0 0
    %7814 = vmatprep.subr.bf16.mxu0 0
    %7815 = vmatpush1.bf16.msra.mxu0 0
    %7816 = vmatprep.subr.bf16.mxu0 0
    %7817 = vmatpush1.bf16.msra.mxu0 0
    %7818 = vmatprep.subr.bf16.mxu0 %v7786
    %7819 = vmatpush1.bf16.msra.mxu0 %v7785
    %7820 = vmatprep.subr.bf16.mxu0 0
    %7821 = vmatpush2.bf16.msra.mxu0 0
    %7822 = vmatprep.subr.bf16.mxu0 0
    %7823 = vmatpush2.bf16.msra.mxu0 0
    %7824 = vmatprep.subr.bf16.mxu0 0
    %7825 = vmatpush2.bf16.msra.mxu0 0
    %7826 = vmatprep.subr.bf16.mxu0 0
    %7827 = vmatpush2.bf16.msra.mxu0 0
    %7828 = vmatprep.subr.bf16.mxu0 0
    %7829 = vmatpush2.bf16.msra.mxu0 0
    %7830 = vmatprep.subr.bf16.mxu0 0
    %7831 = vmatpush2.bf16.msra.mxu0 0
    %7832 = vmatprep.subr.bf16.mxu0 0
    %7833 = vmatpush2.bf16.msra.mxu0 0
    %7834 = vmatprep.subr.bf16.mxu0 0
    %7835 = vmatpush2.bf16.msra.mxu0 0
    %7836 = vmatprep.mubr.bf16.mxu0 0
    %7837 = vmatmul.mubr.bf16.gmra.mxu0 %v7802
    %v7838 = vpop.f32.mrf.mxu0
    %v7839 = vadd.f32 0.0, %v7838
    %v7840 = vpop.f32.mrf.mxu0
    %v7841 = vadd.f32 0.0, %v7840
    %v7842 = vpop.f32.mrf.mxu0
    %v7843 = vpop.f32.mrf.mxu0
    %7844 = vdwg.mxu0
    %7845 = vmatprep.subr.bf16.mxu0 0
    %7846 = vmatpush1.bf16.msra.mxu0 0
    %7847 = vmatprep.subr.bf16.mxu0 0
    %7848 = vmatpush1.bf16.msra.mxu0 0
    %7849 = vmatprep.subr.bf16.mxu0 0
    %7850 = vmatpush1.bf16.msra.mxu0 0
    %7851 = vmatprep.subr.bf16.mxu0 0
    %7852 = vmatpush1.bf16.msra.mxu0 0
    %7853 = vmatprep.subr.bf16.mxu0 0
    %7854 = vmatpush1.bf16.msra.mxu0 0
    %7855 = vmatprep.subr.bf16.mxu0 0
    %7856 = vmatpush1.bf16.msra.mxu0 0
    %7857 = vmatprep.subr.bf16.mxu0 0
    %7858 = vmatpush1.bf16.msra.mxu0 0
    %7859 = vmatprep.subr.bf16.mxu0 %v7788
    %7860 = vmatpush1.bf16.msra.mxu0 %v7787
    %7861 = vmatprep.subr.bf16.mxu0 0
    %7862 = vmatpush2.bf16.msra.mxu0 0
    %7863 = vmatprep.subr.bf16.mxu0 0
    %7864 = vmatpush2.bf16.msra.mxu0 0
    %7865 = vmatprep.subr.bf16.mxu0 0
    %7866 = vmatpush2.bf16.msra.mxu0 0
    %7867 = vmatprep.subr.bf16.mxu0 0
    %7868 = vmatpush2.bf16.msra.mxu0 0
    %7869 = vmatprep.subr.bf16.mxu0 0
    %7870 = vmatpush2.bf16.msra.mxu0 0
    %7871 = vmatprep.subr.bf16.mxu0 0
    %7872 = vmatpush2.bf16.msra.mxu0 0
    %7873 = vmatprep.subr.bf16.mxu0 0
    %7874 = vmatpush2.bf16.msra.mxu0 0
    %7875 = vmatprep.subr.bf16.mxu0 0
    %7876 = vmatpush2.bf16.msra.mxu0 0
    %7877 = vmatprep.mubr.bf16.mxu0 0
    %7878 = vmatmul.mubr.bf16.gmra.mxu0 %v7802
    %v7879 = vpop.f32.mrf.mxu0
    %v7880 = vadd.f32 0.0, %v7879
    %v7881 = vpop.f32.mrf.mxu0
    %v7882 = vadd.f32 0.0, %v7881
    %v7883 = vpop.f32.mrf.mxu0
    %v7884 = vpop.f32.mrf.mxu0
    %7885 = vdwg.mxu0
    %7886 = vmatprep.subr.bf16.mxu0 0
    %7887 = vmatpush1.bf16.msra.mxu0 0
    %7888 = vmatprep.subr.bf16.mxu0 0
    %7889 = vmatpush1.bf16.msra.mxu0 0
    %7890 = vmatprep.subr.bf16.mxu0 0
    %7891 = vmatpush1.bf16.msra.mxu0 0
    %7892 = vmatprep.subr.bf16.mxu0 0
    %7893 = vmatpush1.bf16.msra.mxu0 0
    %7894 = vmatprep.subr.bf16.mxu0 0
    %7895 = vmatpush1.bf16.msra.mxu0 0
    %7896 = vmatprep.subr.bf16.mxu0 0
    %7897 = vmatpush1.bf16.msra.mxu0 0
    %7898 = vmatprep.subr.bf16.mxu0 0
    %7899 = vmatpush1.bf16.msra.mxu0 0
    %7900 = vmatprep.subr.bf16.mxu0 %v7790
    %7901 = vmatpush1.bf16.msra.mxu0 %v7789
    %7902 = vmatprep.subr.bf16.mxu0 0
    %7903 = vmatpush2.bf16.msra.mxu0 0
    %7904 = vmatprep.subr.bf16.mxu0 0
    %7905 = vmatpush2.bf16.msra.mxu0 0
    %7906 = vmatprep.subr.bf16.mxu0 0
    %7907 = vmatpush2.bf16.msra.mxu0 0
    %7908 = vmatprep.subr.bf16.mxu0 0
    %7909 = vmatpush2.bf16.msra.mxu0 0
    %7910 = vmatprep.subr.bf16.mxu0 0
    %7911 = vmatpush2.bf16.msra.mxu0 0
    %7912 = vmatprep.subr.bf16.mxu0 0
    %7913 = vmatpush2.bf16.msra.mxu0 0
    %7914 = vmatprep.subr.bf16.mxu0 0
    %7915 = vmatpush2.bf16.msra.mxu0 0
    %7916 = vmatprep.subr.bf16.mxu0 0
    %7917 = vmatpush2.bf16.msra.mxu0 0
    %7918 = vmatprep.mubr.bf16.mxu0 0
    %7919 = vmatmul.mubr.bf16.gmra.mxu0 %v7802
    %v7920 = vpop.f32.mrf.mxu0
    %v7921 = vadd.f32 0.0, %v7920
    %v7922 = vpop.f32.mrf.mxu0
    %v7923 = vadd.f32 0.0, %v7922
    %v7924 = vpop.f32.mrf.mxu0
    %v7925 = vpop.f32.mrf.mxu0
    %7926 = vdwg.mxu0
    %7927 = vmatprep.subr.bf16.mxu0 0
    %7928 = vmatpush1.bf16.msra.mxu0 0
    %7929 = vmatprep.subr.bf16.mxu0 0
    %7930 = vmatpush1.bf16.msra.mxu0 0
    %7931 = vmatprep.subr.bf16.mxu0 0
    %7932 = vmatpush1.bf16.msra.mxu0 0
    %7933 = vmatprep.subr.bf16.mxu0 0
    %7934 = vmatpush1.bf16.msra.mxu0 0
    %7935 = vmatprep.subr.bf16.mxu0 0
    %7936 = vmatpush1.bf16.msra.mxu0 0
    %7937 = vmatprep.subr.bf16.mxu0 0
    %7938 = vmatpush1.bf16.msra.mxu0 0
    %7939 = vmatprep.subr.bf16.mxu0 0
    %7940 = vmatpush1.bf16.msra.mxu0 0
    %7941 = vmatprep.subr.bf16.mxu0 %v7792
    %7942 = vmatpush1.bf16.msra.mxu0 %v7791
    %7943 = vmatprep.subr.bf16.mxu0 0
    %7944 = vmatpush2.bf16.msra.mxu0 0
    %7945 = vmatprep.subr.bf16.mxu0 0
    %7946 = vmatpush2.bf16.msra.mxu0 0
    %7947 = vmatprep.subr.bf16.mxu0 0
    %7948 = vmatpush2.bf16.msra.mxu0 0
    %7949 = vmatprep.subr.bf16.mxu0 0
    %7950 = vmatpush2.bf16.msra.mxu0 0
    %7951 = vmatprep.subr.bf16.mxu0 0
    %7952 = vmatpush2.bf16.msra.mxu0 0
    %7953 = vmatprep.subr.bf16.mxu0 0
    %7954 = vmatpush2.bf16.msra.mxu0 0
    %7955 = vmatprep.subr.bf16.mxu0 0
    %7956 = vmatpush2.bf16.msra.mxu0 0
    %7957 = vmatprep.subr.bf16.mxu0 0
    %7958 = vmatpush2.bf16.msra.mxu0 0
    %7959 = vmatprep.mubr.bf16.mxu0 0
    %7960 = vmatmul.mubr.bf16.gmra.mxu0 %v7802
    %v7961 = vpop.f32.mrf.mxu0
    %v7962 = vadd.f32 0.0, %v7961
    %v7963 = vpop.f32.mrf.mxu0
    %v7964 = vadd.f32 0.0, %v7963
    %v7965 = vpop.f32.mrf.mxu0
    %v7966 = vpop.f32.mrf.mxu0
    %7967 = vdwg.mxu0
    %7968 = vmatprep.subr.bf16.mxu0 0
    %7969 = vmatpush1.bf16.msra.mxu0 0
    %7970 = vmatprep.subr.bf16.mxu0 0
    %7971 = vmatpush1.bf16.msra.mxu0 0
    %7972 = vmatprep.subr.bf16.mxu0 0
    %7973 = vmatpush1.bf16.msra.mxu0 0
    %7974 = vmatprep.subr.bf16.mxu0 0
    %7975 = vmatpush1.bf16.msra.mxu0 0
    %7976 = vmatprep.subr.bf16.mxu0 0
    %7977 = vmatpush1.bf16.msra.mxu0 0
    %7978 = vmatprep.subr.bf16.mxu0 0
    %7979 = vmatpush1.bf16.msra.mxu0 0
    %7980 = vmatprep.subr.bf16.mxu0 0
    %7981 = vmatpush1.bf16.msra.mxu0 0
    %7982 = vmatprep.subr.bf16.mxu0 %v7794
    %7983 = vmatpush1.bf16.msra.mxu0 %v7793
    %7984 = vmatprep.subr.bf16.mxu0 0
    %7985 = vmatpush2.bf16.msra.mxu0 0
    %7986 = vmatprep.subr.bf16.mxu0 0
    %7987 = vmatpush2.bf16.msra.mxu0 0
    %7988 = vmatprep.subr.bf16.mxu0 0
    %7989 = vmatpush2.bf16.msra.mxu0 0
    %7990 = vmatprep.subr.bf16.mxu0 0
    %7991 = vmatpush2.bf16.msra.mxu0 0
    %7992 = vmatprep.subr.bf16.mxu0 0
    %7993 = vmatpush2.bf16.msra.mxu0 0
    %7994 = vmatprep.subr.bf16.mxu0 0
    %7995 = vmatpush2.bf16.msra.mxu0 0
    %7996 = vmatprep.subr.bf16.mxu0 0
    %7997 = vmatpush2.bf16.msra.mxu0 0
    %7998 = vmatprep.subr.bf16.mxu0 0
    %7999 = vmatpush2.bf16.msra.mxu0 0
    %8000 = vmatprep.mubr.bf16.mxu0 0
    %8001 = vmatmul.mubr.bf16.gmra.mxu0 %v7802
    %v8002 = vpop.f32.mrf.mxu0
    %v8003 = vadd.f32 0.0, %v8002
    %v8004 = vpop.f32.mrf.mxu0
    %v8005 = vadd.f32 0.0, %v8004
    %v8006 = vpop.f32.mrf.mxu0
    %v8007 = vpop.f32.mrf.mxu0
    %8008 = vdwg.mxu0
    %8009 = vmatprep.subr.bf16.mxu0 0
    %8010 = vmatpush1.bf16.msra.mxu0 0
    %8011 = vmatprep.subr.bf16.mxu0 0
    %8012 = vmatpush1.bf16.msra.mxu0 0
    %8013 = vmatprep.subr.bf16.mxu0 0
    %8014 = vmatpush1.bf16.msra.mxu0 0
    %8015 = vmatprep.subr.bf16.mxu0 0
    %8016 = vmatpush1.bf16.msra.mxu0 0
    %8017 = vmatprep.subr.bf16.mxu0 0
    %8018 = vmatpush1.bf16.msra.mxu0 0
    %8019 = vmatprep.subr.bf16.mxu0 0
    %8020 = vmatpush1.bf16.msra.mxu0 0
    %8021 = vmatprep.subr.bf16.mxu0 0
    %8022 = vmatpush1.bf16.msra.mxu0 0
    %8023 = vmatprep.subr.bf16.mxu0 %v7796
    %8024 = vmatpush1.bf16.msra.mxu0 %v7795
    %8025 = vmatprep.subr.bf16.mxu0 0
    %8026 = vmatpush2.bf16.msra.mxu0 0
    %8027 = vmatprep.subr.bf16.mxu0 0
    %8028 = vmatpush2.bf16.msra.mxu0 0
    %8029 = vmatprep.subr.bf16.mxu0 0
    %8030 = vmatpush2.bf16.msra.mxu0 0
    %8031 = vmatprep.subr.bf16.mxu0 0
    %8032 = vmatpush2.bf16.msra.mxu0 0
    %8033 = vmatprep.subr.bf16.mxu0 0
    %8034 = vmatpush2.bf16.msra.mxu0 0
    %8035 = vmatprep.subr.bf16.mxu0 0
    %8036 = vmatpush2.bf16.msra.mxu0 0
    %8037 = vmatprep.subr.bf16.mxu0 0
    %8038 = vmatpush2.bf16.msra.mxu0 0
    %8039 = vmatprep.subr.bf16.mxu0 0
    %8040 = vmatpush2.bf16.msra.mxu0 0
    %8041 = vmatprep.mubr.bf16.mxu0 0
    %8042 = vmatmul.mubr.bf16.gmra.mxu0 %v7802
    %v8043 = vpop.f32.mrf.mxu0
    %v8044 = vadd.f32 0.0, %v8043
    %v8045 = vpop.f32.mrf.mxu0
    %v8046 = vadd.f32 0.0, %v8045
    %v8047 = vpop.f32.mrf.mxu0
    %v8048 = vpop.f32.mrf.mxu0
    %8049 = vdwg.mxu0
    %8050 = vmatprep.subr.bf16.mxu0 0
    %8051 = vmatpush1.bf16.msra.mxu0 0
    %8052 = vmatprep.subr.bf16.mxu0 0
    %8053 = vmatpush1.bf16.msra.mxu0 0
    %8054 = vmatprep.subr.bf16.mxu0 0
    %8055 = vmatpush1.bf16.msra.mxu0 0
    %8056 = vmatprep.subr.bf16.mxu0 0
    %8057 = vmatpush1.bf16.msra.mxu0 0
    %8058 = vmatprep.subr.bf16.mxu0 0
    %8059 = vmatpush1.bf16.msra.mxu0 0
    %8060 = vmatprep.subr.bf16.mxu0 0
    %8061 = vmatpush1.bf16.msra.mxu0 0
    %8062 = vmatprep.subr.bf16.mxu0 0
    %8063 = vmatpush1.bf16.msra.mxu0 0
    %8064 = vmatprep.subr.bf16.mxu0 %v7798
    %8065 = vmatpush1.bf16.msra.mxu0 %v7797
    %8066 = vmatprep.subr.bf16.mxu0 0
    %8067 = vmatpush2.bf16.msra.mxu0 0
    %8068 = vmatprep.subr.bf16.mxu0 0
    %8069 = vmatpush2.bf16.msra.mxu0 0
    %8070 = vmatprep.subr.bf16.mxu0 0
    %8071 = vmatpush2.bf16.msra.mxu0 0
    %8072 = vmatprep.subr.bf16.mxu0 0
    %8073 = vmatpush2.bf16.msra.mxu0 0
    %8074 = vmatprep.subr.bf16.mxu0 0
    %8075 = vmatpush2.bf16.msra.mxu0 0
    %8076 = vmatprep.subr.bf16.mxu0 0
    %8077 = vmatpush2.bf16.msra.mxu0 0
    %8078 = vmatprep.subr.bf16.mxu0 0
    %8079 = vmatpush2.bf16.msra.mxu0 0
    %8080 = vmatprep.subr.bf16.mxu0 0
    %8081 = vmatpush2.bf16.msra.mxu0 0
    %8082 = vmatprep.mubr.bf16.mxu0 0
    %8083 = vmatmul.mubr.bf16.gmra.mxu0 %v7802
    %v8084 = vpop.f32.mrf.mxu0
    %v8085 = vadd.f32 0.0, %v8084
    %v8086 = vpop.f32.mrf.mxu0
    %v8087 = vadd.f32 0.0, %v8086
    %v8088 = vpop.f32.mrf.mxu0
    %v8089 = vpop.f32.mrf.mxu0
    %8090 = vdwg.mxu0
    %8091 = vmatprep.subr.bf16.mxu0 0
    %8092 = vmatpush1.bf16.msra.mxu0 0
    %8093 = vmatprep.subr.bf16.mxu0 0
    %8094 = vmatpush1.bf16.msra.mxu0 0
    %8095 = vmatprep.subr.bf16.mxu0 0
    %8096 = vmatpush1.bf16.msra.mxu0 0
    %8097 = vmatprep.subr.bf16.mxu0 0
    %8098 = vmatpush1.bf16.msra.mxu0 0
    %8099 = vmatprep.subr.bf16.mxu0 0
    %8100 = vmatpush1.bf16.msra.mxu0 0
    %8101 = vmatprep.subr.bf16.mxu0 0
    %8102 = vmatpush1.bf16.msra.mxu0 0
    %8103 = vmatprep.subr.bf16.mxu0 0
    %8104 = vmatpush1.bf16.msra.mxu0 0
    %8105 = vmatprep.subr.bf16.mxu0 %v7800
    %8106 = vmatpush1.bf16.msra.mxu0 %v7799
    %8107 = vmatprep.subr.bf16.mxu0 0
    %8108 = vmatpush2.bf16.msra.mxu0 0
    %8109 = vmatprep.subr.bf16.mxu0 0
    %8110 = vmatpush2.bf16.msra.mxu0 0
    %8111 = vmatprep.subr.bf16.mxu0 0
    %8112 = vmatpush2.bf16.msra.mxu0 0
    %8113 = vmatprep.subr.bf16.mxu0 0
    %8114 = vmatpush2.bf16.msra.mxu0 0
    %8115 = vmatprep.subr.bf16.mxu0 0
    %8116 = vmatpush2.bf16.msra.mxu0 0
    %8117 = vmatprep.subr.bf16.mxu0 0
    %8118 = vmatpush2.bf16.msra.mxu0 0
    %8119 = vmatprep.subr.bf16.mxu0 0
    %8120 = vmatpush2.bf16.msra.mxu0 0
    %8121 = vmatprep.subr.bf16.mxu0 0
    %8122 = vmatpush2.bf16.msra.mxu0 0
    %8123 = vmatprep.mubr.bf16.mxu0 0
    %8124 = vmatmul.mubr.bf16.gmra.mxu0 %v7802
    %v8125 = vpop.f32.mrf.mxu0
    %v8126 = vadd.f32 0.0, %v8125
    %v8127 = vpop.f32.mrf.mxu0
    %v8128 = vadd.f32 0.0, %v8127
    %v8129 = vpop.f32.mrf.mxu0
    %v8130 = vpop.f32.mrf.mxu0
    %8131 = vdwg.mxu0
    %v8132 = vsub.f32 %v7343, %v7305
    %v8133 = vsub.f32 %v7350, %v7306
    %v8134 = vsub.f32 %v7357, %v7307
    %v8135 = vsub.f32 %v7364, %v7308
    %v8136 = vsub.f32 %v7371, %v7309
    %v8137 = vsub.f32 %v7378, %v7310
    %v8138 = vsub.f32 %v7385, %v7311
    %v8139 = vsub.f32 %v7392, %v7312
    %v8140 = vsub.f32 %v7399, %v7313
    %v8141 = vsub.f32 %v7406, %v7314
    %v8142 = vsub.f32 %v7413, %v7315
    %v8143 = vsub.f32 %v7420, %v7316
    %v8144 = vsub.f32 %v7427, %v7317
    %v8145 = vsub.f32 %v7434, %v7318
    %v8146 = vsub.f32 %v7441, %v7319
    %v8147 = vsub.f32 %v7448, %v7320
    %v8148 = vsub.f32 %v7343, %v7321
    %v8149 = vsub.f32 %v7350, %v7322
    %v8150 = vsub.f32 %v7357, %v7323
    %v8151 = vsub.f32 %v7364, %v7324
    %v8152 = vsub.f32 %v7371, %v7325
    %v8153 = vsub.f32 %v7378, %v7326
    %v8154 = vsub.f32 %v7385, %v7327
    %v8155 = vsub.f32 %v7392, %v7328
    %v8156 = vsub.f32 %v7399, %v7329
    %v8157 = vsub.f32 %v7406, %v7330
    %v8158 = vsub.f32 %v7413, %v7331
    %v8159 = vsub.f32 %v7420, %v7332
    %v8160 = vsub.f32 %v7427, %v7333
    %v8161 = vsub.f32 %v7434, %v7334
    %v8162 = vsub.f32 %v7441, %v7335
    %v8163 = vsub.f32 %v7448, %v7336
    %v8164 = vmul.f32 %v8132, 1.442695
    %v8165 = vpow.pop %v8164
    %v8166 = vmul.f32 %v8133, 1.442695
    %v8167 = vpow.pop %v8166
    %v8168 = vmul.f32 %v8134, 1.442695
    %v8169 = vpow.pop %v8168
    %v8170 = vmul.f32 %v8135, 1.442695
    %v8171 = vpow.pop %v8170
    %v8172 = vmul.f32 %v8136, 1.442695
    %v8173 = vpow.pop %v8172
    %v8174 = vmul.f32 %v8137, 1.442695
    %v8175 = vpow.pop %v8174
    %v8176 = vmul.f32 %v8138, 1.442695
    %v8177 = vpow.pop %v8176
    %v8178 = vmul.f32 %v8139, 1.442695
    %v8179 = vpow.pop %v8178
    %v8180 = vmul.f32 %v8140, 1.442695
    %v8181 = vpow.pop %v8180
    %v8182 = vmul.f32 %v8141, 1.442695
    %v8183 = vpow.pop %v8182
    %v8184 = vmul.f32 %v8142, 1.442695
    %v8185 = vpow.pop %v8184
    %v8186 = vmul.f32 %v8143, 1.442695
    %v8187 = vpow.pop %v8186
    %v8188 = vmul.f32 %v8144, 1.442695
    %v8189 = vpow.pop %v8188
    %v8190 = vmul.f32 %v8145, 1.442695
    %v8191 = vpow.pop %v8190
    %v8192 = vmul.f32 %v8146, 1.442695
    %v8193 = vpow.pop %v8192
    %v8194 = vmul.f32 %v8147, 1.442695
    %v8195 = vpow.pop %v8194
    %v8196 = vmul.f32 %v8148, 1.442695
    %v8197 = vpow.pop %v8196
    %v8198 = vmul.f32 %v8149, 1.442695
    %v8199 = vpow.pop %v8198
    %v8200 = vmul.f32 %v8150, 1.442695
    %v8201 = vpow.pop %v8200
    %v8202 = vmul.f32 %v8151, 1.442695
    %v8203 = vpow.pop %v8202
    %v8204 = vmul.f32 %v8152, 1.442695
    %v8205 = vpow.pop %v8204
    %v8206 = vmul.f32 %v8153, 1.442695
    %v8207 = vpow.pop %v8206
    %v8208 = vmul.f32 %v8154, 1.442695
    %v8209 = vpow.pop %v8208
    %v8210 = vmul.f32 %v8155, 1.442695
    %v8211 = vpow.pop %v8210
    %v8212 = vmul.f32 %v8156, 1.442695
    %v8213 = vpow.pop %v8212
    %v8214 = vmul.f32 %v8157, 1.442695
    %v8215 = vpow.pop %v8214
    %v8216 = vmul.f32 %v8158, 1.442695
    %v8217 = vpow.pop %v8216
    %v8218 = vmul.f32 %v8159, 1.442695
    %v8219 = vpow.pop %v8218
    %v8220 = vmul.f32 %v8160, 1.442695
    %v8221 = vpow.pop %v8220
    %v8222 = vmul.f32 %v8161, 1.442695
    %v8223 = vpow.pop %v8222
    %v8224 = vmul.f32 %v8162, 1.442695
    %v8225 = vpow.pop %v8224
    %v8226 = vmul.f32 %v8163, 1.442695
    %v8227 = vpow.pop %v8226
    %v8228 = vadd.f32 %v8165, %v8197
    %v8229 = vrot.slane %v8228, 4
    %v8230 = vadd.f32 %v8228, %v8229
    %v8231 = vrot.slane %v8230, 2
    %v8232 = vadd.f32 %v8230, %v8231
    %v8233 = vrot.slane %v8232, 1
    %v8234 = vadd.f32 %v8232, %v8233
    %v8235 = vadd.f32 %v8167, %v8199
    %v8236 = vrot.slane %v8235, 4
    %v8237 = vadd.f32 %v8235, %v8236
    %v8238 = vrot.slane %v8237, 2
    %v8239 = vadd.f32 %v8237, %v8238
    %v8240 = vrot.slane %v8239, 1
    %v8241 = vadd.f32 %v8239, %v8240
    %v8242 = vadd.f32 %v8169, %v8201
    %v8243 = vrot.slane %v8242, 4
    %v8244 = vadd.f32 %v8242, %v8243
    %v8245 = vrot.slane %v8244, 2
    %v8246 = vadd.f32 %v8244, %v8245
    %v8247 = vrot.slane %v8246, 1
    %v8248 = vadd.f32 %v8246, %v8247
    %v8249 = vadd.f32 %v8171, %v8203
    %v8250 = vrot.slane %v8249, 4
    %v8251 = vadd.f32 %v8249, %v8250
    %v8252 = vrot.slane %v8251, 2
    %v8253 = vadd.f32 %v8251, %v8252
    %v8254 = vrot.slane %v8253, 1
    %v8255 = vadd.f32 %v8253, %v8254
    %v8256 = vadd.f32 %v8173, %v8205
    %v8257 = vrot.slane %v8256, 4
    %v8258 = vadd.f32 %v8256, %v8257
    %v8259 = vrot.slane %v8258, 2
    %v8260 = vadd.f32 %v8258, %v8259
    %v8261 = vrot.slane %v8260, 1
    %v8262 = vadd.f32 %v8260, %v8261
    %v8263 = vadd.f32 %v8175, %v8207
    %v8264 = vrot.slane %v8263, 4
    %v8265 = vadd.f32 %v8263, %v8264
    %v8266 = vrot.slane %v8265, 2
    %v8267 = vadd.f32 %v8265, %v8266
    %v8268 = vrot.slane %v8267, 1
    %v8269 = vadd.f32 %v8267, %v8268
    %v8270 = vadd.f32 %v8177, %v8209
    %v8271 = vrot.slane %v8270, 4
    %v8272 = vadd.f32 %v8270, %v8271
    %v8273 = vrot.slane %v8272, 2
    %v8274 = vadd.f32 %v8272, %v8273
    %v8275 = vrot.slane %v8274, 1
    %v8276 = vadd.f32 %v8274, %v8275
    %v8277 = vadd.f32 %v8179, %v8211
    %v8278 = vrot.slane %v8277, 4
    %v8279 = vadd.f32 %v8277, %v8278
    %v8280 = vrot.slane %v8279, 2
    %v8281 = vadd.f32 %v8279, %v8280
    %v8282 = vrot.slane %v8281, 1
    %v8283 = vadd.f32 %v8281, %v8282
    %v8284 = vadd.f32 %v8181, %v8213
    %v8285 = vrot.slane %v8284, 4
    %v8286 = vadd.f32 %v8284, %v8285
    %v8287 = vrot.slane %v8286, 2
    %v8288 = vadd.f32 %v8286, %v8287
    %v8289 = vrot.slane %v8288, 1
    %v8290 = vadd.f32 %v8288, %v8289
    %v8291 = vadd.f32 %v8183, %v8215
    %v8292 = vrot.slane %v8291, 4
    %v8293 = vadd.f32 %v8291, %v8292
    %v8294 = vrot.slane %v8293, 2
    %v8295 = vadd.f32 %v8293, %v8294
    %v8296 = vrot.slane %v8295, 1
    %v8297 = vadd.f32 %v8295, %v8296
    %v8298 = vadd.f32 %v8185, %v8217
    %v8299 = vrot.slane %v8298, 4
    %v8300 = vadd.f32 %v8298, %v8299
    %v8301 = vrot.slane %v8300, 2
    %v8302 = vadd.f32 %v8300, %v8301
    %v8303 = vrot.slane %v8302, 1
    %v8304 = vadd.f32 %v8302, %v8303
    %v8305 = vadd.f32 %v8187, %v8219
    %v8306 = vrot.slane %v8305, 4
    %v8307 = vadd.f32 %v8305, %v8306
    %v8308 = vrot.slane %v8307, 2
    %v8309 = vadd.f32 %v8307, %v8308
    %v8310 = vrot.slane %v8309, 1
    %v8311 = vadd.f32 %v8309, %v8310
    %v8312 = vadd.f32 %v8189, %v8221
    %v8313 = vrot.slane %v8312, 4
    %v8314 = vadd.f32 %v8312, %v8313
    %v8315 = vrot.slane %v8314, 2
    %v8316 = vadd.f32 %v8314, %v8315
    %v8317 = vrot.slane %v8316, 1
    %v8318 = vadd.f32 %v8316, %v8317
    %v8319 = vadd.f32 %v8191, %v8223
    %v8320 = vrot.slane %v8319, 4
    %v8321 = vadd.f32 %v8319, %v8320
    %v8322 = vrot.slane %v8321, 2
    %v8323 = vadd.f32 %v8321, %v8322
    %v8324 = vrot.slane %v8323, 1
    %v8325 = vadd.f32 %v8323, %v8324
    %v8326 = vadd.f32 %v8193, %v8225
    %v8327 = vrot.slane %v8326, 4
    %v8328 = vadd.f32 %v8326, %v8327
    %v8329 = vrot.slane %v8328, 2
    %v8330 = vadd.f32 %v8328, %v8329
    %v8331 = vrot.slane %v8330, 1
    %v8332 = vadd.f32 %v8330, %v8331
    %v8333 = vadd.f32 %v8195, %v8227
    %v8334 = vrot.slane %v8333, 4
    %v8335 = vadd.f32 %v8333, %v8334
    %v8336 = vrot.slane %v8335, 2
    %v8337 = vadd.f32 %v8335, %v8336
    %v8338 = vrot.slane %v8337, 1
    %v8339 = vadd.f32 %v8337, %v8338
    %v8340 = vrcp.pop %v8234
    %v8341 = vmul.f32 1.0, %v8340
    %v8342 = vrcp.pop %v8241
    %v8343 = vmul.f32 1.0, %v8342
    %v8344 = vrcp.pop %v8248
    %v8345 = vmul.f32 1.0, %v8344
    %v8346 = vrcp.pop %v8255
    %v8347 = vmul.f32 1.0, %v8346
    %v8348 = vrcp.pop %v8262
    %v8349 = vmul.f32 1.0, %v8348
    %v8350 = vrcp.pop %v8269
    %v8351 = vmul.f32 1.0, %v8350
    %v8352 = vrcp.pop %v8276
    %v8353 = vmul.f32 1.0, %v8352
    %v8354 = vrcp.pop %v8283
    %v8355 = vmul.f32 1.0, %v8354
    %v8356 = vrcp.pop %v8290
    %v8357 = vmul.f32 1.0, %v8356
    %v8358 = vrcp.pop %v8297
    %v8359 = vmul.f32 1.0, %v8358
    %v8360 = vrcp.pop %v8304
    %v8361 = vmul.f32 1.0, %v8360
    %v8362 = vrcp.pop %v8311
    %v8363 = vmul.f32 1.0, %v8362
    %v8364 = vrcp.pop %v8318
    %v8365 = vmul.f32 1.0, %v8364
    %v8366 = vrcp.pop %v8325
    %v8367 = vmul.f32 1.0, %v8366
    %v8368 = vrcp.pop %v8332
    %v8369 = vmul.f32 1.0, %v8368
    %v8370 = vrcp.pop %v8339
    %v8371 = vmul.f32 1.0, %v8370
    %v8372 = vmul.f32 %v8165, %v8341
    %v8373 = vmul.f32 %v8167, %v8343
    %v8374 = vmul.f32 %v8169, %v8345
    %v8375 = vmul.f32 %v8171, %v8347
    %v8376 = vmul.f32 %v8173, %v8349
    %v8377 = vmul.f32 %v8175, %v8351
    %v8378 = vmul.f32 %v8177, %v8353
    %v8379 = vmul.f32 %v8179, %v8355
    %v8380 = vmul.f32 %v8181, %v8357
    %v8381 = vmul.f32 %v8183, %v8359
    %v8382 = vmul.f32 %v8185, %v8361
    %v8383 = vmul.f32 %v8187, %v8363
    %v8384 = vmul.f32 %v8189, %v8365
    %v8385 = vmul.f32 %v8191, %v8367
    %v8386 = vmul.f32 %v8193, %v8369
    %v8387 = vmul.f32 %v8195, %v8371
    %v8388 = vmul.f32 %v8197, %v8341
    %v8389 = vmul.f32 %v8199, %v8343
    %v8390 = vmul.f32 %v8201, %v8345
    %v8391 = vmul.f32 %v8203, %v8347
    %v8392 = vmul.f32 %v8205, %v8349
    %v8393 = vmul.f32 %v8207, %v8351
    %v8394 = vmul.f32 %v8209, %v8353
    %v8395 = vmul.f32 %v8211, %v8355
    %v8396 = vmul.f32 %v8213, %v8357
    %v8397 = vmul.f32 %v8215, %v8359
    %v8398 = vmul.f32 %v8217, %v8361
    %v8399 = vmul.f32 %v8219, %v8363
    %v8400 = vmul.f32 %v8221, %v8365
    %v8401 = vmul.f32 %v8223, %v8367
    %v8402 = vmul.f32 %v8225, %v8369
    %v8403 = vmul.f32 %v8227, %v8371
    %v8404 = vsub.f32 %v6631, %v7839
    %v8405 = vsub.f32 %v6632, %v7841
    %v8406 = vsub.f32 %v6633, %v7880
    %v8407 = vsub.f32 %v6634, %v7882
    %v8408 = vsub.f32 %v6635, %v7921
    %v8409 = vsub.f32 %v6636, %v7923
    %v8410 = vsub.f32 %v6637, %v7962
    %v8411 = vsub.f32 %v6638, %v7964
    %v8412 = vsub.f32 %v6639, %v8003
    %v8413 = vsub.f32 %v6640, %v8005
    %v8414 = vsub.f32 %v6641, %v8044
    %v8415 = vsub.f32 %v6642, %v8046
    %v8416 = vsub.f32 %v6643, %v8085
    %v8417 = vsub.f32 %v6644, %v8087
    %v8418 = vsub.f32 %v6645, %v8126
    %v8419 = vsub.f32 %v6646, %v8128
    %v8420 = vmul.f32 %v8404, %v8404
    %v8421 = vmul.f32 %v8405, %v8405
    %v8422 = vmul.f32 %v8406, %v8406
    %v8423 = vmul.f32 %v8407, %v8407
    %v8424 = vmul.f32 %v8408, %v8408
    %v8425 = vmul.f32 %v8409, %v8409
    %v8426 = vmul.f32 %v8410, %v8410
    %v8427 = vmul.f32 %v8411, %v8411
    %v8428 = vmul.f32 %v8412, %v8412
    %v8429 = vmul.f32 %v8413, %v8413
    %v8430 = vmul.f32 %v8414, %v8414
    %v8431 = vmul.f32 %v8415, %v8415
    %v8432 = vmul.f32 %v8416, %v8416
    %v8433 = vmul.f32 %v8417, %v8417
    %v8434 = vmul.f32 %v8418, %v8418
    %v8435 = vmul.f32 %v8419, %v8419
    %v8436 = vrot.slane %v8420, 4
    %v8437 = vadd.f32 %v8420, %v8436
    %v8438 = vrot.slane %v8437, 2
    %v8439 = vadd.f32 %v8437, %v8438
    %v8440 = vrot.slane %v8439, 1
    %v8441 = vadd.f32 %v8439, %v8440
    %v8442 = vrot.slane %v8421, 4
    %v8443 = vadd.f32 %v8421, %v8442
    %v8444 = vrot.slane %v8443, 2
    %v8445 = vadd.f32 %v8443, %v8444
    %v8446 = vrot.slane %v8445, 1
    %v8447 = vadd.f32 %v8445, %v8446
    %v8448 = vrot.slane %v8422, 4
    %v8449 = vadd.f32 %v8422, %v8448
    %v8450 = vrot.slane %v8449, 2
    %v8451 = vadd.f32 %v8449, %v8450
    %v8452 = vrot.slane %v8451, 1
    %v8453 = vadd.f32 %v8451, %v8452
    %v8454 = vrot.slane %v8423, 4
    %v8455 = vadd.f32 %v8423, %v8454
    %v8456 = vrot.slane %v8455, 2
    %v8457 = vadd.f32 %v8455, %v8456
    %v8458 = vrot.slane %v8457, 1
    %v8459 = vadd.f32 %v8457, %v8458
    %v8460 = vrot.slane %v8424, 4
    %v8461 = vadd.f32 %v8424, %v8460
    %v8462 = vrot.slane %v8461, 2
    %v8463 = vadd.f32 %v8461, %v8462
    %v8464 = vrot.slane %v8463, 1
    %v8465 = vadd.f32 %v8463, %v8464
    %v8466 = vrot.slane %v8425, 4
    %v8467 = vadd.f32 %v8425, %v8466
    %v8468 = vrot.slane %v8467, 2
    %v8469 = vadd.f32 %v8467, %v8468
    %v8470 = vrot.slane %v8469, 1
    %v8471 = vadd.f32 %v8469, %v8470
    %v8472 = vrot.slane %v8426, 4
    %v8473 = vadd.f32 %v8426, %v8472
    %v8474 = vrot.slane %v8473, 2
    %v8475 = vadd.f32 %v8473, %v8474
    %v8476 = vrot.slane %v8475, 1
    %v8477 = vadd.f32 %v8475, %v8476
    %v8478 = vrot.slane %v8427, 4
    %v8479 = vadd.f32 %v8427, %v8478
    %v8480 = vrot.slane %v8479, 2
    %v8481 = vadd.f32 %v8479, %v8480
    %v8482 = vrot.slane %v8481, 1
    %v8483 = vadd.f32 %v8481, %v8482
    %v8484 = vrot.slane %v8428, 4
    %v8485 = vadd.f32 %v8428, %v8484
    %v8486 = vrot.slane %v8485, 2
    %v8487 = vadd.f32 %v8485, %v8486
    %v8488 = vrot.slane %v8487, 1
    %v8489 = vadd.f32 %v8487, %v8488
    %v8490 = vrot.slane %v8429, 4
    %v8491 = vadd.f32 %v8429, %v8490
    %v8492 = vrot.slane %v8491, 2
    %v8493 = vadd.f32 %v8491, %v8492
    %v8494 = vrot.slane %v8493, 1
    %v8495 = vadd.f32 %v8493, %v8494
    %v8496 = vrot.slane %v8430, 4
    %v8497 = vadd.f32 %v8430, %v8496
    %v8498 = vrot.slane %v8497, 2
    %v8499 = vadd.f32 %v8497, %v8498
    %v8500 = vrot.slane %v8499, 1
    %v8501 = vadd.f32 %v8499, %v8500
    %v8502 = vrot.slane %v8431, 4
    %v8503 = vadd.f32 %v8431, %v8502
    %v8504 = vrot.slane %v8503, 2
    %v8505 = vadd.f32 %v8503, %v8504
    %v8506 = vrot.slane %v8505, 1
    %v8507 = vadd.f32 %v8505, %v8506
    %v8508 = vrot.slane %v8432, 4
    %v8509 = vadd.f32 %v8432, %v8508
    %v8510 = vrot.slane %v8509, 2
    %v8511 = vadd.f32 %v8509, %v8510
    %v8512 = vrot.slane %v8511, 1
    %v8513 = vadd.f32 %v8511, %v8512
    %v8514 = vrot.slane %v8433, 4
    %v8515 = vadd.f32 %v8433, %v8514
    %v8516 = vrot.slane %v8515, 2
    %v8517 = vadd.f32 %v8515, %v8516
    %v8518 = vrot.slane %v8517, 1
    %v8519 = vadd.f32 %v8517, %v8518
    %v8520 = vrot.slane %v8434, 4
    %v8521 = vadd.f32 %v8434, %v8520
    %v8522 = vrot.slane %v8521, 2
    %v8523 = vadd.f32 %v8521, %v8522
    %v8524 = vrot.slane %v8523, 1
    %v8525 = vadd.f32 %v8523, %v8524
    %v8526 = vrot.slane %v8435, 4
    %v8527 = vadd.f32 %v8435, %v8526
    %v8528 = vrot.slane %v8527, 2
    %v8529 = vadd.f32 %v8527, %v8528
    %v8530 = vrot.slane %v8529, 1
    %v8531 = vadd.f32 %v8529, %v8530
    %v8532 = vmul.f32 %v8441, 0.1250125
    %v8533 = vmul.f32 %v8447, 0.1250125
    %v8534 = vmul.f32 %v8453, 0.1250125
    %v8535 = vmul.f32 %v8459, 0.1250125
    %v8536 = vmul.f32 %v8465, 0.1250125
    %v8537 = vmul.f32 %v8471, 0.1250125
    %v8538 = vmul.f32 %v8477, 0.1250125
    %v8539 = vmul.f32 %v8483, 0.1250125
    %v8540 = vmul.f32 %v8489, 0.1250125
    %v8541 = vmul.f32 %v8495, 0.1250125
    %v8542 = vmul.f32 %v8501, 0.1250125
    %v8543 = vmul.f32 %v8507, 0.1250125
    %v8544 = vmul.f32 %v8513, 0.1250125
    %v8545 = vmul.f32 %v8519, 0.1250125
    %v8546 = vmul.f32 %v8525, 0.1250125
    %v8547 = vmul.f32 %v8531, 0.1250125
    %v8548 = vadd.f32 %v6775, %v8532
    %v8549 = vadd.f32 %v6776, %v8533
    %v8550 = vadd.f32 %v6777, %v8534
    %v8551 = vadd.f32 %v6778, %v8535
    %v8552 = vadd.f32 %v6779, %v8536
    %v8553 = vadd.f32 %v6780, %v8537
    %v8554 = vadd.f32 %v6781, %v8538
    %v8555 = vadd.f32 %v6782, %v8539
    %v8556 = vadd.f32 %v6783, %v8540
    %v8557 = vadd.f32 %v6784, %v8541
    %v8558 = vadd.f32 %v6785, %v8542
    %v8559 = vadd.f32 %v6786, %v8543
    %v8560 = vadd.f32 %v6787, %v8544
    %v8561 = vadd.f32 %v6788, %v8545
    %v8562 = vadd.f32 %v6789, %v8546
    %v8563 = vadd.f32 %v6790, %v8547
    %8564 = vst [vmem:[#allocation6 + $0x300] sm:$0xff] %v8372
    %8565 = vst [vmem:[#allocation6 + $0x308] sm:$0xff] %v8373
    %8566 = vst [vmem:[#allocation6 + $0x310] sm:$0xff] %v8374
    %8567 = vst [vmem:[#allocation6 + $0x318] sm:$0xff] %v8375
    %8568 = vst [vmem:[#allocation6 + $0x320] sm:$0xff] %v8376
    %8569 = vst [vmem:[#allocation6 + $0x328] sm:$0xff] %v8377
    %8570 = vst [vmem:[#allocation6 + $0x330] sm:$0xff] %v8378
    %8571 = vst [vmem:[#allocation6 + $0x338] sm:$0xff] %v8379
    %8572 = vst [vmem:[#allocation6 + $0x340] sm:$0xff] %v8380
    %8573 = vst [vmem:[#allocation6 + $0x348] sm:$0xff] %v8381
    %8574 = vst [vmem:[#allocation6 + $0x350] sm:$0xff] %v8382
    %8575 = vst [vmem:[#allocation6 + $0x358] sm:$0xff] %v8383
    %8576 = vst [vmem:[#allocation6 + $0x360] sm:$0xff] %v8384
    %8577 = vst [vmem:[#allocation6 + $0x368] sm:$0xff] %v8385
    %8578 = vst [vmem:[#allocation6 + $0x370] sm:$0xff] %v8386
    %8579 = vst [vmem:[#allocation6 + $0x378] sm:$0xff] %v8387
    %8580 = vst [vmem:[#allocation6 + $0x380] sm:$0xff] %v8388
    %8581 = vst [vmem:[#allocation6 + $0x388] sm:$0xff] %v8389
    %8582 = vst [vmem:[#allocation6 + $0x390] sm:$0xff] %v8390
    %8583 = vst [vmem:[#allocation6 + $0x398] sm:$0xff] %v8391
    %8584 = vst [vmem:[#allocation6 + $0x3a0] sm:$0xff] %v8392
    %8585 = vst [vmem:[#allocation6 + $0x3a8] sm:$0xff] %v8393
    %8586 = vst [vmem:[#allocation6 + $0x3b0] sm:$0xff] %v8394
    %8587 = vst [vmem:[#allocation6 + $0x3b8] sm:$0xff] %v8395
    %8588 = vst [vmem:[#allocation6 + $0x3c0] sm:$0xff] %v8396
    %8589 = vst [vmem:[#allocation6 + $0x3c8] sm:$0xff] %v8397
    %8590 = vst [vmem:[#allocation6 + $0x3d0] sm:$0xff] %v8398
    %8591 = vst [vmem:[#allocation6 + $0x3d8] sm:$0xff] %v8399
    %8592 = vst [vmem:[#allocation6 + $0x3e0] sm:$0xff] %v8400
    %8593 = vst [vmem:[#allocation6 + $0x3e8] sm:$0xff] %v8401
    %8594 = vst [vmem:[#allocation6 + $0x3f0] sm:$0xff] %v8402
    %8595 = vst [vmem:[#allocation6 + $0x3f8] sm:$0xff] %v8403
    %v8596 = vadd.f32 %v6823, %v7839
    %v8597 = vadd.f32 %v6824, %v7841
    %v8598 = vadd.f32 %v6825, %v7880
    %v8599 = vadd.f32 %v6826, %v7882
    %v8600 = vadd.f32 %v6827, %v7921
    %v8601 = vadd.f32 %v6828, %v7923
    %v8602 = vadd.f32 %v6829, %v7962
    %v8603 = vadd.f32 %v6830, %v7964
    %v8604 = vadd.f32 %v6831, %v8003
    %v8605 = vadd.f32 %v6832, %v8005
    %v8606 = vadd.f32 %v6833, %v8044
    %v8607 = vadd.f32 %v6834, %v8046
    %v8608 = vadd.f32 %v6835, %v8085
    %v8609 = vadd.f32 %v6836, %v8087
    %v8610 = vadd.f32 %v6837, %v8126
    %v8611 = vadd.f32 %v6838, %v8128
    %vm8612 = vcmask 1040384
    %v8613 = vsel %vm8612, %v2204, %v3977
    %v8614 = vsel %vm8612, %v2215, %v3988
    %v8615 = vsel %vm8612, %v2226, %v3999
    %v8616 = vsel %vm8612, %v2237, %v4010
    %v8617 = vsel %vm8612, %v2248, %v4021
    %v8618 = vsel %vm8612, %v2259, %v4032
    %v8619 = vsel %vm8612, %v2270, %v4043
    %v8620 = vsel %vm8612, %v2281, %v4054
    %v8621 = vsel %vm8612, %v2292, %v4065
    %v8622 = vsel %vm8612, %v2303, %v4076
    %v8623 = vsel %vm8612, %v2314, %v4087
    %v8624 = vsel %vm8612, %v2325, %v4098
    %v8625 = vsel %vm8612, %v2336, %v4109
    %v8626 = vsel %vm8612, %v2347, %v4120
    %v8627 = vsel %vm8612, %v2358, %v4131
    %v8628 = vsel %vm8612, %v2369, %v4142
    %vm8629 = vcmask 1041408
    %v8630 = vsel %vm8629, %v8613, %v5750
    %v8631 = vsel %vm8629, %v8614, %v5761
    %v8632 = vsel %vm8629, %v8615, %v5772
    %v8633 = vsel %vm8629, %v8616, %v5783
    %v8634 = vsel %vm8629, %v8617, %v5794
    %v8635 = vsel %vm8629, %v8618, %v5805
    %v8636 = vsel %vm8629, %v8619, %v5816
    %v8637 = vsel %vm8629, %v8620, %v5827
    %v8638 = vsel %vm8629, %v8621, %v5838
    %v8639 = vsel %vm8629, %v8622, %v5849
    %v8640 = vsel %vm8629, %v8623, %v5860
    %v8641 = vsel %vm8629, %v8624, %v5871
    %v8642 = vsel %vm8629, %v8625, %v5882
    %v8643 = vsel %vm8629, %v8626, %v5893
    %v8644 = vsel %vm8629, %v8627, %v5904
    %v8645 = vsel %vm8629, %v8628, %v5915
    %vm8646 = vcmask 1042432
    %v8647 = vsel %vm8646, %v8630, %v7523
    %v8648 = vsel %vm8646, %v8631, %v7534
    %v8649 = vsel %vm8646, %v8632, %v7545
    %v8650 = vsel %vm8646, %v8633, %v7556
    %v8651 = vsel %vm8646, %v8634, %v7567
    %v8652 = vsel %vm8646, %v8635, %v7578
    %v8653 = vsel %vm8646, %v8636, %v7589
    %v8654 = vsel %vm8646, %v8637, %v7600
    %v8655 = vsel %vm8646, %v8638, %v7611
    %v8656 = vsel %vm8646, %v8639, %v7622
    %v8657 = vsel %vm8646, %v8640, %v7633
    %v8658 = vsel %vm8646, %v8641, %v7644
    %v8659 = vsel %vm8646, %v8642, %v7655
    %v8660 = vsel %vm8646, %v8643, %v7666
    %v8661 = vsel %vm8646, %v8644, %v7677
    %v8662 = vsel %vm8646, %v8645, %v7688
    %v8663 = vcombine.low %v8647, %v8648
    %v8664 = vcombine.low %v8649, %v8650
    %v8665 = vcombine.low %v8651, %v8652
    %v8666 = vcombine.low %v8653, %v8654
    %v8667 = vcombine.low %v8655, %v8656
    %v8668 = vcombine.low %v8657, %v8658
    %v8669 = vcombine.low %v8659, %v8660
    %v8670 = vcombine.low %v8661, %v8662
    %8671 = vst [vmem:[#allocation5] sm:$0xff] %v8663
    %8672 = vst [vmem:[#allocation5 + $0x8] sm:$0xff] %v8664
    %8673 = vst [vmem:[#allocation5 + $0x10] sm:$0xff] %v8665
    %8674 = vst [vmem:[#allocation5 + $0x18] sm:$0xff] %v8666
    %8675 = vst [vmem:[#allocation5 + $0x20] sm:$0xff] %v8667
    %8676 = vst [vmem:[#allocation5 + $0x28] sm:$0xff] %v8668
    %8677 = vst [vmem:[#allocation5 + $0x30] sm:$0xff] %v8669
    %8678 = vst [vmem:[#allocation5 + $0x38] sm:$0xff] %v8670
    %v8679 = vpack.c.bf16 %v8596, %v8596
    %v8680 = vpack.c.bf16 %v8597, %v8597
    %v8681 = vpack.c.bf16 %v8598, %v8598
    %v8682 = vpack.c.bf16 %v8599, %v8599
    %v8683 = vpack.c.bf16 %v8600, %v8600
    %v8684 = vpack.c.bf16 %v8601, %v8601
    %v8685 = vpack.c.bf16 %v8602, %v8602
    %v8686 = vpack.c.bf16 %v8603, %v8603
    %v8687 = vpack.c.bf16 %v8604, %v8604
    %v8688 = vpack.c.bf16 %v8605, %v8605
    %v8689 = vpack.c.bf16 %v8606, %v8606
    %v8690 = vpack.c.bf16 %v8607, %v8607
    %v8691 = vpack.c.bf16 %v8608, %v8608
    %v8692 = vpack.c.bf16 %v8609, %v8609
    %v8693 = vpack.c.bf16 %v8610, %v8610
    %v8694 = vpack.c.bf16 %v8611, %v8611
    %8696 = vset.pattern.permute.xlu0 0
    %8697 = vperm.xlu0 %8696, %v90
    %v8698 = vpop.permute.xlu0 %8697
    %8701 = vset.pattern.permute.xlu0 0
    %8702 = vperm.xlu0 %8701, %v91
    %v8703 = vpop.permute.xlu0 %8702
    %v8707 = vunpack.c.l.b16 %v88
    %v8708 = vunpack.c.l.b16 %v89
    %v8709 = vpack.c.b16 %v8708, %v8707
    %v8711 = vsel %vm1545, %v8709, 0
    %v8714 = vsel %vm741, %v8679, 0
    %v8717 = vsel %vm741, %v8680, 0
    %v8720 = vsel %vm741, %v8681, 0
    %v8723 = vsel %vm741, %v8682, 0
    %v8726 = vsel %vm741, %v8683, 0
    %v8729 = vsel %vm741, %v8684, 0
    %v8732 = vsel %vm741, %v8685, 0
    %v8735 = vsel %vm741, %v8686, 0
    %v8738 = vsel %vm741, %v8687, 0
    %v8741 = vsel %vm741, %v8688, 0
    %v8744 = vsel %vm741, %v8689, 0
    %v8747 = vsel %vm741, %v8690, 0
    %v8750 = vsel %vm741, %v8691, 0
    %v8753 = vsel %vm741, %v8692, 0
    %v8756 = vsel %vm741, %v8693, 0
    %v8759 = vsel %vm741, %v8694, 0
    %8761 = vmatprep.subr.bf16.mxu0 0
    %8762 = vmatpush1.bf16.msra.mxu0 0
    %8763 = vmatprep.subr.bf16.mxu0 0
    %8764 = vmatpush1.bf16.msra.mxu0 0
    %8765 = vmatprep.subr.bf16.mxu0 0
    %8766 = vmatpush1.bf16.msra.mxu0 0
    %8767 = vmatprep.subr.bf16.mxu0 0
    %8768 = vmatpush1.bf16.msra.mxu0 0
    %8769 = vmatprep.subr.bf16.mxu0 0
    %8770 = vmatpush1.bf16.msra.mxu0 0
    %8771 = vmatprep.subr.bf16.mxu0 0
    %8772 = vmatpush1.bf16.msra.mxu0 0
    %8773 = vmatprep.subr.bf16.mxu0 0
    %8774 = vmatpush1.bf16.msra.mxu0 0
    %8775 = vmatprep.subr.bf16.mxu0 %v8717
    %8776 = vmatpush1.bf16.msra.mxu0 %v8714
    %8777 = vmatprep.subr.bf16.mxu0 0
    %8778 = vmatpush2.bf16.msra.mxu0 0
    %8779 = vmatprep.subr.bf16.mxu0 0
    %8780 = vmatpush2.bf16.msra.mxu0 0
    %8781 = vmatprep.subr.bf16.mxu0 0
    %8782 = vmatpush2.bf16.msra.mxu0 0
    %8783 = vmatprep.subr.bf16.mxu0 0
    %8784 = vmatpush2.bf16.msra.mxu0 0
    %8785 = vmatprep.subr.bf16.mxu0 0
    %8786 = vmatpush2.bf16.msra.mxu0 0
    %8787 = vmatprep.subr.bf16.mxu0 0
    %8788 = vmatpush2.bf16.msra.mxu0 0
    %8789 = vmatprep.subr.bf16.mxu0 0
    %8790 = vmatpush2.bf16.msra.mxu0 0
    %8791 = vmatprep.subr.bf16.mxu0 0
    %8792 = vmatpush2.bf16.msra.mxu0 0
    %8793 = vmatprep.mubr.bf16.mxu0 0
    %8794 = vmatmul.mubr.bf16.gmra.mxu0 %v8711
    %v8795 = vpop.f32.mrf.mxu0
    %v8796 = vadd.f32 %v8698, %v8795
    %v8797 = vpop.f32.mrf.mxu0
    %v8798 = vadd.f32 %v8698, %v8797
    %v8799 = vpop.f32.mrf.mxu0
    %v8800 = vadd.f32 %v8703, %v8799
    %v8801 = vpop.f32.mrf.mxu0
    %v8802 = vadd.f32 %v8703, %v8801
    %8803 = vdwg.mxu0
    %8804 = vmatprep.subr.bf16.mxu0 0
    %8805 = vmatpush1.bf16.msra.mxu0 0
    %8806 = vmatprep.subr.bf16.mxu0 0
    %8807 = vmatpush1.bf16.msra.mxu0 0
    %8808 = vmatprep.subr.bf16.mxu0 0
    %8809 = vmatpush1.bf16.msra.mxu0 0
    %8810 = vmatprep.subr.bf16.mxu0 0
    %8811 = vmatpush1.bf16.msra.mxu0 0
    %8812 = vmatprep.subr.bf16.mxu0 0
    %8813 = vmatpush1.bf16.msra.mxu0 0
    %8814 = vmatprep.subr.bf16.mxu0 0
    %8815 = vmatpush1.bf16.msra.mxu0 0
    %8816 = vmatprep.subr.bf16.mxu0 0
    %8817 = vmatpush1.bf16.msra.mxu0 0
    %8818 = vmatprep.subr.bf16.mxu0 %v8723
    %8819 = vmatpush1.bf16.msra.mxu0 %v8720
    %8820 = vmatprep.subr.bf16.mxu0 0
    %8821 = vmatpush2.bf16.msra.mxu0 0
    %8822 = vmatprep.subr.bf16.mxu0 0
    %8823 = vmatpush2.bf16.msra.mxu0 0
    %8824 = vmatprep.subr.bf16.mxu0 0
    %8825 = vmatpush2.bf16.msra.mxu0 0
    %8826 = vmatprep.subr.bf16.mxu0 0
    %8827 = vmatpush2.bf16.msra.mxu0 0
    %8828 = vmatprep.subr.bf16.mxu0 0
    %8829 = vmatpush2.bf16.msra.mxu0 0
    %8830 = vmatprep.subr.bf16.mxu0 0
    %8831 = vmatpush2.bf16.msra.mxu0 0
    %8832 = vmatprep.subr.bf16.mxu0 0
    %8833 = vmatpush2.bf16.msra.mxu0 0
    %8834 = vmatprep.subr.bf16.mxu0 0
    %8835 = vmatpush2.bf16.msra.mxu0 0
    %8836 = vmatprep.mubr.bf16.mxu0 0
    %8837 = vmatmul.mubr.bf16.gmra.mxu0 %v8711
    %v8838 = vpop.f32.mrf.mxu0
    %v8839 = vadd.f32 %v8698, %v8838
    %v8840 = vpop.f32.mrf.mxu0
    %v8841 = vadd.f32 %v8698, %v8840
    %v8842 = vpop.f32.mrf.mxu0
    %v8843 = vadd.f32 %v8703, %v8842
    %v8844 = vpop.f32.mrf.mxu0
    %v8845 = vadd.f32 %v8703, %v8844
    %8846 = vdwg.mxu0
    %8847 = vmatprep.subr.bf16.mxu0 0
    %8848 = vmatpush1.bf16.msra.mxu0 0
    %8849 = vmatprep.subr.bf16.mxu0 0
    %8850 = vmatpush1.bf16.msra.mxu0 0
    %8851 = vmatprep.subr.bf16.mxu0 0
    %8852 = vmatpush1.bf16.msra.mxu0 0
    %8853 = vmatprep.subr.bf16.mxu0 0
    %8854 = vmatpush1.bf16.msra.mxu0 0
    %8855 = vmatprep.subr.bf16.mxu0 0
    %8856 = vmatpush1.bf16.msra.mxu0 0
    %8857 = vmatprep.subr.bf16.mxu0 0
    %8858 = vmatpush1.bf16.msra.mxu0 0
    %8859 = vmatprep.subr.bf16.mxu0 0
    %8860 = vmatpush1.bf16.msra.mxu0 0
    %8861 = vmatprep.subr.bf16.mxu0 %v8729
    %8862 = vmatpush1.bf16.msra.mxu0 %v8726
    %8863 = vmatprep.subr.bf16.mxu0 0
    %8864 = vmatpush2.bf16.msra.mxu0 0
    %8865 = vmatprep.subr.bf16.mxu0 0
    %8866 = vmatpush2.bf16.msra.mxu0 0
    %8867 = vmatprep.subr.bf16.mxu0 0
    %8868 = vmatpush2.bf16.msra.mxu0 0
    %8869 = vmatprep.subr.bf16.mxu0 0
    %8870 = vmatpush2.bf16.msra.mxu0 0
    %8871 = vmatprep.subr.bf16.mxu0 0
    %8872 = vmatpush2.bf16.msra.mxu0 0
    %8873 = vmatprep.subr.bf16.mxu0 0
    %8874 = vmatpush2.bf16.msra.mxu0 0
    %8875 = vmatprep.subr.bf16.mxu0 0
    %8876 = vmatpush2.bf16.msra.mxu0 0
    %8877 = vmatprep.subr.bf16.mxu0 0
    %8878 = vmatpush2.bf16.msra.mxu0 0
    %8879 = vmatprep.mubr.bf16.mxu0 0
    %8880 = vmatmul.mubr.bf16.gmra.mxu0 %v8711
    %v8881 = vpop.f32.mrf.mxu0
    %v8882 = vadd.f32 %v8698, %v8881
    %v8883 = vpop.f32.mrf.mxu0
    %v8884 = vadd.f32 %v8698, %v8883
    %v8885 = vpop.f32.mrf.mxu0
    %v8886 = vadd.f32 %v8703, %v8885
    %v8887 = vpop.f32.mrf.mxu0
    %v8888 = vadd.f32 %v8703, %v8887
    %8889 = vdwg.mxu0
    %8890 = vmatprep.subr.bf16.mxu0 0
    %8891 = vmatpush1.bf16.msra.mxu0 0
    %8892 = vmatprep.subr.bf16.mxu0 0
    %8893 = vmatpush1.bf16.msra.mxu0 0
    %8894 = vmatprep.subr.bf16.mxu0 0
    %8895 = vmatpush1.bf16.msra.mxu0 0
    %8896 = vmatprep.subr.bf16.mxu0 0
    %8897 = vmatpush1.bf16.msra.mxu0 0
    %8898 = vmatprep.subr.bf16.mxu0 0
    %8899 = vmatpush1.bf16.msra.mxu0 0
    %8900 = vmatprep.subr.bf16.mxu0 0
    %8901 = vmatpush1.bf16.msra.mxu0 0
    %8902 = vmatprep.subr.bf16.mxu0 0
    %8903 = vmatpush1.bf16.msra.mxu0 0
    %8904 = vmatprep.subr.bf16.mxu0 %v8735
    %8905 = vmatpush1.bf16.msra.mxu0 %v8732
    %8906 = vmatprep.subr.bf16.mxu0 0
    %8907 = vmatpush2.bf16.msra.mxu0 0
    %8908 = vmatprep.subr.bf16.mxu0 0
    %8909 = vmatpush2.bf16.msra.mxu0 0
    %8910 = vmatprep.subr.bf16.mxu0 0
    %8911 = vmatpush2.bf16.msra.mxu0 0
    %8912 = vmatprep.subr.bf16.mxu0 0
    %8913 = vmatpush2.bf16.msra.mxu0 0
    %8914 = vmatprep.subr.bf16.mxu0 0
    %8915 = vmatpush2.bf16.msra.mxu0 0
    %8916 = vmatprep.subr.bf16.mxu0 0
    %8917 = vmatpush2.bf16.msra.mxu0 0
    %8918 = vmatprep.subr.bf16.mxu0 0
    %8919 = vmatpush2.bf16.msra.mxu0 0
    %8920 = vmatprep.subr.bf16.mxu0 0
    %8921 = vmatpush2.bf16.msra.mxu0 0
    %8922 = vmatprep.mubr.bf16.mxu0 0
    %8923 = vmatmul.mubr.bf16.gmra.mxu0 %v8711
    %v8924 = vpop.f32.mrf.mxu0
    %v8925 = vadd.f32 %v8698, %v8924
    %v8926 = vpop.f32.mrf.mxu0
    %v8927 = vadd.f32 %v8698, %v8926
    %v8928 = vpop.f32.mrf.mxu0
    %v8929 = vadd.f32 %v8703, %v8928
    %v8930 = vpop.f32.mrf.mxu0
    %v8931 = vadd.f32 %v8703, %v8930
    %8932 = vdwg.mxu0
    %8933 = vmatprep.subr.bf16.mxu0 0
    %8934 = vmatpush1.bf16.msra.mxu0 0
    %8935 = vmatprep.subr.bf16.mxu0 0
    %8936 = vmatpush1.bf16.msra.mxu0 0
    %8937 = vmatprep.subr.bf16.mxu0 0
    %8938 = vmatpush1.bf16.msra.mxu0 0
    %8939 = vmatprep.subr.bf16.mxu0 0
    %8940 = vmatpush1.bf16.msra.mxu0 0
    %8941 = vmatprep.subr.bf16.mxu0 0
    %8942 = vmatpush1.bf16.msra.mxu0 0
    %8943 = vmatprep.subr.bf16.mxu0 0
    %8944 = vmatpush1.bf16.msra.mxu0 0
    %8945 = vmatprep.subr.bf16.mxu0 0
    %8946 = vmatpush1.bf16.msra.mxu0 0
    %8947 = vmatprep.subr.bf16.mxu0 %v8741
    %8948 = vmatpush1.bf16.msra.mxu0 %v8738
    %8949 = vmatprep.subr.bf16.mxu0 0
    %8950 = vmatpush2.bf16.msra.mxu0 0
    %8951 = vmatprep.subr.bf16.mxu0 0
    %8952 = vmatpush2.bf16.msra.mxu0 0
    %8953 = vmatprep.subr.bf16.mxu0 0
    %8954 = vmatpush2.bf16.msra.mxu0 0
    %8955 = vmatprep.subr.bf16.mxu0 0
    %8956 = vmatpush2.bf16.msra.mxu0 0
    %8957 = vmatprep.subr.bf16.mxu0 0
    %8958 = vmatpush2.bf16.msra.mxu0 0
    %8959 = vmatprep.subr.bf16.mxu0 0
    %8960 = vmatpush2.bf16.msra.mxu0 0
    %8961 = vmatprep.subr.bf16.mxu0 0
    %8962 = vmatpush2.bf16.msra.mxu0 0
    %8963 = vmatprep.subr.bf16.mxu0 0
    %8964 = vmatpush2.bf16.msra.mxu0 0
    %8965 = vmatprep.mubr.bf16.mxu0 0
    %8966 = vmatmul.mubr.bf16.gmra.mxu0 %v8711
    %v8967 = vpop.f32.mrf.mxu0
    %v8968 = vadd.f32 %v8698, %v8967
    %v8969 = vpop.f32.mrf.mxu0
    %v8970 = vadd.f32 %v8698, %v8969
    %v8971 = vpop.f32.mrf.mxu0
    %v8972 = vadd.f32 %v8703, %v8971
    %v8973 = vpop.f32.mrf.mxu0
    %v8974 = vadd.f32 %v8703, %v8973
    %8975 = vdwg.mxu0
    %8976 = vmatprep.subr.bf16.mxu0 0
    %8977 = vmatpush1.bf16.msra.mxu0 0
    %8978 = vmatprep.subr.bf16.mxu0 0
    %8979 = vmatpush1.bf16.msra.mxu0 0
    %8980 = vmatprep.subr.bf16.mxu0 0
    %8981 = vmatpush1.bf16.msra.mxu0 0
    %8982 = vmatprep.subr.bf16.mxu0 0
    %8983 = vmatpush1.bf16.msra.mxu0 0
    %8984 = vmatprep.subr.bf16.mxu0 0
    %8985 = vmatpush1.bf16.msra.mxu0 0
    %8986 = vmatprep.subr.bf16.mxu0 0
    %8987 = vmatpush1.bf16.msra.mxu0 0
    %8988 = vmatprep.subr.bf16.mxu0 0
    %8989 = vmatpush1.bf16.msra.mxu0 0
    %8990 = vmatprep.subr.bf16.mxu0 %v8747
    %8991 = vmatpush1.bf16.msra.mxu0 %v8744
    %8992 = vmatprep.subr.bf16.mxu0 0
    %8993 = vmatpush2.bf16.msra.mxu0 0
    %8994 = vmatprep.subr.bf16.mxu0 0
    %8995 = vmatpush2.bf16.msra.mxu0 0
    %8996 = vmatprep.subr.bf16.mxu0 0
    %8997 = vmatpush2.bf16.msra.mxu0 0
    %8998 = vmatprep.subr.bf16.mxu0 0
    %8999 = vmatpush2.bf16.msra.mxu0 0
    %9000 = vmatprep.subr.bf16.mxu0 0
    %9001 = vmatpush2.bf16.msra.mxu0 0
    %9002 = vmatprep.subr.bf16.mxu0 0
    %9003 = vmatpush2.bf16.msra.mxu0 0
    %9004 = vmatprep.subr.bf16.mxu0 0
    %9005 = vmatpush2.bf16.msra.mxu0 0
    %9006 = vmatprep.subr.bf16.mxu0 0
    %9007 = vmatpush2.bf16.msra.mxu0 0
    %9008 = vmatprep.mubr.bf16.mxu0 0
    %9009 = vmatmul.mubr.bf16.gmra.mxu0 %v8711
    %v9010 = vpop.f32.mrf.mxu0
    %v9011 = vadd.f32 %v8698, %v9010
    %v9012 = vpop.f32.mrf.mxu0
    %v9013 = vadd.f32 %v8698, %v9012
    %v9014 = vpop.f32.mrf.mxu0
    %v9015 = vadd.f32 %v8703, %v9014
    %v9016 = vpop.f32.mrf.mxu0
    %v9017 = vadd.f32 %v8703, %v9016
    %9018 = vdwg.mxu0
    %9019 = vmatprep.subr.bf16.mxu0 0
    %9020 = vmatpush1.bf16.msra.mxu0 0
    %9021 = vmatprep.subr.bf16.mxu0 0
    %9022 = vmatpush1.bf16.msra.mxu0 0
    %9023 = vmatprep.subr.bf16.mxu0 0
    %9024 = vmatpush1.bf16.msra.mxu0 0
    %9025 = vmatprep.subr.bf16.mxu0 0
    %9026 = vmatpush1.bf16.msra.mxu0 0
    %9027 = vmatprep.subr.bf16.mxu0 0
    %9028 = vmatpush1.bf16.msra.mxu0 0
    %9029 = vmatprep.subr.bf16.mxu0 0
    %9030 = vmatpush1.bf16.msra.mxu0 0
    %9031 = vmatprep.subr.bf16.mxu0 0
    %9032 = vmatpush1.bf16.msra.mxu0 0
    %9033 = vmatprep.subr.bf16.mxu0 %v8753
    %9034 = vmatpush1.bf16.msra.mxu0 %v8750
    %9035 = vmatprep.subr.bf16.mxu0 0
    %9036 = vmatpush2.bf16.msra.mxu0 0
    %9037 = vmatprep.subr.bf16.mxu0 0
    %9038 = vmatpush2.bf16.msra.mxu0 0
    %9039 = vmatprep.subr.bf16.mxu0 0
    %9040 = vmatpush2.bf16.msra.mxu0 0
    %9041 = vmatprep.subr.bf16.mxu0 0
    %9042 = vmatpush2.bf16.msra.mxu0 0
    %9043 = vmatprep.subr.bf16.mxu0 0
    %9044 = vmatpush2.bf16.msra.mxu0 0
    %9045 = vmatprep.subr.bf16.mxu0 0
    %9046 = vmatpush2.bf16.msra.mxu0 0
    %9047 = vmatprep.subr.bf16.mxu0 0
    %9048 = vmatpush2.bf16.msra.mxu0 0
    %9049 = vmatprep.subr.bf16.mxu0 0
    %9050 = vmatpush2.bf16.msra.mxu0 0
    %9051 = vmatprep.mubr.bf16.mxu0 0
    %9052 = vmatmul.mubr.bf16.gmra.mxu0 %v8711
    %v9053 = vpop.f32.mrf.mxu0
    %v9054 = vadd.f32 %v8698, %v9053
    %v9055 = vpop.f32.mrf.mxu0
    %v9056 = vadd.f32 %v8698, %v9055
    %v9057 = vpop.f32.mrf.mxu0
    %v9058 = vadd.f32 %v8703, %v9057
    %v9059 = vpop.f32.mrf.mxu0
    %v9060 = vadd.f32 %v8703, %v9059
    %9061 = vdwg.mxu0
    %9062 = vmatprep.subr.bf16.mxu0 0
    %9063 = vmatpush1.bf16.msra.mxu0 0
    %9064 = vmatprep.subr.bf16.mxu0 0
    %9065 = vmatpush1.bf16.msra.mxu0 0
    %9066 = vmatprep.subr.bf16.mxu0 0
    %9067 = vmatpush1.bf16.msra.mxu0 0
    %9068 = vmatprep.subr.bf16.mxu0 0
    %9069 = vmatpush1.bf16.msra.mxu0 0
    %9070 = vmatprep.subr.bf16.mxu0 0
    %9071 = vmatpush1.bf16.msra.mxu0 0
    %9072 = vmatprep.subr.bf16.mxu0 0
    %9073 = vmatpush1.bf16.msra.mxu0 0
    %9074 = vmatprep.subr.bf16.mxu0 0
    %9075 = vmatpush1.bf16.msra.mxu0 0
    %9076 = vmatprep.subr.bf16.mxu0 %v8759
    %9077 = vmatpush1.bf16.msra.mxu0 %v8756
    %9078 = vmatprep.subr.bf16.mxu0 0
    %9079 = vmatpush2.bf16.msra.mxu0 0
    %9080 = vmatprep.subr.bf16.mxu0 0
    %9081 = vmatpush2.bf16.msra.mxu0 0
    %9082 = vmatprep.subr.bf16.mxu0 0
    %9083 = vmatpush2.bf16.msra.mxu0 0
    %9084 = vmatprep.subr.bf16.mxu0 0
    %9085 = vmatpush2.bf16.msra.mxu0 0
    %9086 = vmatprep.subr.bf16.mxu0 0
    %9087 = vmatpush2.bf16.msra.mxu0 0
    %9088 = vmatprep.subr.bf16.mxu0 0
    %9089 = vmatpush2.bf16.msra.mxu0 0
    %9090 = vmatprep.subr.bf16.mxu0 0
    %9091 = vmatpush2.bf16.msra.mxu0 0
    %9092 = vmatprep.subr.bf16.mxu0 0
    %9093 = vmatpush2.bf16.msra.mxu0 0
    %9094 = vmatprep.mubr.bf16.mxu0 0
    %9095 = vmatmul.mubr.bf16.gmra.mxu0 %v8711
    %v9096 = vpop.f32.mrf.mxu0
    %v9097 = vadd.f32 %v8698, %v9096
    %v9098 = vpop.f32.mrf.mxu0
    %v9099 = vadd.f32 %v8698, %v9098
    %v9100 = vpop.f32.mrf.mxu0
    %v9101 = vadd.f32 %v8703, %v9100
    %v9102 = vpop.f32.mrf.mxu0
    %v9103 = vadd.f32 %v8703, %v9102
    %9104 = vdwg.mxu0
    %v9105 = vmax.f32 %v8796, 0.0
    %v9106 = vmax.f32 %v8798, 0.0
    %v9107 = vmax.f32 %v8839, 0.0
    %v9108 = vmax.f32 %v8841, 0.0
    %v9109 = vmax.f32 %v8882, 0.0
    %v9110 = vmax.f32 %v8884, 0.0
    %v9111 = vmax.f32 %v8925, 0.0
    %v9112 = vmax.f32 %v8927, 0.0
    %v9113 = vmax.f32 %v8968, 0.0
    %v9114 = vmax.f32 %v8970, 0.0
    %v9115 = vmax.f32 %v9011, 0.0
    %v9116 = vmax.f32 %v9013, 0.0
    %v9117 = vmax.f32 %v9054, 0.0
    %v9118 = vmax.f32 %v9056, 0.0
    %v9119 = vmax.f32 %v9097, 0.0
    %v9120 = vmax.f32 %v9099, 0.0
    %v9121 = vmax.f32 %v8800, 0.0
    %v9122 = vmax.f32 %v8802, 0.0
    %v9123 = vmax.f32 %v8843, 0.0
    %v9124 = vmax.f32 %v8845, 0.0
    %v9125 = vmax.f32 %v8886, 0.0
    %v9126 = vmax.f32 %v8888, 0.0
    %v9127 = vmax.f32 %v8929, 0.0
    %v9128 = vmax.f32 %v8931, 0.0
    %v9129 = vmax.f32 %v8972, 0.0
    %v9130 = vmax.f32 %v8974, 0.0
    %v9131 = vmax.f32 %v9015, 0.0
    %v9132 = vmax.f32 %v9017, 0.0
    %v9133 = vmax.f32 %v9058, 0.0
    %v9134 = vmax.f32 %v9060, 0.0
    %v9135 = vmax.f32 %v9101, 0.0
    %v9136 = vmax.f32 %v9103, 0.0
    %v9137 = vpack.c.bf16 %v9121, %v9105
    %v9138 = vpack.c.bf16 %v9122, %v9106
    %v9139 = vpack.c.bf16 %v9123, %v9107
    %v9140 = vpack.c.bf16 %v9124, %v9108
    %v9141 = vpack.c.bf16 %v9125, %v9109
    %v9142 = vpack.c.bf16 %v9126, %v9110
    %v9143 = vpack.c.bf16 %v9127, %v9111
    %v9144 = vpack.c.bf16 %v9128, %v9112
    %v9145 = vpack.c.bf16 %v9129, %v9113
    %v9146 = vpack.c.bf16 %v9130, %v9114
    %v9147 = vpack.c.bf16 %v9131, %v9115
    %v9148 = vpack.c.bf16 %v9132, %v9116
    %v9149 = vpack.c.bf16 %v9133, %v9117
    %v9150 = vpack.c.bf16 %v9134, %v9118
    %v9151 = vpack.c.bf16 %v9135, %v9119
    %v9152 = vpack.c.bf16 %v9136, %v9120
    %9154 = vset.pattern.permute.xlu0 0
    %9155 = vperm.xlu0 %9154, %v95
    %v9156 = vpop.permute.xlu0 %9155
    %9159 = vset.pattern.permute.xlu0 0
    %9160 = vperm.xlu0 %9159, %v96
    %v9161 = vpop.permute.xlu0 %9160
    %9164 = vset.pattern.permute.xlu0 0
    %9165 = vperm.xlu0 %9164, %v97
    %v9166 = vpop.permute.xlu0 %9165
    %v9171 = vunpack.c.l.b16 %v92
    %v9172 = vunpack.c.l.b16 %v93
    %v9173 = vunpack.c.l.b16 %v94
    %v9174 = vpack.c.b16 %v9172, %v9171
    %v9175 = vpack.c.b16 %v9173, %v9173
    %v9177 = vsel %vm1187, %v9174, 0
    %v9180 = vsel %vm1187, %v9175, 0
    %9182 = vmatprep.subr.bf16.mxu0 0
    %9183 = vmatpush1.bf16.msra.mxu0 0
    %9184 = vmatprep.subr.bf16.mxu0 0
    %9185 = vmatpush1.bf16.msra.mxu0 0
    %9186 = vmatprep.subr.bf16.mxu0 0
    %9187 = vmatpush1.bf16.msra.mxu0 0
    %9188 = vmatprep.subr.bf16.mxu0 0
    %9189 = vmatpush1.bf16.msra.mxu0 0
    %9190 = vmatprep.subr.bf16.mxu0 0
    %9191 = vmatpush1.bf16.msra.mxu0 0
    %9192 = vmatprep.subr.bf16.mxu0 0
    %9193 = vmatpush1.bf16.msra.mxu0 0
    %9194 = vmatprep.subr.bf16.mxu0 0
    %9195 = vmatpush1.bf16.msra.mxu0 0
    %9196 = vmatprep.subr.bf16.mxu0 %v9138
    %9197 = vmatpush1.bf16.msra.mxu0 %v9137
    %9198 = vmatprep.subr.bf16.mxu0 0
    %9199 = vmatpush2.bf16.msra.mxu0 0
    %9200 = vmatprep.subr.bf16.mxu0 0
    %9201 = vmatpush2.bf16.msra.mxu0 0
    %9202 = vmatprep.subr.bf16.mxu0 0
    %9203 = vmatpush2.bf16.msra.mxu0 0
    %9204 = vmatprep.subr.bf16.mxu0 0
    %9205 = vmatpush2.bf16.msra.mxu0 0
    %9206 = vmatprep.subr.bf16.mxu0 0
    %9207 = vmatpush2.bf16.msra.mxu0 0
    %9208 = vmatprep.subr.bf16.mxu0 0
    %9209 = vmatpush2.bf16.msra.mxu0 0
    %9210 = vmatprep.subr.bf16.mxu0 0
    %9211 = vmatpush2.bf16.msra.mxu0 0
    %9212 = vmatprep.subr.bf16.mxu0 0
    %9213 = vmatpush2.bf16.msra.mxu0 0
    %9214 = vmatprep.mubr.bf16.mxu0 0
    %9215 = vmatmul.mubr.bf16.gmra.mxu0 %v9177
    %v9216 = vpop.f32.mrf.mxu0
    %v9217 = vadd.f32 %v9156, %v9216
    %v9218 = vpop.f32.mrf.mxu0
    %v9219 = vadd.f32 %v9156, %v9218
    %v9220 = vpop.f32.mrf.mxu0
    %v9221 = vadd.f32 %v9161, %v9220
    %v9222 = vpop.f32.mrf.mxu0
    %v9223 = vadd.f32 %v9161, %v9222
    %9224 = vmatprep.mubr.bf16.mxu0 0
    %9225 = vmatmul.mubr.bf16.gmra.mxu0 %v9180
    %v9226 = vpop.f32.mrf.mxu0
    %v9227 = vadd.f32 %v9166, %v9226
    %v9228 = vpop.f32.mrf.mxu0
    %v9229 = vadd.f32 %v9166, %v9228
    %v9230 = vpop.f32.mrf.mxu0
    %v9231 = vpop.f32.mrf.mxu0
    %9232 = vdwg.mxu0
    %9233 = vmatprep.subr.bf16.mxu0 0
    %9234 = vmatpush1.bf16.msra.mxu0 0
    %9235 = vmatprep.subr.bf16.mxu0 0
    %9236 = vmatpush1.bf16.msra.mxu0 0
    %9237 = vmatprep.subr.bf16.mxu0 0
    %9238 = vmatpush1.bf16.msra.mxu0 0
    %9239 = vmatprep.subr.bf16.mxu0 0
    %9240 = vmatpush1.bf16.msra.mxu0 0
    %9241 = vmatprep.subr.bf16.mxu0 0
    %9242 = vmatpush1.bf16.msra.mxu0 0
    %9243 = vmatprep.subr.bf16.mxu0 0
    %9244 = vmatpush1.bf16.msra.mxu0 0
    %9245 = vmatprep.subr.bf16.mxu0 0
    %9246 = vmatpush1.bf16.msra.mxu0 0
    %9247 = vmatprep.subr.bf16.mxu0 %v9140
    %9248 = vmatpush1.bf16.msra.mxu0 %v9139
    %9249 = vmatprep.subr.bf16.mxu0 0
    %9250 = vmatpush2.bf16.msra.mxu0 0
    %9251 = vmatprep.subr.bf16.mxu0 0
    %9252 = vmatpush2.bf16.msra.mxu0 0
    %9253 = vmatprep.subr.bf16.mxu0 0
    %9254 = vmatpush2.bf16.msra.mxu0 0
    %9255 = vmatprep.subr.bf16.mxu0 0
    %9256 = vmatpush2.bf16.msra.mxu0 0
    %9257 = vmatprep.subr.bf16.mxu0 0
    %9258 = vmatpush2.bf16.msra.mxu0 0
    %9259 = vmatprep.subr.bf16.mxu0 0
    %9260 = vmatpush2.bf16.msra.mxu0 0
    %9261 = vmatprep.subr.bf16.mxu0 0
    %9262 = vmatpush2.bf16.msra.mxu0 0
    %9263 = vmatprep.subr.bf16.mxu0 0
    %9264 = vmatpush2.bf16.msra.mxu0 0
    %9265 = vmatprep.mubr.bf16.mxu0 0
    %9266 = vmatmul.mubr.bf16.gmra.mxu0 %v9177
    %v9267 = vpop.f32.mrf.mxu0
    %v9268 = vadd.f32 %v9156, %v9267
    %v9269 = vpop.f32.mrf.mxu0
    %v9270 = vadd.f32 %v9156, %v9269
    %v9271 = vpop.f32.mrf.mxu0
    %v9272 = vadd.f32 %v9161, %v9271
    %v9273 = vpop.f32.mrf.mxu0
    %v9274 = vadd.f32 %v9161, %v9273
    %9275 = vmatprep.mubr.bf16.mxu0 0
    %9276 = vmatmul.mubr.bf16.gmra.mxu0 %v9180
    %v9277 = vpop.f32.mrf.mxu0
    %v9278 = vadd.f32 %v9166, %v9277
    %v9279 = vpop.f32.mrf.mxu0
    %v9280 = vadd.f32 %v9166, %v9279
    %v9281 = vpop.f32.mrf.mxu0
    %v9282 = vpop.f32.mrf.mxu0
    %9283 = vdwg.mxu0
    %9284 = vmatprep.subr.bf16.mxu0 0
    %9285 = vmatpush1.bf16.msra.mxu0 0
    %9286 = vmatprep.subr.bf16.mxu0 0
    %9287 = vmatpush1.bf16.msra.mxu0 0
    %9288 = vmatprep.subr.bf16.mxu0 0
    %9289 = vmatpush1.bf16.msra.mxu0 0
    %9290 = vmatprep.subr.bf16.mxu0 0
    %9291 = vmatpush1.bf16.msra.mxu0 0
    %9292 = vmatprep.subr.bf16.mxu0 0
    %9293 = vmatpush1.bf16.msra.mxu0 0
    %9294 = vmatprep.subr.bf16.mxu0 0
    %9295 = vmatpush1.bf16.msra.mxu0 0
    %9296 = vmatprep.subr.bf16.mxu0 0
    %9297 = vmatpush1.bf16.msra.mxu0 0
    %9298 = vmatprep.subr.bf16.mxu0 %v9142
    %9299 = vmatpush1.bf16.msra.mxu0 %v9141
    %9300 = vmatprep.subr.bf16.mxu0 0
    %9301 = vmatpush2.bf16.msra.mxu0 0
    %9302 = vmatprep.subr.bf16.mxu0 0
    %9303 = vmatpush2.bf16.msra.mxu0 0
    %9304 = vmatprep.subr.bf16.mxu0 0
    %9305 = vmatpush2.bf16.msra.mxu0 0
    %9306 = vmatprep.subr.bf16.mxu0 0
    %9307 = vmatpush2.bf16.msra.mxu0 0
    %9308 = vmatprep.subr.bf16.mxu0 0
    %9309 = vmatpush2.bf16.msra.mxu0 0
    %9310 = vmatprep.subr.bf16.mxu0 0
    %9311 = vmatpush2.bf16.msra.mxu0 0
    %9312 = vmatprep.subr.bf16.mxu0 0
    %9313 = vmatpush2.bf16.msra.mxu0 0
    %9314 = vmatprep.subr.bf16.mxu0 0
    %9315 = vmatpush2.bf16.msra.mxu0 0
    %9316 = vmatprep.mubr.bf16.mxu0 0
    %9317 = vmatmul.mubr.bf16.gmra.mxu0 %v9177
    %v9318 = vpop.f32.mrf.mxu0
    %v9319 = vadd.f32 %v9156, %v9318
    %v9320 = vpop.f32.mrf.mxu0
    %v9321 = vadd.f32 %v9156, %v9320
    %v9322 = vpop.f32.mrf.mxu0
    %v9323 = vadd.f32 %v9161, %v9322
    %v9324 = vpop.f32.mrf.mxu0
    %v9325 = vadd.f32 %v9161, %v9324
    %9326 = vmatprep.mubr.bf16.mxu0 0
    %9327 = vmatmul.mubr.bf16.gmra.mxu0 %v9180
    %v9328 = vpop.f32.mrf.mxu0
    %v9329 = vadd.f32 %v9166, %v9328
    %v9330 = vpop.f32.mrf.mxu0
    %v9331 = vadd.f32 %v9166, %v9330
    %v9332 = vpop.f32.mrf.mxu0
    %v9333 = vpop.f32.mrf.mxu0
    %9334 = vdwg.mxu0
    %9335 = vmatprep.subr.bf16.mxu0 0
    %9336 = vmatpush1.bf16.msra.mxu0 0
    %9337 = vmatprep.subr.bf16.mxu0 0
    %9338 = vmatpush1.bf16.msra.mxu0 0
    %9339 = vmatprep.subr.bf16.mxu0 0
    %9340 = vmatpush1.bf16.msra.mxu0 0
    %9341 = vmatprep.subr.bf16.mxu0 0
    %9342 = vmatpush1.bf16.msra.mxu0 0
    %9343 = vmatprep.subr.bf16.mxu0 0
    %9344 = vmatpush1.bf16.msra.mxu0 0
    %9345 = vmatprep.subr.bf16.mxu0 0
    %9346 = vmatpush1.bf16.msra.mxu0 0
    %9347 = vmatprep.subr.bf16.mxu0 0
    %9348 = vmatpush1.bf16.msra.mxu0 0
    %9349 = vmatprep.subr.bf16.mxu0 %v9144
    %9350 = vmatpush1.bf16.msra.mxu0 %v9143
    %9351 = vmatprep.subr.bf16.mxu0 0
    %9352 = vmatpush2.bf16.msra.mxu0 0
    %9353 = vmatprep.subr.bf16.mxu0 0
    %9354 = vmatpush2.bf16.msra.mxu0 0
    %9355 = vmatprep.subr.bf16.mxu0 0
    %9356 = vmatpush2.bf16.msra.mxu0 0
    %9357 = vmatprep.subr.bf16.mxu0 0
    %9358 = vmatpush2.bf16.msra.mxu0 0
    %9359 = vmatprep.subr.bf16.mxu0 0
    %9360 = vmatpush2.bf16.msra.mxu0 0
    %9361 = vmatprep.subr.bf16.mxu0 0
    %9362 = vmatpush2.bf16.msra.mxu0 0
    %9363 = vmatprep.subr.bf16.mxu0 0
    %9364 = vmatpush2.bf16.msra.mxu0 0
    %9365 = vmatprep.subr.bf16.mxu0 0
    %9366 = vmatpush2.bf16.msra.mxu0 0
    %9367 = vmatprep.mubr.bf16.mxu0 0
    %9368 = vmatmul.mubr.bf16.gmra.mxu0 %v9177
    %v9369 = vpop.f32.mrf.mxu0
    %v9370 = vadd.f32 %v9156, %v9369
    %v9371 = vpop.f32.mrf.mxu0
    %v9372 = vadd.f32 %v9156, %v9371
    %v9373 = vpop.f32.mrf.mxu0
    %v9374 = vadd.f32 %v9161, %v9373
    %v9375 = vpop.f32.mrf.mxu0
    %v9376 = vadd.f32 %v9161, %v9375
    %9377 = vmatprep.mubr.bf16.mxu0 0
    %9378 = vmatmul.mubr.bf16.gmra.mxu0 %v9180
    %v9379 = vpop.f32.mrf.mxu0
    %v9380 = vadd.f32 %v9166, %v9379
    %v9381 = vpop.f32.mrf.mxu0
    %v9382 = vadd.f32 %v9166, %v9381
    %v9383 = vpop.f32.mrf.mxu0
    %v9384 = vpop.f32.mrf.mxu0
    %9385 = vdwg.mxu0
    %9386 = vmatprep.subr.bf16.mxu0 0
    %9387 = vmatpush1.bf16.msra.mxu0 0
    %9388 = vmatprep.subr.bf16.mxu0 0
    %9389 = vmatpush1.bf16.msra.mxu0 0
    %9390 = vmatprep.subr.bf16.mxu0 0
    %9391 = vmatpush1.bf16.msra.mxu0 0
    %9392 = vmatprep.subr.bf16.mxu0 0
    %9393 = vmatpush1.bf16.msra.mxu0 0
    %9394 = vmatprep.subr.bf16.mxu0 0
    %9395 = vmatpush1.bf16.msra.mxu0 0
    %9396 = vmatprep.subr.bf16.mxu0 0
    %9397 = vmatpush1.bf16.msra.mxu0 0
    %9398 = vmatprep.subr.bf16.mxu0 0
    %9399 = vmatpush1.bf16.msra.mxu0 0
    %9400 = vmatprep.subr.bf16.mxu0 %v9146
    %9401 = vmatpush1.bf16.msra.mxu0 %v9145
    %9402 = vmatprep.subr.bf16.mxu0 0
    %9403 = vmatpush2.bf16.msra.mxu0 0
    %9404 = vmatprep.subr.bf16.mxu0 0
    %9405 = vmatpush2.bf16.msra.mxu0 0
    %9406 = vmatprep.subr.bf16.mxu0 0
    %9407 = vmatpush2.bf16.msra.mxu0 0
    %9408 = vmatprep.subr.bf16.mxu0 0
    %9409 = vmatpush2.bf16.msra.mxu0 0
    %9410 = vmatprep.subr.bf16.mxu0 0
    %9411 = vmatpush2.bf16.msra.mxu0 0
    %9412 = vmatprep.subr.bf16.mxu0 0
    %9413 = vmatpush2.bf16.msra.mxu0 0
    %9414 = vmatprep.subr.bf16.mxu0 0
    %9415 = vmatpush2.bf16.msra.mxu0 0
    %9416 = vmatprep.subr.bf16.mxu0 0
    %9417 = vmatpush2.bf16.msra.mxu0 0
    %9418 = vmatprep.mubr.bf16.mxu0 0
    %9419 = vmatmul.mubr.bf16.gmra.mxu0 %v9177
    %v9420 = vpop.f32.mrf.mxu0
    %v9421 = vadd.f32 %v9156, %v9420
    %v9422 = vpop.f32.mrf.mxu0
    %v9423 = vadd.f32 %v9156, %v9422
    %v9424 = vpop.f32.mrf.mxu0
    %v9425 = vadd.f32 %v9161, %v9424
    %v9426 = vpop.f32.mrf.mxu0
    %v9427 = vadd.f32 %v9161, %v9426
    %9428 = vmatprep.mubr.bf16.mxu0 0
    %9429 = vmatmul.mubr.bf16.gmra.mxu0 %v9180
    %v9430 = vpop.f32.mrf.mxu0
    %v9431 = vadd.f32 %v9166, %v9430
    %v9432 = vpop.f32.mrf.mxu0
    %v9433 = vadd.f32 %v9166, %v9432
    %v9434 = vpop.f32.mrf.mxu0
    %v9435 = vpop.f32.mrf.mxu0
    %9436 = vdwg.mxu0
    %9437 = vmatprep.subr.bf16.mxu0 0
    %9438 = vmatpush1.bf16.msra.mxu0 0
    %9439 = vmatprep.subr.bf16.mxu0 0
    %9440 = vmatpush1.bf16.msra.mxu0 0
    %9441 = vmatprep.subr.bf16.mxu0 0
    %9442 = vmatpush1.bf16.msra.mxu0 0
    %9443 = vmatprep.subr.bf16.mxu0 0
    %9444 = vmatpush1.bf16.msra.mxu0 0
    %9445 = vmatprep.subr.bf16.mxu0 0
    %9446 = vmatpush1.bf16.msra.mxu0 0
    %9447 = vmatprep.subr.bf16.mxu0 0
    %9448 = vmatpush1.bf16.msra.mxu0 0
    %9449 = vmatprep.subr.bf16.mxu0 0
    %9450 = vmatpush1.bf16.msra.mxu0 0
    %9451 = vmatprep.subr.bf16.mxu0 %v9148
    %9452 = vmatpush1.bf16.msra.mxu0 %v9147
    %9453 = vmatprep.subr.bf16.mxu0 0
    %9454 = vmatpush2.bf16.msra.mxu0 0
    %9455 = vmatprep.subr.bf16.mxu0 0
    %9456 = vmatpush2.bf16.msra.mxu0 0
    %9457 = vmatprep.subr.bf16.mxu0 0
    %9458 = vmatpush2.bf16.msra.mxu0 0
    %9459 = vmatprep.subr.bf16.mxu0 0
    %9460 = vmatpush2.bf16.msra.mxu0 0
    %9461 = vmatprep.subr.bf16.mxu0 0
    %9462 = vmatpush2.bf16.msra.mxu0 0
    %9463 = vmatprep.subr.bf16.mxu0 0
    %9464 = vmatpush2.bf16.msra.mxu0 0
    %9465 = vmatprep.subr.bf16.mxu0 0
    %9466 = vmatpush2.bf16.msra.mxu0 0
    %9467 = vmatprep.subr.bf16.mxu0 0
    %9468 = vmatpush2.bf16.msra.mxu0 0
    %9469 = vmatprep.mubr.bf16.mxu0 0
    %9470 = vmatmul.mubr.bf16.gmra.mxu0 %v9177
    %v9471 = vpop.f32.mrf.mxu0
    %v9472 = vadd.f32 %v9156, %v9471
    %v9473 = vpop.f32.mrf.mxu0
    %v9474 = vadd.f32 %v9156, %v9473
    %v9475 = vpop.f32.mrf.mxu0
    %v9476 = vadd.f32 %v9161, %v9475
    %v9477 = vpop.f32.mrf.mxu0
    %v9478 = vadd.f32 %v9161, %v9477
    %9479 = vmatprep.mubr.bf16.mxu0 0
    %9480 = vmatmul.mubr.bf16.gmra.mxu0 %v9180
    %v9481 = vpop.f32.mrf.mxu0
    %v9482 = vadd.f32 %v9166, %v9481
    %v9483 = vpop.f32.mrf.mxu0
    %v9484 = vadd.f32 %v9166, %v9483
    %v9485 = vpop.f32.mrf.mxu0
    %v9486 = vpop.f32.mrf.mxu0
    %9487 = vdwg.mxu0
    %9488 = vmatprep.subr.bf16.mxu0 0
    %9489 = vmatpush1.bf16.msra.mxu0 0
    %9490 = vmatprep.subr.bf16.mxu0 0
    %9491 = vmatpush1.bf16.msra.mxu0 0
    %9492 = vmatprep.subr.bf16.mxu0 0
    %9493 = vmatpush1.bf16.msra.mxu0 0
    %9494 = vmatprep.subr.bf16.mxu0 0
    %9495 = vmatpush1.bf16.msra.mxu0 0
    %9496 = vmatprep.subr.bf16.mxu0 0
    %9497 = vmatpush1.bf16.msra.mxu0 0
    %9498 = vmatprep.subr.bf16.mxu0 0
    %9499 = vmatpush1.bf16.msra.mxu0 0
    %9500 = vmatprep.subr.bf16.mxu0 0
    %9501 = vmatpush1.bf16.msra.mxu0 0
    %9502 = vmatprep.subr.bf16.mxu0 %v9150
    %9503 = vmatpush1.bf16.msra.mxu0 %v9149
    %9504 = vmatprep.subr.bf16.mxu0 0
    %9505 = vmatpush2.bf16.msra.mxu0 0
    %9506 = vmatprep.subr.bf16.mxu0 0
    %9507 = vmatpush2.bf16.msra.mxu0 0
    %9508 = vmatprep.subr.bf16.mxu0 0
    %9509 = vmatpush2.bf16.msra.mxu0 0
    %9510 = vmatprep.subr.bf16.mxu0 0
    %9511 = vmatpush2.bf16.msra.mxu0 0
    %9512 = vmatprep.subr.bf16.mxu0 0
    %9513 = vmatpush2.bf16.msra.mxu0 0
    %9514 = vmatprep.subr.bf16.mxu0 0
    %9515 = vmatpush2.bf16.msra.mxu0 0
    %9516 = vmatprep.subr.bf16.mxu0 0
    %9517 = vmatpush2.bf16.msra.mxu0 0
    %9518 = vmatprep.subr.bf16.mxu0 0
    %9519 = vmatpush2.bf16.msra.mxu0 0
    %9520 = vmatprep.mubr.bf16.mxu0 0
    %9521 = vmatmul.mubr.bf16.gmra.mxu0 %v9177
    %v9522 = vpop.f32.mrf.mxu0
    %v9523 = vadd.f32 %v9156, %v9522
    %v9524 = vpop.f32.mrf.mxu0
    %v9525 = vadd.f32 %v9156, %v9524
    %v9526 = vpop.f32.mrf.mxu0
    %v9527 = vadd.f32 %v9161, %v9526
    %v9528 = vpop.f32.mrf.mxu0
    %v9529 = vadd.f32 %v9161, %v9528
    %9530 = vmatprep.mubr.bf16.mxu0 0
    %9531 = vmatmul.mubr.bf16.gmra.mxu0 %v9180
    %v9532 = vpop.f32.mrf.mxu0
    %v9533 = vadd.f32 %v9166, %v9532
    %v9534 = vpop.f32.mrf.mxu0
    %v9535 = vadd.f32 %v9166, %v9534
    %v9536 = vpop.f32.mrf.mxu0
    %v9537 = vpop.f32.mrf.mxu0
    %9538 = vdwg.mxu0
    %9539 = vmatprep.subr.bf16.mxu0 0
    %9540 = vmatpush1.bf16.msra.mxu0 0
    %9541 = vmatprep.subr.bf16.mxu0 0
    %9542 = vmatpush1.bf16.msra.mxu0 0
    %9543 = vmatprep.subr.bf16.mxu0 0
    %9544 = vmatpush1.bf16.msra.mxu0 0
    %9545 = vmatprep.subr.bf16.mxu0 0
    %9546 = vmatpush1.bf16.msra.mxu0 0
    %9547 = vmatprep.subr.bf16.mxu0 0
    %9548 = vmatpush1.bf16.msra.mxu0 0
    %9549 = vmatprep.subr.bf16.mxu0 0
    %9550 = vmatpush1.bf16.msra.mxu0 0
    %9551 = vmatprep.subr.bf16.mxu0 0
    %9552 = vmatpush1.bf16.msra.mxu0 0
    %9553 = vmatprep.subr.bf16.mxu0 %v9152
    %9554 = vmatpush1.bf16.msra.mxu0 %v9151
    %9555 = vmatprep.subr.bf16.mxu0 0
    %9556 = vmatpush2.bf16.msra.mxu0 0
    %9557 = vmatprep.subr.bf16.mxu0 0
    %9558 = vmatpush2.bf16.msra.mxu0 0
    %9559 = vmatprep.subr.bf16.mxu0 0
    %9560 = vmatpush2.bf16.msra.mxu0 0
    %9561 = vmatprep.subr.bf16.mxu0 0
    %9562 = vmatpush2.bf16.msra.mxu0 0
    %9563 = vmatprep.subr.bf16.mxu0 0
    %9564 = vmatpush2.bf16.msra.mxu0 0
    %9565 = vmatprep.subr.bf16.mxu0 0
    %9566 = vmatpush2.bf16.msra.mxu0 0
    %9567 = vmatprep.subr.bf16.mxu0 0
    %9568 = vmatpush2.bf16.msra.mxu0 0
    %9569 = vmatprep.subr.bf16.mxu0 0
    %9570 = vmatpush2.bf16.msra.mxu0 0
    %9571 = vmatprep.mubr.bf16.mxu0 0
    %9572 = vmatmul.mubr.bf16.gmra.mxu0 %v9177
    %v9573 = vpop.f32.mrf.mxu0
    %v9574 = vadd.f32 %v9156, %v9573
    %v9575 = vpop.f32.mrf.mxu0
    %v9576 = vadd.f32 %v9156, %v9575
    %v9577 = vpop.f32.mrf.mxu0
    %v9578 = vadd.f32 %v9161, %v9577
    %v9579 = vpop.f32.mrf.mxu0
    %v9580 = vadd.f32 %v9161, %v9579
    %9581 = vmatprep.mubr.bf16.mxu0 0
    %9582 = vmatmul.mubr.bf16.gmra.mxu0 %v9180
    %v9583 = vpop.f32.mrf.mxu0
    %v9584 = vadd.f32 %v9166, %v9583
    %v9585 = vpop.f32.mrf.mxu0
    %v9586 = vadd.f32 %v9166, %v9585
    %v9587 = vpop.f32.mrf.mxu0
    %v9588 = vpop.f32.mrf.mxu0
    %9589 = vdwg.mxu0
    %v9590 = vmax.f32 %v9217, 0.0
    %v9591 = vmax.f32 %v9219, 0.0
    %v9592 = vmax.f32 %v9268, 0.0
    %v9593 = vmax.f32 %v9270, 0.0
    %v9594 = vmax.f32 %v9319, 0.0
    %v9595 = vmax.f32 %v9321, 0.0
    %v9596 = vmax.f32 %v9370, 0.0
    %v9597 = vmax.f32 %v9372, 0.0
    %v9598 = vmax.f32 %v9421, 0.0
    %v9599 = vmax.f32 %v9423, 0.0
    %v9600 = vmax.f32 %v9472, 0.0
    %v9601 = vmax.f32 %v9474, 0.0
    %v9602 = vmax.f32 %v9523, 0.0
    %v9603 = vmax.f32 %v9525, 0.0
    %v9604 = vmax.f32 %v9574, 0.0
    %v9605 = vmax.f32 %v9576, 0.0
    %v9606 = vmax.f32 %v9221, 0.0
    %v9607 = vmax.f32 %v9223, 0.0
    %v9608 = vmax.f32 %v9272, 0.0
    %v9609 = vmax.f32 %v9274, 0.0
    %v9610 = vmax.f32 %v9323, 0.0
    %v9611 = vmax.f32 %v9325, 0.0
    %v9612 = vmax.f32 %v9374, 0.0
    %v9613 = vmax.f32 %v9376, 0.0
    %v9614 = vmax.f32 %v9425, 0.0
    %v9615 = vmax.f32 %v9427, 0.0
    %v9616 = vmax.f32 %v9476, 0.0
    %v9617 = vmax.f32 %v9478, 0.0
    %v9618 = vmax.f32 %v9527, 0.0
    %v9619 = vmax.f32 %v9529, 0.0
    %v9620 = vmax.f32 %v9578, 0.0
    %v9621 = vmax.f32 %v9580, 0.0
    %v9622 = vmax.f32 %v9227, 0.0
    %v9623 = vmax.f32 %v9229, 0.0
    %v9624 = vmax.f32 %v9278, 0.0
    %v9625 = vmax.f32 %v9280, 0.0
    %v9626 = vmax.f32 %v9329, 0.0
    %v9627 = vmax.f32 %v9331, 0.0
    %v9628 = vmax.f32 %v9380, 0.0
    %v9629 = vmax.f32 %v9382, 0.0
    %v9630 = vmax.f32 %v9431, 0.0
    %v9631 = vmax.f32 %v9433, 0.0
    %v9632 = vmax.f32 %v9482, 0.0
    %v9633 = vmax.f32 %v9484, 0.0
    %v9634 = vmax.f32 %v9533, 0.0
    %v9635 = vmax.f32 %v9535, 0.0
    %v9636 = vmax.f32 %v9584, 0.0
    %v9637 = vmax.f32 %v9586, 0.0
    %v9638 = vpack.c.bf16 %v9606, %v9590
    %v9639 = vpack.c.bf16 %v9607, %v9591
    %v9640 = vpack.c.bf16 %v9608, %v9592
    %v9641 = vpack.c.bf16 %v9609, %v9593
    %v9642 = vpack.c.bf16 %v9610, %v9594
    %v9643 = vpack.c.bf16 %v9611, %v9595
    %v9644 = vpack.c.bf16 %v9612, %v9596
    %v9645 = vpack.c.bf16 %v9613, %v9597
    %v9646 = vpack.c.bf16 %v9614, %v9598
    %v9647 = vpack.c.bf16 %v9615, %v9599
    %v9648 = vpack.c.bf16 %v9616, %v9600
    %v9649 = vpack.c.bf16 %v9617, %v9601
    %v9650 = vpack.c.bf16 %v9618, %v9602
    %v9651 = vpack.c.bf16 %v9619, %v9603
    %v9652 = vpack.c.bf16 %v9620, %v9604
    %v9653 = vpack.c.bf16 %v9621, %v9605
    %v9654 = vpack.c.bf16 %v9622, %v9622
    %v9655 = vpack.c.bf16 %v9623, %v9623
    %v9656 = vpack.c.bf16 %v9624, %v9624
    %v9657 = vpack.c.bf16 %v9625, %v9625
    %v9658 = vpack.c.bf16 %v9626, %v9626
    %v9659 = vpack.c.bf16 %v9627, %v9627
    %v9660 = vpack.c.bf16 %v9628, %v9628
    %v9661 = vpack.c.bf16 %v9629, %v9629
    %v9662 = vpack.c.bf16 %v9630, %v9630
    %v9663 = vpack.c.bf16 %v9631, %v9631
    %v9664 = vpack.c.bf16 %v9632, %v9632
    %v9665 = vpack.c.bf16 %v9633, %v9633
    %v9666 = vpack.c.bf16 %v9634, %v9634
    %v9667 = vpack.c.bf16 %v9635, %v9635
    %v9668 = vpack.c.bf16 %v9636, %v9636
    %v9669 = vpack.c.bf16 %v9637, %v9637
    %9671 = vset.pattern.permute.xlu0 0
    %9672 = vperm.xlu0 %9671, %v102
    %v9673 = vpop.permute.xlu0 %9672
    %9676 = vset.pattern.permute.xlu0 0
    %9677 = vperm.xlu0 %9676, %v103
    %v9678 = vpop.permute.xlu0 %9677
    %9681 = vset.pattern.permute.xlu0 0
    %9682 = vperm.xlu0 %9681, %v104
    %v9683 = vpop.permute.xlu0 %9682
    %9686 = vset.pattern.permute.xlu0 0
    %9687 = vperm.xlu0 %9686, %v105
    %v9688 = vpop.permute.xlu0 %9687
    %v9694 = vunpack.c.l.b16 %v98
    %v9695 = vunpack.c.l.b16 %v99
    %v9696 = vunpack.c.l.b16 %v100
    %v9697 = vunpack.c.l.b16 %v101
    %v9698 = vpack.c.b16 %v9695, %v9694
    %v9699 = vpack.c.b16 %v9697, %v9696
    %v9701 = vsel %vm737, %v9698, 0
    %v9704 = vsel %vm737, %v9699, 0
    %v9707 = vsel %vm741, %v9654, 0
    %v9710 = vsel %vm741, %v9655, 0
    %v9713 = vsel %vm741, %v9656, 0
    %v9716 = vsel %vm741, %v9657, 0
    %v9719 = vsel %vm741, %v9658, 0
    %v9722 = vsel %vm741, %v9659, 0
    %v9725 = vsel %vm741, %v9660, 0
    %v9728 = vsel %vm741, %v9661, 0
    %v9731 = vsel %vm741, %v9662, 0
    %v9734 = vsel %vm741, %v9663, 0
    %v9737 = vsel %vm741, %v9664, 0
    %v9740 = vsel %vm741, %v9665, 0
    %v9743 = vsel %vm741, %v9666, 0
    %v9746 = vsel %vm741, %v9667, 0
    %v9749 = vsel %vm741, %v9668, 0
    %v9752 = vsel %vm741, %v9669, 0
    %9754 = vmatprep.subr.bf16.mxu0 0
    %9755 = vmatpush1.bf16.msra.mxu0 0
    %9756 = vmatprep.subr.bf16.mxu0 0
    %9757 = vmatpush1.bf16.msra.mxu0 0
    %9758 = vmatprep.subr.bf16.mxu0 0
    %9759 = vmatpush1.bf16.msra.mxu0 0
    %9760 = vmatprep.subr.bf16.mxu0 0
    %9761 = vmatpush1.bf16.msra.mxu0 0
    %9762 = vmatprep.subr.bf16.mxu0 0
    %9763 = vmatpush1.bf16.msra.mxu0 0
    %9764 = vmatprep.subr.bf16.mxu0 0
    %9765 = vmatpush1.bf16.msra.mxu0 0
    %9766 = vmatprep.subr.bf16.mxu0 %v9710
    %9767 = vmatpush1.bf16.msra.mxu0 %v9707
    %9768 = vmatprep.subr.bf16.mxu0 %v9639
    %9769 = vmatpush1.bf16.msra.mxu0 %v9638
    %9770 = vmatprep.subr.bf16.mxu0 0
    %9771 = vmatpush2.bf16.msra.mxu0 0
    %9772 = vmatprep.subr.bf16.mxu0 0
    %9773 = vmatpush2.bf16.msra.mxu0 0
    %9774 = vmatprep.subr.bf16.mxu0 0
    %9775 = vmatpush2.bf16.msra.mxu0 0
    %9776 = vmatprep.subr.bf16.mxu0 0
    %9777 = vmatpush2.bf16.msra.mxu0 0
    %9778 = vmatprep.subr.bf16.mxu0 0
    %9779 = vmatpush2.bf16.msra.mxu0 0
    %9780 = vmatprep.subr.bf16.mxu0 0
    %9781 = vmatpush2.bf16.msra.mxu0 0
    %9782 = vmatprep.subr.bf16.mxu0 0
    %9783 = vmatpush2.bf16.msra.mxu0 0
    %9784 = vmatprep.subr.bf16.mxu0 0
    %9785 = vmatpush2.bf16.msra.mxu0 0
    %9786 = vmatprep.mubr.bf16.mxu0 0
    %9787 = vmatmul.mubr.bf16.gmra.mxu0 %v9701
    %v9788 = vpop.f32.mrf.mxu0
    %v9789 = vadd.f32 %v9673, %v9788
    %v9790 = vpop.f32.mrf.mxu0
    %v9791 = vadd.f32 %v9673, %v9790
    %v9792 = vpop.f32.mrf.mxu0
    %v9793 = vadd.f32 %v9678, %v9792
    %v9794 = vpop.f32.mrf.mxu0
    %v9795 = vadd.f32 %v9678, %v9794
    %9796 = vmatprep.mubr.bf16.mxu0 0
    %9797 = vmatmul.mubr.bf16.gmra.mxu0 %v9704
    %v9798 = vpop.f32.mrf.mxu0
    %v9799 = vadd.f32 %v9683, %v9798
    %v9800 = vpop.f32.mrf.mxu0
    %v9801 = vadd.f32 %v9683, %v9800
    %v9802 = vpop.f32.mrf.mxu0
    %v9803 = vadd.f32 %v9688, %v9802
    %v9804 = vpop.f32.mrf.mxu0
    %v9805 = vadd.f32 %v9688, %v9804
    %9806 = vdwg.mxu0
    %9807 = vmatprep.subr.bf16.mxu0 0
    %9808 = vmatpush1.bf16.msra.mxu0 0
    %9809 = vmatprep.subr.bf16.mxu0 0
    %9810 = vmatpush1.bf16.msra.mxu0 0
    %9811 = vmatprep.subr.bf16.mxu0 0
    %9812 = vmatpush1.bf16.msra.mxu0 0
    %9813 = vmatprep.subr.bf16.mxu0 0
    %9814 = vmatpush1.bf16.msra.mxu0 0
    %9815 = vmatprep.subr.bf16.mxu0 0
    %9816 = vmatpush1.bf16.msra.mxu0 0
    %9817 = vmatprep.subr.bf16.mxu0 0
    %9818 = vmatpush1.bf16.msra.mxu0 0
    %9819 = vmatprep.subr.bf16.mxu0 %v9716
    %9820 = vmatpush1.bf16.msra.mxu0 %v9713
    %9821 = vmatprep.subr.bf16.mxu0 %v9641
    %9822 = vmatpush1.bf16.msra.mxu0 %v9640
    %9823 = vmatprep.subr.bf16.mxu0 0
    %9824 = vmatpush2.bf16.msra.mxu0 0
    %9825 = vmatprep.subr.bf16.mxu0 0
    %9826 = vmatpush2.bf16.msra.mxu0 0
    %9827 = vmatprep.subr.bf16.mxu0 0
    %9828 = vmatpush2.bf16.msra.mxu0 0
    %9829 = vmatprep.subr.bf16.mxu0 0
    %9830 = vmatpush2.bf16.msra.mxu0 0
    %9831 = vmatprep.subr.bf16.mxu0 0
    %9832 = vmatpush2.bf16.msra.mxu0 0
    %9833 = vmatprep.subr.bf16.mxu0 0
    %9834 = vmatpush2.bf16.msra.mxu0 0
    %9835 = vmatprep.subr.bf16.mxu0 0
    %9836 = vmatpush2.bf16.msra.mxu0 0
    %9837 = vmatprep.subr.bf16.mxu0 0
    %9838 = vmatpush2.bf16.msra.mxu0 0
    %9839 = vmatprep.mubr.bf16.mxu0 0
    %9840 = vmatmul.mubr.bf16.gmra.mxu0 %v9701
    %v9841 = vpop.f32.mrf.mxu0
    %v9842 = vadd.f32 %v9673, %v9841
    %v9843 = vpop.f32.mrf.mxu0
    %v9844 = vadd.f32 %v9673, %v9843
    %v9845 = vpop.f32.mrf.mxu0
    %v9846 = vadd.f32 %v9678, %v9845
    %v9847 = vpop.f32.mrf.mxu0
    %v9848 = vadd.f32 %v9678, %v9847
    %9849 = vmatprep.mubr.bf16.mxu0 0
    %9850 = vmatmul.mubr.bf16.gmra.mxu0 %v9704
    %v9851 = vpop.f32.mrf.mxu0
    %v9852 = vadd.f32 %v9683, %v9851
    %v9853 = vpop.f32.mrf.mxu0
    %v9854 = vadd.f32 %v9683, %v9853
    %v9855 = vpop.f32.mrf.mxu0
    %v9856 = vadd.f32 %v9688, %v9855
    %v9857 = vpop.f32.mrf.mxu0
    %v9858 = vadd.f32 %v9688, %v9857
    %9859 = vdwg.mxu0
    %9860 = vmatprep.subr.bf16.mxu0 0
    %9861 = vmatpush1.bf16.msra.mxu0 0
    %9862 = vmatprep.subr.bf16.mxu0 0
    %9863 = vmatpush1.bf16.msra.mxu0 0
    %9864 = vmatprep.subr.bf16.mxu0 0
    %9865 = vmatpush1.bf16.msra.mxu0 0
    %9866 = vmatprep.subr.bf16.mxu0 0
    %9867 = vmatpush1.bf16.msra.mxu0 0
    %9868 = vmatprep.subr.bf16.mxu0 0
    %9869 = vmatpush1.bf16.msra.mxu0 0
    %9870 = vmatprep.subr.bf16.mxu0 0
    %9871 = vmatpush1.bf16.msra.mxu0 0
    %9872 = vmatprep.subr.bf16.mxu0 %v9722
    %9873 = vmatpush1.bf16.msra.mxu0 %v9719
    %9874 = vmatprep.subr.bf16.mxu0 %v9643
    %9875 = vmatpush1.bf16.msra.mxu0 %v9642
    %9876 = vmatprep.subr.bf16.mxu0 0
    %9877 = vmatpush2.bf16.msra.mxu0 0
    %9878 = vmatprep.subr.bf16.mxu0 0
    %9879 = vmatpush2.bf16.msra.mxu0 0
    %9880 = vmatprep.subr.bf16.mxu0 0
    %9881 = vmatpush2.bf16.msra.mxu0 0
    %9882 = vmatprep.subr.bf16.mxu0 0
    %9883 = vmatpush2.bf16.msra.mxu0 0
    %9884 = vmatprep.subr.bf16.mxu0 0
    %9885 = vmatpush2.bf16.msra.mxu0 0
    %9886 = vmatprep.subr.bf16.mxu0 0
    %9887 = vmatpush2.bf16.msra.mxu0 0
    %9888 = vmatprep.subr.bf16.mxu0 0
    %9889 = vmatpush2.bf16.msra.mxu0 0
    %9890 = vmatprep.subr.bf16.mxu0 0
    %9891 = vmatpush2.bf16.msra.mxu0 0
    %9892 = vmatprep.mubr.bf16.mxu0 0
    %9893 = vmatmul.mubr.bf16.gmra.mxu0 %v9701
    %v9894 = vpop.f32.mrf.mxu0
    %v9895 = vadd.f32 %v9673, %v9894
    %v9896 = vpop.f32.mrf.mxu0
    %v9897 = vadd.f32 %v9673, %v9896
    %v9898 = vpop.f32.mrf.mxu0
    %v9899 = vadd.f32 %v9678, %v9898
    %v9900 = vpop.f32.mrf.mxu0
    %v9901 = vadd.f32 %v9678, %v9900
    %9902 = vmatprep.mubr.bf16.mxu0 0
    %9903 = vmatmul.mubr.bf16.gmra.mxu0 %v9704
    %v9904 = vpop.f32.mrf.mxu0
    %v9905 = vadd.f32 %v9683, %v9904
    %v9906 = vpop.f32.mrf.mxu0
    %v9907 = vadd.f32 %v9683, %v9906
    %v9908 = vpop.f32.mrf.mxu0
    %v9909 = vadd.f32 %v9688, %v9908
    %v9910 = vpop.f32.mrf.mxu0
    %v9911 = vadd.f32 %v9688, %v9910
    %9912 = vdwg.mxu0
    %9913 = vmatprep.subr.bf16.mxu0 0
    %9914 = vmatpush1.bf16.msra.mxu0 0
    %9915 = vmatprep.subr.bf16.mxu0 0
    %9916 = vmatpush1.bf16.msra.mxu0 0
    %9917 = vmatprep.subr.bf16.mxu0 0
    %9918 = vmatpush1.bf16.msra.mxu0 0
    %9919 = vmatprep.subr.bf16.mxu0 0
    %9920 = vmatpush1.bf16.msra.mxu0 0
    %9921 = vmatprep.subr.bf16.mxu0 0
    %9922 = vmatpush1.bf16.msra.mxu0 0
    %9923 = vmatprep.subr.bf16.mxu0 0
    %9924 = vmatpush1.bf16.msra.mxu0 0
    %9925 = vmatprep.subr.bf16.mxu0 %v9728
    %9926 = vmatpush1.bf16.msra.mxu0 %v9725
    %9927 = vmatprep.subr.bf16.mxu0 %v9645
    %9928 = vmatpush1.bf16.msra.mxu0 %v9644
    %9929 = vmatprep.subr.bf16.mxu0 0
    %9930 = vmatpush2.bf16.msra.mxu0 0
    %9931 = vmatprep.subr.bf16.mxu0 0
    %9932 = vmatpush2.bf16.msra.mxu0 0
    %9933 = vmatprep.subr.bf16.mxu0 0
    %9934 = vmatpush2.bf16.msra.mxu0 0
    %9935 = vmatprep.subr.bf16.mxu0 0
    %9936 = vmatpush2.bf16.msra.mxu0 0
    %9937 = vmatprep.subr.bf16.mxu0 0
    %9938 = vmatpush2.bf16.msra.mxu0 0
    %9939 = vmatprep.subr.bf16.mxu0 0
    %9940 = vmatpush2.bf16.msra.mxu0 0
    %9941 = vmatprep.subr.bf16.mxu0 0
    %9942 = vmatpush2.bf16.msra.mxu0 0
    %9943 = vmatprep.subr.bf16.mxu0 0
    %9944 = vmatpush2.bf16.msra.mxu0 0
    %9945 = vmatprep.mubr.bf16.mxu0 0
    %9946 = vmatmul.mubr.bf16.gmra.mxu0 %v9701
    %v9947 = vpop.f32.mrf.mxu0
    %v9948 = vadd.f32 %v9673, %v9947
    %v9949 = vpop.f32.mrf.mxu0
    %v9950 = vadd.f32 %v9673, %v9949
    %v9951 = vpop.f32.mrf.mxu0
    %v9952 = vadd.f32 %v9678, %v9951
    %v9953 = vpop.f32.mrf.mxu0
    %v9954 = vadd.f32 %v9678, %v9953
    %9955 = vmatprep.mubr.bf16.mxu0 0
    %9956 = vmatmul.mubr.bf16.gmra.mxu0 %v9704
    %v9957 = vpop.f32.mrf.mxu0
    %v9958 = vadd.f32 %v9683, %v9957
    %v9959 = vpop.f32.mrf.mxu0
    %v9960 = vadd.f32 %v9683, %v9959
    %v9961 = vpop.f32.mrf.mxu0
    %v9962 = vadd.f32 %v9688, %v9961
    %v9963 = vpop.f32.mrf.mxu0
    %v9964 = vadd.f32 %v9688, %v9963
    %9965 = vdwg.mxu0
    %9966 = vmatprep.subr.bf16.mxu0 0
    %9967 = vmatpush1.bf16.msra.mxu0 0
    %9968 = vmatprep.subr.bf16.mxu0 0
    %9969 = vmatpush1.bf16.msra.mxu0 0
    %9970 = vmatprep.subr.bf16.mxu0 0
    %9971 = vmatpush1.bf16.msra.mxu0 0
    %9972 = vmatprep.subr.bf16.mxu0 0
    %9973 = vmatpush1.bf16.msra.mxu0 0
    %9974 = vmatprep.subr.bf16.mxu0 0
    %9975 = vmatpush1.bf16.msra.mxu0 0
    %9976 = vmatprep.subr.bf16.mxu0 0
    %9977 = vmatpush1.bf16.msra.mxu0 0
    %9978 = vmatprep.subr.bf16.mxu0 %v9734
    %9979 = vmatpush1.bf16.msra.mxu0 %v9731
    %9980 = vmatprep.subr.bf16.mxu0 %v9647
    %9981 = vmatpush1.bf16.msra.mxu0 %v9646
    %9982 = vmatprep.subr.bf16.mxu0 0
    %9983 = vmatpush2.bf16.msra.mxu0 0
    %9984 = vmatprep.subr.bf16.mxu0 0
    %9985 = vmatpush2.bf16.msra.mxu0 0
    %9986 = vmatprep.subr.bf16.mxu0 0
    %9987 = vmatpush2.bf16.msra.mxu0 0
    %9988 = vmatprep.subr.bf16.mxu0 0
    %9989 = vmatpush2.bf16.msra.mxu0 0
    %9990 = vmatprep.subr.bf16.mxu0 0
    %9991 = vmatpush2.bf16.msra.mxu0 0
    %9992 = vmatprep.subr.bf16.mxu0 0
    %9993 = vmatpush2.bf16.msra.mxu0 0
    %9994 = vmatprep.subr.bf16.mxu0 0
    %9995 = vmatpush2.bf16.msra.mxu0 0
    %9996 = vmatprep.subr.bf16.mxu0 0
    %9997 = vmatpush2.bf16.msra.mxu0 0
    %9998 = vmatprep.mubr.bf16.mxu0 0
    %9999 = vmatmul.mubr.bf16.gmra.mxu0 %v9701
    %v10000 = vpop.f32.mrf.mxu0
    %v10001 = vadd.f32 %v9673, %v10000
    %v10002 = vpop.f32.mrf.mxu0
    %v10003 = vadd.f32 %v9673, %v10002
    %v10004 = vpop.f32.mrf.mxu0
    %v10005 = vadd.f32 %v9678, %v10004
    %v10006 = vpop.f32.mrf.mxu0
    %v10007 = vadd.f32 %v9678, %v10006
    %10008 = vmatprep.mubr.bf16.mxu0 0
    %10009 = vmatmul.mubr.bf16.gmra.mxu0 %v9704
    %v10010 = vpop.f32.mrf.mxu0
    %v10011 = vadd.f32 %v9683, %v10010
    %v10012 = vpop.f32.mrf.mxu0
    %v10013 = vadd.f32 %v9683, %v10012
    %v10014 = vpop.f32.mrf.mxu0
    %v10015 = vadd.f32 %v9688, %v10014
    %v10016 = vpop.f32.mrf.mxu0
    %v10017 = vadd.f32 %v9688, %v10016
    %10018 = vdwg.mxu0
    %10019 = vmatprep.subr.bf16.mxu0 0
    %10020 = vmatpush1.bf16.msra.mxu0 0
    %10021 = vmatprep.subr.bf16.mxu0 0
    %10022 = vmatpush1.bf16.msra.mxu0 0
    %10023 = vmatprep.subr.bf16.mxu0 0
    %10024 = vmatpush1.bf16.msra.mxu0 0
    %10025 = vmatprep.subr.bf16.mxu0 0
    %10026 = vmatpush1.bf16.msra.mxu0 0
    %10027 = vmatprep.subr.bf16.mxu0 0
    %10028 = vmatpush1.bf16.msra.mxu0 0
    %10029 = vmatprep.subr.bf16.mxu0 0
    %10030 = vmatpush1.bf16.msra.mxu0 0
    %10031 = vmatprep.subr.bf16.mxu0 %v9740
    %10032 = vmatpush1.bf16.msra.mxu0 %v9737
    %10033 = vmatprep.subr.bf16.mxu0 %v9649
    %10034 = vmatpush1.bf16.msra.mxu0 %v9648
    %10035 = vmatprep.subr.bf16.mxu0 0
    %10036 = vmatpush2.bf16.msra.mxu0 0
    %10037 = vmatprep.subr.bf16.mxu0 0
    %10038 = vmatpush2.bf16.msra.mxu0 0
    %10039 = vmatprep.subr.bf16.mxu0 0
    %10040 = vmatpush2.bf16.msra.mxu0 0
    %10041 = vmatprep.subr.bf16.mxu0 0
    %10042 = vmatpush2.bf16.msra.mxu0 0
    %10043 = vmatprep.subr.bf16.mxu0 0
    %10044 = vmatpush2.bf16.msra.mxu0 0
    %10045 = vmatprep.subr.bf16.mxu0 0
    %10046 = vmatpush2.bf16.msra.mxu0 0
    %10047 = vmatprep.subr.bf16.mxu0 0
    %10048 = vmatpush2.bf16.msra.mxu0 0
    %10049 = vmatprep.subr.bf16.mxu0 0
    %10050 = vmatpush2.bf16.msra.mxu0 0
    %10051 = vmatprep.mubr.bf16.mxu0 0
    %10052 = vmatmul.mubr.bf16.gmra.mxu0 %v9701
    %v10053 = vpop.f32.mrf.mxu0
    %v10054 = vadd.f32 %v9673, %v10053
    %v10055 = vpop.f32.mrf.mxu0
    %v10056 = vadd.f32 %v9673, %v10055
    %v10057 = vpop.f32.mrf.mxu0
    %v10058 = vadd.f32 %v9678, %v10057
    %v10059 = vpop.f32.mrf.mxu0
    %v10060 = vadd.f32 %v9678, %v10059
    %10061 = vmatprep.mubr.bf16.mxu0 0
    %10062 = vmatmul.mubr.bf16.gmra.mxu0 %v9704
    %v10063 = vpop.f32.mrf.mxu0
    %v10064 = vadd.f32 %v9683, %v10063
    %v10065 = vpop.f32.mrf.mxu0
    %v10066 = vadd.f32 %v9683, %v10065
    %v10067 = vpop.f32.mrf.mxu0
    %v10068 = vadd.f32 %v9688, %v10067
    %v10069 = vpop.f32.mrf.mxu0
    %v10070 = vadd.f32 %v9688, %v10069
    %10071 = vdwg.mxu0
    %10072 = vmatprep.subr.bf16.mxu0 0
    %10073 = vmatpush1.bf16.msra.mxu0 0
    %10074 = vmatprep.subr.bf16.mxu0 0
    %10075 = vmatpush1.bf16.msra.mxu0 0
    %10076 = vmatprep.subr.bf16.mxu0 0
    %10077 = vmatpush1.bf16.msra.mxu0 0
    %10078 = vmatprep.subr.bf16.mxu0 0
    %10079 = vmatpush1.bf16.msra.mxu0 0
    %10080 = vmatprep.subr.bf16.mxu0 0
    %10081 = vmatpush1.bf16.msra.mxu0 0
    %10082 = vmatprep.subr.bf16.mxu0 0
    %10083 = vmatpush1.bf16.msra.mxu0 0
    %10084 = vmatprep.subr.bf16.mxu0 %v9746
    %10085 = vmatpush1.bf16.msra.mxu0 %v9743
    %10086 = vmatprep.subr.bf16.mxu0 %v9651
    %10087 = vmatpush1.bf16.msra.mxu0 %v9650
    %10088 = vmatprep.subr.bf16.mxu0 0
    %10089 = vmatpush2.bf16.msra.mxu0 0
    %10090 = vmatprep.subr.bf16.mxu0 0
    %10091 = vmatpush2.bf16.msra.mxu0 0
    %10092 = vmatprep.subr.bf16.mxu0 0
    %10093 = vmatpush2.bf16.msra.mxu0 0
    %10094 = vmatprep.subr.bf16.mxu0 0
    %10095 = vmatpush2.bf16.msra.mxu0 0
    %10096 = vmatprep.subr.bf16.mxu0 0
    %10097 = vmatpush2.bf16.msra.mxu0 0
    %10098 = vmatprep.subr.bf16.mxu0 0
    %10099 = vmatpush2.bf16.msra.mxu0 0
    %10100 = vmatprep.subr.bf16.mxu0 0
    %10101 = vmatpush2.bf16.msra.mxu0 0
    %10102 = vmatprep.subr.bf16.mxu0 0
    %10103 = vmatpush2.bf16.msra.mxu0 0
    %10104 = vmatprep.mubr.bf16.mxu0 0
    %10105 = vmatmul.mubr.bf16.gmra.mxu0 %v9701
    %v10106 = vpop.f32.mrf.mxu0
    %v10107 = vadd.f32 %v9673, %v10106
    %v10108 = vpop.f32.mrf.mxu0
    %v10109 = vadd.f32 %v9673, %v10108
    %v10110 = vpop.f32.mrf.mxu0
    %v10111 = vadd.f32 %v9678, %v10110
    %v10112 = vpop.f32.mrf.mxu0
    %v10113 = vadd.f32 %v9678, %v10112
    %10114 = vmatprep.mubr.bf16.mxu0 0
    %10115 = vmatmul.mubr.bf16.gmra.mxu0 %v9704
    %v10116 = vpop.f32.mrf.mxu0
    %v10117 = vadd.f32 %v9683, %v10116
    %v10118 = vpop.f32.mrf.mxu0
    %v10119 = vadd.f32 %v9683, %v10118
    %v10120 = vpop.f32.mrf.mxu0
    %v10121 = vadd.f32 %v9688, %v10120
    %v10122 = vpop.f32.mrf.mxu0
    %v10123 = vadd.f32 %v9688, %v10122
    %10124 = vdwg.mxu0
    %10125 = vmatprep.subr.bf16.mxu0 0
    %10126 = vmatpush1.bf16.msra.mxu0 0
    %10127 = vmatprep.subr.bf16.mxu0 0
    %10128 = vmatpush1.bf16.msra.mxu0 0
    %10129 = vmatprep.subr.bf16.mxu0 0
    %10130 = vmatpush1.bf16.msra.mxu0 0
    %10131 = vmatprep.subr.bf16.mxu0 0
    %10132 = vmatpush1.bf16.msra.mxu0 0
    %10133 = vmatprep.subr.bf16.mxu0 0
    %10134 = vmatpush1.bf16.msra.mxu0 0
    %10135 = vmatprep.subr.bf16.mxu0 0
    %10136 = vmatpush1.bf16.msra.mxu0 0
    %10137 = vmatprep.subr.bf16.mxu0 %v9752
    %10138 = vmatpush1.bf16.msra.mxu0 %v9749
    %10139 = vmatprep.subr.bf16.mxu0 %v9653
    %10140 = vmatpush1.bf16.msra.mxu0 %v9652
    %10141 = vmatprep.subr.bf16.mxu0 0
    %10142 = vmatpush2.bf16.msra.mxu0 0
    %10143 = vmatprep.subr.bf16.mxu0 0
    %10144 = vmatpush2.bf16.msra.mxu0 0
    %10145 = vmatprep.subr.bf16.mxu0 0
    %10146 = vmatpush2.bf16.msra.mxu0 0
    %10147 = vmatprep.subr.bf16.mxu0 0
    %10148 = vmatpush2.bf16.msra.mxu0 0
    %10149 = vmatprep.subr.bf16.mxu0 0
    %10150 = vmatpush2.bf16.msra.mxu0 0
    %10151 = vmatprep.subr.bf16.mxu0 0
    %10152 = vmatpush2.bf16.msra.mxu0 0
    %10153 = vmatprep.subr.bf16.mxu0 0
    %10154 = vmatpush2.bf16.msra.mxu0 0
    %10155 = vmatprep.subr.bf16.mxu0 0
    %10156 = vmatpush2.bf16.msra.mxu0 0
    %10157 = vmatprep.mubr.bf16.mxu0 0
    %10158 = vmatmul.mubr.bf16.gmra.mxu0 %v9701
    %v10159 = vpop.f32.mrf.mxu0
    %v10160 = vadd.f32 %v9673, %v10159
    %v10161 = vpop.f32.mrf.mxu0
    %v10162 = vadd.f32 %v9673, %v10161
    %v10163 = vpop.f32.mrf.mxu0
    %v10164 = vadd.f32 %v9678, %v10163
    %v10165 = vpop.f32.mrf.mxu0
    %v10166 = vadd.f32 %v9678, %v10165
    %10167 = vmatprep.mubr.bf16.mxu0 0
    %10168 = vmatmul.mubr.bf16.gmra.mxu0 %v9704
    %v10169 = vpop.f32.mrf.mxu0
    %v10170 = vadd.f32 %v9683, %v10169
    %v10171 = vpop.f32.mrf.mxu0
    %v10172 = vadd.f32 %v9683, %v10171
    %v10173 = vpop.f32.mrf.mxu0
    %v10174 = vadd.f32 %v9688, %v10173
    %v10175 = vpop.f32.mrf.mxu0
    %v10176 = vadd.f32 %v9688, %v10175
    %10177 = vdwg.mxu0
    %v10178 = vsub.f32 %v9789, %v106
    %v10179 = vsub.f32 %v9791, %v107
    %v10180 = vsub.f32 %v9842, %v108
    %v10181 = vsub.f32 %v9844, %v109
    %v10182 = vsub.f32 %v9895, %v110
    %v10183 = vsub.f32 %v9897, %v111
    %v10184 = vsub.f32 %v9948, %v112
    %v10185 = vsub.f32 %v9950, %v113
    %v10186 = vsub.f32 %v10001, %v114
    %v10187 = vsub.f32 %v10003, %v115
    %v10188 = vsub.f32 %v10054, %v116
    %v10189 = vsub.f32 %v10056, %v117
    %v10190 = vsub.f32 %v10107, %v118
    %v10191 = vsub.f32 %v10109, %v119
    %v10192 = vsub.f32 %v10160, %v120
    %v10193 = vsub.f32 %v10162, %v121
    %v10194 = vsub.f32 %v9793, %v122
    %v10195 = vsub.f32 %v9795, %v123
    %v10196 = vsub.f32 %v9846, %v124
    %v10197 = vsub.f32 %v9848, %v125
    %v10198 = vsub.f32 %v9899, %v126
    %v10199 = vsub.f32 %v9901, %v127
    %v10200 = vsub.f32 %v9952, %v128
    %v10201 = vsub.f32 %v9954, %v129
    %v10202 = vsub.f32 %v10005, %v130
    %v10203 = vsub.f32 %v10007, %v131
    %v10204 = vsub.f32 %v10058, %v132
    %v10205 = vsub.f32 %v10060, %v133
    %v10206 = vsub.f32 %v10111, %v134
    %v10207 = vsub.f32 %v10113, %v135
    %v10208 = vsub.f32 %v10164, %v136
    %v10209 = vsub.f32 %v10166, %v137
    %v10210 = vsub.f32 %v9799, %v138
    %v10211 = vsub.f32 %v9801, %v139
    %v10212 = vsub.f32 %v9852, %v140
    %v10213 = vsub.f32 %v9854, %v141
    %v10214 = vsub.f32 %v9905, %v142
    %v10215 = vsub.f32 %v9907, %v143
    %v10216 = vsub.f32 %v9958, %v144
    %v10217 = vsub.f32 %v9960, %v145
    %v10218 = vsub.f32 %v10011, %v146
    %v10219 = vsub.f32 %v10013, %v147
    %v10220 = vsub.f32 %v10064, %v148
    %v10221 = vsub.f32 %v10066, %v149
    %v10222 = vsub.f32 %v10117, %v150
    %v10223 = vsub.f32 %v10119, %v151
    %v10224 = vsub.f32 %v10170, %v152
    %v10225 = vsub.f32 %v10172, %v153
    %v10226 = vsub.f32 %v9803, %v154
    %v10227 = vsub.f32 %v9805, %v155
    %v10228 = vsub.f32 %v9856, %v156
    %v10229 = vsub.f32 %v9858, %v157
    %v10230 = vsub.f32 %v9909, %v158
    %v10231 = vsub.f32 %v9911, %v159
    %v10232 = vsub.f32 %v9962, %v160
    %v10233 = vsub.f32 %v9964, %v161
    %v10234 = vsub.f32 %v10015, %v162
    %v10235 = vsub.f32 %v10017, %v163
    %v10236 = vsub.f32 %v10068, %v164
    %v10237 = vsub.f32 %v10070, %v165
    %v10238 = vsub.f32 %v10121, %v166
    %v10239 = vsub.f32 %v10123, %v167
    %v10240 = vsub.f32 %v10174, %v168
    %v10241 = vsub.f32 %v10176, %v169
    %v10242 = vmul.f32 %v10178, %v10178
    %v10243 = vmul.f32 %v10179, %v10179
    %v10244 = vmul.f32 %v10180, %v10180
    %v10245 = vmul.f32 %v10181, %v10181
    %v10246 = vmul.f32 %v10182, %v10182
    %v10247 = vmul.f32 %v10183, %v10183
    %v10248 = vmul.f32 %v10184, %v10184
    %v10249 = vmul.f32 %v10185, %v10185
    %v10250 = vmul.f32 %v10186, %v10186
    %v10251 = vmul.f32 %v10187, %v10187
    %v10252 = vmul.f32 %v10188, %v10188
    %v10253 = vmul.f32 %v10189, %v10189
    %v10254 = vmul.f32 %v10190, %v10190
    %v10255 = vmul.f32 %v10191, %v10191
    %v10256 = vmul.f32 %v10192, %v10192
    %v10257 = vmul.f32 %v10193, %v10193
    %v10258 = vmul.f32 %v10194, %v10194
    %v10259 = vmul.f32 %v10195, %v10195
    %v10260 = vmul.f32 %v10196, %v10196
    %v10261 = vmul.f32 %v10197, %v10197
    %v10262 = vmul.f32 %v10198, %v10198
    %v10263 = vmul.f32 %v10199, %v10199
    %v10264 = vmul.f32 %v10200, %v10200
    %v10265 = vmul.f32 %v10201, %v10201
    %v10266 = vmul.f32 %v10202, %v10202
    %v10267 = vmul.f32 %v10203, %v10203
    %v10268 = vmul.f32 %v10204, %v10204
    %v10269 = vmul.f32 %v10205, %v10205
    %v10270 = vmul.f32 %v10206, %v10206
    %v10271 = vmul.f32 %v10207, %v10207
    %v10272 = vmul.f32 %v10208, %v10208
    %v10273 = vmul.f32 %v10209, %v10209
    %v10274 = vmul.f32 %v10210, %v10210
    %v10275 = vmul.f32 %v10211, %v10211
    %v10276 = vmul.f32 %v10212, %v10212
    %v10277 = vmul.f32 %v10213, %v10213
    %v10278 = vmul.f32 %v10214, %v10214
    %v10279 = vmul.f32 %v10215, %v10215
    %v10280 = vmul.f32 %v10216, %v10216
    %v10281 = vmul.f32 %v10217, %v10217
    %v10282 = vmul.f32 %v10218, %v10218
    %v10283 = vmul.f32 %v10219, %v10219
    %v10284 = vmul.f32 %v10220, %v10220
    %v10285 = vmul.f32 %v10221, %v10221
    %v10286 = vmul.f32 %v10222, %v10222
    %v10287 = vmul.f32 %v10223, %v10223
    %v10288 = vmul.f32 %v10224, %v10224
    %v10289 = vmul.f32 %v10225, %v10225
    %v10290 = vmul.f32 %v10226, %v10226
    %v10291 = vmul.f32 %v10227, %v10227
    %v10292 = vmul.f32 %v10228, %v10228
    %v10293 = vmul.f32 %v10229, %v10229
    %v10294 = vmul.f32 %v10230, %v10230
    %v10295 = vmul.f32 %v10231, %v10231
    %v10296 = vmul.f32 %v10232, %v10232
    %v10297 = vmul.f32 %v10233, %v10233
    %v10298 = vmul.f32 %v10234, %v10234
    %v10299 = vmul.f32 %v10235, %v10235
    %v10300 = vmul.f32 %v10236, %v10236
    %v10301 = vmul.f32 %v10237, %v10237
    %v10302 = vmul.f32 %v10238, %v10238
    %v10303 = vmul.f32 %v10239, %v10239
    %v10304 = vmul.f32 %v10240, %v10240
    %v10305 = vmul.f32 %v10241, %v10241
    %v10306 = vadd.f32 %v10242, %v10258
    %v10307 = vadd.f32 %v10306, %v10274
    %v10308 = vadd.f32 %v10307, %v10290
    %v10309 = vrot.slane %v10308, 4
    %v10310 = vadd.f32 %v10308, %v10309
    %v10311 = vrot.slane %v10310, 2
    %v10312 = vadd.f32 %v10310, %v10311
    %v10313 = vrot.slane %v10312, 1
    %v10314 = vadd.f32 %v10312, %v10313
    %v10315 = vadd.f32 %v10243, %v10259
    %v10316 = vadd.f32 %v10315, %v10275
    %v10317 = vadd.f32 %v10316, %v10291
    %v10318 = vrot.slane %v10317, 4
    %v10319 = vadd.f32 %v10317, %v10318
    %v10320 = vrot.slane %v10319, 2
    %v10321 = vadd.f32 %v10319, %v10320
    %v10322 = vrot.slane %v10321, 1
    %v10323 = vadd.f32 %v10321, %v10322
    %v10324 = vadd.f32 %v10244, %v10260
    %v10325 = vadd.f32 %v10324, %v10276
    %v10326 = vadd.f32 %v10325, %v10292
    %v10327 = vrot.slane %v10326, 4
    %v10328 = vadd.f32 %v10326, %v10327
    %v10329 = vrot.slane %v10328, 2
    %v10330 = vadd.f32 %v10328, %v10329
    %v10331 = vrot.slane %v10330, 1
    %v10332 = vadd.f32 %v10330, %v10331
    %v10333 = vadd.f32 %v10245, %v10261
    %v10334 = vadd.f32 %v10333, %v10277
    %v10335 = vadd.f32 %v10334, %v10293
    %v10336 = vrot.slane %v10335, 4
    %v10337 = vadd.f32 %v10335, %v10336
    %v10338 = vrot.slane %v10337, 2
    %v10339 = vadd.f32 %v10337, %v10338
    %v10340 = vrot.slane %v10339, 1
    %v10341 = vadd.f32 %v10339, %v10340
    %v10342 = vadd.f32 %v10246, %v10262
    %v10343 = vadd.f32 %v10342, %v10278
    %v10344 = vadd.f32 %v10343, %v10294
    %v10345 = vrot.slane %v10344, 4
    %v10346 = vadd.f32 %v10344, %v10345
    %v10347 = vrot.slane %v10346, 2
    %v10348 = vadd.f32 %v10346, %v10347
    %v10349 = vrot.slane %v10348, 1
    %v10350 = vadd.f32 %v10348, %v10349
    %v10351 = vadd.f32 %v10247, %v10263
    %v10352 = vadd.f32 %v10351, %v10279
    %v10353 = vadd.f32 %v10352, %v10295
    %v10354 = vrot.slane %v10353, 4
    %v10355 = vadd.f32 %v10353, %v10354
    %v10356 = vrot.slane %v10355, 2
    %v10357 = vadd.f32 %v10355, %v10356
    %v10358 = vrot.slane %v10357, 1
    %v10359 = vadd.f32 %v10357, %v10358
    %v10360 = vadd.f32 %v10248, %v10264
    %v10361 = vadd.f32 %v10360, %v10280
    %v10362 = vadd.f32 %v10361, %v10296
    %v10363 = vrot.slane %v10362, 4
    %v10364 = vadd.f32 %v10362, %v10363
    %v10365 = vrot.slane %v10364, 2
    %v10366 = vadd.f32 %v10364, %v10365
    %v10367 = vrot.slane %v10366, 1
    %v10368 = vadd.f32 %v10366, %v10367
    %v10369 = vadd.f32 %v10249, %v10265
    %v10370 = vadd.f32 %v10369, %v10281
    %v10371 = vadd.f32 %v10370, %v10297
    %v10372 = vrot.slane %v10371, 4
    %v10373 = vadd.f32 %v10371, %v10372
    %v10374 = vrot.slane %v10373, 2
    %v10375 = vadd.f32 %v10373, %v10374
    %v10376 = vrot.slane %v10375, 1
    %v10377 = vadd.f32 %v10375, %v10376
    %v10378 = vadd.f32 %v10250, %v10266
    %v10379 = vadd.f32 %v10378, %v10282
    %v10380 = vadd.f32 %v10379, %v10298
    %v10381 = vrot.slane %v10380, 4
    %v10382 = vadd.f32 %v10380, %v10381
    %v10383 = vrot.slane %v10382, 2
    %v10384 = vadd.f32 %v10382, %v10383
    %v10385 = vrot.slane %v10384, 1
    %v10386 = vadd.f32 %v10384, %v10385
    %v10387 = vadd.f32 %v10251, %v10267
    %v10388 = vadd.f32 %v10387, %v10283
    %v10389 = vadd.f32 %v10388, %v10299
    %v10390 = vrot.slane %v10389, 4
    %v10391 = vadd.f32 %v10389, %v10390
    %v10392 = vrot.slane %v10391, 2
    %v10393 = vadd.f32 %v10391, %v10392
    %v10394 = vrot.slane %v10393, 1
    %v10395 = vadd.f32 %v10393, %v10394
    %v10396 = vadd.f32 %v10252, %v10268
    %v10397 = vadd.f32 %v10396, %v10284
    %v10398 = vadd.f32 %v10397, %v10300
    %v10399 = vrot.slane %v10398, 4
    %v10400 = vadd.f32 %v10398, %v10399
    %v10401 = vrot.slane %v10400, 2
    %v10402 = vadd.f32 %v10400, %v10401
    %v10403 = vrot.slane %v10402, 1
    %v10404 = vadd.f32 %v10402, %v10403
    %v10405 = vadd.f32 %v10253, %v10269
    %v10406 = vadd.f32 %v10405, %v10285
    %v10407 = vadd.f32 %v10406, %v10301
    %v10408 = vrot.slane %v10407, 4
    %v10409 = vadd.f32 %v10407, %v10408
    %v10410 = vrot.slane %v10409, 2
    %v10411 = vadd.f32 %v10409, %v10410
    %v10412 = vrot.slane %v10411, 1
    %v10413 = vadd.f32 %v10411, %v10412
    %v10414 = vadd.f32 %v10254, %v10270
    %v10415 = vadd.f32 %v10414, %v10286
    %v10416 = vadd.f32 %v10415, %v10302
    %v10417 = vrot.slane %v10416, 4
    %v10418 = vadd.f32 %v10416, %v10417
    %v10419 = vrot.slane %v10418, 2
    %v10420 = vadd.f32 %v10418, %v10419
    %v10421 = vrot.slane %v10420, 1
    %v10422 = vadd.f32 %v10420, %v10421
    %v10423 = vadd.f32 %v10255, %v10271
    %v10424 = vadd.f32 %v10423, %v10287
    %v10425 = vadd.f32 %v10424, %v10303
    %v10426 = vrot.slane %v10425, 4
    %v10427 = vadd.f32 %v10425, %v10426
    %v10428 = vrot.slane %v10427, 2
    %v10429 = vadd.f32 %v10427, %v10428
    %v10430 = vrot.slane %v10429, 1
    %v10431 = vadd.f32 %v10429, %v10430
    %v10432 = vadd.f32 %v10256, %v10272
    %v10433 = vadd.f32 %v10432, %v10288
    %v10434 = vadd.f32 %v10433, %v10304
    %v10435 = vrot.slane %v10434, 4
    %v10436 = vadd.f32 %v10434, %v10435
    %v10437 = vrot.slane %v10436, 2
    %v10438 = vadd.f32 %v10436, %v10437
    %v10439 = vrot.slane %v10438, 1
    %v10440 = vadd.f32 %v10438, %v10439
    %v10441 = vadd.f32 %v10257, %v10273
    %v10442 = vadd.f32 %v10441, %v10289
    %v10443 = vadd.f32 %v10442, %v10305
    %v10444 = vrot.slane %v10443, 4
    %v10445 = vadd.f32 %v10443, %v10444
    %v10446 = vrot.slane %v10445, 2
    %v10447 = vadd.f32 %v10445, %v10446
    %v10448 = vrot.slane %v10447, 1
    %v10449 = vadd.f32 %v10447, %v10448
    %v10450 = vmul.f32 %v10314, 0.03125
    %v10451 = vmul.f32 %v10323, 0.03125
    %v10452 = vmul.f32 %v10332, 0.03125
    %v10453 = vmul.f32 %v10341, 0.03125
    %v10454 = vmul.f32 %v10350, 0.03125
    %v10455 = vmul.f32 %v10359, 0.03125
    %v10456 = vmul.f32 %v10368, 0.03125
    %v10457 = vmul.f32 %v10377, 0.03125
    %v10458 = vmul.f32 %v10386, 0.03125
    %v10459 = vmul.f32 %v10395, 0.03125
    %v10460 = vmul.f32 %v10404, 0.03125
    %v10461 = vmul.f32 %v10413, 0.03125
    %v10462 = vmul.f32 %v10422, 0.03125
    %v10463 = vmul.f32 %v10431, 0.03125
    %v10464 = vmul.f32 %v10440, 0.03125
    %v10465 = vmul.f32 %v10449, 0.03125
    %v10466 = vmul.f32 %v8548, 0.25
    %v10467 = vmul.f32 %v8549, 0.25
    %v10468 = vmul.f32 %v8550, 0.25
    %v10469 = vmul.f32 %v8551, 0.25
    %v10470 = vmul.f32 %v8552, 0.25
    %v10471 = vmul.f32 %v8553, 0.25
    %v10472 = vmul.f32 %v8554, 0.25
    %v10473 = vmul.f32 %v8555, 0.25
    %v10474 = vmul.f32 %v8556, 0.25
    %v10475 = vmul.f32 %v8557, 0.25
    %v10476 = vmul.f32 %v8558, 0.25
    %v10477 = vmul.f32 %v8559, 0.25
    %v10478 = vmul.f32 %v8560, 0.25
    %v10479 = vmul.f32 %v8561, 0.25
    %v10480 = vmul.f32 %v8562, 0.25
    %v10481 = vmul.f32 %v8563, 0.25
    %v10484 = vlaneseq
    %v10485 = vshrl.u32 %v10484, 7
    %v10486 = vsub.s32 0, %v10485
    %v10487 = vrot.slane %v170, %v10486
    %v10488 = vlaneseq
    %v10489 = vshrl.u32 %v10488, 7
    %v10490 = vsub.s32 1, %v10489
    %v10491 = vrot.slane %v170, %v10490
    %v10492 = vlaneseq
    %v10493 = vshrl.u32 %v10492, 7
    %v10494 = vsub.s32 2, %v10493
    %v10495 = vrot.slane %v170, %v10494
    %v10496 = vlaneseq
    %v10497 = vshrl.u32 %v10496, 7
    %v10498 = vsub.s32 3, %v10497
    %v10499 = vrot.slane %v170, %v10498
    %v10500 = vlaneseq
    %v10501 = vshrl.u32 %v10500, 7
    %v10502 = vsub.s32 4, %v10501
    %v10503 = vrot.slane %v170, %v10502
    %v10504 = vlaneseq
    %v10505 = vshrl.u32 %v10504, 7
    %v10506 = vsub.s32 5, %v10505
    %v10507 = vrot.slane %v170, %v10506
    %v10508 = vlaneseq
    %v10509 = vshrl.u32 %v10508, 7
    %v10510 = vsub.s32 6, %v10509
    %v10511 = vrot.slane %v170, %v10510
    %v10512 = vlaneseq
    %v10513 = vshrl.u32 %v10512, 7
    %v10514 = vsub.s32 7, %v10513
    %v10515 = vrot.slane %v170, %v10514
    %v10516 = vlaneseq
    %v10517 = vshrl.u32 %v10516, 7
    %v10518 = vsub.s32 0, %v10517
    %v10519 = vrot.slane %v171, %v10518
    %v10520 = vlaneseq
    %v10521 = vshrl.u32 %v10520, 7
    %v10522 = vsub.s32 1, %v10521
    %v10523 = vrot.slane %v171, %v10522
    %v10524 = vlaneseq
    %v10525 = vshrl.u32 %v10524, 7
    %v10526 = vsub.s32 2, %v10525
    %v10527 = vrot.slane %v171, %v10526
    %v10528 = vlaneseq
    %v10529 = vshrl.u32 %v10528, 7
    %v10530 = vsub.s32 3, %v10529
    %v10531 = vrot.slane %v171, %v10530
    %v10532 = vlaneseq
    %v10533 = vshrl.u32 %v10532, 7
    %v10534 = vsub.s32 4, %v10533
    %v10535 = vrot.slane %v171, %v10534
    %v10536 = vlaneseq
    %v10537 = vshrl.u32 %v10536, 7
    %v10538 = vsub.s32 5, %v10537
    %v10539 = vrot.slane %v171, %v10538
    %v10540 = vlaneseq
    %v10541 = vshrl.u32 %v10540, 7
    %v10542 = vsub.s32 6, %v10541
    %v10543 = vrot.slane %v171, %v10542
    %v10544 = vlaneseq
    %v10545 = vshrl.u32 %v10544, 7
    %v10546 = vsub.s32 7, %v10545
    %v10547 = vrot.slane %v171, %v10546
    %v10564 = vmul.f32 %v10450, %v10487
    %v10565 = vmul.f32 %v10451, %v10491
    %v10566 = vmul.f32 %v10452, %v10495
    %v10567 = vmul.f32 %v10453, %v10499
    %v10568 = vmul.f32 %v10454, %v10503
    %v10569 = vmul.f32 %v10455, %v10507
    %v10570 = vmul.f32 %v10456, %v10511
    %v10571 = vmul.f32 %v10457, %v10515
    %v10572 = vmul.f32 %v10458, %v10519
    %v10573 = vmul.f32 %v10459, %v10523
    %v10574 = vmul.f32 %v10460, %v10527
    %v10575 = vmul.f32 %v10461, %v10531
    %v10576 = vmul.f32 %v10462, %v10535
    %v10577 = vmul.f32 %v10463, %v10539
    %v10578 = vmul.f32 %v10464, %v10543
    %v10579 = vmul.f32 %v10465, %v10547
    %v10580 = vmul.f32 %v10466, %v10487
    %v10581 = vmul.f32 %v10467, %v10491
    %v10582 = vmul.f32 %v10468, %v10495
    %v10583 = vmul.f32 %v10469, %v10499
    %v10584 = vmul.f32 %v10470, %v10503
    %v10585 = vmul.f32 %v10471, %v10507
    %v10586 = vmul.f32 %v10472, %v10511
    %v10587 = vmul.f32 %v10473, %v10515
    %v10588 = vmul.f32 %v10474, %v10519
    %v10589 = vmul.f32 %v10475, %v10523
    %v10590 = vmul.f32 %v10476, %v10527
    %v10591 = vmul.f32 %v10477, %v10531
    %v10592 = vmul.f32 %v10478, %v10535
    %v10593 = vmul.f32 %v10479, %v10539
    %v10594 = vmul.f32 %v10480, %v10543
    %v10595 = vmul.f32 %v10481, %v10547
    %v10612 = vrot.slane %v10580, 7
    %v10613 = vrot.slane %v10581, 7
    %v10614 = vrot.slane %v10582, 7
    %v10615 = vrot.slane %v10583, 7
    %v10616 = vrot.slane %v10584, 7
    %v10617 = vrot.slane %v10585, 7
    %v10618 = vrot.slane %v10586, 7
    %v10619 = vrot.slane %v10587, 7
    %v10620 = vrot.slane %v10588, 7
    %v10621 = vrot.slane %v10589, 7
    %v10622 = vrot.slane %v10590, 7
    %v10623 = vrot.slane %v10591, 7
    %v10624 = vrot.slane %v10592, 7
    %v10625 = vrot.slane %v10593, 7
    %v10626 = vrot.slane %v10594, 7
    %v10627 = vrot.slane %v10595, 7
    %v10644 = vsel %vm8612, %v10564, %v10612
    %v10645 = vsel %vm8612, %v10565, %v10613
    %v10646 = vsel %vm8612, %v10566, %v10614
    %v10647 = vsel %vm8612, %v10567, %v10615
    %v10648 = vsel %vm8612, %v10568, %v10616
    %v10649 = vsel %vm8612, %v10569, %v10617
    %v10650 = vsel %vm8612, %v10570, %v10618
    %v10651 = vsel %vm8612, %v10571, %v10619
    %v10652 = vsel %vm8612, %v10572, %v10620
    %v10653 = vsel %vm8612, %v10573, %v10621
    %v10654 = vsel %vm8612, %v10574, %v10622
    %v10655 = vsel %vm8612, %v10575, %v10623
    %v10656 = vsel %vm8612, %v10576, %v10624
    %v10657 = vsel %vm8612, %v10577, %v10625
    %v10658 = vsel %vm8612, %v10578, %v10626
    %v10659 = vsel %vm8612, %v10579, %v10627
    %v10660 = vsel %vm8629, %v10644, %v10487
    %v10661 = vsel %vm8629, %v10645, %v10491
    %v10662 = vsel %vm8629, %v10646, %v10495
    %v10663 = vsel %vm8629, %v10647, %v10499
    %v10664 = vsel %vm8629, %v10648, %v10503
    %v10665 = vsel %vm8629, %v10649, %v10507
    %v10666 = vsel %vm8629, %v10650, %v10511
    %v10667 = vsel %vm8629, %v10651, %v10515
    %v10668 = vsel %vm8629, %v10652, %v10519
    %v10669 = vsel %vm8629, %v10653, %v10523
    %v10670 = vsel %vm8629, %v10654, %v10527
    %v10671 = vsel %vm8629, %v10655, %v10531
    %v10672 = vsel %vm8629, %v10656, %v10535
    %v10673 = vsel %vm8629, %v10657, %v10539
    %v10674 = vsel %vm8629, %v10658, %v10543
    %v10675 = vsel %vm8629, %v10659, %v10547
    %v10676 = vsel %vm8646, %v10660, 0.0
    %v10677 = vsel %vm8646, %v10661, 0.0
    %v10678 = vadd.f32 %v10676, %v10677
    %v10679 = vsel %vm8646, %v10662, 0.0
    %v10680 = vadd.f32 %v10678, %v10679
    %v10681 = vsel %vm8646, %v10663, 0.0
    %v10682 = vadd.f32 %v10680, %v10681
    %v10683 = vsel %vm8646, %v10664, 0.0
    %v10684 = vadd.f32 %v10682, %v10683
    %v10685 = vsel %vm8646, %v10665, 0.0
    %v10686 = vadd.f32 %v10684, %v10685
    %v10687 = vsel %vm8646, %v10666, 0.0
    %v10688 = vadd.f32 %v10686, %v10687
    %v10689 = vsel %vm8646, %v10667, 0.0
    %v10690 = vadd.f32 %v10688, %v10689
    %v10691 = vsel %vm8646, %v10668, 0.0
    %v10692 = vadd.f32 %v10690, %v10691
    %v10693 = vsel %vm8646, %v10669, 0.0
    %v10694 = vadd.f32 %v10692, %v10693
    %v10695 = vsel %vm8646, %v10670, 0.0
    %v10696 = vadd.f32 %v10694, %v10695
    %v10697 = vsel %vm8646, %v10671, 0.0
    %v10698 = vadd.f32 %v10696, %v10697
    %v10699 = vsel %vm8646, %v10672, 0.0
    %v10700 = vadd.f32 %v10698, %v10699
    %v10701 = vsel %vm8646, %v10673, 0.0
    %v10702 = vadd.f32 %v10700, %v10701
    %v10703 = vsel %vm8646, %v10674, 0.0
    %v10704 = vadd.f32 %v10702, %v10703
    %v10705 = vsel %vm8646, %v10675, 0.0
    %v10706 = vadd.f32 %v10704, %v10705
    %10707 = vadd.xlane.f32.xlu0 %v10706
    %v10708 = vpop.xlane.xlu0 %10707
    %10709 = vst [vmem:[%s19] sm:$0x7] %v10708
    // Predicated region
    $region74: #{tpu_custom_call.1} parent=1 // pred_check
      _
    $region75: #{tpu_custom_call.1} parent=1 // pred_check_branch
      %10711 = sbr.rel (0) target = $region77
    $region76: #{tpu_custom_call.1} parent=1 // pred_region
      %s10713 = ssub.s32 1024, 1024
      %10714 = vsyncadd [#allocation4], %s10713
      %s10716 = sshll.u32 [#allocation5], 4
      %s10717 = int_to_ptr.vmem [resolvable:$true] %s10716
      %10719 = dma.vmem_to_hbm [thread:$0]  %s10717, 1024, %s17, [#allocation4]
    $region77: #{tpu_custom_call.1} parent=1 // pred_fallthru
      _
    // Predicated region
    $region78: #{tpu_custom_call.1} parent=1 // pred_check
      _
    $region79: #{tpu_custom_call.1} parent=1 // pred_check_branch
      %10721 = sbr.rel (0) target = $region81
    $region80: #{tpu_custom_call.1} parent=1 // pred_region
      %s10723 = ssub.s32 16384, 16384
      %10724 = vsyncadd [#allocation7], %s10723
      %s10725 = sshll.u32 [#allocation6], 4
      %s10726 = int_to_ptr.vmem [resolvable:$true] %s10725
      %10731 = dma.vmem_to_hbm [thread:$0]  %s10726, 16384, %s18, [#allocation7], 2048, 2048, 128
    $region81: #{tpu_custom_call.1} parent=1 // pred_fallthru
      _
    // Predicated region
    $region82: #{tpu_custom_call.1} parent=1 // pred_check
      _
    $region83: #{tpu_custom_call.1} parent=1 // pred_check_branch
      %10733 = sbr.rel (0) target = $region85
    $region84: #{tpu_custom_call.1} parent=1 // pred_region
      _
    $region85: #{tpu_custom_call.1} parent=1 // pred_fallthru
      _
    // Predicated region
    $region86: #{tpu_custom_call.1} parent=1 // pred_check
      _
    $region87: #{tpu_custom_call.1} parent=1 // pred_check_branch
      %10735 = sbr.rel (0) target = $region89
    $region88: #{tpu_custom_call.1} parent=1 // pred_region
      %10736 = dma.done [#allocation4], 1024
    $region89: #{tpu_custom_call.1} parent=1 // pred_fallthru
      _
    // Predicated region
    $region90: #{tpu_custom_call.1} parent=1 // pred_check
      _
    $region91: #{tpu_custom_call.1} parent=1 // pred_check_branch
      %10738 = sbr.rel (0) target = $region93
    $region92: #{tpu_custom_call.1} parent=1 // pred_region
      %10739 = dma.done [#allocation7], 16384
    $region93: #{tpu_custom_call.1} parent=1 // pred_fallthru
      _
    // Predicated region
    $region94: #{tpu_custom_call.1} parent=1 // pred_check
      _
    $region95: #{tpu_custom_call.1} parent=1 // pred_check_branch
      %10741 = sbr.rel (0) target = $region97
    $region96: #{tpu_custom_call.1} parent=1 // pred_region
      _
    $region97: #{tpu_custom_call.1} parent=1 // pred_fallthru
      _
    %10742 = vsyncpa [#allocation3], 1
    %10743 = vsyncpa [#allocation4], 1
    %10744 = vsyncpa [#allocation7], 1

</llo_original>
